<compile_context>
chip_gen: v6e
topology: v6e:2x2x1
jax: 0.10.0
libtpu: 0.0.40
codegen_flags: <defaults>
</compile_context>

<pallas_src>
import functools
import math

import jax
import jax.numpy as jnp
from jax import lax
from jax.experimental import pallas as pl
from jax.experimental.pallas import tpu as pltpu


MXU_DTYPE = jnp.bfloat16      # MXU operand dtype; every accumulation is f32
ACT_DTYPE = jnp.bfloat16      # inter-kernel activation dtype (halves chained HBM traffic)
LN_EPS = 1e-5

_MIN_VMEM = 32 * 1024 * 1024
_MAX_VMEM = 100 * 1024 * 1024
_VMEM_LIMIT_CACHE = None


def _vmem_limit():
    """~75% of physical VMEM (96 MiB on v5e/v6e, 48 MiB on v7x), clamped to [32, 100] MiB."""
    global _VMEM_LIMIT_CACHE
    if _VMEM_LIMIT_CACHE is None:
        try:
            cap = int(pltpu.get_tpu_info().vmem_capacity_bytes)
        except Exception:
            cap = 64 * 1024 * 1024
        _VMEM_LIMIT_CACHE = int(min(max(cap * 3 // 4, _MIN_VMEM), _MAX_VMEM))
    return _VMEM_LIMIT_CACHE


def _cdiv(a, b):
    return -(-a // b)


def _round_up(a, m):
    return _cdiv(a, m) * m


def _largest_divisor_tile(n, cap, step):
    """Largest divisor of n that is a multiple of `step` and <= cap; n itself if none."""
    if n <= cap:
        return n
    t = (cap // step) * step
    while t >= step:
        if n % t == 0:
            return t
        t -= step
    return n  # TODO(synk): pad + mask ragged sequence tails instead of one oversized tile


def _pick_row_tile(m):
    """FFN row tile: large (amortize ~0.35us/step), >=2 grid steps when possible, mult of 8."""
    if m >= 1024:
        return 512
    return max(8, _round_up(_cdiv(m, 2), 8))


def _layernorm(h, g, b, eps=LN_EPS):
    mean = jnp.mean(h, axis=-1, keepdims=True)
    cen = h - mean
    var = jnp.mean(cen * cen, axis=-1, keepdims=True)
    return cen * lax.rsqrt(var + eps) * g + b


# ---------------------------------------------------------------------------
# Kernel 1/2: fused MHA (online softmax over K/V tiles) + out-proj + residual + LayerNorm
#   grid = (B, Tq_tiles, Tk_tiles)   dims = ("parallel", "parallel", "arbitrary")
# ---------------------------------------------------------------------------
def _mha_ln_kernel(x_ref, kv_ref, wq_ref, bq_ref, wk_ref, bk_ref, wv_ref, bv_ref,
                   wo_ref, bo_ref, g_ref, beta_ref, o_ref,
                   q_scr, k_scr, v_scr, m_scr, l_scr, acc_scr, attn_scr, *, nhead):
    kk = pl.program_id(2)
    nk = pl.num_programs(2)

    tq, E = x_ref.shape[1], x_ref.shape[2]
    tk = kv_ref.shape[1]
    dh = E // nhead
    scale = 1.0 / math.sqrt(dh)

    # --- init (once per (b, qi) tile): project q head-major, reset softmax state ------
    @pl.when(kk == 0)
    def _init():
        xb = x_ref[0].astype(MXU_DTYPE)                              # (tq, E) cast once
        for h in range(nhead):                                       # temporaries die at store
            qh = jnp.dot(xb, wq_ref[h], preferred_element_type=jnp.float32)
            q_scr[h] = ((qh + bq_ref[h]) * scale).astype(MXU_DTYPE)  # scale folded once
        m_scr[...] = jnp.full(m_scr.shape, -jnp.inf, m_scr.dtype)
        l_scr[...] = jnp.zeros(l_scr.shape, l_scr.dtype)
        acc_scr[...] = jnp.zeros(acc_scr.shape, acc_scr.dtype)

    # --- project the current K/V tile (only this tile ever lives in VMEM) -------------
    kvb = kv_ref[0].astype(MXU_DTYPE)                                # (tk, Ekv) cast once
    for h in range(nhead):
        k_scr[h] = (jnp.dot(kvb, wk_ref[h], preferred_element_type=jnp.float32)
                    + bk_ref[h]).astype(MXU_DTYPE)
        v_scr[h] = (jnp.dot(kvb, wv_ref[h], preferred_element_type=jnp.float32)
                    + bv_ref[h]).astype(MXU_DTYPE)

    # --- one online-softmax step, all heads batched on the MXU ------------------------
    s = lax.dot_general(q_scr[...], k_scr[...],                      # (H, tq, tk) f32
                        dimension_numbers=(((2,), (2,)), ((0,), (0,))),
                        preferred_element_type=jnp.float32)
    m_prev = m_scr[...]
    m_cur = jnp.maximum(m_prev, jnp.max(s, axis=-1, keepdims=True))
    alpha = jnp.exp(m_prev - m_cur)
    p = jnp.exp(s - m_cur)
    l_scr[...] = alpha * l_scr[...] + jnp.sum(p, axis=-1, keepdims=True)
    pv = lax.dot_general(p.astype(MXU_DTYPE), v_scr[...],            # (H, tq, dh) f32
                         dimension_numbers=(((2,), (1,)), ((0,), (0,))),
                         preferred_element_type=jnp.float32)
    acc_scr[...] = alpha * acc_scr[...] + pv
    m_scr[...] = m_cur

    # --- finalize: normalize, merge heads, single K=E out-proj, residual + LayerNorm --
    @pl.when(kk == nk - 1)
    def _finalize():
        inv_l = pl.reciprocal(l_scr[...], approx=True)               # EUP, (H, tq, 1)
        for h in range(nhead):                                       # static lane-offset stores
            attn_scr[:, h * dh:(h + 1) * dh] = (acc_scr[h] * inv_l[h]).astype(MXU_DTYPE)
        y = jnp.dot(attn_scr[...], wo_ref[...],                      # one K=E matmul
                    preferred_element_type=jnp.float32) + bo_ref[...]
        res = x_ref[0].astype(jnp.float32) + y
        o_ref[0] = _layernorm(res, g_ref[...], beta_ref[...]).astype(o_ref.dtype)


def fused_mha_layernorm(x, kv, p, gamma, beta, nhead, out_dtype):
    """LayerNorm(x + MHA(x, kv, kv)) with torch nn.MultiheadAttention(batch_first) semantics."""
    B, Tq, E = x.shape
    Tk, Ekv = kv.shape[1], kv.shape[2]
    assert E % nhead == 0
    dh = E // nhead
    H = nhead

    tq = _largest_divisor_tile(Tq, 256, 8)
    tk = _largest_divisor_tile(Tk, 512, 8)
    nq, nk = Tq // tq, Tk // tk

    def full(shape):
        n = len(shape)
        return pl.BlockSpec(shape, lambda b, qi, kk, _n=n: (0,) * _n)

    return pl.pallas_call(
        functools.partial(_mha_ln_kernel, nhead=nhead),
        out_shape=jax.ShapeDtypeStruct((B, Tq, E), out_dtype),
        grid=(B, nq, nk),
        in_specs=[
            pl.BlockSpec((1, tq, E), lambda b, qi, kk: (b, qi, 0)),    # x (query + residual)
            pl.BlockSpec((1, tk, Ekv), lambda b, qi, kk: (b, 0, kk)),  # kv tile (streamed)
            full((H, E, dh)), full((H, 1, dh)),                        # wq, bq (head-split)
            full((H, Ekv, dh)), full((H, 1, dh)),                      # wk, bk
            full((H, Ekv, dh)), full((H, 1, dh)),                      # wv, bv
            full((E, E)), full((1, E)),                                # wo, bo
            full((1, E)), full((1, E)),                                # LN gamma, beta
        ],
        out_specs=pl.BlockSpec((1, tq, E), lambda b, qi, kk: (b, qi, 0)),
        scratch_shapes=[
            pltpu.VMEM((H, tq, dh), MXU_DTYPE),     # q (head-major, persists across kk)
            pltpu.VMEM((H, tk, dh), MXU_DTYPE),     # k tile
            pltpu.VMEM((H, tk, dh), MXU_DTYPE),     # v tile
            pltpu.VMEM((H, tq, 1), jnp.float32),    # m (online softmax max)
            pltpu.VMEM((H, tq, 1), jnp.float32),    # l (online softmax denom)
            pltpu.VMEM((H, tq, dh), jnp.float32),   # acc
            pltpu.VMEM((tq, E), MXU_DTYPE),         # merged heads for the single out-proj
        ],
        compiler_params=pltpu.CompilerParams(
            dimension_semantics=("parallel", "parallel", "arbitrary"),
            vmem_limit_bytes=_vmem_limit()),
    )(x, kv,
      p["wq"], p["bq"], p["wk"], p["bk"], p["wv"], p["bv"],
      p["wo"], p["bo"], gamma, beta)


# ---------------------------------------------------------------------------
# Kernel 3: fused FFN (linear1 -> ReLU -> linear2, Dff-tiled) + residual + LayerNorm
#   grid = (row_tiles, Dff_tiles)   dims = ("parallel", "arbitrary")
# ---------------------------------------------------------------------------
def _ffn_ln_kernel(x_ref, w1_ref, b1_ref, w2_ref, b2_ref, g_ref, beta_ref, o_ref, acc_ref):
    j = pl.program_id(1)
    nj = pl.num_programs(1)

    @pl.when(j == 0)
    def _init():
        acc_ref[...] = jnp.zeros(acc_ref.shape, acc_ref.dtype)

    xb = x_ref[...].astype(MXU_DTYPE)                                  # (tm, E) cast once
    h = jnp.dot(xb, w1_ref[...], preferred_element_type=jnp.float32) + b1_ref[...]
    h = jnp.maximum(h, 0.0)                                            # ReLU, f32 VPU
    acc_ref[...] += jnp.dot(h.astype(MXU_DTYPE), w2_ref[...],
                            preferred_element_type=jnp.float32)        # hidden never leaves VMEM

    @pl.when(j == nj - 1)
    def _finalize():
        y = acc_ref[...] + b2_ref[...]
        res = x_ref[...].astype(jnp.float32) + y
        o_ref[...] = _layernorm(res, g_ref[...], beta_ref[...]).astype(o_ref.dtype)


def fused_ffn_layernorm(x, w1, b1, w2, b2, gamma, beta, out_dtype):
    B, T, E = x.shape
    Dff = w1.shape[1]
    M = B * T
    x2 = x.reshape(M, E)

    tm = _pick_row_tile(M)
    Mp = _round_up(M, tm)
    if Mp != M:                       # pad rows (LayerNorm of zero rows is finite; sliced off)
        x2 = jnp.pad(x2, ((0, Mp - M), (0, 0)))
    tdff = _largest_divisor_tile(Dff, 2048, 128)

    y = pl.pallas_call(
        _ffn_ln_kernel,
        out_shape=jax.ShapeDtypeStruct((Mp, E), out_dtype),
        grid=(Mp // tm, Dff // tdff),
        in_specs=[
            pl.BlockSpec((tm, E), lambda i, j: (i, 0)),      # x rows (+ residual)
            pl.BlockSpec((E, tdff), lambda i, j: (0, j)),    # w1 tile
            pl.BlockSpec((1, tdff), lambda i, j: (0, j)),    # b1 tile
            pl.BlockSpec((tdff, E), lambda i, j: (j, 0)),    # w2 tile
            pl.BlockSpec((1, E), lambda i, j: (0, 0)),       # b2
            pl.BlockSpec((1, E), lambda i, j: (0, 0)),       # LN gamma
            pl.BlockSpec((1, E), lambda i, j: (0, 0)),       # LN beta
        ],
        out_specs=pl.BlockSpec((tm, E), lambda i, j: (i, 0)),
        scratch_shapes=[pltpu.VMEM((tm, E), jnp.float32)],
        compiler_params=pltpu.CompilerParams(
            dimension_semantics=("parallel", "arbitrary"),
            vmem_limit_bytes=_vmem_limit()),
    )(x2, w1, b1, w2, b2, gamma, beta)

    if Mp != M:
        y = y[:M]
    return y.reshape(B, T, E)


# ---------------------------------------------------------------------------
# Full forward pass of CrossAttention (decoder layer), eval mode (no dropout)
# ---------------------------------------------------------------------------
def cross_attention_forward(tgt, memory, prep, *, nhead):
    # 1) self attention + residual + LayerNorm (bf16 activation handoff)
    t = fused_mha_layernorm(tgt, tgt, prep["self_attn"],
                            prep["norm1_g"], prep["norm1_b"], nhead, out_dtype=ACT_DTYPE)
    # 2) cross attention (k/v from memory, kdim=vdim=kv_dim) + residual + LayerNorm
    t = fused_mha_layernorm(t, memory, prep["cross_attn"],
                            prep["norm2_g"], prep["norm2_b"], nhead, out_dtype=ACT_DTYPE)
    # 3) feed-forward + residual + LayerNorm (final output in f32)
    t = fused_ffn_layernorm(t, prep["w1"], prep["b1"], prep["w2"], prep["b2"],
                            prep["norm3_g"], prep["norm3_b"], out_dtype=jnp.float32)
    return t


# ---------------------------------------------------------------------------
# One-time parameter repack: head-split projections, bf16 weights in HBM, 2-D biases
# ---------------------------------------------------------------------------
def prepare_params(params, nhead):
    def repack_attn(p):
        e_out = p["wq"].shape[1]
        dh = e_out // nhead

        def split_w(w):   # (E_in, E_out) -> (H, E_in, dh), bf16
            e_in = w.shape[0]
            return w.reshape(e_in, nhead, dh).transpose(1, 0, 2).astype(MXU_DTYPE)

        def split_b(b):   # (E_out,) -> (H, 1, dh), f32
            return b.reshape(nhead, 1, dh).astype(jnp.float32)

        return {
            "wq": split_w(p["wq"]), "bq": split_b(p["bq"]),
            "wk": split_w(p["wk"]), "bk": split_b(p["bk"]),
            "wv": split_w(p["wv"]), "bv": split_b(p["bv"]),
            "wo": p["wo"].astype(MXU_DTYPE), "bo": p["bo"].reshape(1, -1).astype(jnp.float32),
        }

    E = params["w2"].shape[1]
    Dff = params["w1"].shape[1]
    return {
        "self_attn": repack_attn(params["self_attn"]),
        "cross_attn": repack_attn(params["cross_attn"]),
        "w1": params["w1"].astype(MXU_DTYPE), "b1": params["b1"].reshape(1, Dff),
        "w2": params["w2"].astype(MXU_DTYPE), "b2": params["b2"].reshape(1, E),
        "norm1_g": params["norm1_g"].reshape(1, E), "norm1_b": params["norm1_b"].reshape(1, E),
        "norm2_g": params["norm2_g"].reshape(1, E), "norm2_b": params["norm2_b"].reshape(1, E),
        "norm3_g": params["norm3_g"].reshape(1, E), "norm3_b": params["norm3_b"].reshape(1, E),
    }


# ---------------------------------------------------------------------------
# Pure-JAX f32 reference (sanity check for the Pallas path)
# ---------------------------------------------------------------------------
def _mha_ref(query, key, value, p, nhead):
    B, Tq, E = query.shape
    Tk = key.shape[1]
    dh = E // nhead
    q = query @ p["wq"] + p["bq"]
    k = key @ p["wk"] + p["bk"]
    v = value @ p["wv"] + p["bv"]
    q = q.reshape(B, Tq, nhead, dh).transpose(0, 2, 1, 3)
    k = k.reshape(B, Tk, nhead, dh).transpose(0, 2, 1, 3)
    v = v.reshape(B, Tk, nhead, dh).transpose(0, 2, 1, 3)
    s = jnp.einsum("bhqd,bhkd->bhqk", q, k) / math.sqrt(dh)
    a = jax.nn.softmax(s, axis=-1)
    o = jnp.einsum("bhqk,bhkd->bhqd", a, v).transpose(0, 2, 1, 3).reshape(B, Tq, E)
    return o @ p["wo"] + p["bo"]


def _ln_ref(x, g, b, eps=LN_EPS):
    m = jnp.mean(x, axis=-1, keepdims=True)
    v = jnp.mean((x - m) ** 2, axis=-1, keepdims=True)
    return (x - m) * lax.rsqrt(v + eps) * g + b


def cross_attention_ref(tgt, memory, params, nhead):
    tgt2 = _mha_ref(tgt, tgt, tgt, params["self_attn"], nhead)
    tgt = _ln_ref(tgt + tgt2, params["norm1_g"], params["norm1_b"])
    tgt2 = _mha_ref(tgt, memory, memory, params["cross_attn"], nhead)
    tgt = _ln_ref(tgt + tgt2, params["norm2_g"], params["norm2_b"])
    h = jnp.maximum(tgt @ params["w1"] + params["b1"], 0.0)
    tgt2 = h @ params["w2"] + params["b2"]
    tgt = _ln_ref(tgt + tgt2, params["norm3_g"], params["norm3_b"])
    return tgt


# ---------------------------------------------------------------------------
# Deterministic parameter initialization (shapes from the module __init__)
# ---------------------------------------------------------------------------
def init_params(key, d_model, nhead, kv_dim, dim_feedforward):
    ks = jax.random.split(key, 16)
    s = 0.02

    def w(k, shape):
        return jax.random.normal(k, shape, jnp.float32) * s

    return {
        "self_attn": {
            "wq": w(ks[0], (d_model, d_model)), "bq": jnp.zeros((d_model,), jnp.float32),
            "wk": w(ks[1], (d_model, d_model)), "bk": jnp.zeros((d_model,), jnp.float32),
            "wv": w(ks[2], (d_model, d_model)), "bv": jnp.zeros((d_model,), jnp.float32),
            "wo": w(ks[3], (d_model, d_model)), "bo": jnp.zeros((d_model,), jnp.float32),
        },
        "cross_attn": {
            "wq": w(ks[4], (d_model, d_model)), "bq": jnp.zeros((d_model,), jnp.float32),
            "wk": w(ks[5], (kv_dim, d_model)),  "bk": jnp.zeros((d_model,), jnp.float32),
            "wv": w(ks[6], (kv_dim, d_model)),  "bv": jnp.zeros((d_model,), jnp.float32),
            "wo": w(ks[7], (d_model, d_model)), "bo": jnp.zeros((d_model,), jnp.float32),
        },
        "w1": w(ks[8], (d_model, dim_feedforward)),
        "b1": jnp.zeros((dim_feedforward,), jnp.float32),
        "w2": w(ks[9], (dim_feedforward, d_model)),
        "b2": jnp.zeros((d_model,), jnp.float32),
        "norm1_g": jnp.ones((d_model,), jnp.float32), "norm1_b": jnp.zeros((d_model,), jnp.float32),
        "norm2_g": jnp.ones((d_model,), jnp.float32), "norm2_b": jnp.zeros((d_model,), jnp.float32),
        "norm3_g": jnp.ones((d_model,), jnp.float32), "norm3_b": jnp.zeros((d_model,), jnp.float32),
    }


# ---------------------------------------------------------------------------
if __name__ == "__main__":
    d_model = 32
    nhead = 4
    kv_dim = 64
    dim_feedforward = 128
    B, Tt, Tm = 2, 8, 16

    key = jax.random.PRNGKey(0)
    k_tgt, k_mem, k_par = jax.random.split(key, 3)
    tgt = jax.random.normal(k_tgt, (B, Tt, d_model), jnp.float32)
    memory = jax.random.normal(k_mem, (B, Tm, kv_dim), jnp.float32)
    params = init_params(k_par, d_model, nhead, kv_dim, dim_feedforward)

    # One-time weight repack (bf16 in HBM, head-split q/k/v projections).
    prep = prepare_params(params, nhead)

    fwd = jax.jit(functools.partial(cross_attention_forward, nhead=nhead))
    out = jax.block_until_ready(fwd(tgt, memory, prep))

    ref = cross_attention_ref(tgt, memory, params, nhead)
    assert out.shape == (B, Tt, d_model)
    # Tolerance accounts for bf16 MXU operands, bf16 inter-kernel activations, and the EUP
    # approximate reciprocal vs the pure-f32 reference; structural bugs are O(0.1-1).
    err = jnp.max(jnp.abs(out - ref))
    assert jnp.allclose(out, ref, atol=3e-2, rtol=3e-2), f"Pallas mismatch, max abs err {err}"

    print("KERNEL_OK")
</pallas_src>

<mosaic_0001>
module attributes {stable_mosaic.version = 11 : i64} {
  func.func @_mha_ln_kernel(%arg0: i32, %arg1: i32, %arg2: i32, %arg3: memref<1x8x32xbf16, #tpu.memory_space<vmem>>, %arg4: memref<1x16x64xf32, #tpu.memory_space<vmem>>, %arg5: memref<4x32x8xbf16, #tpu.memory_space<vmem>>, %arg6: memref<4x1x8xf32, #tpu.memory_space<vmem>>, %arg7: memref<4x64x8xbf16, #tpu.memory_space<vmem>>, %arg8: memref<4x1x8xf32, #tpu.memory_space<vmem>>, %arg9: memref<4x64x8xbf16, #tpu.memory_space<vmem>>, %arg10: memref<4x1x8xf32, #tpu.memory_space<vmem>>, %arg11: memref<32x32xbf16, #tpu.memory_space<vmem>>, %arg12: memref<1x32xf32, #tpu.memory_space<vmem>>, %arg13: memref<1x32xf32, #tpu.memory_space<vmem>>, %arg14: memref<1x32xf32, #tpu.memory_space<vmem>>, %arg15: memref<1x8x32xbf16, #tpu.memory_space<vmem>>, %arg16: memref<4x8x8xbf16, #tpu.memory_space<vmem>>, %arg17: memref<4x16x8xbf16, #tpu.memory_space<vmem>>, %arg18: memref<4x16x8xbf16, #tpu.memory_space<vmem>>, %arg19: memref<4x8x1xf32, #tpu.memory_space<vmem>>, %arg20: memref<4x8x1xf32, #tpu.memory_space<vmem>>, %arg21: memref<4x8x8xf32, #tpu.memory_space<vmem>>, %arg22: memref<8x32xbf16, #tpu.memory_space<vmem>>) attributes {dimension_semantics = [#tpu.dimension_semantics<parallel>, #tpu.dimension_semantics<parallel>, #tpu.dimension_semantics<arbitrary>], iteration_bounds = array<i64: 2, 1, 1>, scalar_prefetch = 0 : i64, scratch_operands = 7 : i64, tpu.core_type = #tpu.core_type<tc>, window_params = [{transform_indices = @transform_0, window_bounds = array<i64: 1, 8, 32>}, {transform_indices = @transform_1, window_bounds = array<i64: 1, 16, 64>}, {pipeline_mode = #tpu.pipeline_mode<synchronous>, transform_indices = @transform_2, window_bounds = array<i64: 4, 32, 8>}, {pipeline_mode = #tpu.pipeline_mode<synchronous>, transform_indices = @transform_3, window_bounds = array<i64: 4, 1, 8>}, {pipeline_mode = #tpu.pipeline_mode<synchronous>, transform_indices = @transform_4, window_bounds = array<i64: 4, 64, 8>}, {pipeline_mode = #tpu.pipeline_mode<synchronous>, transform_indices = @transform_5, window_bounds = array<i64: 4, 1, 8>}, {pipeline_mode = #tpu.pipeline_mode<synchronous>, transform_indices = @transform_6, window_bounds = array<i64: 4, 64, 8>}, {pipeline_mode = #tpu.pipeline_mode<synchronous>, transform_indices = @transform_7, window_bounds = array<i64: 4, 1, 8>}, {pipeline_mode = #tpu.pipeline_mode<synchronous>, transform_indices = @transform_8, window_bounds = array<i64: 32, 32>}, {pipeline_mode = #tpu.pipeline_mode<synchronous>, transform_indices = @transform_9, window_bounds = array<i64: 1, 32>}, {pipeline_mode = #tpu.pipeline_mode<synchronous>, transform_indices = @transform_10, window_bounds = array<i64: 1, 32>}, {pipeline_mode = #tpu.pipeline_mode<synchronous>, transform_indices = @transform_11, window_bounds = array<i64: 1, 32>}, {transform_indices = @transform_12, window_bounds = array<i64: 1, 8, 32>}]} {
    %c0_i32 = arith.constant 0 : i32
    %0 = arith.cmpi eq, %arg2, %c0_i32 : i32
    %1 = arith.extui %0 : i1 to i32
    %c0_i32_0 = arith.constant 0 : i32
    %2 = arith.cmpi ne, %1, %c0_i32_0 : i32
    scf.if %2 {
      %c0_112 = arith.constant 0 : index
      %c0_113 = arith.constant 0 : index
      %c0_114 = arith.constant 0 : index
      %124 = vector.load %arg3[%c0_112, %c0_113, %c0_114] : memref<1x8x32xbf16, #tpu.memory_space<vmem>>, vector<1x8x32xbf16>
      %125 = vector.shape_cast %124 : vector<1x8x32xbf16> to vector<8x32xbf16>
      %c0_115 = arith.constant 0 : index
      %c0_116 = arith.constant 0 : index
      %c0_117 = arith.constant 0 : index
      %126 = vector.load %arg5[%c0_115, %c0_116, %c0_117] : memref<4x32x8xbf16, #tpu.memory_space<vmem>>, vector<1x32x8xbf16>
      %127 = vector.shape_cast %126 : vector<1x32x8xbf16> to vector<32x8xbf16>
      %cst_118 = arith.constant dense<0.000000e+00> : vector<8x8xf32>
      %128 = tpu.matmul %125, %127, %cst_118 {dimension_numbers = #tpu.dot_dimension_numbers<[1], [0], [0], [1], [0, 0, 1, 1], [], []>} : vector<8x32xbf16>, vector<32x8xbf16>, vector<8x8xf32> -> vector<8x8xf32>
      %c0_119 = arith.constant 0 : index
      %c0_120 = arith.constant 0 : index
      %c0_121 = arith.constant 0 : index
      %129 = vector.load %arg6[%c0_119, %c0_120, %c0_121] : memref<4x1x8xf32, #tpu.memory_space<vmem>>, vector<1x1x8xf32>
      %130 = vector.shape_cast %129 : vector<1x1x8xf32> to vector<1x8xf32>
      %131 = vector.broadcast %130 : vector<1x8xf32> to vector<8x8xf32>
      %132 = arith.addf %128, %131 : vector<8x8xf32>
      %cst_122 = arith.constant 0.353553385 : f32
      %133 = vector.broadcast %cst_122 : f32 to vector<8x8xf32>
      %134 = arith.mulf %132, %133 : vector<8x8xf32>
      %135 = arith.truncf %134 : vector<8x8xf32> to vector<8x8xbf16>
      %c0_123 = arith.constant 0 : index
      %c0_124 = arith.constant 0 : index
      %c0_125 = arith.constant 0 : index
      %136 = vector.load %arg16[%c0_123, %c0_124, %c0_125] : memref<4x8x8xbf16, #tpu.memory_space<vmem>>, vector<1x8x8xbf16>
      %137 = vector.shape_cast %136 : vector<1x8x8xbf16> to vector<8x8xbf16>
      %138 = vector.shape_cast %135 : vector<8x8xbf16> to vector<1x8x8xbf16>
      tpu.vector_store %arg16[%c0_123, %c0_124, %c0_125], %138 {strides = array<i32>} : memref<4x8x8xbf16, #tpu.memory_space<vmem>>, vector<1x8x8xbf16>,
      %c1_126 = arith.constant 1 : index
      %c0_127 = arith.constant 0 : index
      %c0_128 = arith.constant 0 : index
      %139 = vector.load %arg5[%c1_126, %c0_127, %c0_128] : memref<4x32x8xbf16, #tpu.memory_space<vmem>>, vector<1x32x8xbf16>
      %140 = vector.shape_cast %139 : vector<1x32x8xbf16> to vector<32x8xbf16>
      %cst_129 = arith.constant dense<0.000000e+00> : vector<8x8xf32>
      %141 = tpu.matmul %125, %140, %cst_129 {dimension_numbers = #tpu.dot_dimension_numbers<[1], [0], [0], [1], [0, 0, 1, 1], [], []>} : vector<8x32xbf16>, vector<32x8xbf16>, vector<8x8xf32> -> vector<8x8xf32>
      %c1_130 = arith.constant 1 : index
      %c0_131 = arith.constant 0 : index
      %c0_132 = arith.constant 0 : index
      %142 = vector.load %arg6[%c1_130, %c0_131, %c0_132] : memref<4x1x8xf32, #tpu.memory_space<vmem>>, vector<1x1x8xf32>
      %143 = vector.shape_cast %142 : vector<1x1x8xf32> to vector<1x8xf32>
      %144 = vector.broadcast %143 : vector<1x8xf32> to vector<8x8xf32>
      %145 = arith.addf %141, %144 : vector<8x8xf32>
      %cst_133 = arith.constant 0.353553385 : f32
      %146 = vector.broadcast %cst_133 : f32 to vector<8x8xf32>
      %147 = arith.mulf %145, %146 : vector<8x8xf32>
      %148 = arith.truncf %147 : vector<8x8xf32> to vector<8x8xbf16>
      %c1_134 = arith.constant 1 : index
      %c0_135 = arith.constant 0 : index
      %c0_136 = arith.constant 0 : index
      %149 = vector.load %arg16[%c1_134, %c0_135, %c0_136] : memref<4x8x8xbf16, #tpu.memory_space<vmem>>, vector<1x8x8xbf16>
      %150 = vector.shape_cast %149 : vector<1x8x8xbf16> to vector<8x8xbf16>
      %151 = vector.shape_cast %148 : vector<8x8xbf16> to vector<1x8x8xbf16>
      tpu.vector_store %arg16[%c1_134, %c0_135, %c0_136], %151 {strides = array<i32>} : memref<4x8x8xbf16, #tpu.memory_space<vmem>>, vector<1x8x8xbf16>,
      %c2_137 = arith.constant 2 : index
      %c0_138 = arith.constant 0 : index
      %c0_139 = arith.constant 0 : index
      %152 = vector.load %arg5[%c2_137, %c0_138, %c0_139] : memref<4x32x8xbf16, #tpu.memory_space<vmem>>, vector<1x32x8xbf16>
      %153 = vector.shape_cast %152 : vector<1x32x8xbf16> to vector<32x8xbf16>
      %cst_140 = arith.constant dense<0.000000e+00> : vector<8x8xf32>
      %154 = tpu.matmul %125, %153, %cst_140 {dimension_numbers = #tpu.dot_dimension_numbers<[1], [0], [0], [1], [0, 0, 1, 1], [], []>} : vector<8x32xbf16>, vector<32x8xbf16>, vector<8x8xf32> -> vector<8x8xf32>
      %c2_141 = arith.constant 2 : index
      %c0_142 = arith.constant 0 : index
      %c0_143 = arith.constant 0 : index
      %155 = vector.load %arg6[%c2_141, %c0_142, %c0_143] : memref<4x1x8xf32, #tpu.memory_space<vmem>>, vector<1x1x8xf32>
      %156 = vector.shape_cast %155 : vector<1x1x8xf32> to vector<1x8xf32>
      %157 = vector.broadcast %156 : vector<1x8xf32> to vector<8x8xf32>
      %158 = arith.addf %154, %157 : vector<8x8xf32>
      %cst_144 = arith.constant 0.353553385 : f32
      %159 = vector.broadcast %cst_144 : f32 to vector<8x8xf32>
      %160 = arith.mulf %158, %159 : vector<8x8xf32>
      %161 = arith.truncf %160 : vector<8x8xf32> to vector<8x8xbf16>
      %c2_145 = arith.constant 2 : index
      %c0_146 = arith.constant 0 : index
      %c0_147 = arith.constant 0 : index
      %162 = vector.load %arg16[%c2_145, %c0_146, %c0_147] : memref<4x8x8xbf16, #tpu.memory_space<vmem>>, vector<1x8x8xbf16>
      %163 = vector.shape_cast %162 : vector<1x8x8xbf16> to vector<8x8xbf16>
      %164 = vector.shape_cast %161 : vector<8x8xbf16> to vector<1x8x8xbf16>
      tpu.vector_store %arg16[%c2_145, %c0_146, %c0_147], %164 {strides = array<i32>} : memref<4x8x8xbf16, #tpu.memory_space<vmem>>, vector<1x8x8xbf16>,
      %c3_148 = arith.constant 3 : index
      %c0_149 = arith.constant 0 : index
      %c0_150 = arith.constant 0 : index
      %165 = vector.load %arg5[%c3_148, %c0_149, %c0_150] : memref<4x32x8xbf16, #tpu.memory_space<vmem>>, vector<1x32x8xbf16>
      %166 = vector.shape_cast %165 : vector<1x32x8xbf16> to vector<32x8xbf16>
      %cst_151 = arith.constant dense<0.000000e+00> : vector<8x8xf32>
      %167 = tpu.matmul %125, %166, %cst_151 {dimension_numbers = #tpu.dot_dimension_numbers<[1], [0], [0], [1], [0, 0, 1, 1], [], []>} : vector<8x32xbf16>, vector<32x8xbf16>, vector<8x8xf32> -> vector<8x8xf32>
      %c3_152 = arith.constant 3 : index
      %c0_153 = arith.constant 0 : index
      %c0_154 = arith.constant 0 : index
      %168 = vector.load %arg6[%c3_152, %c0_153, %c0_154] : memref<4x1x8xf32, #tpu.memory_space<vmem>>, vector<1x1x8xf32>
      %169 = vector.shape_cast %168 : vector<1x1x8xf32> to vector<1x8xf32>
      %170 = vector.broadcast %169 : vector<1x8xf32> to vector<8x8xf32>
      %171 = arith.addf %167, %170 : vector<8x8xf32>
      %cst_155 = arith.constant 0.353553385 : f32
      %172 = vector.broadcast %cst_155 : f32 to vector<8x8xf32>
      %173 = arith.mulf %171, %172 : vector<8x8xf32>
      %174 = arith.truncf %173 : vector<8x8xf32> to vector<8x8xbf16>
      %c3_156 = arith.constant 3 : index
      %c0_157 = arith.constant 0 : index
      %c0_158 = arith.constant 0 : index
      %175 = vector.load %arg16[%c3_156, %c0_157, %c0_158] : memref<4x8x8xbf16, #tpu.memory_space<vmem>>, vector<1x8x8xbf16>
      %176 = vector.shape_cast %175 : vector<1x8x8xbf16> to vector<8x8xbf16>
      %177 = vector.shape_cast %174 : vector<8x8xbf16> to vector<1x8x8xbf16>
      tpu.vector_store %arg16[%c3_156, %c0_157, %c0_158], %177 {strides = array<i32>} : memref<4x8x8xbf16, #tpu.memory_space<vmem>>, vector<1x8x8xbf16>,
      %cst_159 = arith.constant 0xFF800000 : f32
      %178 = vector.broadcast %cst_159 : f32 to vector<4x8x1xf32>
      %c0_160 = arith.constant 0 : index
      %c0_161 = arith.constant 0 : index
      %c0_162 = arith.constant 0 : index
      %179 = vector.load %arg19[%c0_160, %c0_161, %c0_162] : memref<4x8x1xf32, #tpu.memory_space<vmem>>, vector<4x8x1xf32>
      tpu.vector_store %arg19[%c0_160, %c0_161, %c0_162], %178 {strides = array<i32>} : memref<4x8x1xf32, #tpu.memory_space<vmem>>, vector<4x8x1xf32>,
      %cst_163 = arith.constant 0.000000e+00 : f32
      %180 = vector.broadcast %cst_163 : f32 to vector<4x8x1xf32>
      %c0_164 = arith.constant 0 : index
      %c0_165 = arith.constant 0 : index
      %c0_166 = arith.constant 0 : index
      %181 = vector.load %arg20[%c0_164, %c0_165, %c0_166] : memref<4x8x1xf32, #tpu.memory_space<vmem>>, vector<4x8x1xf32>
      tpu.vector_store %arg20[%c0_164, %c0_165, %c0_166], %180 {strides = array<i32>} : memref<4x8x1xf32, #tpu.memory_space<vmem>>, vector<4x8x1xf32>,
      %cst_167 = arith.constant 0.000000e+00 : f32
      %182 = vector.broadcast %cst_167 : f32 to vector<4x8x8xf32>
      %c0_168 = arith.constant 0 : index
      %c0_169 = arith.constant 0 : index
      %c0_170 = arith.constant 0 : index
      %183 = vector.load %arg21[%c0_168, %c0_169, %c0_170] : memref<4x8x8xf32, #tpu.memory_space<vmem>>, vector<4x8x8xf32>
      tpu.vector_store %arg21[%c0_168, %c0_169, %c0_170], %182 {strides = array<i32>} : memref<4x8x8xf32, #tpu.memory_space<vmem>>, vector<4x8x8xf32>,
    } else {
    }
    %c0 = arith.constant 0 : index
    %c0_1 = arith.constant 0 : index
    %c0_2 = arith.constant 0 : index
    %3 = vector.load %arg4[%c0, %c0_1, %c0_2] : memref<1x16x64xf32, #tpu.memory_space<vmem>>, vector<1x16x64xf32>
    %4 = vector.shape_cast %3 : vector<1x16x64xf32> to vector<16x64xf32>
    %5 = arith.truncf %4 : vector<16x64xf32> to vector<16x64xbf16>
    %c0_3 = arith.constant 0 : index
    %c0_4 = arith.constant 0 : index
    %c0_5 = arith.constant 0 : index
    %6 = vector.load %arg7[%c0_3, %c0_4, %c0_5] : memref<4x64x8xbf16, #tpu.memory_space<vmem>>, vector<1x64x8xbf16>
    %7 = vector.shape_cast %6 : vector<1x64x8xbf16> to vector<64x8xbf16>
    %cst = arith.constant dense<0.000000e+00> : vector<16x8xf32>
    %8 = tpu.matmul %5, %7, %cst {dimension_numbers = #tpu.dot_dimension_numbers<[1], [0], [0], [1], [0, 0, 1, 1], [], []>} : vector<16x64xbf16>, vector<64x8xbf16>, vector<16x8xf32> -> vector<16x8xf32>
    %c0_6 = arith.constant 0 : index
    %c0_7 = arith.constant 0 : index
    %c0_8 = arith.constant 0 : index
    %9 = vector.load %arg8[%c0_6, %c0_7, %c0_8] : memref<4x1x8xf32, #tpu.memory_space<vmem>>, vector<1x1x8xf32>
    %10 = vector.shape_cast %9 : vector<1x1x8xf32> to vector<1x8xf32>
    %11 = vector.broadcast %10 : vector<1x8xf32> to vector<16x8xf32>
    %12 = arith.addf %8, %11 : vector<16x8xf32>
    %13 = arith.truncf %12 : vector<16x8xf32> to vector<16x8xbf16>
    %c0_9 = arith.constant 0 : index
    %c0_10 = arith.constant 0 : index
    %c0_11 = arith.constant 0 : index
    %14 = vector.load %arg17[%c0_9, %c0_10, %c0_11] : memref<4x16x8xbf16, #tpu.memory_space<vmem>>, vector<1x16x8xbf16>
    %15 = vector.shape_cast %14 : vector<1x16x8xbf16> to vector<16x8xbf16>
    %16 = vector.shape_cast %13 : vector<16x8xbf16> to vector<1x16x8xbf16>
    tpu.vector_store %arg17[%c0_9, %c0_10, %c0_11], %16 {strides = array<i32>} : memref<4x16x8xbf16, #tpu.memory_space<vmem>>, vector<1x16x8xbf16>,
    %c0_12 = arith.constant 0 : index
    %c0_13 = arith.constant 0 : index
    %c0_14 = arith.constant 0 : index
    %17 = vector.load %arg9[%c0_12, %c0_13, %c0_14] : memref<4x64x8xbf16, #tpu.memory_space<vmem>>, vector<1x64x8xbf16>
    %18 = vector.shape_cast %17 : vector<1x64x8xbf16> to vector<64x8xbf16>
    %cst_15 = arith.constant dense<0.000000e+00> : vector<16x8xf32>
    %19 = tpu.matmul %5, %18, %cst_15 {dimension_numbers = #tpu.dot_dimension_numbers<[1], [0], [0], [1], [0, 0, 1, 1], [], []>} : vector<16x64xbf16>, vector<64x8xbf16>, vector<16x8xf32> -> vector<16x8xf32>
    %c0_16 = arith.constant 0 : index
    %c0_17 = arith.constant 0 : index
    %c0_18 = arith.constant 0 : index
    %20 = vector.load %arg10[%c0_16, %c0_17, %c0_18] : memref<4x1x8xf32, #tpu.memory_space<vmem>>, vector<1x1x8xf32>
    %21 = vector.shape_cast %20 : vector<1x1x8xf32> to vector<1x8xf32>
    %22 = vector.broadcast %21 : vector<1x8xf32> to vector<16x8xf32>
    %23 = arith.addf %19, %22 : vector<16x8xf32>
    %24 = arith.truncf %23 : vector<16x8xf32> to vector<16x8xbf16>
    %c0_19 = arith.constant 0 : index
    %c0_20 = arith.constant 0 : index
    %c0_21 = arith.constant 0 : index
    %25 = vector.load %arg18[%c0_19, %c0_20, %c0_21] : memref<4x16x8xbf16, #tpu.memory_space<vmem>>, vector<1x16x8xbf16>
    %26 = vector.shape_cast %25 : vector<1x16x8xbf16> to vector<16x8xbf16>
    %27 = vector.shape_cast %24 : vector<16x8xbf16> to vector<1x16x8xbf16>
    tpu.vector_store %arg18[%c0_19, %c0_20, %c0_21], %27 {strides = array<i32>} : memref<4x16x8xbf16, #tpu.memory_space<vmem>>, vector<1x16x8xbf16>,
    %c1 = arith.constant 1 : index
    %c0_22 = arith.constant 0 : index
    %c0_23 = arith.constant 0 : index
    %28 = vector.load %arg7[%c1, %c0_22, %c0_23] : memref<4x64x8xbf16, #tpu.memory_space<vmem>>, vector<1x64x8xbf16>
    %29 = vector.shape_cast %28 : vector<1x64x8xbf16> to vector<64x8xbf16>
    %cst_24 = arith.constant dense<0.000000e+00> : vector<16x8xf32>
    %30 = tpu.matmul %5, %29, %cst_24 {dimension_numbers = #tpu.dot_dimension_numbers<[1], [0], [0], [1], [0, 0, 1, 1], [], []>} : vector<16x64xbf16>, vector<64x8xbf16>, vector<16x8xf32> -> vector<16x8xf32>
    %c1_25 = arith.constant 1 : index
    %c0_26 = arith.constant 0 : index
    %c0_27 = arith.constant 0 : index
    %31 = vector.load %arg8[%c1_25, %c0_26, %c0_27] : memref<4x1x8xf32, #tpu.memory_space<vmem>>, vector<1x1x8xf32>
    %32 = vector.shape_cast %31 : vector<1x1x8xf32> to vector<1x8xf32>
    %33 = vector.broadcast %32 : vector<1x8xf32> to vector<16x8xf32>
    %34 = arith.addf %30, %33 : vector<16x8xf32>
    %35 = arith.truncf %34 : vector<16x8xf32> to vector<16x8xbf16>
    %c1_28 = arith.constant 1 : index
    %c0_29 = arith.constant 0 : index
    %c0_30 = arith.constant 0 : index
    %36 = vector.load %arg17[%c1_28, %c0_29, %c0_30] : memref<4x16x8xbf16, #tpu.memory_space<vmem>>, vector<1x16x8xbf16>
    %37 = vector.shape_cast %36 : vector<1x16x8xbf16> to vector<16x8xbf16>
    %38 = vector.shape_cast %35 : vector<16x8xbf16> to vector<1x16x8xbf16>
    tpu.vector_store %arg17[%c1_28, %c0_29, %c0_30], %38 {strides = array<i32>} : memref<4x16x8xbf16, #tpu.memory_space<vmem>>, vector<1x16x8xbf16>,
    %c1_31 = arith.constant 1 : index
    %c0_32 = arith.constant 0 : index
    %c0_33 = arith.constant 0 : index
    %39 = vector.load %arg9[%c1_31, %c0_32, %c0_33] : memref<4x64x8xbf16, #tpu.memory_space<vmem>>, vector<1x64x8xbf16>
    %40 = vector.shape_cast %39 : vector<1x64x8xbf16> to vector<64x8xbf16>
    %cst_34 = arith.constant dense<0.000000e+00> : vector<16x8xf32>
    %41 = tpu.matmul %5, %40, %cst_34 {dimension_numbers = #tpu.dot_dimension_numbers<[1], [0], [0], [1], [0, 0, 1, 1], [], []>} : vector<16x64xbf16>, vector<64x8xbf16>, vector<16x8xf32> -> vector<16x8xf32>
    %c1_35 = arith.constant 1 : index
    %c0_36 = arith.constant 0 : index
    %c0_37 = arith.constant 0 : index
    %42 = vector.load %arg10[%c1_35, %c0_36, %c0_37] : memref<4x1x8xf32, #tpu.memory_space<vmem>>, vector<1x1x8xf32>
    %43 = vector.shape_cast %42 : vector<1x1x8xf32> to vector<1x8xf32>
    %44 = vector.broadcast %43 : vector<1x8xf32> to vector<16x8xf32>
    %45 = arith.addf %41, %44 : vector<16x8xf32>
    %46 = arith.truncf %45 : vector<16x8xf32> to vector<16x8xbf16>
    %c1_38 = arith.constant 1 : index
    %c0_39 = arith.constant 0 : index
    %c0_40 = arith.constant 0 : index
    %47 = vector.load %arg18[%c1_38, %c0_39, %c0_40] : memref<4x16x8xbf16, #tpu.memory_space<vmem>>, vector<1x16x8xbf16>
    %48 = vector.shape_cast %47 : vector<1x16x8xbf16> to vector<16x8xbf16>
    %49 = vector.shape_cast %46 : vector<16x8xbf16> to vector<1x16x8xbf16>
    tpu.vector_store %arg18[%c1_38, %c0_39, %c0_40], %49 {strides = array<i32>} : memref<4x16x8xbf16, #tpu.memory_space<vmem>>, vector<1x16x8xbf16>,
    %c2 = arith.constant 2 : index
    %c0_41 = arith.constant 0 : index
    %c0_42 = arith.constant 0 : index
    %50 = vector.load %arg7[%c2, %c0_41, %c0_42] : memref<4x64x8xbf16, #tpu.memory_space<vmem>>, vector<1x64x8xbf16>
    %51 = vector.shape_cast %50 : vector<1x64x8xbf16> to vector<64x8xbf16>
    %cst_43 = arith.constant dense<0.000000e+00> : vector<16x8xf32>
    %52 = tpu.matmul %5, %51, %cst_43 {dimension_numbers = #tpu.dot_dimension_numbers<[1], [0], [0], [1], [0, 0, 1, 1], [], []>} : vector<16x64xbf16>, vector<64x8xbf16>, vector<16x8xf32> -> vector<16x8xf32>
    %c2_44 = arith.constant 2 : index
    %c0_45 = arith.constant 0 : index
    %c0_46 = arith.constant 0 : index
    %53 = vector.load %arg8[%c2_44, %c0_45, %c0_46] : memref<4x1x8xf32, #tpu.memory_space<vmem>>, vector<1x1x8xf32>
    %54 = vector.shape_cast %53 : vector<1x1x8xf32> to vector<1x8xf32>
    %55 = vector.broadcast %54 : vector<1x8xf32> to vector<16x8xf32>
    %56 = arith.addf %52, %55 : vector<16x8xf32>
    %57 = arith.truncf %56 : vector<16x8xf32> to vector<16x8xbf16>
    %c2_47 = arith.constant 2 : index
    %c0_48 = arith.constant 0 : index
    %c0_49 = arith.constant 0 : index
    %58 = vector.load %arg17[%c2_47, %c0_48, %c0_49] : memref<4x16x8xbf16, #tpu.memory_space<vmem>>, vector<1x16x8xbf16>
    %59 = vector.shape_cast %58 : vector<1x16x8xbf16> to vector<16x8xbf16>
    %60 = vector.shape_cast %57 : vector<16x8xbf16> to vector<1x16x8xbf16>
    tpu.vector_store %arg17[%c2_47, %c0_48, %c0_49], %60 {strides = array<i32>} : memref<4x16x8xbf16, #tpu.memory_space<vmem>>, vector<1x16x8xbf16>,
    %c2_50 = arith.constant 2 : index
    %c0_51 = arith.constant 0 : index
    %c0_52 = arith.constant 0 : index
    %61 = vector.load %arg9[%c2_50, %c0_51, %c0_52] : memref<4x64x8xbf16, #tpu.memory_space<vmem>>, vector<1x64x8xbf16>
    %62 = vector.shape_cast %61 : vector<1x64x8xbf16> to vector<64x8xbf16>
    %cst_53 = arith.constant dense<0.000000e+00> : vector<16x8xf32>
    %63 = tpu.matmul %5, %62, %cst_53 {dimension_numbers = #tpu.dot_dimension_numbers<[1], [0], [0], [1], [0, 0, 1, 1], [], []>} : vector<16x64xbf16>, vector<64x8xbf16>, vector<16x8xf32> -> vector<16x8xf32>
    %c2_54 = arith.constant 2 : index
    %c0_55 = arith.constant 0 : index
    %c0_56 = arith.constant 0 : index
    %64 = vector.load %arg10[%c2_54, %c0_55, %c0_56] : memref<4x1x8xf32, #tpu.memory_space<vmem>>, vector<1x1x8xf32>
    %65 = vector.shape_cast %64 : vector<1x1x8xf32> to vector<1x8xf32>
    %66 = vector.broadcast %65 : vector<1x8xf32> to vector<16x8xf32>
    %67 = arith.addf %63, %66 : vector<16x8xf32>
    %68 = arith.truncf %67 : vector<16x8xf32> to vector<16x8xbf16>
    %c2_57 = arith.constant 2 : index
    %c0_58 = arith.constant 0 : index
    %c0_59 = arith.constant 0 : index
    %69 = vector.load %arg18[%c2_57, %c0_58, %c0_59] : memref<4x16x8xbf16, #tpu.memory_space<vmem>>, vector<1x16x8xbf16>
    %70 = vector.shape_cast %69 : vector<1x16x8xbf16> to vector<16x8xbf16>
    %71 = vector.shape_cast %68 : vector<16x8xbf16> to vector<1x16x8xbf16>
    tpu.vector_store %arg18[%c2_57, %c0_58, %c0_59], %71 {strides = array<i32>} : memref<4x16x8xbf16, #tpu.memory_space<vmem>>, vector<1x16x8xbf16>,
    %c3 = arith.constant 3 : index
    %c0_60 = arith.constant 0 : index
    %c0_61 = arith.constant 0 : index
    %72 = vector.load %arg7[%c3, %c0_60, %c0_61] : memref<4x64x8xbf16, #tpu.memory_space<vmem>>, vector<1x64x8xbf16>
    %73 = vector.shape_cast %72 : vector<1x64x8xbf16> to vector<64x8xbf16>
    %cst_62 = arith.constant dense<0.000000e+00> : vector<16x8xf32>
    %74 = tpu.matmul %5, %73, %cst_62 {dimension_numbers = #tpu.dot_dimension_numbers<[1], [0], [0], [1], [0, 0, 1, 1], [], []>} : vector<16x64xbf16>, vector<64x8xbf16>, vector<16x8xf32> -> vector<16x8xf32>
    %c3_63 = arith.constant 3 : index
    %c0_64 = arith.constant 0 : index
    %c0_65 = arith.constant 0 : index
    %75 = vector.load %arg8[%c3_63, %c0_64, %c0_65] : memref<4x1x8xf32, #tpu.memory_space<vmem>>, vector<1x1x8xf32>
    %76 = vector.shape_cast %75 : vector<1x1x8xf32> to vector<1x8xf32>
    %77 = vector.broadcast %76 : vector<1x8xf32> to vector<16x8xf32>
    %78 = arith.addf %74, %77 : vector<16x8xf32>
    %79 = arith.truncf %78 : vector<16x8xf32> to vector<16x8xbf16>
    %c3_66 = arith.constant 3 : index
    %c0_67 = arith.constant 0 : index
    %c0_68 = arith.constant 0 : index
    %80 = vector.load %arg17[%c3_66, %c0_67, %c0_68] : memref<4x16x8xbf16, #tpu.memory_space<vmem>>, vector<1x16x8xbf16>
    %81 = vector.shape_cast %80 : vector<1x16x8xbf16> to vector<16x8xbf16>
    %82 = vector.shape_cast %79 : vector<16x8xbf16> to vector<1x16x8xbf16>
    tpu.vector_store %arg17[%c3_66, %c0_67, %c0_68], %82 {strides = array<i32>} : memref<4x16x8xbf16, #tpu.memory_space<vmem>>, vector<1x16x8xbf16>,
    %c3_69 = arith.constant 3 : index
    %c0_70 = arith.constant 0 : index
    %c0_71 = arith.constant 0 : index
    %83 = vector.load %arg9[%c3_69, %c0_70, %c0_71] : memref<4x64x8xbf16, #tpu.memory_space<vmem>>, vector<1x64x8xbf16>
    %84 = vector.shape_cast %83 : vector<1x64x8xbf16> to vector<64x8xbf16>
    %cst_72 = arith.constant dense<0.000000e+00> : vector<16x8xf32>
    %85 = tpu.matmul %5, %84, %cst_72 {dimension_numbers = #tpu.dot_dimension_numbers<[1], [0], [0], [1], [0, 0, 1, 1], [], []>} : vector<16x64xbf16>, vector<64x8xbf16>, vector<16x8xf32> -> vector<16x8xf32>
    %c3_73 = arith.constant 3 : index
    %c0_74 = arith.constant 0 : index
    %c0_75 = arith.constant 0 : index
    %86 = vector.load %arg10[%c3_73, %c0_74, %c0_75] : memref<4x1x8xf32, #tpu.memory_space<vmem>>, vector<1x1x8xf32>
    %87 = vector.shape_cast %86 : vector<1x1x8xf32> to vector<1x8xf32>
    %88 = vector.broadcast %87 : vector<1x8xf32> to vector<16x8xf32>
    %89 = arith.addf %85, %88 : vector<16x8xf32>
    %90 = arith.truncf %89 : vector<16x8xf32> to vector<16x8xbf16>
    %c3_76 = arith.constant 3 : index
    %c0_77 = arith.constant 0 : index
    %c0_78 = arith.constant 0 : index
    %91 = vector.load %arg18[%c3_76, %c0_77, %c0_78] : memref<4x16x8xbf16, #tpu.memory_space<vmem>>, vector<1x16x8xbf16>
    %92 = vector.shape_cast %91 : vector<1x16x8xbf16> to vector<16x8xbf16>
    %93 = vector.shape_cast %90 : vector<16x8xbf16> to vector<1x16x8xbf16>
    tpu.vector_store %arg18[%c3_76, %c0_77, %c0_78], %93 {strides = array<i32>} : memref<4x16x8xbf16, #tpu.memory_space<vmem>>, vector<1x16x8xbf16>,
    %c0_79 = arith.constant 0 : index
    %c0_80 = arith.constant 0 : index
    %c0_81 = arith.constant 0 : index
    %94 = vector.load %arg16[%c0_79, %c0_80, %c0_81] : memref<4x8x8xbf16, #tpu.memory_space<vmem>>, vector<4x8x8xbf16>
    %c0_82 = arith.constant 0 : index
    %c0_83 = arith.constant 0 : index
    %c0_84 = arith.constant 0 : index
    %95 = vector.load %arg17[%c0_82, %c0_83, %c0_84] : memref<4x16x8xbf16, #tpu.memory_space<vmem>>, vector<4x16x8xbf16>
    %cst_85 = arith.constant dense<0.000000e+00> : vector<4x8x16xf32>
    %96 = tpu.matmul %94, %95, %cst_85 {dimension_numbers = #tpu.dot_dimension_numbers<[2], [2], [1], [1], [0, 0, 0, 1, 1, 1], [0], [0]>} : vector<4x8x8xbf16>, vector<4x16x8xbf16>, vector<4x8x16xf32> -> vector<4x8x16xf32>
    %c0_86 = arith.constant 0 : index
    %c0_87 = arith.constant 0 : index
    %c0_88 = arith.constant 0 : index
    %97 = vector.load %arg19[%c0_86, %c0_87, %c0_88] : memref<4x8x1xf32, #tpu.memory_space<vmem>>, vector<4x8x1xf32>
    %cst_89 = arith.constant dense<0xFF800000> : vector<4x8xf32>
    %98 = vector.multi_reduction <maximumf>, %96, %cst_89 [2] : vector<4x8x16xf32> to vector<4x8xf32>
    %99 = vector.shape_cast %98 : vector<4x8xf32> to vector<4x8x1xf32>
    %100 = arith.maximumf %97, %99 : vector<4x8x1xf32>
    %101 = arith.subf %97, %100 : vector<4x8x1xf32>
    %102 = math.exp %101 : vector<4x8x1xf32>
    %103 = vector.broadcast %100 : vector<4x8x1xf32> to vector<4x8x16xf32>
    %104 = arith.subf %96, %103 : vector<4x8x16xf32>
    %105 = math.exp %104 : vector<4x8x16xf32>
    %c0_90 = arith.constant 0 : index
    %c0_91 = arith.constant 0 : index
    %c0_92 = arith.constant 0 : index
    %106 = vector.load %arg20[%c0_90, %c0_91, %c0_92] : memref<4x8x1xf32, #tpu.memory_space<vmem>>, vector<4x8x1xf32>
    %107 = arith.mulf %102, %106 : vector<4x8x1xf32>
    %cst_93 = arith.constant dense<0.000000e+00> : vector<4x8xf32>
    %108 = vector.multi_reduction <add>, %105, %cst_93 [2] : vector<4x8x16xf32> to vector<4x8xf32>
    %109 = vector.shape_cast %108 : vector<4x8xf32> to vector<4x8x1xf32>
    %110 = arith.addf %107, %109 : vector<4x8x1xf32>
    %c0_94 = arith.constant 0 : index
    %c0_95 = arith.constant 0 : index
    %c0_96 = arith.constant 0 : index
    %111 = vector.load %arg20[%c0_94, %c0_95, %c0_96] : memref<4x8x1xf32, #tpu.memory_space<vmem>>, vector<4x8x1xf32>
    tpu.vector_store %arg20[%c0_94, %c0_95, %c0_96], %110 {strides = array<i32>} : memref<4x8x1xf32, #tpu.memory_space<vmem>>, vector<4x8x1xf32>,
    %112 = arith.truncf %105 : vector<4x8x16xf32> to vector<4x8x16xbf16>
    %c0_97 = arith.constant 0 : index
    %c0_98 = arith.constant 0 : index
    %c0_99 = arith.constant 0 : index
    %113 = vector.load %arg18[%c0_97, %c0_98, %c0_99] : memref<4x16x8xbf16, #tpu.memory_space<vmem>>, vector<4x16x8xbf16>
    %cst_100 = arith.constant dense<0.000000e+00> : vector<4x8x8xf32>
    %114 = tpu.matmul %112, %113, %cst_100 {dimension_numbers = #tpu.dot_dimension_numbers<[2], [1], [1], [2], [0, 0, 0, 1, 1, 2], [0], [0]>} : vector<4x8x16xbf16>, vector<4x16x8xbf16>, vector<4x8x8xf32> -> vector<4x8x8xf32>
    %c0_101 = arith.constant 0 : index
    %c0_102 = arith.constant 0 : index
    %c0_103 = arith.constant 0 : index
    %115 = vector.load %arg21[%c0_101, %c0_102, %c0_103] : memref<4x8x8xf32, #tpu.memory_space<vmem>>, vector<4x8x8xf32>
    %116 = vector.broadcast %102 : vector<4x8x1xf32> to vector<4x8x8xf32>
    %117 = arith.mulf %116, %115 : vector<4x8x8xf32>
    %118 = arith.addf %117, %114 : vector<4x8x8xf32>
    %c0_104 = arith.constant 0 : index
    %c0_105 = arith.constant 0 : index
    %c0_106 = arith.constant 0 : index
    %119 = vector.load %arg21[%c0_104, %c0_105, %c0_106] : memref<4x8x8xf32, #tpu.memory_space<vmem>>, vector<4x8x8xf32>
    tpu.vector_store %arg21[%c0_104, %c0_105, %c0_106], %118 {strides = array<i32>} : memref<4x8x8xf32, #tpu.memory_space<vmem>>, vector<4x8x8xf32>,
    %c0_107 = arith.constant 0 : index
    %c0_108 = arith.constant 0 : index
    %c0_109 = arith.constant 0 : index
    %120 = vector.load %arg19[%c0_107, %c0_108, %c0_109] : memref<4x8x1xf32, #tpu.memory_space<vmem>>, vector<4x8x1xf32>
    tpu.vector_store %arg19[%c0_107, %c0_108, %c0_109], %100 {strides = array<i32>} : memref<4x8x1xf32, #tpu.memory_space<vmem>>, vector<4x8x1xf32>,
    %c0_i32_110 = arith.constant 0 : i32
    %121 = arith.cmpi eq, %arg2, %c0_i32_110 : i32
    %122 = arith.extui %121 : i1 to i32
    %c0_i32_111 = arith.constant 0 : i32
    %123 = arith.cmpi ne, %122, %c0_i32_111 : i32
    scf.if %123 {
      %c0_112 = arith.constant 0 : index
      %c0_113 = arith.constant 0 : index
      %c0_114 = arith.constant 0 : index
      %124 = vector.load %arg20[%c0_112, %c0_113, %c0_114] : memref<4x8x1xf32, #tpu.memory_space<vmem>>, vector<4x8x1xf32>
      %125 = tpu.reciprocal %124 {approx = true} : vector<4x8x1xf32> -> vector<4x8x1xf32>
      %c0_115 = arith.constant 0 : index
      %c0_116 = arith.constant 0 : index
      %c0_117 = arith.constant 0 : index
      %126 = vector.load %arg21[%c0_115, %c0_116, %c0_117] : memref<4x8x8xf32, #tpu.memory_space<vmem>>, vector<1x8x8xf32>
      %127 = vector.shape_cast %126 : vector<1x8x8xf32> to vector<8x8xf32>
      %128 = vector.extract_strided_slice %125 {offsets = [0, 0, 0], sizes = [1, 8, 1], strides = [1, 1, 1]} : vector<4x8x1xf32> to vector<1x8x1xf32>
      %129 = vector.shape_cast %128 : vector<1x8x1xf32> to vector<8x1xf32>
      %130 = vector.broadcast %129 : vector<8x1xf32> to vector<8x8xf32>
      %131 = arith.mulf %127, %130 : vector<8x8xf32>
      %132 = arith.truncf %131 : vector<8x8xf32> to vector<8x8xbf16>
      %c0_118 = arith.constant 0 : index
      %c0_119 = arith.constant 0 : index
      %133 = vector.load %arg22[%c0_118, %c0_119] : memref<8x32xbf16, #tpu.memory_space<vmem>>, vector<8x8xbf16>
      tpu.vector_store %arg22[%c0_118, %c0_119], %132 {strides = array<i32>} : memref<8x32xbf16, #tpu.memory_space<vmem>>, vector<8x8xbf16>,
      %c1_120 = arith.constant 1 : index
      %c0_121 = arith.constant 0 : index
      %c0_122 = arith.constant 0 : index
      %134 = vector.load %arg21[%c1_120, %c0_121, %c0_122] : memref<4x8x8xf32, #tpu.memory_space<vmem>>, vector<1x8x8xf32>
      %135 = vector.shape_cast %134 : vector<1x8x8xf32> to vector<8x8xf32>
      %136 = vector.extract_strided_slice %125 {offsets = [1, 0, 0], sizes = [1, 8, 1], strides = [1, 1, 1]} : vector<4x8x1xf32> to vector<1x8x1xf32>
      %137 = vector.shape_cast %136 : vector<1x8x1xf32> to vector<8x1xf32>
      %138 = vector.broadcast %137 : vector<8x1xf32> to vector<8x8xf32>
      %139 = arith.mulf %135, %138 : vector<8x8xf32>
      %140 = arith.truncf %139 : vector<8x8xf32> to vector<8x8xbf16>
      %c0_123 = arith.constant 0 : index
      %c8 = arith.constant 8 : index
      %141 = vector.load %arg22[%c0_123, %c8] : memref<8x32xbf16, #tpu.memory_space<vmem>>, vector<8x8xbf16>
      tpu.vector_store %arg22[%c0_123, %c8], %140 {strides = array<i32>} : memref<8x32xbf16, #tpu.memory_space<vmem>>, vector<8x8xbf16>,
      %c2_124 = arith.constant 2 : index
      %c0_125 = arith.constant 0 : index
      %c0_126 = arith.constant 0 : index
      %142 = vector.load %arg21[%c2_124, %c0_125, %c0_126] : memref<4x8x8xf32, #tpu.memory_space<vmem>>, vector<1x8x8xf32>
      %143 = vector.shape_cast %142 : vector<1x8x8xf32> to vector<8x8xf32>
      %144 = vector.extract_strided_slice %125 {offsets = [2, 0, 0], sizes = [1, 8, 1], strides = [1, 1, 1]} : vector<4x8x1xf32> to vector<1x8x1xf32>
      %145 = vector.shape_cast %144 : vector<1x8x1xf32> to vector<8x1xf32>
      %146 = vector.broadcast %145 : vector<8x1xf32> to vector<8x8xf32>
      %147 = arith.mulf %143, %146 : vector<8x8xf32>
      %148 = arith.truncf %147 : vector<8x8xf32> to vector<8x8xbf16>
      %c0_127 = arith.constant 0 : index
      %c16 = arith.constant 16 : index
      %149 = vector.load %arg22[%c0_127, %c16] : memref<8x32xbf16, #tpu.memory_space<vmem>>, vector<8x8xbf16>
      tpu.vector_store %arg22[%c0_127, %c16], %148 {strides = array<i32>} : memref<8x32xbf16, #tpu.memory_space<vmem>>, vector<8x8xbf16>,
      %c3_128 = arith.constant 3 : index
      %c0_129 = arith.constant 0 : index
      %c0_130 = arith.constant 0 : index
      %150 = vector.load %arg21[%c3_128, %c0_129, %c0_130] : memref<4x8x8xf32, #tpu.memory_space<vmem>>, vector<1x8x8xf32>
      %151 = vector.shape_cast %150 : vector<1x8x8xf32> to vector<8x8xf32>
      %152 = vector.extract_strided_slice %125 {offsets = [3, 0, 0], sizes = [1, 8, 1], strides = [1, 1, 1]} : vector<4x8x1xf32> to vector<1x8x1xf32>
      %153 = vector.shape_cast %152 : vector<1x8x1xf32> to vector<8x1xf32>
      %154 = vector.broadcast %153 : vector<8x1xf32> to vector<8x8xf32>
      %155 = arith.mulf %151, %154 : vector<8x8xf32>
      %156 = arith.truncf %155 : vector<8x8xf32> to vector<8x8xbf16>
      %c0_131 = arith.constant 0 : index
      %c24 = arith.constant 24 : index
      %157 = vector.load %arg22[%c0_131, %c24] : memref<8x32xbf16, #tpu.memory_space<vmem>>, vector<8x8xbf16>
      tpu.vector_store %arg22[%c0_131, %c24], %156 {strides = array<i32>} : memref<8x32xbf16, #tpu.memory_space<vmem>>, vector<8x8xbf16>,
      %c0_132 = arith.constant 0 : index
      %c0_133 = arith.constant 0 : index
      %158 = vector.load %arg22[%c0_132, %c0_133] : memref<8x32xbf16, #tpu.memory_space<vmem>>, vector<8x32xbf16>
      %c0_134 = arith.constant 0 : index
      %c0_135 = arith.constant 0 : index
      %159 = vector.load %arg11[%c0_134, %c0_135] : memref<32x32xbf16, #tpu.memory_space<vmem>>, vector<32x32xbf16>
      %cst_136 = arith.constant dense<0.000000e+00> : vector<8x32xf32>
      %160 = tpu.matmul %158, %159, %cst_136 {dimension_numbers = #tpu.dot_dimension_numbers<[1], [0], [0], [1], [0, 0, 1, 1], [], []>} : vector<8x32xbf16>, vector<32x32xbf16>, vector<8x32xf32> -> vector<8x32xf32>
      %c0_137 = arith.constant 0 : index
      %c0_138 = arith.constant 0 : index
      %161 = vector.load %arg12[%c0_137, %c0_138] : memref<1x32xf32, #tpu.memory_space<vmem>>, vector<1x32xf32>
      %162 = vector.broadcast %161 : vector<1x32xf32> to vector<8x32xf32>
      %163 = arith.addf %160, %162 : vector<8x32xf32>
      %c0_139 = arith.constant 0 : index
      %c0_140 = arith.constant 0 : index
      %c0_141 = arith.constant 0 : index
      %164 = vector.load %arg3[%c0_139, %c0_140, %c0_141] : memref<1x8x32xbf16, #tpu.memory_space<vmem>>, vector<1x8x32xbf16>
      %165 = vector.shape_cast %164 : vector<1x8x32xbf16> to vector<8x32xbf16>
      %166 = arith.extf %165 : vector<8x32xbf16> to vector<8x32xf32>
      %167 = arith.addf %166, %163 : vector<8x32xf32>
      %c0_142 = arith.constant 0 : index
      %c0_143 = arith.constant 0 : index
      %168 = vector.load %arg13[%c0_142, %c0_143] : memref<1x32xf32, #tpu.memory_space<vmem>>, vector<1x32xf32>
      %c0_144 = arith.constant 0 : index
      %c0_145 = arith.constant 0 : index
      %169 = vector.load %arg14[%c0_144, %c0_145] : memref<1x32xf32, #tpu.memory_space<vmem>>, vector<1x32xf32>
      %cst_146 = arith.constant dense<0.000000e+00> : vector<8xf32>
      %170 = vector.multi_reduction <add>, %167, %cst_146 [1] : vector<8x32xf32> to vector<8xf32>
      %171 = vector.shape_cast %170 : vector<8xf32> to vector<8x1xf32>
      %cst_147 = arith.constant 3.200000e+01 : f32
      %172 = vector.broadcast %cst_147 : f32 to vector<8x1xf32>
      %173 = arith.divf %171, %172 : vector<8x1xf32>
      %174 = vector.broadcast %173 : vector<8x1xf32> to vector<8x32xf32>
      %175 = arith.subf %167, %174 : vector<8x32xf32>
      %176 = arith.mulf %175, %175 : vector<8x32xf32>
      %cst_148 = arith.constant dense<0.000000e+00> : vector<8xf32>
      %177 = vector.multi_reduction <add>, %176, %cst_148 [1] : vector<8x32xf32> to vector<8xf32>
      %178 = vector.shape_cast %177 : vector<8xf32> to vector<8x1xf32>
      %cst_149 = arith.constant 3.200000e+01 : f32
      %179 = vector.broadcast %cst_149 : f32 to vector<8x1xf32>
      %180 = arith.divf %178, %179 : vector<8x1xf32>
      %cst_150 = arith.constant 9.99999974E-6 : f32
      %181 = vector.broadcast %cst_150 : f32 to vector<8x1xf32>
      %182 = arith.addf %180, %181 : vector<8x1xf32>
      %183 = math.rsqrt %182 : vector<8x1xf32>
      %184 = vector.broadcast %183 : vector<8x1xf32> to vector<8x32xf32>
      %185 = arith.mulf %175, %184 : vector<8x32xf32>
      %186 = vector.broadcast %168 : vector<1x32xf32> to vector<8x32xf32>
      %187 = arith.mulf %185, %186 : vector<8x32xf32>
      %188 = vector.broadcast %169 : vector<1x32xf32> to vector<8x32xf32>
      %189 = arith.addf %187, %188 : vector<8x32xf32>
      %190 = arith.truncf %189 : vector<8x32xf32> to vector<8x32xbf16>
      %c0_151 = arith.constant 0 : index
      %c0_152 = arith.constant 0 : index
      %c0_153 = arith.constant 0 : index
      %191 = vector.load %arg15[%c0_151, %c0_152, %c0_153] : memref<1x8x32xbf16, #tpu.memory_space<vmem>>, vector<1x8x32xbf16>
      %192 = vector.shape_cast %191 : vector<1x8x32xbf16> to vector<8x32xbf16>
      %193 = vector.shape_cast %190 : vector<8x32xbf16> to vector<1x8x32xbf16>
      tpu.vector_store %arg15[%c0_151, %c0_152, %c0_153], %193 {strides = array<i32>} : memref<1x8x32xbf16, #tpu.memory_space<vmem>>, vector<1x8x32xbf16>,
    } else {
    }
    return
  }
  func.func @transform_0(%arg0: i32, %arg1: i32, %arg2: i32) -> (i32, i32, i32) {
    %c0_i32 = arith.constant 0 : i32
    %c0_i32_0 = arith.constant 0 : i32
    return %arg0, %arg1, %c0_i32 : i32, i32, i32
  }
  func.func @transform_1(%arg0: i32, %arg1: i32, %arg2: i32) -> (i32, i32, i32) {
    %c0_i32 = arith.constant 0 : i32
    %c0_i32_0 = arith.constant 0 : i32
    return %arg0, %c0_i32, %arg2 : i32, i32, i32
  }
  func.func @transform_2(%arg0: i32, %arg1: i32, %arg2: i32) -> (i32, i32, i32) {
    %c0_i32 = arith.constant 0 : i32
    %c0_i32_0 = arith.constant 0 : i32
    %c0_i32_1 = arith.constant 0 : i32
    %c0_i32_2 = arith.constant 0 : i32
    return %c0_i32, %c0_i32_0, %c0_i32_1 : i32, i32, i32
  }
  func.func @transform_3(%arg0: i32, %arg1: i32, %arg2: i32) -> (i32, i32, i32) {
    %c0_i32 = arith.constant 0 : i32
    %c0_i32_0 = arith.constant 0 : i32
    %c0_i32_1 = arith.constant 0 : i32
    %c0_i32_2 = arith.constant 0 : i32
    return %c0_i32, %c0_i32_0, %c0_i32_1 : i32, i32, i32
  }
  func.func @transform_4(%arg0: i32, %arg1: i32, %arg2: i32) -> (i32, i32, i32) {
    %c0_i32 = arith.constant 0 : i32
    %c0_i32_0 = arith.constant 0 : i32
    %c0_i32_1 = arith.constant 0 : i32
    %c0_i32_2 = arith.constant 0 : i32
    return %c0_i32, %c0_i32_0, %c0_i32_1 : i32, i32, i32
  }
  func.func @transform_5(%arg0: i32, %arg1: i32, %arg2: i32) -> (i32, i32, i32) {
    %c0_i32 = arith.constant 0 : i32
    %c0_i32_0 = arith.constant 0 : i32
    %c0_i32_1 = arith.constant 0 : i32
    %c0_i32_2 = arith.constant 0 : i32
    return %c0_i32, %c0_i32_0, %c0_i32_1 : i32, i32, i32
  }
  func.func @transform_6(%arg0: i32, %arg1: i32, %arg2: i32) -> (i32, i32, i32) {
    %c0_i32 = arith.constant 0 : i32
    %c0_i32_0 = arith.constant 0 : i32
    %c0_i32_1 = arith.constant 0 : i32
    %c0_i32_2 = arith.constant 0 : i32
    return %c0_i32, %c0_i32_0, %c0_i32_1 : i32, i32, i32
  }
  func.func @transform_7(%arg0: i32, %arg1: i32, %arg2: i32) -> (i32, i32, i32) {
    %c0_i32 = arith.constant 0 : i32
    %c0_i32_0 = arith.constant 0 : i32
    %c0_i32_1 = arith.constant 0 : i32
    %c0_i32_2 = arith.constant 0 : i32
    return %c0_i32, %c0_i32_0, %c0_i32_1 : i32, i32, i32
  }
  func.func @transform_8(%arg0: i32, %arg1: i32, %arg2: i32) -> (i32, i32) {
    %c0_i32 = arith.constant 0 : i32
    %c0_i32_0 = arith.constant 0 : i32
    %c0_i32_1 = arith.constant 0 : i32
    return %c0_i32, %c0_i32_0 : i32, i32
  }
  func.func @transform_9(%arg0: i32, %arg1: i32, %arg2: i32) -> (i32, i32) {
    %c0_i32 = arith.constant 0 : i32
    %c0_i32_0 = arith.constant 0 : i32
    %c0_i32_1 = arith.constant 0 : i32
    return %c0_i32, %c0_i32_0 : i32, i32
  }
  func.func @transform_10(%arg0: i32, %arg1: i32, %arg2: i32) -> (i32, i32) {
    %c0_i32 = arith.constant 0 : i32
    %c0_i32_0 = arith.constant 0 : i32
    %c0_i32_1 = arith.constant 0 : i32
    return %c0_i32, %c0_i32_0 : i32, i32
  }
  func.func @transform_11(%arg0: i32, %arg1: i32, %arg2: i32) -> (i32, i32) {
    %c0_i32 = arith.constant 0 : i32
    %c0_i32_0 = arith.constant 0 : i32
    %c0_i32_1 = arith.constant 0 : i32
    return %c0_i32, %c0_i32_0 : i32, i32
  }
  func.func @transform_12(%arg0: i32, %arg1: i32, %arg2: i32) -> (i32, i32, i32) {
    %c0_i32 = arith.constant 0 : i32
    %c0_i32_0 = arith.constant 0 : i32
    return %arg0, %arg1, %c0_i32 : i32, i32, i32
  }
}

module attributes {stable_mosaic.version = 11 : i64} {
  func.func @_mha_ln_kernel(%arg0: i32, %arg1: i32, %arg2: i32, %arg3: memref<1x8x32xf32, #tpu.memory_space<vmem>>, %arg4: memref<1x8x32xf32, #tpu.memory_space<vmem>>, %arg5: memref<4x32x8xbf16, #tpu.memory_space<vmem>>, %arg6: memref<4x1x8xf32, #tpu.memory_space<vmem>>, %arg7: memref<4x32x8xbf16, #tpu.memory_space<vmem>>, %arg8: memref<4x1x8xf32, #tpu.memory_space<vmem>>, %arg9: memref<4x32x8xbf16, #tpu.memory_space<vmem>>, %arg10: memref<4x1x8xf32, #tpu.memory_space<vmem>>, %arg11: memref<32x32xbf16, #tpu.memory_space<vmem>>, %arg12: memref<1x32xf32, #tpu.memory_space<vmem>>, %arg13: memref<1x32xf32, #tpu.memory_space<vmem>>, %arg14: memref<1x32xf32, #tpu.memory_space<vmem>>, %arg15: memref<1x8x32xbf16, #tpu.memory_space<vmem>>, %arg16: memref<4x8x8xbf16, #tpu.memory_space<vmem>>, %arg17: memref<4x8x8xbf16, #tpu.memory_space<vmem>>, %arg18: memref<4x8x8xbf16, #tpu.memory_space<vmem>>, %arg19: memref<4x8x1xf32, #tpu.memory_space<vmem>>, %arg20: memref<4x8x1xf32, #tpu.memory_space<vmem>>, %arg21: memref<4x8x8xf32, #tpu.memory_space<vmem>>, %arg22: memref<8x32xbf16, #tpu.memory_space<vmem>>) attributes {dimension_semantics = [#tpu.dimension_semantics<parallel>, #tpu.dimension_semantics<parallel>, #tpu.dimension_semantics<arbitrary>], iteration_bounds = array<i64: 2, 1, 1>, scalar_prefetch = 0 : i64, scratch_operands = 7 : i64, tpu.core_type = #tpu.core_type<tc>, window_params = [{transform_indices = @transform_0, window_bounds = array<i64: 1, 8, 32>}, {transform_indices = @transform_1, window_bounds = array<i64: 1, 8, 32>}, {pipeline_mode = #tpu.pipeline_mode<synchronous>, transform_indices = @transform_2, window_bounds = array<i64: 4, 32, 8>}, {pipeline_mode = #tpu.pipeline_mode<synchronous>, transform_indices = @transform_3, window_bounds = array<i64: 4, 1, 8>}, {pipeline_mode = #tpu.pipeline_mode<synchronous>, transform_indices = @transform_4, window_bounds = array<i64: 4, 32, 8>}, {pipeline_mode = #tpu.pipeline_mode<synchronous>, transform_indices = @transform_5, window_bounds = array<i64: 4, 1, 8>}, {pipeline_mode = #tpu.pipeline_mode<synchronous>, transform_indices = @transform_6, window_bounds = array<i64: 4, 32, 8>}, {pipeline_mode = #tpu.pipeline_mode<synchronous>, transform_indices = @transform_7, window_bounds = array<i64: 4, 1, 8>}, {pipeline_mode = #tpu.pipeline_mode<synchronous>, transform_indices = @transform_8, window_bounds = array<i64: 32, 32>}, {pipeline_mode = #tpu.pipeline_mode<synchronous>, transform_indices = @transform_9, window_bounds = array<i64: 1, 32>}, {pipeline_mode = #tpu.pipeline_mode<synchronous>, transform_indices = @transform_10, window_bounds = array<i64: 1, 32>}, {pipeline_mode = #tpu.pipeline_mode<synchronous>, transform_indices = @transform_11, window_bounds = array<i64: 1, 32>}, {transform_indices = @transform_12, window_bounds = array<i64: 1, 8, 32>}]} {
    %c0_i32 = arith.constant 0 : i32
    %0 = arith.cmpi eq, %arg2, %c0_i32 : i32
    %1 = arith.extui %0 : i1 to i32
    %c0_i32_0 = arith.constant 0 : i32
    %2 = arith.cmpi ne, %1, %c0_i32_0 : i32
    scf.if %2 {
      %c0_112 = arith.constant 0 : index
      %c0_113 = arith.constant 0 : index
      %c0_114 = arith.constant 0 : index
      %124 = vector.load %arg3[%c0_112, %c0_113, %c0_114] : memref<1x8x32xf32, #tpu.memory_space<vmem>>, vector<1x8x32xf32>
      %125 = vector.shape_cast %124 : vector<1x8x32xf32> to vector<8x32xf32>
      %126 = arith.truncf %125 : vector<8x32xf32> to vector<8x32xbf16>
      %c0_115 = arith.constant 0 : index
      %c0_116 = arith.constant 0 : index
      %c0_117 = arith.constant 0 : index
      %127 = vector.load %arg5[%c0_115, %c0_116, %c0_117] : memref<4x32x8xbf16, #tpu.memory_space<vmem>>, vector<1x32x8xbf16>
      %128 = vector.shape_cast %127 : vector<1x32x8xbf16> to vector<32x8xbf16>
      %cst_118 = arith.constant dense<0.000000e+00> : vector<8x8xf32>
      %129 = tpu.matmul %126, %128, %cst_118 {dimension_numbers = #tpu.dot_dimension_numbers<[1], [0], [0], [1], [0, 0, 1, 1], [], []>} : vector<8x32xbf16>, vector<32x8xbf16>, vector<8x8xf32> -> vector<8x8xf32>
      %c0_119 = arith.constant 0 : index
      %c0_120 = arith.constant 0 : index
      %c0_121 = arith.constant 0 : index
      %130 = vector.load %arg6[%c0_119, %c0_120, %c0_121] : memref<4x1x8xf32, #tpu.memory_space<vmem>>, vector<1x1x8xf32>
      %131 = vector.shape_cast %130 : vector<1x1x8xf32> to vector<1x8xf32>
      %132 = vector.broadcast %131 : vector<1x8xf32> to vector<8x8xf32>
      %133 = arith.addf %129, %132 : vector<8x8xf32>
      %cst_122 = arith.constant 0.353553385 : f32
      %134 = vector.broadcast %cst_122 : f32 to vector<8x8xf32>
      %135 = arith.mulf %133, %134 : vector<8x8xf32>
      %136 = arith.truncf %135 : vector<8x8xf32> to vector<8x8xbf16>
      %c0_123 = arith.constant 0 : index
      %c0_124 = arith.constant 0 : index
      %c0_125 = arith.constant 0 : index
      %137 = vector.load %arg16[%c0_123, %c0_124, %c0_125] : memref<4x8x8xbf16, #tpu.memory_space<vmem>>, vector<1x8x8xbf16>
      %138 = vector.shape_cast %137 : vector<1x8x8xbf16> to vector<8x8xbf16>
      %139 = vector.shape_cast %136 : vector<8x8xbf16> to vector<1x8x8xbf16>
      tpu.vector_store %arg16[%c0_123, %c0_124, %c0_125], %139 {strides = array<i32>} : memref<4x8x8xbf16, #tpu.memory_space<vmem>>, vector<1x8x8xbf16>,
      %c1_126 = arith.constant 1 : index
      %c0_127 = arith.constant 0 : index
      %c0_128 = arith.constant 0 : index
      %140 = vector.load %arg5[%c1_126, %c0_127, %c0_128] : memref<4x32x8xbf16, #tpu.memory_space<vmem>>, vector<1x32x8xbf16>
      %141 = vector.shape_cast %140 : vector<1x32x8xbf16> to vector<32x8xbf16>
      %cst_129 = arith.constant dense<0.000000e+00> : vector<8x8xf32>
      %142 = tpu.matmul %126, %141, %cst_129 {dimension_numbers = #tpu.dot_dimension_numbers<[1], [0], [0], [1], [0, 0, 1, 1], [], []>} : vector<8x32xbf16>, vector<32x8xbf16>, vector<8x8xf32> -> vector<8x8xf32>
      %c1_130 = arith.constant 1 : index
      %c0_131 = arith.constant 0 : index
      %c0_132 = arith.constant 0 : index
      %143 = vector.load %arg6[%c1_130, %c0_131, %c0_132] : memref<4x1x8xf32, #tpu.memory_space<vmem>>, vector<1x1x8xf32>
      %144 = vector.shape_cast %143 : vector<1x1x8xf32> to vector<1x8xf32>
      %145 = vector.broadcast %144 : vector<1x8xf32> to vector<8x8xf32>
      %146 = arith.addf %142, %145 : vector<8x8xf32>
      %cst_133 = arith.constant 0.353553385 : f32
      %147 = vector.broadcast %cst_133 : f32 to vector<8x8xf32>
      %148 = arith.mulf %146, %147 : vector<8x8xf32>
      %149 = arith.truncf %148 : vector<8x8xf32> to vector<8x8xbf16>
      %c1_134 = arith.constant 1 : index
      %c0_135 = arith.constant 0 : index
      %c0_136 = arith.constant 0 : index
      %150 = vector.load %arg16[%c1_134, %c0_135, %c0_136] : memref<4x8x8xbf16, #tpu.memory_space<vmem>>, vector<1x8x8xbf16>
      %151 = vector.shape_cast %150 : vector<1x8x8xbf16> to vector<8x8xbf16>
      %152 = vector.shape_cast %149 : vector<8x8xbf16> to vector<1x8x8xbf16>
      tpu.vector_store %arg16[%c1_134, %c0_135, %c0_136], %152 {strides = array<i32>} : memref<4x8x8xbf16, #tpu.memory_space<vmem>>, vector<1x8x8xbf16>,
      %c2_137 = arith.constant 2 : index
      %c0_138 = arith.constant 0 : index
      %c0_139 = arith.constant 0 : index
      %153 = vector.load %arg5[%c2_137, %c0_138, %c0_139] : memref<4x32x8xbf16, #tpu.memory_space<vmem>>, vector<1x32x8xbf16>
      %154 = vector.shape_cast %153 : vector<1x32x8xbf16> to vector<32x8xbf16>
      %cst_140 = arith.constant dense<0.000000e+00> : vector<8x8xf32>
      %155 = tpu.matmul %126, %154, %cst_140 {dimension_numbers = #tpu.dot_dimension_numbers<[1], [0], [0], [1], [0, 0, 1, 1], [], []>} : vector<8x32xbf16>, vector<32x8xbf16>, vector<8x8xf32> -> vector<8x8xf32>
      %c2_141 = arith.constant 2 : index
      %c0_142 = arith.constant 0 : index
      %c0_143 = arith.constant 0 : index
      %156 = vector.load %arg6[%c2_141, %c0_142, %c0_143] : memref<4x1x8xf32, #tpu.memory_space<vmem>>, vector<1x1x8xf32>
      %157 = vector.shape_cast %156 : vector<1x1x8xf32> to vector<1x8xf32>
      %158 = vector.broadcast %157 : vector<1x8xf32> to vector<8x8xf32>
      %159 = arith.addf %155, %158 : vector<8x8xf32>
      %cst_144 = arith.constant 0.353553385 : f32
      %160 = vector.broadcast %cst_144 : f32 to vector<8x8xf32>
      %161 = arith.mulf %159, %160 : vector<8x8xf32>
      %162 = arith.truncf %161 : vector<8x8xf32> to vector<8x8xbf16>
      %c2_145 = arith.constant 2 : index
      %c0_146 = arith.constant 0 : index
      %c0_147 = arith.constant 0 : index
      %163 = vector.load %arg16[%c2_145, %c0_146, %c0_147] : memref<4x8x8xbf16, #tpu.memory_space<vmem>>, vector<1x8x8xbf16>
      %164 = vector.shape_cast %163 : vector<1x8x8xbf16> to vector<8x8xbf16>
      %165 = vector.shape_cast %162 : vector<8x8xbf16> to vector<1x8x8xbf16>
      tpu.vector_store %arg16[%c2_145, %c0_146, %c0_147], %165 {strides = array<i32>} : memref<4x8x8xbf16, #tpu.memory_space<vmem>>, vector<1x8x8xbf16>,
      %c3_148 = arith.constant 3 : index
      %c0_149 = arith.constant 0 : index
      %c0_150 = arith.constant 0 : index
      %166 = vector.load %arg5[%c3_148, %c0_149, %c0_150] : memref<4x32x8xbf16, #tpu.memory_space<vmem>>, vector<1x32x8xbf16>
      %167 = vector.shape_cast %166 : vector<1x32x8xbf16> to vector<32x8xbf16>
      %cst_151 = arith.constant dense<0.000000e+00> : vector<8x8xf32>
      %168 = tpu.matmul %126, %167, %cst_151 {dimension_numbers = #tpu.dot_dimension_numbers<[1], [0], [0], [1], [0, 0, 1, 1], [], []>} : vector<8x32xbf16>, vector<32x8xbf16>, vector<8x8xf32> -> vector<8x8xf32>
      %c3_152 = arith.constant 3 : index
      %c0_153 = arith.constant 0 : index
      %c0_154 = arith.constant 0 : index
      %169 = vector.load %arg6[%c3_152, %c0_153, %c0_154] : memref<4x1x8xf32, #tpu.memory_space<vmem>>, vector<1x1x8xf32>
      %170 = vector.shape_cast %169 : vector<1x1x8xf32> to vector<1x8xf32>
      %171 = vector.broadcast %170 : vector<1x8xf32> to vector<8x8xf32>
      %172 = arith.addf %168, %171 : vector<8x8xf32>
      %cst_155 = arith.constant 0.353553385 : f32
      %173 = vector.broadcast %cst_155 : f32 to vector<8x8xf32>
      %174 = arith.mulf %172, %173 : vector<8x8xf32>
      %175 = arith.truncf %174 : vector<8x8xf32> to vector<8x8xbf16>
      %c3_156 = arith.constant 3 : index
      %c0_157 = arith.constant 0 : index
      %c0_158 = arith.constant 0 : index
      %176 = vector.load %arg16[%c3_156, %c0_157, %c0_158] : memref<4x8x8xbf16, #tpu.memory_space<vmem>>, vector<1x8x8xbf16>
      %177 = vector.shape_cast %176 : vector<1x8x8xbf16> to vector<8x8xbf16>
      %178 = vector.shape_cast %175 : vector<8x8xbf16> to vector<1x8x8xbf16>
      tpu.vector_store %arg16[%c3_156, %c0_157, %c0_158], %178 {strides = array<i32>} : memref<4x8x8xbf16, #tpu.memory_space<vmem>>, vector<1x8x8xbf16>,
      %cst_159 = arith.constant 0xFF800000 : f32
      %179 = vector.broadcast %cst_159 : f32 to vector<4x8x1xf32>
      %c0_160 = arith.constant 0 : index
      %c0_161 = arith.constant 0 : index
      %c0_162 = arith.constant 0 : index
      %180 = vector.load %arg19[%c0_160, %c0_161, %c0_162] : memref<4x8x1xf32, #tpu.memory_space<vmem>>, vector<4x8x1xf32>
      tpu.vector_store %arg19[%c0_160, %c0_161, %c0_162], %179 {strides = array<i32>} : memref<4x8x1xf32, #tpu.memory_space<vmem>>, vector<4x8x1xf32>,
      %cst_163 = arith.constant 0.000000e+00 : f32
      %181 = vector.broadcast %cst_163 : f32 to vector<4x8x1xf32>
      %c0_164 = arith.constant 0 : index
      %c0_165 = arith.constant 0 : index
      %c0_166 = arith.constant 0 : index
      %182 = vector.load %arg20[%c0_164, %c0_165, %c0_166] : memref<4x8x1xf32, #tpu.memory_space<vmem>>, vector<4x8x1xf32>
      tpu.vector_store %arg20[%c0_164, %c0_165, %c0_166], %181 {strides = array<i32>} : memref<4x8x1xf32, #tpu.memory_space<vmem>>, vector<4x8x1xf32>,
      %cst_167 = arith.constant 0.000000e+00 : f32
      %183 = vector.broadcast %cst_167 : f32 to vector<4x8x8xf32>
      %c0_168 = arith.constant 0 : index
      %c0_169 = arith.constant 0 : index
      %c0_170 = arith.constant 0 : index
      %184 = vector.load %arg21[%c0_168, %c0_169, %c0_170] : memref<4x8x8xf32, #tpu.memory_space<vmem>>, vector<4x8x8xf32>
      tpu.vector_store %arg21[%c0_168, %c0_169, %c0_170], %183 {strides = array<i32>} : memref<4x8x8xf32, #tpu.memory_space<vmem>>, vector<4x8x8xf32>,
    } else {
    }
    %c0 = arith.constant 0 : index
    %c0_1 = arith.constant 0 : index
    %c0_2 = arith.constant 0 : index
    %3 = vector.load %arg4[%c0, %c0_1, %c0_2] : memref<1x8x32xf32, #tpu.memory_space<vmem>>, vector<1x8x32xf32>
    %4 = vector.shape_cast %3 : vector<1x8x32xf32> to vector<8x32xf32>
    %5 = arith.truncf %4 : vector<8x32xf32> to vector<8x32xbf16>
    %c0_3 = arith.constant 0 : index
    %c0_4 = arith.constant 0 : index
    %c0_5 = arith.constant 0 : index
    %6 = vector.load %arg7[%c0_3, %c0_4, %c0_5] : memref<4x32x8xbf16, #tpu.memory_space<vmem>>, vector<1x32x8xbf16>
    %7 = vector.shape_cast %6 : vector<1x32x8xbf16> to vector<32x8xbf16>
    %cst = arith.constant dense<0.000000e+00> : vector<8x8xf32>
    %8 = tpu.matmul %5, %7, %cst {dimension_numbers = #tpu.dot_dimension_numbers<[1], [0], [0], [1], [0, 0, 1, 1], [], []>} : vector<8x32xbf16>, vector<32x8xbf16>, vector<8x8xf32> -> vector<8x8xf32>
    %c0_6 = arith.constant 0 : index
    %c0_7 = arith.constant 0 : index
    %c0_8 = arith.constant 0 : index
    %9 = vector.load %arg8[%c0_6, %c0_7, %c0_8] : memref<4x1x8xf32, #tpu.memory_space<vmem>>, vector<1x1x8xf32>
    %10 = vector.shape_cast %9 : vector<1x1x8xf32> to vector<1x8xf32>
    %11 = vector.broadcast %10 : vector<1x8xf32> to vector<8x8xf32>
    %12 = arith.addf %8, %11 : vector<8x8xf32>
    %13 = arith.truncf %12 : vector<8x8xf32> to vector<8x8xbf16>
    %c0_9 = arith.constant 0 : index
    %c0_10 = arith.constant 0 : index
    %c0_11 = arith.constant 0 : index
    %14 = vector.load %arg17[%c0_9, %c0_10, %c0_11] : memref<4x8x8xbf16, #tpu.memory_space<vmem>>, vector<1x8x8xbf16>
    %15 = vector.shape_cast %14 : vector<1x8x8xbf16> to vector<8x8xbf16>
    %16 = vector.shape_cast %13 : vector<8x8xbf16> to vector<1x8x8xbf16>
    tpu.vector_store %arg17[%c0_9, %c0_10, %c0_11], %16 {strides = array<i32>} : memref<4x8x8xbf16, #tpu.memory_space<vmem>>, vector<1x8x8xbf16>,
    %c0_12 = arith.constant 0 : index
    %c0_13 = arith.constant 0 : index
    %c0_14 = arith.constant 0 : index
    %17 = vector.load %arg9[%c0_12, %c0_13, %c0_14] : memref<4x32x8xbf16, #tpu.memory_space<vmem>>, vector<1x32x8xbf16>
    %18 = vector.shape_cast %17 : vector<1x32x8xbf16> to vector<32x8xbf16>
    %cst_15 = arith.constant dense<0.000000e+00> : vector<8x8xf32>
    %19 = tpu.matmul %5, %18, %cst_15 {dimension_numbers = #tpu.dot_dimension_numbers<[1], [0], [0], [1], [0, 0, 1, 1], [], []>} : vector<8x32xbf16>, vector<32x8xbf16>, vector<8x8xf32> -> vector<8x8xf32>
    %c0_16 = arith.constant 0 : index
    %c0_17 = arith.constant 0 : index
    %c0_18 = arith.constant 0 : index
    %20 = vector.load %arg10[%c0_16, %c0_17, %c0_18] : memref<4x1x8xf32, #tpu.memory_space<vmem>>, vector<1x1x8xf32>
    %21 = vector.shape_cast %20 : vector<1x1x8xf32> to vector<1x8xf32>
    %22 = vector.broadcast %21 : vector<1x8xf32> to vector<8x8xf32>
    %23 = arith.addf %19, %22 : vector<8x8xf32>
    %24 = arith.truncf %23 : vector<8x8xf32> to vector<8x8xbf16>
    %c0_19 = arith.constant 0 : index
    %c0_20 = arith.constant 0 : index
    %c0_21 = arith.constant 0 : index
    %25 = vector.load %arg18[%c0_19, %c0_20, %c0_21] : memref<4x8x8xbf16, #tpu.memory_space<vmem>>, vector<1x8x8xbf16>
    %26 = vector.shape_cast %25 : vector<1x8x8xbf16> to vector<8x8xbf16>
    %27 = vector.shape_cast %24 : vector<8x8xbf16> to vector<1x8x8xbf16>
    tpu.vector_store %arg18[%c0_19, %c0_20, %c0_21], %27 {strides = array<i32>} : memref<4x8x8xbf16, #tpu.memory_space<vmem>>, vector<1x8x8xbf16>,
    %c1 = arith.constant 1 : index
    %c0_22 = arith.constant 0 : index
    %c0_23 = arith.constant 0 : index
    %28 = vector.load %arg7[%c1, %c0_22, %c0_23] : memref<4x32x8xbf16, #tpu.memory_space<vmem>>, vector<1x32x8xbf16>
    %29 = vector.shape_cast %28 : vector<1x32x8xbf16> to vector<32x8xbf16>
    %cst_24 = arith.constant dense<0.000000e+00> : vector<8x8xf32>
    %30 = tpu.matmul %5, %29, %cst_24 {dimension_numbers = #tpu.dot_dimension_numbers<[1], [0], [0], [1], [0, 0, 1, 1], [], []>} : vector<8x32xbf16>, vector<32x8xbf16>, vector<8x8xf32> -> vector<8x8xf32>
    %c1_25 = arith.constant 1 : index
    %c0_26 = arith.constant 0 : index
    %c0_27 = arith.constant 0 : index
    %31 = vector.load %arg8[%c1_25, %c0_26, %c0_27] : memref<4x1x8xf32, #tpu.memory_space<vmem>>, vector<1x1x8xf32>
    %32 = vector.shape_cast %31 : vector<1x1x8xf32> to vector<1x8xf32>
    %33 = vector.broadcast %32 : vector<1x8xf32> to vector<8x8xf32>
    %34 = arith.addf %30, %33 : vector<8x8xf32>
    %35 = arith.truncf %34 : vector<8x8xf32> to vector<8x8xbf16>
    %c1_28 = arith.constant 1 : index
    %c0_29 = arith.constant 0 : index
    %c0_30 = arith.constant 0 : index
    %36 = vector.load %arg17[%c1_28, %c0_29, %c0_30] : memref<4x8x8xbf16, #tpu.memory_space<vmem>>, vector<1x8x8xbf16>
    %37 = vector.shape_cast %36 : vector<1x8x8xbf16> to vector<8x8xbf16>
    %38 = vector.shape_cast %35 : vector<8x8xbf16> to vector<1x8x8xbf16>
    tpu.vector_store %arg17[%c1_28, %c0_29, %c0_30], %38 {strides = array<i32>} : memref<4x8x8xbf16, #tpu.memory_space<vmem>>, vector<1x8x8xbf16>,
    %c1_31 = arith.constant 1 : index
    %c0_32 = arith.constant 0 : index
    %c0_33 = arith.constant 0 : index
    %39 = vector.load %arg9[%c1_31, %c0_32, %c0_33] : memref<4x32x8xbf16, #tpu.memory_space<vmem>>, vector<1x32x8xbf16>
    %40 = vector.shape_cast %39 : vector<1x32x8xbf16> to vector<32x8xbf16>
    %cst_34 = arith.constant dense<0.000000e+00> : vector<8x8xf32>
    %41 = tpu.matmul %5, %40, %cst_34 {dimension_numbers = #tpu.dot_dimension_numbers<[1], [0], [0], [1], [0, 0, 1, 1], [], []>} : vector<8x32xbf16>, vector<32x8xbf16>, vector<8x8xf32> -> vector<8x8xf32>
    %c1_35 = arith.constant 1 : index
    %c0_36 = arith.constant 0 : index
    %c0_37 = arith.constant 0 : index
    %42 = vector.load %arg10[%c1_35, %c0_36, %c0_37] : memref<4x1x8xf32, #tpu.memory_space<vmem>>, vector<1x1x8xf32>
    %43 = vector.shape_cast %42 : vector<1x1x8xf32> to vector<1x8xf32>
    %44 = vector.broadcast %43 : vector<1x8xf32> to vector<8x8xf32>
    %45 = arith.addf %41, %44 : vector<8x8xf32>
    %46 = arith.truncf %45 : vector<8x8xf32> to vector<8x8xbf16>
    %c1_38 = arith.constant 1 : index
    %c0_39 = arith.constant 0 : index
    %c0_40 = arith.constant 0 : index
    %47 = vector.load %arg18[%c1_38, %c0_39, %c0_40] : memref<4x8x8xbf16, #tpu.memory_space<vmem>>, vector<1x8x8xbf16>
    %48 = vector.shape_cast %47 : vector<1x8x8xbf16> to vector<8x8xbf16>
    %49 = vector.shape_cast %46 : vector<8x8xbf16> to vector<1x8x8xbf16>
    tpu.vector_store %arg18[%c1_38, %c0_39, %c0_40], %49 {strides = array<i32>} : memref<4x8x8xbf16, #tpu.memory_space<vmem>>, vector<1x8x8xbf16>,
    %c2 = arith.constant 2 : index
    %c0_41 = arith.constant 0 : index
    %c0_42 = arith.constant 0 : index
    %50 = vector.load %arg7[%c2, %c0_41, %c0_42] : memref<4x32x8xbf16, #tpu.memory_space<vmem>>, vector<1x32x8xbf16>
    %51 = vector.shape_cast %50 : vector<1x32x8xbf16> to vector<32x8xbf16>
    %cst_43 = arith.constant dense<0.000000e+00> : vector<8x8xf32>
    %52 = tpu.matmul %5, %51, %cst_43 {dimension_numbers = #tpu.dot_dimension_numbers<[1], [0], [0], [1], [0, 0, 1, 1], [], []>} : vector<8x32xbf16>, vector<32x8xbf16>, vector<8x8xf32> -> vector<8x8xf32>
    %c2_44 = arith.constant 2 : index
    %c0_45 = arith.constant 0 : index
    %c0_46 = arith.constant 0 : index
    %53 = vector.load %arg8[%c2_44, %c0_45, %c0_46] : memref<4x1x8xf32, #tpu.memory_space<vmem>>, vector<1x1x8xf32>
    %54 = vector.shape_cast %53 : vector<1x1x8xf32> to vector<1x8xf32>
    %55 = vector.broadcast %54 : vector<1x8xf32> to vector<8x8xf32>
    %56 = arith.addf %52, %55 : vector<8x8xf32>
    %57 = arith.truncf %56 : vector<8x8xf32> to vector<8x8xbf16>
    %c2_47 = arith.constant 2 : index
    %c0_48 = arith.constant 0 : index
    %c0_49 = arith.constant 0 : index
    %58 = vector.load %arg17[%c2_47, %c0_48, %c0_49] : memref<4x8x8xbf16, #tpu.memory_space<vmem>>, vector<1x8x8xbf16>
    %59 = vector.shape_cast %58 : vector<1x8x8xbf16> to vector<8x8xbf16>
    %60 = vector.shape_cast %57 : vector<8x8xbf16> to vector<1x8x8xbf16>
    tpu.vector_store %arg17[%c2_47, %c0_48, %c0_49], %60 {strides = array<i32>} : memref<4x8x8xbf16, #tpu.memory_space<vmem>>, vector<1x8x8xbf16>,
    %c2_50 = arith.constant 2 : index
    %c0_51 = arith.constant 0 : index
    %c0_52 = arith.constant 0 : index
    %61 = vector.load %arg9[%c2_50, %c0_51, %c0_52] : memref<4x32x8xbf16, #tpu.memory_space<vmem>>, vector<1x32x8xbf16>
    %62 = vector.shape_cast %61 : vector<1x32x8xbf16> to vector<32x8xbf16>
    %cst_53 = arith.constant dense<0.000000e+00> : vector<8x8xf32>
    %63 = tpu.matmul %5, %62, %cst_53 {dimension_numbers = #tpu.dot_dimension_numbers<[1], [0], [0], [1], [0, 0, 1, 1], [], []>} : vector<8x32xbf16>, vector<32x8xbf16>, vector<8x8xf32> -> vector<8x8xf32>
    %c2_54 = arith.constant 2 : index
    %c0_55 = arith.constant 0 : index
    %c0_56 = arith.constant 0 : index
    %64 = vector.load %arg10[%c2_54, %c0_55, %c0_56] : memref<4x1x8xf32, #tpu.memory_space<vmem>>, vector<1x1x8xf32>
    %65 = vector.shape_cast %64 : vector<1x1x8xf32> to vector<1x8xf32>
    %66 = vector.broadcast %65 : vector<1x8xf32> to vector<8x8xf32>
    %67 = arith.addf %63, %66 : vector<8x8xf32>
    %68 = arith.truncf %67 : vector<8x8xf32> to vector<8x8xbf16>
    %c2_57 = arith.constant 2 : index
    %c0_58 = arith.constant 0 : index
    %c0_59 = arith.constant 0 : index
    %69 = vector.load %arg18[%c2_57, %c0_58, %c0_59] : memref<4x8x8xbf16, #tpu.memory_space<vmem>>, vector<1x8x8xbf16>
    %70 = vector.shape_cast %69 : vector<1x8x8xbf16> to vector<8x8xbf16>
    %71 = vector.shape_cast %68 : vector<8x8xbf16> to vector<1x8x8xbf16>
    tpu.vector_store %arg18[%c2_57, %c0_58, %c0_59], %71 {strides = array<i32>} : memref<4x8x8xbf16, #tpu.memory_space<vmem>>, vector<1x8x8xbf16>,
    %c3 = arith.constant 3 : index
    %c0_60 = arith.constant 0 : index
    %c0_61 = arith.constant 0 : index
    %72 = vector.load %arg7[%c3, %c0_60, %c0_61] : memref<4x32x8xbf16, #tpu.memory_space<vmem>>, vector<1x32x8xbf16>
    %73 = vector.shape_cast %72 : vector<1x32x8xbf16> to vector<32x8xbf16>
    %cst_62 = arith.constant dense<0.000000e+00> : vector<8x8xf32>
    %74 = tpu.matmul %5, %73, %cst_62 {dimension_numbers = #tpu.dot_dimension_numbers<[1], [0], [0], [1], [0, 0, 1, 1], [], []>} : vector<8x32xbf16>, vector<32x8xbf16>, vector<8x8xf32> -> vector<8x8xf32>
    %c3_63 = arith.constant 3 : index
    %c0_64 = arith.constant 0 : index
    %c0_65 = arith.constant 0 : index
    %75 = vector.load %arg8[%c3_63, %c0_64, %c0_65] : memref<4x1x8xf32, #tpu.memory_space<vmem>>, vector<1x1x8xf32>
    %76 = vector.shape_cast %75 : vector<1x1x8xf32> to vector<1x8xf32>
    %77 = vector.broadcast %76 : vector<1x8xf32> to vector<8x8xf32>
    %78 = arith.addf %74, %77 : vector<8x8xf32>
    %79 = arith.truncf %78 : vector<8x8xf32> to vector<8x8xbf16>
    %c3_66 = arith.constant 3 : index
    %c0_67 = arith.constant 0 : index
    %c0_68 = arith.constant 0 : index
    %80 = vector.load %arg17[%c3_66, %c0_67, %c0_68] : memref<4x8x8xbf16, #tpu.memory_space<vmem>>, vector<1x8x8xbf16>
    %81 = vector.shape_cast %80 : vector<1x8x8xbf16> to vector<8x8xbf16>
    %82 = vector.shape_cast %79 : vector<8x8xbf16> to vector<1x8x8xbf16>
    tpu.vector_store %arg17[%c3_66, %c0_67, %c0_68], %82 {strides = array<i32>} : memref<4x8x8xbf16, #tpu.memory_space<vmem>>, vector<1x8x8xbf16>,
    %c3_69 = arith.constant 3 : index
    %c0_70 = arith.constant 0 : index
    %c0_71 = arith.constant 0 : index
    %83 = vector.load %arg9[%c3_69, %c0_70, %c0_71] : memref<4x32x8xbf16, #tpu.memory_space<vmem>>, vector<1x32x8xbf16>
    %84 = vector.shape_cast %83 : vector<1x32x8xbf16> to vector<32x8xbf16>
    %cst_72 = arith.constant dense<0.000000e+00> : vector<8x8xf32>
    %85 = tpu.matmul %5, %84, %cst_72 {dimension_numbers = #tpu.dot_dimension_numbers<[1], [0], [0], [1], [0, 0, 1, 1], [], []>} : vector<8x32xbf16>, vector<32x8xbf16>, vector<8x8xf32> -> vector<8x8xf32>
    %c3_73 = arith.constant 3 : index
    %c0_74 = arith.constant 0 : index
    %c0_75 = arith.constant 0 : index
    %86 = vector.load %arg10[%c3_73, %c0_74, %c0_75] : memref<4x1x8xf32, #tpu.memory_space<vmem>>, vector<1x1x8xf32>
    %87 = vector.shape_cast %86 : vector<1x1x8xf32> to vector<1x8xf32>
    %88 = vector.broadcast %87 : vector<1x8xf32> to vector<8x8xf32>
    %89 = arith.addf %85, %88 : vector<8x8xf32>
    %90 = arith.truncf %89 : vector<8x8xf32> to vector<8x8xbf16>
    %c3_76 = arith.constant 3 : index
    %c0_77 = arith.constant 0 : index
    %c0_78 = arith.constant 0 : index
    %91 = vector.load %arg18[%c3_76, %c0_77, %c0_78] : memref<4x8x8xbf16, #tpu.memory_space<vmem>>, vector<1x8x8xbf16>
    %92 = vector.shape_cast %91 : vector<1x8x8xbf16> to vector<8x8xbf16>
    %93 = vector.shape_cast %90 : vector<8x8xbf16> to vector<1x8x8xbf16>
    tpu.vector_store %arg18[%c3_76, %c0_77, %c0_78], %93 {strides = array<i32>} : memref<4x8x8xbf16, #tpu.memory_space<vmem>>, vector<1x8x8xbf16>,
    %c0_79 = arith.constant 0 : index
    %c0_80 = arith.constant 0 : index
    %c0_81 = arith.constant 0 : index
    %94 = vector.load %arg16[%c0_79, %c0_80, %c0_81] : memref<4x8x8xbf16, #tpu.memory_space<vmem>>, vector<4x8x8xbf16>
    %c0_82 = arith.constant 0 : index
    %c0_83 = arith.constant 0 : index
    %c0_84 = arith.constant 0 : index
    %95 = vector.load %arg17[%c0_82, %c0_83, %c0_84] : memref<4x8x8xbf16, #tpu.memory_space<vmem>>, vector<4x8x8xbf16>
    %cst_85 = arith.constant dense<0.000000e+00> : vector<4x8x8xf32>
    %96 = tpu.matmul %94, %95, %cst_85 {dimension_numbers = #tpu.dot_dimension_numbers<[2], [2], [1], [1], [0, 0, 0, 1, 1, 1], [0], [0]>} : vector<4x8x8xbf16>, vector<4x8x8xbf16>, vector<4x8x8xf32> -> vector<4x8x8xf32>
    %c0_86 = arith.constant 0 : index
    %c0_87 = arith.constant 0 : index
    %c0_88 = arith.constant 0 : index
    %97 = vector.load %arg19[%c0_86, %c0_87, %c0_88] : memref<4x8x1xf32, #tpu.memory_space<vmem>>, vector<4x8x1xf32>
    %cst_89 = arith.constant dense<0xFF800000> : vector<4x8xf32>
    %98 = vector.multi_reduction <maximumf>, %96, %cst_89 [2] : vector<4x8x8xf32> to vector<4x8xf32>
    %99 = vector.shape_cast %98 : vector<4x8xf32> to vector<4x8x1xf32>
    %100 = arith.maximumf %97, %99 : vector<4x8x1xf32>
    %101 = arith.subf %97, %100 : vector<4x8x1xf32>
    %102 = math.exp %101 : vector<4x8x1xf32>
    %103 = vector.broadcast %100 : vector<4x8x1xf32> to vector<4x8x8xf32>
    %104 = arith.subf %96, %103 : vector<4x8x8xf32>
    %105 = math.exp %104 : vector<4x8x8xf32>
    %c0_90 = arith.constant 0 : index
    %c0_91 = arith.constant 0 : index
    %c0_92 = arith.constant 0 : index
    %106 = vector.load %arg20[%c0_90, %c0_91, %c0_92] : memref<4x8x1xf32, #tpu.memory_space<vmem>>, vector<4x8x1xf32>
    %107 = arith.mulf %102, %106 : vector<4x8x1xf32>
    %cst_93 = arith.constant dense<0.000000e+00> : vector<4x8xf32>
    %108 = vector.multi_reduction <add>, %105, %cst_93 [2] : vector<4x8x8xf32> to vector<4x8xf32>
    %109 = vector.shape_cast %108 : vector<4x8xf32> to vector<4x8x1xf32>
    %110 = arith.addf %107, %109 : vector<4x8x1xf32>
    %c0_94 = arith.constant 0 : index
    %c0_95 = arith.constant 0 : index
    %c0_96 = arith.constant 0 : index
    %111 = vector.load %arg20[%c0_94, %c0_95, %c0_96] : memref<4x8x1xf32, #tpu.memory_space<vmem>>, vector<4x8x1xf32>
    tpu.vector_store %arg20[%c0_94, %c0_95, %c0_96], %110 {strides = array<i32>} : memref<4x8x1xf32, #tpu.memory_space<vmem>>, vector<4x8x1xf32>,
    %112 = arith.truncf %105 : vector<4x8x8xf32> to vector<4x8x8xbf16>
    %c0_97 = arith.constant 0 : index
    %c0_98 = arith.constant 0 : index
    %c0_99 = arith.constant 0 : index
    %113 = vector.load %arg18[%c0_97, %c0_98, %c0_99] : memref<4x8x8xbf16, #tpu.memory_space<vmem>>, vector<4x8x8xbf16>
    %cst_100 = arith.constant dense<0.000000e+00> : vector<4x8x8xf32>
    %114 = tpu.matmul %112, %113, %cst_100 {dimension_numbers = #tpu.dot_dimension_numbers<[2], [1], [1], [2], [0, 0, 0, 1, 1, 2], [0], [0]>} : vector<4x8x8xbf16>, vector<4x8x8xbf16>, vector<4x8x8xf32> -> vector<4x8x8xf32>
    %c0_101 = arith.constant 0 : index
    %c0_102 = arith.constant 0 : index
    %c0_103 = arith.constant 0 : index
    %115 = vector.load %arg21[%c0_101, %c0_102, %c0_103] : memref<4x8x8xf32, #tpu.memory_space<vmem>>, vector<4x8x8xf32>
    %116 = vector.broadcast %102 : vector<4x8x1xf32> to vector<4x8x8xf32>
    %117 = arith.mulf %116, %115 : vector<4x8x8xf32>
    %118 = arith.addf %117, %114 : vector<4x8x8xf32>
    %c0_104 = arith.constant 0 : index
    %c0_105 = arith.constant 0 : index
    %c0_106 = arith.constant 0 : index
    %119 = vector.load %arg21[%c0_104, %c0_105, %c0_106] : memref<4x8x8xf32, #tpu.memory_space<vmem>>, vector<4x8x8xf32>
    tpu.vector_store %arg21[%c0_104, %c0_105, %c0_106], %118 {strides = array<i32>} : memref<4x8x8xf32, #tpu.memory_space<vmem>>, vector<4x8x8xf32>,
    %c0_107 = arith.constant 0 : index
    %c0_108 = arith.constant 0 : index
    %c0_109 = arith.constant 0 : index
    %120 = vector.load %arg19[%c0_107, %c0_108, %c0_109] : memref<4x8x1xf32, #tpu.memory_space<vmem>>, vector<4x8x1xf32>
    tpu.vector_store %arg19[%c0_107, %c0_108, %c0_109], %100 {strides = array<i32>} : memref<4x8x1xf32, #tpu.memory_space<vmem>>, vector<4x8x1xf32>,
    %c0_i32_110 = arith.constant 0 : i32
    %121 = arith.cmpi eq, %arg2, %c0_i32_110 : i32
    %122 = arith.extui %121 : i1 to i32
    %c0_i32_111 = arith.constant 0 : i32
    %123 = arith.cmpi ne, %122, %c0_i32_111 : i32
    scf.if %123 {
      %c0_112 = arith.constant 0 : index
      %c0_113 = arith.constant 0 : index
      %c0_114 = arith.constant 0 : index
      %124 = vector.load %arg20[%c0_112, %c0_113, %c0_114] : memref<4x8x1xf32, #tpu.memory_space<vmem>>, vector<4x8x1xf32>
      %125 = tpu.reciprocal %124 {approx = true} : vector<4x8x1xf32> -> vector<4x8x1xf32>
      %c0_115 = arith.constant 0 : index
      %c0_116 = arith.constant 0 : index
      %c0_117 = arith.constant 0 : index
      %126 = vector.load %arg21[%c0_115, %c0_116, %c0_117] : memref<4x8x8xf32, #tpu.memory_space<vmem>>, vector<1x8x8xf32>
      %127 = vector.shape_cast %126 : vector<1x8x8xf32> to vector<8x8xf32>
      %128 = vector.extract_strided_slice %125 {offsets = [0, 0, 0], sizes = [1, 8, 1], strides = [1, 1, 1]} : vector<4x8x1xf32> to vector<1x8x1xf32>
      %129 = vector.shape_cast %128 : vector<1x8x1xf32> to vector<8x1xf32>
      %130 = vector.broadcast %129 : vector<8x1xf32> to vector<8x8xf32>
      %131 = arith.mulf %127, %130 : vector<8x8xf32>
      %132 = arith.truncf %131 : vector<8x8xf32> to vector<8x8xbf16>
      %c0_118 = arith.constant 0 : index
      %c0_119 = arith.constant 0 : index
      %133 = vector.load %arg22[%c0_118, %c0_119] : memref<8x32xbf16, #tpu.memory_space<vmem>>, vector<8x8xbf16>
      tpu.vector_store %arg22[%c0_118, %c0_119], %132 {strides = array<i32>} : memref<8x32xbf16, #tpu.memory_space<vmem>>, vector<8x8xbf16>,
      %c1_120 = arith.constant 1 : index
      %c0_121 = arith.constant 0 : index
      %c0_122 = arith.constant 0 : index
      %134 = vector.load %arg21[%c1_120, %c0_121, %c0_122] : memref<4x8x8xf32, #tpu.memory_space<vmem>>, vector<1x8x8xf32>
      %135 = vector.shape_cast %134 : vector<1x8x8xf32> to vector<8x8xf32>
      %136 = vector.extract_strided_slice %125 {offsets = [1, 0, 0], sizes = [1, 8, 1], strides = [1, 1, 1]} : vector<4x8x1xf32> to vector<1x8x1xf32>
      %137 = vector.shape_cast %136 : vector<1x8x1xf32> to vector<8x1xf32>
      %138 = vector.broadcast %137 : vector<8x1xf32> to vector<8x8xf32>
      %139 = arith.mulf %135, %138 : vector<8x8xf32>
      %140 = arith.truncf %139 : vector<8x8xf32> to vector<8x8xbf16>
      %c0_123 = arith.constant 0 : index
      %c8 = arith.constant 8 : index
      %141 = vector.load %arg22[%c0_123, %c8] : memref<8x32xbf16, #tpu.memory_space<vmem>>, vector<8x8xbf16>
      tpu.vector_store %arg22[%c0_123, %c8], %140 {strides = array<i32>} : memref<8x32xbf16, #tpu.memory_space<vmem>>, vector<8x8xbf16>,
      %c2_124 = arith.constant 2 : index
      %c0_125 = arith.constant 0 : index
      %c0_126 = arith.constant 0 : index
      %142 = vector.load %arg21[%c2_124, %c0_125, %c0_126] : memref<4x8x8xf32, #tpu.memory_space<vmem>>, vector<1x8x8xf32>
      %143 = vector.shape_cast %142 : vector<1x8x8xf32> to vector<8x8xf32>
      %144 = vector.extract_strided_slice %125 {offsets = [2, 0, 0], sizes = [1, 8, 1], strides = [1, 1, 1]} : vector<4x8x1xf32> to vector<1x8x1xf32>
      %145 = vector.shape_cast %144 : vector<1x8x1xf32> to vector<8x1xf32>
      %146 = vector.broadcast %145 : vector<8x1xf32> to vector<8x8xf32>
      %147 = arith.mulf %143, %146 : vector<8x8xf32>
      %148 = arith.truncf %147 : vector<8x8xf32> to vector<8x8xbf16>
      %c0_127 = arith.constant 0 : index
      %c16 = arith.constant 16 : index
      %149 = vector.load %arg22[%c0_127, %c16] : memref<8x32xbf16, #tpu.memory_space<vmem>>, vector<8x8xbf16>
      tpu.vector_store %arg22[%c0_127, %c16], %148 {strides = array<i32>} : memref<8x32xbf16, #tpu.memory_space<vmem>>, vector<8x8xbf16>,
      %c3_128 = arith.constant 3 : index
      %c0_129 = arith.constant 0 : index
      %c0_130 = arith.constant 0 : index
      %150 = vector.load %arg21[%c3_128, %c0_129, %c0_130] : memref<4x8x8xf32, #tpu.memory_space<vmem>>, vector<1x8x8xf32>
      %151 = vector.shape_cast %150 : vector<1x8x8xf32> to vector<8x8xf32>
      %152 = vector.extract_strided_slice %125 {offsets = [3, 0, 0], sizes = [1, 8, 1], strides = [1, 1, 1]} : vector<4x8x1xf32> to vector<1x8x1xf32>
      %153 = vector.shape_cast %152 : vector<1x8x1xf32> to vector<8x1xf32>
      %154 = vector.broadcast %153 : vector<8x1xf32> to vector<8x8xf32>
      %155 = arith.mulf %151, %154 : vector<8x8xf32>
      %156 = arith.truncf %155 : vector<8x8xf32> to vector<8x8xbf16>
      %c0_131 = arith.constant 0 : index
      %c24 = arith.constant 24 : index
      %157 = vector.load %arg22[%c0_131, %c24] : memref<8x32xbf16, #tpu.memory_space<vmem>>, vector<8x8xbf16>
      tpu.vector_store %arg22[%c0_131, %c24], %156 {strides = array<i32>} : memref<8x32xbf16, #tpu.memory_space<vmem>>, vector<8x8xbf16>,
      %c0_132 = arith.constant 0 : index
      %c0_133 = arith.constant 0 : index
      %158 = vector.load %arg22[%c0_132, %c0_133] : memref<8x32xbf16, #tpu.memory_space<vmem>>, vector<8x32xbf16>
      %c0_134 = arith.constant 0 : index
      %c0_135 = arith.constant 0 : index
      %159 = vector.load %arg11[%c0_134, %c0_135] : memref<32x32xbf16, #tpu.memory_space<vmem>>, vector<32x32xbf16>
      %cst_136 = arith.constant dense<0.000000e+00> : vector<8x32xf32>
      %160 = tpu.matmul %158, %159, %cst_136 {dimension_numbers = #tpu.dot_dimension_numbers<[1], [0], [0], [1], [0, 0, 1, 1], [], []>} : vector<8x32xbf16>, vector<32x32xbf16>, vector<8x32xf32> -> vector<8x32xf32>
      %c0_137 = arith.constant 0 : index
      %c0_138 = arith.constant 0 : index
      %161 = vector.load %arg12[%c0_137, %c0_138] : memref<1x32xf32, #tpu.memory_space<vmem>>, vector<1x32xf32>
      %162 = vector.broadcast %161 : vector<1x32xf32> to vector<8x32xf32>
      %163 = arith.addf %160, %162 : vector<8x32xf32>
      %c0_139 = arith.constant 0 : index
      %c0_140 = arith.constant 0 : index
      %c0_141 = arith.constant 0 : index
      %164 = vector.load %arg3[%c0_139, %c0_140, %c0_141] : memref<1x8x32xf32, #tpu.memory_space<vmem>>, vector<1x8x32xf32>
      %165 = vector.shape_cast %164 : vector<1x8x32xf32> to vector<8x32xf32>
      %166 = arith.addf %165, %163 : vector<8x32xf32>
      %c0_142 = arith.constant 0 : index
      %c0_143 = arith.constant 0 : index
      %167 = vector.load %arg13[%c0_142, %c0_143] : memref<1x32xf32, #tpu.memory_space<vmem>>, vector<1x32xf32>
      %c0_144 = arith.constant 0 : index
      %c0_145 = arith.constant 0 : index
      %168 = vector.load %arg14[%c0_144, %c0_145] : memref<1x32xf32, #tpu.memory_space<vmem>>, vector<1x32xf32>
      %cst_146 = arith.constant dense<0.000000e+00> : vector<8xf32>
      %169 = vector.multi_reduction <add>, %166, %cst_146 [1] : vector<8x32xf32> to vector<8xf32>
      %170 = vector.shape_cast %169 : vector<8xf32> to vector<8x1xf32>
      %cst_147 = arith.constant 3.200000e+01 : f32
      %171 = vector.broadcast %cst_147 : f32 to vector<8x1xf32>
      %172 = arith.divf %170, %171 : vector<8x1xf32>
      %173 = vector.broadcast %172 : vector<8x1xf32> to vector<8x32xf32>
      %174 = arith.subf %166, %173 : vector<8x32xf32>
      %175 = arith.mulf %174, %174 : vector<8x32xf32>
      %cst_148 = arith.constant dense<0.000000e+00> : vector<8xf32>
      %176 = vector.multi_reduction <add>, %175, %cst_148 [1] : vector<8x32xf32> to vector<8xf32>
      %177 = vector.shape_cast %176 : vector<8xf32> to vector<8x1xf32>
      %cst_149 = arith.constant 3.200000e+01 : f32
      %178 = vector.broadcast %cst_149 : f32 to vector<8x1xf32>
      %179 = arith.divf %177, %178 : vector<8x1xf32>
      %cst_150 = arith.constant 9.99999974E-6 : f32
      %180 = vector.broadcast %cst_150 : f32 to vector<8x1xf32>
      %181 = arith.addf %179, %180 : vector<8x1xf32>
      %182 = math.rsqrt %181 : vector<8x1xf32>
      %183 = vector.broadcast %182 : vector<8x1xf32> to vector<8x32xf32>
      %184 = arith.mulf %174, %183 : vector<8x32xf32>
      %185 = vector.broadcast %167 : vector<1x32xf32> to vector<8x32xf32>
      %186 = arith.mulf %184, %185 : vector<8x32xf32>
      %187 = vector.broadcast %168 : vector<1x32xf32> to vector<8x32xf32>
      %188 = arith.addf %186, %187 : vector<8x32xf32>
      %189 = arith.truncf %188 : vector<8x32xf32> to vector<8x32xbf16>
      %c0_151 = arith.constant 0 : index
      %c0_152 = arith.constant 0 : index
      %c0_153 = arith.constant 0 : index
      %190 = vector.load %arg15[%c0_151, %c0_152, %c0_153] : memref<1x8x32xbf16, #tpu.memory_space<vmem>>, vector<1x8x32xbf16>
      %191 = vector.shape_cast %190 : vector<1x8x32xbf16> to vector<8x32xbf16>
      %192 = vector.shape_cast %189 : vector<8x32xbf16> to vector<1x8x32xbf16>
      tpu.vector_store %arg15[%c0_151, %c0_152, %c0_153], %192 {strides = array<i32>} : memref<1x8x32xbf16, #tpu.memory_space<vmem>>, vector<1x8x32xbf16>,
    } else {
    }
    return
  }
  func.func @transform_0(%arg0: i32, %arg1: i32, %arg2: i32) -> (i32, i32, i32) {
    %c0_i32 = arith.constant 0 : i32
    %c0_i32_0 = arith.constant 0 : i32
    return %arg0, %arg1, %c0_i32 : i32, i32, i32
  }
  func.func @transform_1(%arg0: i32, %arg1: i32, %arg2: i32) -> (i32, i32, i32) {
    %c0_i32 = arith.constant 0 : i32
    %c0_i32_0 = arith.constant 0 : i32
    return %arg0, %c0_i32, %arg2 : i32, i32, i32
  }
  func.func @transform_2(%arg0: i32, %arg1: i32, %arg2: i32) -> (i32, i32, i32) {
    %c0_i32 = arith.constant 0 : i32
    %c0_i32_0 = arith.constant 0 : i32
    %c0_i32_1 = arith.constant 0 : i32
    %c0_i32_2 = arith.constant 0 : i32
    return %c0_i32, %c0_i32_0, %c0_i32_1 : i32, i32, i32
  }
  func.func @transform_3(%arg0: i32, %arg1: i32, %arg2: i32) -> (i32, i32, i32) {
    %c0_i32 = arith.constant 0 : i32
    %c0_i32_0 = arith.constant 0 : i32
    %c0_i32_1 = arith.constant 0 : i32
    %c0_i32_2 = arith.constant 0 : i32
    return %c0_i32, %c0_i32_0, %c0_i32_1 : i32, i32, i32
  }
  func.func @transform_4(%arg0: i32, %arg1: i32, %arg2: i32) -> (i32, i32, i32) {
    %c0_i32 = arith.constant 0 : i32
    %c0_i32_0 = arith.constant 0 : i32
    %c0_i32_1 = arith.constant 0 : i32
    %c0_i32_2 = arith.constant 0 : i32
    return %c0_i32, %c0_i32_0, %c0_i32_1 : i32, i32, i32
  }
  func.func @transform_5(%arg0: i32, %arg1: i32, %arg2: i32) -> (i32, i32, i32) {
    %c0_i32 = arith.constant 0 : i32
    %c0_i32_0 = arith.constant 0 : i32
    %c0_i32_1 = arith.constant 0 : i32
    %c0_i32_2 = arith.constant 0 : i32
    return %c0_i32, %c0_i32_0, %c0_i32_1 : i32, i32, i32
  }
  func.func @transform_6(%arg0: i32, %arg1: i32, %arg2: i32) -> (i32, i32, i32) {
    %c0_i32 = arith.constant 0 : i32
    %c0_i32_0 = arith.constant 0 : i32
    %c0_i32_1 = arith.constant 0 : i32
    %c0_i32_2 = arith.constant 0 : i32
    return %c0_i32, %c0_i32_0, %c0_i32_1 : i32, i32, i32
  }
  func.func @transform_7(%arg0: i32, %arg1: i32, %arg2: i32) -> (i32, i32, i32) {
    %c0_i32 = arith.constant 0 : i32
    %c0_i32_0 = arith.constant 0 : i32
    %c0_i32_1 = arith.constant 0 : i32
    %c0_i32_2 = arith.constant 0 : i32
    return %c0_i32, %c0_i32_0, %c0_i32_1 : i32, i32, i32
  }
  func.func @transform_8(%arg0: i32, %arg1: i32, %arg2: i32) -> (i32, i32) {
    %c0_i32 = arith.constant 0 : i32
    %c0_i32_0 = arith.constant 0 : i32
    %c0_i32_1 = arith.constant 0 : i32
    return %c0_i32, %c0_i32_0 : i32, i32
  }
  func.func @transform_9(%arg0: i32, %arg1: i32, %arg2: i32) -> (i32, i32) {
    %c0_i32 = arith.constant 0 : i32
    %c0_i32_0 = arith.constant 0 : i32
    %c0_i32_1 = arith.constant 0 : i32
    return %c0_i32, %c0_i32_0 : i32, i32
  }
  func.func @transform_10(%arg0: i32, %arg1: i32, %arg2: i32) -> (i32, i32) {
    %c0_i32 = arith.constant 0 : i32
    %c0_i32_0 = arith.constant 0 : i32
    %c0_i32_1 = arith.constant 0 : i32
    return %c0_i32, %c0_i32_0 : i32, i32
  }
  func.func @transform_11(%arg0: i32, %arg1: i32, %arg2: i32) -> (i32, i32) {
    %c0_i32 = arith.constant 0 : i32
    %c0_i32_0 = arith.constant 0 : i32
    %c0_i32_1 = arith.constant 0 : i32
    return %c0_i32, %c0_i32_0 : i32, i32
  }
  func.func @transform_12(%arg0: i32, %arg1: i32, %arg2: i32) -> (i32, i32, i32) {
    %c0_i32 = arith.constant 0 : i32
    %c0_i32_0 = arith.constant 0 : i32
    return %arg0, %arg1, %c0_i32 : i32, i32, i32
  }
}

module attributes {stable_mosaic.version = 11 : i64} {
  func.func @_ffn_ln_kernel(%arg0: i32, %arg1: i32, %arg2: memref<8x32xbf16, #tpu.memory_space<vmem>>, %arg3: memref<32x128xbf16, #tpu.memory_space<vmem>>, %arg4: memref<1x128xf32, #tpu.memory_space<vmem>>, %arg5: memref<128x32xbf16, #tpu.memory_space<vmem>>, %arg6: memref<1x32xf32, #tpu.memory_space<vmem>>, %arg7: memref<1x32xf32, #tpu.memory_space<vmem>>, %arg8: memref<1x32xf32, #tpu.memory_space<vmem>>, %arg9: memref<8x32xf32, #tpu.memory_space<vmem>>, %arg10: memref<8x32xf32, #tpu.memory_space<vmem>>) attributes {dimension_semantics = [#tpu.dimension_semantics<parallel>, #tpu.dimension_semantics<arbitrary>], iteration_bounds = array<i64: 2, 1>, scalar_prefetch = 0 : i64, scratch_operands = 1 : i64, tpu.core_type = #tpu.core_type<tc>, window_params = [{transform_indices = @transform_0, window_bounds = array<i64: 8, 32>}, {transform_indices = @transform_1, window_bounds = array<i64: 32, 128>}, {transform_indices = @transform_2, window_bounds = array<i64: 1, 128>}, {transform_indices = @transform_3, window_bounds = array<i64: 128, 32>}, {pipeline_mode = #tpu.pipeline_mode<synchronous>, transform_indices = @transform_4, window_bounds = array<i64: 1, 32>}, {pipeline_mode = #tpu.pipeline_mode<synchronous>, transform_indices = @transform_5, window_bounds = array<i64: 1, 32>}, {pipeline_mode = #tpu.pipeline_mode<synchronous>, transform_indices = @transform_6, window_bounds = array<i64: 1, 32>}, {transform_indices = @transform_7, window_bounds = array<i64: 8, 32>}]} {
    %c0_i32 = arith.constant 0 : i32
    %0 = arith.cmpi eq, %arg1, %c0_i32 : i32
    %1 = arith.extui %0 : i1 to i32
    %c0_i32_0 = arith.constant 0 : i32
    %2 = arith.cmpi ne, %1, %c0_i32_0 : i32
    scf.if %2 {
      %cst_16 = arith.constant 0.000000e+00 : f32
      %20 = vector.broadcast %cst_16 : f32 to vector<8x32xf32>
      %c0_17 = arith.constant 0 : index
      %c0_18 = arith.constant 0 : index
      %21 = vector.load %arg10[%c0_17, %c0_18] : memref<8x32xf32, #tpu.memory_space<vmem>>, vector<8x32xf32>
      tpu.vector_store %arg10[%c0_17, %c0_18], %20 {strides = array<i32>} : memref<8x32xf32, #tpu.memory_space<vmem>>, vector<8x32xf32>,
    } else {
    }
    %c0 = arith.constant 0 : index
    %c0_1 = arith.constant 0 : index
    %3 = vector.load %arg2[%c0, %c0_1] : memref<8x32xbf16, #tpu.memory_space<vmem>>, vector<8x32xbf16>
    %c0_2 = arith.constant 0 : index
    %c0_3 = arith.constant 0 : index
    %4 = vector.load %arg3[%c0_2, %c0_3] : memref<32x128xbf16, #tpu.memory_space<vmem>>, vector<32x128xbf16>
    %cst = arith.constant dense<0.000000e+00> : vector<8x128xf32>
    %5 = tpu.matmul %3, %4, %cst {dimension_numbers = #tpu.dot_dimension_numbers<[1], [0], [0], [1], [0, 0, 1, 1], [], []>} : vector<8x32xbf16>, vector<32x128xbf16>, vector<8x128xf32> -> vector<8x128xf32>
    %c0_4 = arith.constant 0 : index
    %c0_5 = arith.constant 0 : index
    %6 = vector.load %arg4[%c0_4, %c0_5] : memref<1x128xf32, #tpu.memory_space<vmem>>, vector<1x128xf32>
    %7 = vector.broadcast %6 : vector<1x128xf32> to vector<8x128xf32>
    %8 = arith.addf %5, %7 : vector<8x128xf32>
    %cst_6 = arith.constant 0.000000e+00 : f32
    %9 = vector.broadcast %cst_6 : f32 to vector<8x128xf32>
    %10 = arith.maximumf %8, %9 : vector<8x128xf32>
    %c0_7 = arith.constant 0 : index
    %c0_8 = arith.constant 0 : index
    %11 = vector.load %arg10[%c0_7, %c0_8] : memref<8x32xf32, #tpu.memory_space<vmem>>, vector<8x32xf32>
    %12 = arith.truncf %10 : vector<8x128xf32> to vector<8x128xbf16>
    %c0_9 = arith.constant 0 : index
    %c0_10 = arith.constant 0 : index
    %13 = vector.load %arg5[%c0_9, %c0_10] : memref<128x32xbf16, #tpu.memory_space<vmem>>, vector<128x32xbf16>
    %cst_11 = arith.constant dense<0.000000e+00> : vector<8x32xf32>
    %14 = tpu.matmul %12, %13, %cst_11 {dimension_numbers = #tpu.dot_dimension_numbers<[1], [0], [0], [1], [0, 0, 1, 1], [], []>} : vector<8x128xbf16>, vector<128x32xbf16>, vector<8x32xf32> -> vector<8x32xf32>
    %15 = arith.addf %11, %14 : vector<8x32xf32>
    %c0_12 = arith.constant 0 : index
    %c0_13 = arith.constant 0 : index
    %16 = vector.load %arg10[%c0_12, %c0_13] : memref<8x32xf32, #tpu.memory_space<vmem>>, vector<8x32xf32>
    tpu.vector_store %arg10[%c0_12, %c0_13], %15 {strides = array<i32>} : memref<8x32xf32, #tpu.memory_space<vmem>>, vector<8x32xf32>,
    %c0_i32_14 = arith.constant 0 : i32
    %17 = arith.cmpi eq, %arg1, %c0_i32_14 : i32
    %18 = arith.extui %17 : i1 to i32
    %c0_i32_15 = arith.constant 0 : i32
    %19 = arith.cmpi ne, %18, %c0_i32_15 : i32
    scf.if %19 {
      %c0_16 = arith.constant 0 : index
      %c0_17 = arith.constant 0 : index
      %20 = vector.load %arg10[%c0_16, %c0_17] : memref<8x32xf32, #tpu.memory_space<vmem>>, vector<8x32xf32>
      %c0_18 = arith.constant 0 : index
      %c0_19 = arith.constant 0 : index
      %21 = vector.load %arg6[%c0_18, %c0_19] : memref<1x32xf32, #tpu.memory_space<vmem>>, vector<1x32xf32>
      %22 = vector.broadcast %21 : vector<1x32xf32> to vector<8x32xf32>
      %23 = arith.addf %20, %22 : vector<8x32xf32>
      %c0_20 = arith.constant 0 : index
      %c0_21 = arith.constant 0 : index
      %24 = vector.load %arg2[%c0_20, %c0_21] : memref<8x32xbf16, #tpu.memory_space<vmem>>, vector<8x32xbf16>
      %25 = arith.extf %24 : vector<8x32xbf16> to vector<8x32xf32>
      %26 = arith.addf %25, %23 : vector<8x32xf32>
      %c0_22 = arith.constant 0 : index
      %c0_23 = arith.constant 0 : index
      %27 = vector.load %arg7[%c0_22, %c0_23] : memref<1x32xf32, #tpu.memory_space<vmem>>, vector<1x32xf32>
      %c0_24 = arith.constant 0 : index
      %c0_25 = arith.constant 0 : index
      %28 = vector.load %arg8[%c0_24, %c0_25] : memref<1x32xf32, #tpu.memory_space<vmem>>, vector<1x32xf32>
      %cst_26 = arith.constant dense<0.000000e+00> : vector<8xf32>
      %29 = vector.multi_reduction <add>, %26, %cst_26 [1] : vector<8x32xf32> to vector<8xf32>
      %30 = vector.shape_cast %29 : vector<8xf32> to vector<8x1xf32>
      %cst_27 = arith.constant 3.200000e+01 : f32
      %31 = vector.broadcast %cst_27 : f32 to vector<8x1xf32>
      %32 = arith.divf %30, %31 : vector<8x1xf32>
      %33 = vector.broadcast %32 : vector<8x1xf32> to vector<8x32xf32>
      %34 = arith.subf %26, %33 : vector<8x32xf32>
      %35 = arith.mulf %34, %34 : vector<8x32xf32>
      %cst_28 = arith.constant dense<0.000000e+00> : vector<8xf32>
      %36 = vector.multi_reduction <add>, %35, %cst_28 [1] : vector<8x32xf32> to vector<8xf32>
      %37 = vector.shape_cast %36 : vector<8xf32> to vector<8x1xf32>
      %cst_29 = arith.constant 3.200000e+01 : f32
      %38 = vector.broadcast %cst_29 : f32 to vector<8x1xf32>
      %39 = arith.divf %37, %38 : vector<8x1xf32>
      %cst_30 = arith.constant 9.99999974E-6 : f32
      %40 = vector.broadcast %cst_30 : f32 to vector<8x1xf32>
      %41 = arith.addf %39, %40 : vector<8x1xf32>
      %42 = math.rsqrt %41 : vector<8x1xf32>
      %43 = vector.broadcast %42 : vector<8x1xf32> to vector<8x32xf32>
      %44 = arith.mulf %34, %43 : vector<8x32xf32>
      %45 = vector.broadcast %27 : vector<1x32xf32> to vector<8x32xf32>
      %46 = arith.mulf %44, %45 : vector<8x32xf32>
      %47 = vector.broadcast %28 : vector<1x32xf32> to vector<8x32xf32>
      %48 = arith.addf %46, %47 : vector<8x32xf32>
      %c0_31 = arith.constant 0 : index
      %c0_32 = arith.constant 0 : index
      %49 = vector.load %arg9[%c0_31, %c0_32] : memref<8x32xf32, #tpu.memory_space<vmem>>, vector<8x32xf32>
      tpu.vector_store %arg9[%c0_31, %c0_32], %48 {strides = array<i32>} : memref<8x32xf32, #tpu.memory_space<vmem>>, vector<8x32xf32>,
    } else {
    }
    return
  }
  func.func @transform_0(%arg0: i32, %arg1: i32) -> (i32, i32) {
    %c0_i32 = arith.constant 0 : i32
    %c0_i32_0 = arith.constant 0 : i32
    return %arg0, %c0_i32 : i32, i32
  }
  func.func @transform_1(%arg0: i32, %arg1: i32) -> (i32, i32) {
    %c0_i32 = arith.constant 0 : i32
    %c0_i32_0 = arith.constant 0 : i32
    return %c0_i32, %arg1 : i32, i32
  }
  func.func @transform_2(%arg0: i32, %arg1: i32) -> (i32, i32) {
    %c0_i32 = arith.constant 0 : i32
    %c0_i32_0 = arith.constant 0 : i32
    return %c0_i32, %arg1 : i32, i32
  }
  func.func @transform_3(%arg0: i32, %arg1: i32) -> (i32, i32) {
    %c0_i32 = arith.constant 0 : i32
    %c0_i32_0 = arith.constant 0 : i32
    return %arg1, %c0_i32 : i32, i32
  }
  func.func @transform_4(%arg0: i32, %arg1: i32) -> (i32, i32) {
    %c0_i32 = arith.constant 0 : i32
    %c0_i32_0 = arith.constant 0 : i32
    %c0_i32_1 = arith.constant 0 : i32
    return %c0_i32, %c0_i32_0 : i32, i32
  }
  func.func @transform_5(%arg0: i32, %arg1: i32) -> (i32, i32) {
    %c0_i32 = arith.constant 0 : i32
    %c0_i32_0 = arith.constant 0 : i32
    %c0_i32_1 = arith.constant 0 : i32
    return %c0_i32, %c0_i32_0 : i32, i32
  }
  func.func @transform_6(%arg0: i32, %arg1: i32) -> (i32, i32) {
    %c0_i32 = arith.constant 0 : i32
    %c0_i32_0 = arith.constant 0 : i32
    %c0_i32_1 = arith.constant 0 : i32
    return %c0_i32, %c0_i32_0 : i32, i32
  }
  func.func @transform_7(%arg0: i32, %arg1: i32) -> (i32, i32) {
    %c0_i32 = arith.constant 0 : i32
    %c0_i32_0 = arith.constant 0 : i32
    return %arg0, %c0_i32 : i32, i32
  }
}

</mosaic_0001>

<llo_original>
// kernel: cross_attention_forward.5
$region0: #{cross_attention_forward.5}
  #allocation0 [shape = 'u32[]', space=smem, size = 0x4, offset = 0x4, fixed_abs, tag = 'smem constant byte address 0x4 - core index']
  #allocation1 [shape = 'u32[144,128]{1,0:T(1,128)}', space=vmem, size = 0x12000, scoped, tag = 'internal scratch']
  #allocation2 [shape = 'f32[8,32]{1,0:T(8,128)}', space=vmem, size = 0x1000, scoped, tag = 'scratch operand']
  %s0 = inlined_call_operand.vmem [shape: bf16[16,32], index: 0, kind: input, shape index: {}]
  %s1 = inlined_call_operand.vmem [shape: bf16[32,128], index: 1, kind: input, shape index: {}]
  %s2 = inlined_call_operand.vmem [shape: f32[1,128], index: 2, kind: input, shape index: {}]
  %s3 = inlined_call_operand.vmem [shape: bf16[128,32], index: 3, kind: input, shape index: {}]
  %s4 = inlined_call_operand.vmem [shape: f32[1,32], index: 4, kind: input, shape index: {}]
  %s5 = inlined_call_operand.vmem [shape: f32[1,32], index: 5, kind: input, shape index: {}]
  %s6 = inlined_call_operand.vmem [shape: f32[1,32], index: 6, kind: input, shape index: {}]
  %s7 = inlined_call_operand.hbm [shape: f32[16,32], index: 7, kind: output, shape index: {}]
  %s8 = sld [smem:[#allocation0]]
  $region69: #{cross_attention_forward.5} parent=0
    _
  %s10 = ssub.s32 1, %s8
  %s11 = scalar_select 0, %s10, %s8
  $region1: #{cross_attention_forward.5} parent=0
    #allocation3 [shape = 'u8[8192]{0}', space=vmem, size = 0x2000, scoped, tag = 'output window, operand 0']
    #allocation4 [shape = 's32[2]{0}', space=sflag, size = 0x8, scoped, tag = 'scoped memory for cross_attention_forward.5']
    %12 = vsyncpa [#allocation4], 0
    %s13 = scalar_lea.sflag [#allocation4], 1
    %14 = vsyncpa %s13, 0
    loop: start=0, step=1, limit=4
    $region2: #{cross_attention_forward.5} parent=1 // loop_pre_header
      _
    $region3: #{cross_attention_forward.5} parent=1 // loop_header
      %s16 = sphi 0, %s20
      %p17 = scmp.ge.s32.totalorder %s16, 4
      %s23 = sphi 0, %s35
      %s24 = sphi 0, %s31
      %s25 = sphi 0, %s23
      %s26 = sphi 0, %s24
      %s27 = sphi 0, %s25
      %s28 = sphi 0, %s26
      %s38 = sphi 0, %s40
      %s41 = sphi 0, %s38
      %s42 = sphi 0, %s41
      %s58 = sphi 0, %s42
      %s64 = sphi 0, %s66
      %s67 = sphi 0, %s64
      %s68 = sphi 0, %s67
      %s84 = sphi 0, %s68
      %s90 = sphi 0, %s92
      %s93 = sphi 0, %s90
      %s94 = sphi 0, %s93
      %s110 = sphi 0, %s94
      %s116 = sphi 0, %s118
      %s119 = sphi 0, %s116
      %s120 = sphi 0, %s119
      %s136 = sphi 0, %s120
      %s140 = sphi 0, %s140
      %s142 = sphi 0, %s140
      %s143 = sphi 0, %s142
      %s157 = sphi 0, %s143
      %s161 = sphi 0, %s161
      %s163 = sphi 0, %s161
      %s164 = sphi 0, %s163
      %s178 = sphi 0, %s164
      %s182 = sphi 0, %s182
      %s184 = sphi 0, %s182
      %s185 = sphi 0, %s184
      %s199 = sphi 0, %s185
      %s205 = sphi 0, %s207
      %s208 = sphi 0, %s205
      %s209 = sphi 0, %s208
      %s225 = sphi 0, %s209
    $region4: #{cross_attention_forward.5} parent=1 // loop_header_branch
      %19 = sbr.rel (%p17) target = $region8
    $region5: #{cross_attention_forward.5} parent=1 // loop_body
      %s21 = ssub.s32 %s16, 1
      %s22 = ssub.s32 %s16, 2
      %s29 = sadd.s32 1, %s24
      %p30 = scmp.ge.s32.totalorder %s29, 1
      %s31 = scalar_select %p30, 0, %s29
      %s32 = sadd.s32 1, %s23
      %s33 = scalar_select %p30, %s32, %s23
      %p34 = scmp.ge.s32.totalorder %s33, 2
      %s35 = scalar_select %p34, 0, %s33
      %s36 = ssub.s32 %s23, %s35
      %p37 = scmp.eq.s32.totalorder %s36, 0
      %s39 = sadd.s32 %s38, 1
      %s40 = scalar_select %p37, %s38, %s39
      %p43 = pneg %p37
      %p44 = scmp.eq.s32.totalorder %s16, 1
      %p45 = por %p43, %p44
      %p46 = scmp.ne.s32.totalorder %s38, %s41
      %p47 = scmp.eq.s32.totalorder %s16, 0
      %p48 = por %p46, %p47
      %p49 = scmp.ne.s32.totalorder %s38, %s41
      %p50 = scmp.eq.s32.totalorder %s21, 1
      %p51 = por %p49, %p50
      %p52 = scmp.ne.s32.totalorder %s41, %s42
      %p53 = scmp.eq.s32.totalorder %s21, 0
      %p54 = por %p52, %p53
      %p55 = scmp.ne.s32.totalorder %s41, %s42
      %p56 = scmp.eq.s32.totalorder %s22, 1
      %p57 = por %p55, %p56
      %p59 = scmp.ne.s32.totalorder %s42, %s58
      %p60 = scmp.eq.s32.totalorder %s22, 0
      %p61 = por %p59, %p60
      %s62 = ssub.s32 %s24, %s31
      %p63 = scmp.eq.s32.totalorder %s62, 0
      %s65 = sadd.s32 %s64, 1
      %s66 = scalar_select %p63, %s64, %s65
      %p69 = pneg %p63
      %p70 = scmp.eq.s32.totalorder %s16, 1
      %p71 = por %p69, %p70
      %p72 = scmp.ne.s32.totalorder %s64, %s67
      %p73 = scmp.eq.s32.totalorder %s16, 0
      %p74 = por %p72, %p73
      %p75 = scmp.ne.s32.totalorder %s64, %s67
      %p76 = scmp.eq.s32.totalorder %s21, 1
      %p77 = por %p75, %p76
      %p78 = scmp.ne.s32.totalorder %s67, %s68
      %p79 = scmp.eq.s32.totalorder %s21, 0
      %p80 = por %p78, %p79
      %p81 = scmp.ne.s32.totalorder %s67, %s68
      %p82 = scmp.eq.s32.totalorder %s22, 1
      %p83 = por %p81, %p82
      %p85 = scmp.ne.s32.totalorder %s68, %s84
      %p86 = scmp.eq.s32.totalorder %s22, 0
      %p87 = por %p85, %p86
      %s88 = ssub.s32 %s24, %s31
      %p89 = scmp.eq.s32.totalorder %s88, 0
      %s91 = sadd.s32 %s90, 1
      %s92 = scalar_select %p89, %s90, %s91
      %p95 = pneg %p89
      %p96 = scmp.eq.s32.totalorder %s16, 1
      %p97 = por %p95, %p96
      %p98 = scmp.ne.s32.totalorder %s90, %s93
      %p99 = scmp.eq.s32.totalorder %s16, 0
      %p100 = por %p98, %p99
      %p101 = scmp.ne.s32.totalorder %s90, %s93
      %p102 = scmp.eq.s32.totalorder %s21, 1
      %p103 = por %p101, %p102
      %p104 = scmp.ne.s32.totalorder %s93, %s94
      %p105 = scmp.eq.s32.totalorder %s21, 0
      %p106 = por %p104, %p105
      %p107 = scmp.ne.s32.totalorder %s93, %s94
      %p108 = scmp.eq.s32.totalorder %s22, 1
      %p109 = por %p107, %p108
      %p111 = scmp.ne.s32.totalorder %s94, %s110
      %p112 = scmp.eq.s32.totalorder %s22, 0
      %p113 = por %p111, %p112
      %s114 = ssub.s32 %s24, %s31
      %p115 = scmp.eq.s32.totalorder %s114, 0
      %s117 = sadd.s32 %s116, 1
      %s118 = scalar_select %p115, %s116, %s117
      %p121 = pneg %p115
      %p122 = scmp.eq.s32.totalorder %s16, 1
      %p123 = por %p121, %p122
      %p124 = scmp.ne.s32.totalorder %s116, %s119
      %p125 = scmp.eq.s32.totalorder %s16, 0
      %p126 = por %p124, %p125
      %p127 = scmp.ne.s32.totalorder %s116, %s119
      %p128 = scmp.eq.s32.totalorder %s21, 1
      %p129 = por %p127, %p128
      %p130 = scmp.ne.s32.totalorder %s119, %s120
      %p131 = scmp.eq.s32.totalorder %s21, 0
      %p132 = por %p130, %p131
      %p133 = scmp.ne.s32.totalorder %s119, %s120
      %p134 = scmp.eq.s32.totalorder %s22, 1
      %p135 = por %p133, %p134
      %p137 = scmp.ne.s32.totalorder %s120, %s136
      %p138 = scmp.eq.s32.totalorder %s22, 0
      %p139 = por %p137, %p138
      %s141 = sadd.s32 %s140, 1
      %p144 = scmp.eq.s32.totalorder %s16, 1
      %p145 = scmp.ne.s32.totalorder %s140, %s142
      %p146 = scmp.eq.s32.totalorder %s16, 0
      %p147 = por %p145, %p146
      %p148 = scmp.ne.s32.totalorder %s140, %s142
      %p149 = scmp.eq.s32.totalorder %s21, 1
      %p150 = por %p148, %p149
      %p151 = scmp.ne.s32.totalorder %s142, %s143
      %p152 = scmp.eq.s32.totalorder %s21, 0
      %p153 = por %p151, %p152
      %p154 = scmp.ne.s32.totalorder %s142, %s143
      %p155 = scmp.eq.s32.totalorder %s22, 1
      %p156 = por %p154, %p155
      %p158 = scmp.ne.s32.totalorder %s143, %s157
      %p159 = scmp.eq.s32.totalorder %s22, 0
      %p160 = por %p158, %p159
      %s162 = sadd.s32 %s161, 1
      %p165 = scmp.eq.s32.totalorder %s16, 1
      %p166 = scmp.ne.s32.totalorder %s161, %s163
      %p167 = scmp.eq.s32.totalorder %s16, 0
      %p168 = por %p166, %p167
      %p169 = scmp.ne.s32.totalorder %s161, %s163
      %p170 = scmp.eq.s32.totalorder %s21, 1
      %p171 = por %p169, %p170
      %p172 = scmp.ne.s32.totalorder %s163, %s164
      %p173 = scmp.eq.s32.totalorder %s21, 0
      %p174 = por %p172, %p173
      %p175 = scmp.ne.s32.totalorder %s163, %s164
      %p176 = scmp.eq.s32.totalorder %s22, 1
      %p177 = por %p175, %p176
      %p179 = scmp.ne.s32.totalorder %s164, %s178
      %p180 = scmp.eq.s32.totalorder %s22, 0
      %p181 = por %p179, %p180
      %s183 = sadd.s32 %s182, 1
      %p186 = scmp.eq.s32.totalorder %s16, 1
      %p187 = scmp.ne.s32.totalorder %s182, %s184
      %p188 = scmp.eq.s32.totalorder %s16, 0
      %p189 = por %p187, %p188
      %p190 = scmp.ne.s32.totalorder %s182, %s184
      %p191 = scmp.eq.s32.totalorder %s21, 1
      %p192 = por %p190, %p191
      %p193 = scmp.ne.s32.totalorder %s184, %s185
      %p194 = scmp.eq.s32.totalorder %s21, 0
      %p195 = por %p193, %p194
      %p196 = scmp.ne.s32.totalorder %s184, %s185
      %p197 = scmp.eq.s32.totalorder %s22, 1
      %p198 = por %p196, %p197
      %p200 = scmp.ne.s32.totalorder %s185, %s199
      %p201 = scmp.eq.s32.totalorder %s22, 0
      %p202 = por %p200, %p201
      %s203 = ssub.s32 %s23, %s35
      %p204 = scmp.eq.s32.totalorder %s203, 0
      %s206 = sadd.s32 %s205, 1
      %s207 = scalar_select %p204, %s205, %s206
      %p210 = pneg %p204
      %p211 = scmp.eq.s32.totalorder %s16, 1
      %p212 = por %p210, %p211
      %p213 = scmp.ne.s32.totalorder %s205, %s208
      %p214 = scmp.eq.s32.totalorder %s16, 0
      %p215 = por %p213, %p214
      %p216 = scmp.ne.s32.totalorder %s205, %s208
      %p217 = scmp.eq.s32.totalorder %s21, 1
      %p218 = por %p216, %p217
      %p219 = scmp.ne.s32.totalorder %s208, %s209
      %p220 = scmp.eq.s32.totalorder %s21, 0
      %p221 = por %p219, %p220
      %p222 = scmp.ne.s32.totalorder %s208, %s209
      %p223 = scmp.eq.s32.totalorder %s22, 1
      %p224 = por %p222, %p223
      %p226 = scmp.ne.s32.totalorder %s209, %s225
      %p227 = scmp.eq.s32.totalorder %s22, 0
      %p228 = por %p226, %p227
      %p229 = scmp.le.s32.totalorder 1, %s16
      %p230 = scmp.lt.s32.totalorder %s16, 3
      %p231 = pnand %p229, %p230
      %p232 = pneg %p231
      // Predicated region
      $region9: #{cross_attention_forward.5} parent=5 // pred_check
        _
      $region10: #{cross_attention_forward.5} parent=5 // pred_check_branch
        %234 = sbr.rel (%p231) target = $region12
      $region11: #{cross_attention_forward.5} parent=5 // pred_region
        %s235 = ssub.s32 %s16, 1
        // Predicated region
        $region13: #{cross_attention_forward.5} parent=11 // pred_check
          %p236 = pneg %p80
        $region14: #{cross_attention_forward.5} parent=11 // pred_check_branch
          %238 = sbr.rel (%p236) target = $region16
        $region15: #{cross_attention_forward.5} parent=11 // pred_region
          %p239 = scmp.lt.s32.totalorder %s26, 0
          %s240 = scalar_select %p239, %s26, 0
          %s241 = smul.addr %s240, 4
          %s242 = scalar_lea.vmem %s1, %s241
        $region16: #{cross_attention_forward.5} parent=11 // pred_fallthru
          _
        // Predicated region
        $region17: #{cross_attention_forward.5} parent=11 // pred_check
          %p243 = pneg %p106
        $region18: #{cross_attention_forward.5} parent=11 // pred_check_branch
          %245 = sbr.rel (%p243) target = $region20
        $region19: #{cross_attention_forward.5} parent=11 // pred_region
          %p246 = scmp.lt.s32.totalorder %s26, 0
          %s247 = scalar_select %p246, %s26, 0
          %s248 = scalar_lea.vmem %s2, %s247
        $region20: #{cross_attention_forward.5} parent=11 // pred_fallthru
          _
        // Predicated region
        $region21: #{cross_attention_forward.5} parent=11 // pred_check
          %p249 = pneg %p132
        $region22: #{cross_attention_forward.5} parent=11 // pred_check_branch
          %251 = sbr.rel (%p249) target = $region24
        $region23: #{cross_attention_forward.5} parent=11 // pred_region
          %s252 = smul.u32 16, %s26
          %p253 = scmp.lt.s32.totalorder %s252, 15
          %s254 = scalar_select %p253, %s252, 15
          %s255 = smul.addr %s254, 4
          %s256 = scalar_lea.vmem %s3, %s255
          %s257 = smul.u32 16, %s26
        $region24: #{cross_attention_forward.5} parent=11 // pred_fallthru
          _
        // Predicated region
        $region25: #{cross_attention_forward.5} parent=11 // pred_check
          %p258 = pneg %p153
        $region26: #{cross_attention_forward.5} parent=11 // pred_check_branch
          %260 = sbr.rel (%p258) target = $region28
        $region27: #{cross_attention_forward.5} parent=11 // pred_region
          _
        $region28: #{cross_attention_forward.5} parent=11 // pred_fallthru
          _
        // Predicated region
        $region29: #{cross_attention_forward.5} parent=11 // pred_check
          %p261 = pneg %p174
        $region30: #{cross_attention_forward.5} parent=11 // pred_check_branch
          %263 = sbr.rel (%p261) target = $region32
        $region31: #{cross_attention_forward.5} parent=11 // pred_region
          _
        $region32: #{cross_attention_forward.5} parent=11 // pred_fallthru
          _
        // Predicated region
        $region33: #{cross_attention_forward.5} parent=11 // pred_check
          %p264 = pneg %p195
        $region34: #{cross_attention_forward.5} parent=11 // pred_check_branch
          %266 = sbr.rel (%p264) target = $region36
        $region35: #{cross_attention_forward.5} parent=11 // pred_region
          _
        $region36: #{cross_attention_forward.5} parent=11 // pred_fallthru
          _
      $region12: #{cross_attention_forward.5} parent=5 // pred_fallthru
        _
      %p267 = scmp.lt.s32.totalorder %s16, 2
      // Predicated region
      $region37: #{cross_attention_forward.5} parent=5 // pred_check
        %p268 = pneg %p267
      $region38: #{cross_attention_forward.5} parent=5 // pred_check_branch
        %270 = sbr.rel (%p268) target = $region40
      $region39: #{cross_attention_forward.5} parent=5 // pred_region
        // Predicated region
        $region41: #{cross_attention_forward.5} parent=39 // pred_check
          %p271 = pneg %p48
        $region42: #{cross_attention_forward.5} parent=39 // pred_check_branch
          %273 = sbr.rel (%p271) target = $region44
        $region43: #{cross_attention_forward.5} parent=39 // pred_region
          %p274 = scmp.lt.s32.totalorder %s23, 1
          %s275 = scalar_select %p274, %s23, 1
          %s276 = smul.addr %s275, 4
          %s277 = scalar_lea.vmem %s0, %s276
        $region44: #{cross_attention_forward.5} parent=39 // pred_fallthru
          _
      $region40: #{cross_attention_forward.5} parent=5 // pred_fallthru
        _
      %p278 = scmp.le.s32.totalorder 1, %s16
      %p279 = scmp.lt.s32.totalorder %s16, 3
      %p280 = pnand %p278, %p279
      %p281 = pneg %p280
      // Predicated region
      $region45: #{cross_attention_forward.5} parent=5 // pred_check
        _
      $region46: #{cross_attention_forward.5} parent=5 // pred_check_branch
        %283 = sbr.rel (%p280) target = $region48
      $region47: #{cross_attention_forward.5} parent=5 // pred_region
        %s284 = ssub.s32 %s16, 1
        %p285 = scmp.lt.s32.totalorder %s25, 1
        %s286 = scalar_select %p285, %s25, 1
        %s287 = smul.addr %s286, 4
        %s288 = scalar_lea.vmem %s0, %s287
        %p289 = pneg %p54
        %p290 = pneg %p51
        %p291 = scmp.lt.s32.totalorder %s26, 0
        %s292 = scalar_select %p291, %s26, 0
        %s293 = smul.addr %s292, 4
        %s294 = scalar_lea.vmem %s1, %s293
        %p295 = pneg %p80
        %p296 = pneg %p77
        %p297 = scmp.lt.s32.totalorder %s26, 0
        %s298 = scalar_select %p297, %s26, 0
        %s299 = scalar_lea.vmem %s2, %s298
        %p300 = pneg %p106
        %p301 = pneg %p103
        %s302 = smul.u32 16, %s26
        %p303 = scmp.lt.s32.totalorder %s302, 15
        %s304 = scalar_select %p303, %s302, 15
        %s305 = smul.addr %s304, 4
        %s306 = scalar_lea.vmem %s3, %s305
        %p307 = pneg %p132
        %p308 = pneg %p129
        %p309 = pneg %p153
        %p310 = pneg %p150
        %p311 = pneg %p174
        %p312 = pneg %p171
        %p313 = pneg %p195
        %p314 = pneg %p192
        %p315 = pneg %p221
        %p316 = pneg %p218
        %s317 = sand.u32 %s208, 1
        %s318 = scalar_lea.sflag [#allocation4], %s317
        %s319 = sand.u32 %s208, 1
        %s320 = smul.addr %s319, 8
        %s321 = scalar_lea.vmem [#allocation3], %s320
        %p322 = scmp.lt.s32.totalorder %s25, 1
        %s323 = scalar_select %p322, %s25, 1
        %s324 = smul.addr %s323, 4
        %s325 = scalar_lea.vmem %s0, %s324
        %p326 = scmp.lt.s32.totalorder %s26, 0
        %s327 = scalar_select %p326, %s26, 0
        %s328 = smul.addr %s327, 4
        %s329 = scalar_lea.vmem %s1, %s328
        %p330 = scmp.lt.s32.totalorder %s26, 0
        %s331 = scalar_select %p330, %s26, 0
        %s332 = scalar_lea.vmem %s2, %s331
        %s333 = smul.u32 16, %s26
        %p334 = scmp.lt.s32.totalorder %s333, 15
        %s335 = scalar_select %p334, %s333, 15
        %s336 = smul.addr %s335, 4
        %s337 = scalar_lea.vmem %s3, %s336
        %s338 = smul.u32 16, %s26
        %p340 = scmp.eq.s32.totalorder %s26, 0
        // Predicated region
        $region49: #{cross_attention_forward.5} parent=47 // pred_check
          %p341 = pneg %p340
        $region50: #{cross_attention_forward.5} parent=47 // pred_check_branch
          %343 = sbr.rel (%p341) target = $region52
        $region51: #{cross_attention_forward.5} parent=47 // pred_region
          %vm344 = vcmask 261120
          %345 = vst.msk [vmem:[#allocation2] sm:$0xff] %vm344, 0.0
        $region52: #{cross_attention_forward.5} parent=47 // pred_fallthru
          _
        %v346 = vld [vmem:[%s325] sm:$0xf]
        %v347 = vld [vmem:[%s329] sm:$0xf]
        %v348 = vld [vmem:[%s329 + $0x4] sm:$0xf]
        %v349 = vld [vmem:[%s329 + $0x8] sm:$0xf]
        %v350 = vld [vmem:[%s329 + $0xc] sm:$0xf]
        %v351 = vld [vmem:[%s332] sm:$0x1]
        %v353 = vlaneseq
        %v354 = vshrl.u32 %v353, 7
        %v355 = vsub.s32 0, %v354
        %v356 = vrot.slane %v351, %v355
        %v362 = vunpack.c.l.b16 %v347
        %v363 = vunpack.c.l.b16 %v348
        %v364 = vunpack.c.l.b16 %v349
        %v365 = vunpack.c.l.b16 %v350
        %v366 = vpack.c.b16 %v363, %v362
        %v367 = vpack.c.b16 %v365, %v364
        %vm370 = vcmask 261120
        %v372 = vsel %vm370, %v346, 0
        %374 = vmatprep.subr.bf16.mxu0 0
        %375 = vmatpush1.bf16.msra.mxu0 0
        %376 = vmatprep.subr.bf16.mxu0 0
        %377 = vmatpush1.bf16.msra.mxu0 0
        %378 = vmatprep.subr.bf16.mxu0 0
        %379 = vmatpush1.bf16.msra.mxu0 0
        %380 = vmatprep.subr.bf16.mxu0 0
        %381 = vmatpush1.bf16.msra.mxu0 0
        %382 = vmatprep.subr.bf16.mxu0 0
        %383 = vmatpush1.bf16.msra.mxu0 0
        %384 = vmatprep.subr.bf16.mxu0 0
        %385 = vmatpush1.bf16.msra.mxu0 0
        %386 = vmatprep.subr.bf16.mxu0 0
        %387 = vmatpush1.bf16.msra.mxu0 %v367
        %388 = vmatprep.subr.bf16.mxu0 0
        %389 = vmatpush1.bf16.msra.mxu0 %v366
        %390 = vmatprep.subr.bf16.mxu0 0
        %391 = vmatpush2.bf16.msra.mxu0 0
        %392 = vmatprep.subr.bf16.mxu0 0
        %393 = vmatpush2.bf16.msra.mxu0 0
        %394 = vmatprep.subr.bf16.mxu0 0
        %395 = vmatpush2.bf16.msra.mxu0 0
        %396 = vmatprep.subr.bf16.mxu0 0
        %397 = vmatpush2.bf16.msra.mxu0 0
        %398 = vmatprep.subr.bf16.mxu0 0
        %399 = vmatpush2.bf16.msra.mxu0 0
        %400 = vmatprep.subr.bf16.mxu0 0
        %401 = vmatpush2.bf16.msra.mxu0 0
        %402 = vmatprep.subr.bf16.mxu0 0
        %403 = vmatpush2.bf16.msra.mxu0 0
        %404 = vmatprep.subr.bf16.mxu0 0
        %405 = vmatpush2.bf16.msra.mxu0 0
        %406 = vmatprep.mubr.bf16.mxu0 0
        %407 = vmatmul.mubr.bf16.gmra.mxu0 %v372
        %v408 = vpop.f32.mrf.mxu0
        %v409 = vadd.f32 %v356, %v408
        %v410 = vpop.f32.mrf.mxu0
        %v411 = vpop.f32.mrf.mxu0
        %v412 = vpop.f32.mrf.mxu0
        %413 = vdwg.mxu0
        %v414 = vmax.f32 %v409, 0.0
        %v415 = vld [vmem:[#allocation2] sm:$0xff]
        %v416 = vpack.c.bf16 %v414, %v414
        %v417 = vld [vmem:[%s337] sm:$0xf]
        %v418 = vld [vmem:[%s337 + $0x4] sm:$0xf]
        %v419 = vld [vmem:[%s337 + $0x8] sm:$0xf]
        %v420 = vld [vmem:[%s337 + $0xc] sm:$0xf]
        %v421 = vld [vmem:[%s337 + $0x10] sm:$0xf]
        %v422 = vld [vmem:[%s337 + $0x14] sm:$0xf]
        %v423 = vld [vmem:[%s337 + $0x18] sm:$0xf]
        %v424 = vld [vmem:[%s337 + $0x1c] sm:$0xf]
        %v425 = vld [vmem:[%s337 + $0x20] sm:$0xf]
        %v426 = vld [vmem:[%s337 + $0x24] sm:$0xf]
        %v427 = vld [vmem:[%s337 + $0x28] sm:$0xf]
        %v428 = vld [vmem:[%s337 + $0x2c] sm:$0xf]
        %v429 = vld [vmem:[%s337 + $0x30] sm:$0xf]
        %v430 = vld [vmem:[%s337 + $0x34] sm:$0xf]
        %v431 = vld [vmem:[%s337 + $0x38] sm:$0xf]
        %v432 = vld [vmem:[%s337 + $0x3c] sm:$0xf]
        %v449 = vunpack.c.l.b16 %v417
        %v450 = vunpack.c.l.b16 %v418
        %v451 = vunpack.c.l.b16 %v419
        %v452 = vunpack.c.l.b16 %v420
        %v453 = vunpack.c.l.b16 %v421
        %v454 = vunpack.c.l.b16 %v422
        %v455 = vunpack.c.l.b16 %v423
        %v456 = vunpack.c.l.b16 %v424
        %v457 = vunpack.c.l.b16 %v425
        %v458 = vunpack.c.l.b16 %v426
        %v459 = vunpack.c.l.b16 %v427
        %v460 = vunpack.c.l.b16 %v428
        %v461 = vunpack.c.l.b16 %v429
        %v462 = vunpack.c.l.b16 %v430
        %v463 = vunpack.c.l.b16 %v431
        %v464 = vunpack.c.l.b16 %v432
        %v465 = vpack.c.b16 %v450, %v449
        %v466 = vpack.c.b16 %v452, %v451
        %v467 = vpack.c.b16 %v454, %v453
        %v468 = vpack.c.b16 %v456, %v455
        %v469 = vpack.c.b16 %v458, %v457
        %v470 = vpack.c.b16 %v460, %v459
        %v471 = vpack.c.b16 %v462, %v461
        %v472 = vpack.c.b16 %v464, %v463
        %481 = vmatprep.subr.bf16.mxu0 0
        %482 = vmatpush1.bf16.msra.mxu0 %v472
        %483 = vmatprep.subr.bf16.mxu0 0
        %484 = vmatpush1.bf16.msra.mxu0 %v471
        %485 = vmatprep.subr.bf16.mxu0 0
        %486 = vmatpush1.bf16.msra.mxu0 %v470
        %487 = vmatprep.subr.bf16.mxu0 0
        %488 = vmatpush1.bf16.msra.mxu0 %v469
        %489 = vmatprep.subr.bf16.mxu0 0
        %490 = vmatpush1.bf16.msra.mxu0 %v468
        %491 = vmatprep.subr.bf16.mxu0 0
        %492 = vmatpush1.bf16.msra.mxu0 %v467
        %493 = vmatprep.subr.bf16.mxu0 0
        %494 = vmatpush1.bf16.msra.mxu0 %v466
        %495 = vmatprep.subr.bf16.mxu0 0
        %496 = vmatpush1.bf16.msra.mxu0 %v465
        %497 = vmatprep.subr.bf16.mxu0 0
        %498 = vmatpush2.bf16.msra.mxu0 0
        %499 = vmatprep.subr.bf16.mxu0 0
        %500 = vmatpush2.bf16.msra.mxu0 0
        %501 = vmatprep.subr.bf16.mxu0 0
        %502 = vmatpush2.bf16.msra.mxu0 0
        %503 = vmatprep.subr.bf16.mxu0 0
        %504 = vmatpush2.bf16.msra.mxu0 0
        %505 = vmatprep.subr.bf16.mxu0 0
        %506 = vmatpush2.bf16.msra.mxu0 0
        %507 = vmatprep.subr.bf16.mxu0 0
        %508 = vmatpush2.bf16.msra.mxu0 0
        %509 = vmatprep.subr.bf16.mxu0 0
        %510 = vmatpush2.bf16.msra.mxu0 0
        %511 = vmatprep.subr.bf16.mxu0 0
        %512 = vmatpush2.bf16.msra.mxu0 0
        %513 = vmatprep.mubr.bf16.mxu0 0
        %514 = vmatmul.mubr.bf16.gmra.mxu0 %v416
        %v515 = vpop.f32.mrf.mxu0
        %v516 = vadd.f32 0.0, %v515
        %v517 = vpop.f32.mrf.mxu0
        %v518 = vpop.f32.mrf.mxu0
        %v519 = vpop.f32.mrf.mxu0
        %520 = vdwg.mxu0
        %v521 = vadd.f32 %v415, %v516
        %522 = vst.msk [vmem:[#allocation2] sm:$0xff] %vm370, %v521
        // Predicated region
        $region53: #{cross_attention_forward.5} parent=47 // pred_check
          %p523 = pneg %p340
        $region54: #{cross_attention_forward.5} parent=47 // pred_check_branch
          %525 = sbr.rel (%p523) target = $region56
        $region55: #{cross_attention_forward.5} parent=47 // pred_region
          %v526 = vld [vmem:[#allocation2] sm:$0xff]
          %v527 = vld [vmem:[%s4] sm:$0x1]
          %v529 = vlaneseq
          %v530 = vshrl.u32 %v529, 7
          %v531 = vsub.s32 0, %v530
          %v532 = vrot.slane %v527, %v531
          %v534 = vadd.f32 %v526, %v532
          %v535 = vld [vmem:[%s325] sm:$0xf]
          %v536 = vunpack.c.l.bf16 %v535
          %v537 = vadd.f32 %v536, %v534
          %v538 = vld [vmem:[%s5] sm:$0x1]
          %v539 = vld [vmem:[%s6] sm:$0x1]
          %v540 = vsel %vm370, %v537, 0.0
          %541 = vadd.xlane.f32.xlu0 %v540
          %v542 = vpop.xlane.xlu0 %541
          %v543 = vrcp.pop 32.0
          %v544 = vmul.f32 %v542, %v543
          %v545 = vsub.f32 %v537, %v544
          %v546 = vmul.f32 %v545, %v545
          %v547 = vsel %vm370, %v546, 0.0
          %548 = vadd.xlane.f32.xlu0 %v547
          %v549 = vpop.xlane.xlu0 %548
          %v550 = vmul.f32 %v549, %v543
          %v551 = vadd.f32 %v550, 1e-05
          %v552 = vrsqrt.pop %v551
          %v553 = vmul.f32 %v545, %v552
          %v555 = vlaneseq
          %v556 = vshrl.u32 %v555, 7
          %v557 = vsub.s32 0, %v556
          %v558 = vrot.slane %v538, %v557
          %v560 = vmul.f32 %v553, %v558
          %v562 = vlaneseq
          %v563 = vshrl.u32 %v562, 7
          %v564 = vsub.s32 0, %v563
          %v565 = vrot.slane %v539, %v564
          %v567 = vadd.f32 %v560, %v565
          %568 = vst.msk [vmem:[%s321] sm:$0xff] %vm370, %v567
        $region56: #{cross_attention_forward.5} parent=47 // pred_fallthru
          _
        %s569 = sand.u32 %s208, 1
        %s570 = scalar_lea.sflag [#allocation4], %s569
        %s571 = sand.u32 %s208, 1
        %s572 = smul.addr %s571, 8
        %s573 = scalar_lea.vmem [#allocation3], %s572
        // Predicated region
        $region57: #{cross_attention_forward.5} parent=47 // pred_check
          %p574 = pneg %p218
        $region58: #{cross_attention_forward.5} parent=47 // pred_check_branch
          %576 = sbr.rel (%p574) target = $region60
        $region59: #{cross_attention_forward.5} parent=47 // pred_region
          %s578 = ssub.s32 128, 128
          %579 = vsyncadd %s570, %s578
          %s580 = smul.addr %s25, 128
          %s581 = scalar_lea.hbm %s7, %s580
          %s583 = sshll.u32 %s573, 4
          %s584 = int_to_ptr.vmem [resolvable:$true] %s583
          %586 = dma.vmem_to_hbm [thread:$0]  %s584, 128, %s581, %s570
        $region60: #{cross_attention_forward.5} parent=47 // pred_fallthru
          _
      $region48: #{cross_attention_forward.5} parent=5 // pred_fallthru
        _
      %p587 = scmp.le.s32.totalorder 2, %s16
      // Predicated region
      $region61: #{cross_attention_forward.5} parent=5 // pred_check
        %p588 = pneg %p587
      $region62: #{cross_attention_forward.5} parent=5 // pred_check_branch
        %590 = sbr.rel (%p588) target = $region64
      $region63: #{cross_attention_forward.5} parent=5 // pred_region
        %s591 = ssub.s32 %s16, 2
        // Predicated region
        $region65: #{cross_attention_forward.5} parent=63 // pred_check
          %p592 = pneg %p224
        $region66: #{cross_attention_forward.5} parent=63 // pred_check_branch
          %594 = sbr.rel (%p592) target = $region68
        $region67: #{cross_attention_forward.5} parent=63 // pred_region
          %s595 = sand.u32 %s209, 1
          %s596 = scalar_lea.sflag [#allocation4], %s595
          %s597 = sand.u32 %s209, 1
          %s598 = smul.addr %s597, 8
          %s599 = scalar_lea.vmem [#allocation3], %s598
          %600 = dma.done %s596, 128
        $region68: #{cross_attention_forward.5} parent=63 // pred_fallthru
          _
      $region64: #{cross_attention_forward.5} parent=5 // pred_fallthru
        _
    $region6: #{cross_attention_forward.5} parent=1 // loop_footer
      %s20 = sadd.s32 1, %s16
    $region7: #{cross_attention_forward.5} parent=1 // loop_footer_branch
      %15 = sbr.rel target = $region3
    $region8: #{cross_attention_forward.5} parent=1 // loop_exit
      _
    %601 = vsyncpa [#allocation4], 1
    %s602 = scalar_lea.sflag [#allocation4], 1
    %603 = vsyncpa %s602, 1

// kernel: cross_attention_forward.4
$region0: #{cross_attention_forward.4}
  #allocation0 [shape = 'u32[]', space=smem, size = 0x4, offset = 0x4, fixed_abs, tag = 'smem constant byte address 0x4 - core index']
  #allocation1 [shape = 'u32[144,128]{1,0:T(1,128)}', space=vmem, size = 0x12000, scoped, tag = 'internal scratch']
  #allocation2 [shape = 'bf16[4,8,8]{2,1,0:T(8,128)(2,1)}', space=vmem, size = 0x2000, scoped, tag = 'scratch operand']
  #allocation3 [shape = 'bf16[4,16,8]{2,1,0:T(8,128)(2,1)}', space=vmem, size = 0x4000, scoped, tag = 'scratch operand']
  #allocation4 [shape = 'bf16[4,16,8]{2,1,0:T(8,128)(2,1)}', space=vmem, size = 0x4000, scoped, tag = 'scratch operand']
  #allocation5 [shape = 'f32[4,8,1]{2,1,0:T(8,128)}', space=vmem, size = 0x4000, scoped, tag = 'scratch operand']
  #allocation6 [shape = 'f32[4,8,1]{2,1,0:T(8,128)}', space=vmem, size = 0x4000, scoped, tag = 'scratch operand']
  #allocation7 [shape = 'f32[4,8,8]{2,1,0:T(8,128)}', space=vmem, size = 0x4000, scoped, tag = 'scratch operand']
  #allocation8 [shape = 'bf16[8,32]{1,0:T(8,128)(2,1)}', space=vmem, size = 0x800, scoped, tag = 'scratch operand']
  %s0 = inlined_call_operand.vmem [shape: bf16[2,8,32], index: 0, kind: input, shape index: {}]
  %s1 = inlined_call_operand.vmem [shape: f32[2,16,64], index: 1, kind: input, shape index: {}]
  %s2 = inlined_call_operand.vmem [shape: bf16[4,32,8], index: 2, kind: input, shape index: {}]
  %s3 = inlined_call_operand.vmem [shape: f32[4,1,8], index: 3, kind: input, shape index: {}]
  %s4 = inlined_call_operand.vmem [shape: bf16[4,64,8], index: 4, kind: input, shape index: {}]
  %s5 = inlined_call_operand.vmem [shape: f32[4,1,8], index: 5, kind: input, shape index: {}]
  %s6 = inlined_call_operand.vmem [shape: bf16[4,64,8], index: 6, kind: input, shape index: {}]
  %s7 = inlined_call_operand.vmem [shape: f32[4,1,8], index: 7, kind: input, shape index: {}]
  %s8 = inlined_call_operand.vmem [shape: bf16[32,32], index: 8, kind: input, shape index: {}]
  %s9 = inlined_call_operand.vmem [shape: f32[1,32], index: 9, kind: input, shape index: {}]
  %s10 = inlined_call_operand.vmem [shape: f32[1,32], index: 10, kind: input, shape index: {}]
  %s11 = inlined_call_operand.vmem [shape: f32[1,32], index: 11, kind: input, shape index: {}]
  %s12 = inlined_call_operand.vmem [shape: bf16[2,8,32], index: 12, kind: output, shape index: {}]
  %s13 = sld [smem:[#allocation0]]
  $region89: #{cross_attention_forward.4} parent=0
    _
  %s15 = ssub.s32 1, %s13
  %s16 = scalar_select 0, %s15, %s13
  loop: start=0, step=1, limit=4
  $region2: #{cross_attention_forward.4} parent=0 // loop_pre_header
    _
  $region3: #{cross_attention_forward.4} parent=0 // loop_header
    %s18 = sphi 0, %s22
    %p19 = scmp.ge.s32.totalorder %s18, 4
    %s25 = sphi 0, %s44
    %s26 = sphi 0, %s40
    %s27 = sphi 0, %s36
    %s28 = sphi 0, %s25
    %s29 = sphi 0, %s26
    %s30 = sphi 0, %s27
    %s31 = sphi 0, %s28
    %s32 = sphi 0, %s29
    %s33 = sphi 0, %s30
    %s49 = sphi 0, %s51
    %s52 = sphi 0, %s49
    %s53 = sphi 0, %s52
    %s69 = sphi 0, %s53
    %s77 = sphi 0, %s79
    %s80 = sphi 0, %s77
    %s81 = sphi 0, %s80
    %s97 = sphi 0, %s81
    %s101 = sphi 0, %s101
    %s103 = sphi 0, %s101
    %s104 = sphi 0, %s103
    %s118 = sphi 0, %s104
    %s122 = sphi 0, %s122
    %s124 = sphi 0, %s122
    %s125 = sphi 0, %s124
    %s139 = sphi 0, %s125
    %s143 = sphi 0, %s143
    %s145 = sphi 0, %s143
    %s146 = sphi 0, %s145
    %s160 = sphi 0, %s146
    %s164 = sphi 0, %s164
    %s166 = sphi 0, %s164
    %s167 = sphi 0, %s166
    %s181 = sphi 0, %s167
    %s185 = sphi 0, %s185
    %s187 = sphi 0, %s185
    %s188 = sphi 0, %s187
    %s202 = sphi 0, %s188
    %s206 = sphi 0, %s206
    %s208 = sphi 0, %s206
    %s209 = sphi 0, %s208
    %s223 = sphi 0, %s209
    %s227 = sphi 0, %s227
    %s229 = sphi 0, %s227
    %s230 = sphi 0, %s229
    %s244 = sphi 0, %s230
    %s248 = sphi 0, %s248
    %s250 = sphi 0, %s248
    %s251 = sphi 0, %s250
    %s265 = sphi 0, %s251
    %s269 = sphi 0, %s269
    %s271 = sphi 0, %s269
    %s272 = sphi 0, %s271
    %s286 = sphi 0, %s272
    %s290 = sphi 0, %s290
    %s292 = sphi 0, %s290
    %s293 = sphi 0, %s292
    %s307 = sphi 0, %s293
    %s315 = sphi 0, %s317
    %s318 = sphi 0, %s315
    %s319 = sphi 0, %s318
    %s335 = sphi 0, %s319
  $region4: #{cross_attention_forward.4} parent=0 // loop_header_branch
    %21 = sbr.rel (%p19) target = $region8
  $region5: #{cross_attention_forward.4} parent=0 // loop_body
    %s23 = ssub.s32 %s18, 1
    %s24 = ssub.s32 %s18, 2
    %s34 = sadd.s32 1, %s27
    %p35 = scmp.ge.s32.totalorder %s34, 1
    %s36 = scalar_select %p35, 0, %s34
    %s37 = sadd.s32 1, %s26
    %s38 = scalar_select %p35, %s37, %s26
    %p39 = scmp.ge.s32.totalorder %s38, 1
    %s40 = scalar_select %p39, 0, %s38
    %s41 = sadd.s32 1, %s25
    %s42 = scalar_select %p39, %s41, %s25
    %p43 = scmp.ge.s32.totalorder %s42, 2
    %s44 = scalar_select %p43, 0, %s42
    %s45 = ssub.s32 %s25, %s44
    %s46 = ssub.s32 %s26, %s40
    %s47 = sor.u32 %s45, %s46
    %p48 = scmp.eq.s32.totalorder %s47, 0
    %s50 = sadd.s32 %s49, 1
    %s51 = scalar_select %p48, %s49, %s50
    %p54 = pneg %p48
    %p55 = scmp.eq.s32.totalorder %s18, 1
    %p56 = por %p54, %p55
    %p57 = scmp.ne.s32.totalorder %s49, %s52
    %p58 = scmp.eq.s32.totalorder %s18, 0
    %p59 = por %p57, %p58
    %p60 = scmp.ne.s32.totalorder %s49, %s52
    %p61 = scmp.eq.s32.totalorder %s23, 1
    %p62 = por %p60, %p61
    %p63 = scmp.ne.s32.totalorder %s52, %s53
    %p64 = scmp.eq.s32.totalorder %s23, 0
    %p65 = por %p63, %p64
    %p66 = scmp.ne.s32.totalorder %s52, %s53
    %p67 = scmp.eq.s32.totalorder %s24, 1
    %p68 = por %p66, %p67
    %p70 = scmp.ne.s32.totalorder %s53, %s69
    %p71 = scmp.eq.s32.totalorder %s24, 0
    %p72 = por %p70, %p71
    %s73 = ssub.s32 %s25, %s44
    %s74 = ssub.s32 %s27, %s36
    %s75 = sor.u32 %s73, %s74
    %p76 = scmp.eq.s32.totalorder %s75, 0
    %s78 = sadd.s32 %s77, 1
    %s79 = scalar_select %p76, %s77, %s78
    %p82 = pneg %p76
    %p83 = scmp.eq.s32.totalorder %s18, 1
    %p84 = por %p82, %p83
    %p85 = scmp.ne.s32.totalorder %s77, %s80
    %p86 = scmp.eq.s32.totalorder %s18, 0
    %p87 = por %p85, %p86
    %p88 = scmp.ne.s32.totalorder %s77, %s80
    %p89 = scmp.eq.s32.totalorder %s23, 1
    %p90 = por %p88, %p89
    %p91 = scmp.ne.s32.totalorder %s80, %s81
    %p92 = scmp.eq.s32.totalorder %s23, 0
    %p93 = por %p91, %p92
    %p94 = scmp.ne.s32.totalorder %s80, %s81
    %p95 = scmp.eq.s32.totalorder %s24, 1
    %p96 = por %p94, %p95
    %p98 = scmp.ne.s32.totalorder %s81, %s97
    %p99 = scmp.eq.s32.totalorder %s24, 0
    %p100 = por %p98, %p99
    %s102 = sadd.s32 %s101, 1
    %p105 = scmp.eq.s32.totalorder %s18, 1
    %p106 = scmp.ne.s32.totalorder %s101, %s103
    %p107 = scmp.eq.s32.totalorder %s18, 0
    %p108 = por %p106, %p107
    %p109 = scmp.ne.s32.totalorder %s101, %s103
    %p110 = scmp.eq.s32.totalorder %s23, 1
    %p111 = por %p109, %p110
    %p112 = scmp.ne.s32.totalorder %s103, %s104
    %p113 = scmp.eq.s32.totalorder %s23, 0
    %p114 = por %p112, %p113
    %p115 = scmp.ne.s32.totalorder %s103, %s104
    %p116 = scmp.eq.s32.totalorder %s24, 1
    %p117 = por %p115, %p116
    %p119 = scmp.ne.s32.totalorder %s104, %s118
    %p120 = scmp.eq.s32.totalorder %s24, 0
    %p121 = por %p119, %p120
    %s123 = sadd.s32 %s122, 1
    %p126 = scmp.eq.s32.totalorder %s18, 1
    %p127 = scmp.ne.s32.totalorder %s122, %s124
    %p128 = scmp.eq.s32.totalorder %s18, 0
    %p129 = por %p127, %p128
    %p130 = scmp.ne.s32.totalorder %s122, %s124
    %p131 = scmp.eq.s32.totalorder %s23, 1
    %p132 = por %p130, %p131
    %p133 = scmp.ne.s32.totalorder %s124, %s125
    %p134 = scmp.eq.s32.totalorder %s23, 0
    %p135 = por %p133, %p134
    %p136 = scmp.ne.s32.totalorder %s124, %s125
    %p137 = scmp.eq.s32.totalorder %s24, 1
    %p138 = por %p136, %p137
    %p140 = scmp.ne.s32.totalorder %s125, %s139
    %p141 = scmp.eq.s32.totalorder %s24, 0
    %p142 = por %p140, %p141
    %s144 = sadd.s32 %s143, 1
    %p147 = scmp.eq.s32.totalorder %s18, 1
    %p148 = scmp.ne.s32.totalorder %s143, %s145
    %p149 = scmp.eq.s32.totalorder %s18, 0
    %p150 = por %p148, %p149
    %p151 = scmp.ne.s32.totalorder %s143, %s145
    %p152 = scmp.eq.s32.totalorder %s23, 1
    %p153 = por %p151, %p152
    %p154 = scmp.ne.s32.totalorder %s145, %s146
    %p155 = scmp.eq.s32.totalorder %s23, 0
    %p156 = por %p154, %p155
    %p157 = scmp.ne.s32.totalorder %s145, %s146
    %p158 = scmp.eq.s32.totalorder %s24, 1
    %p159 = por %p157, %p158
    %p161 = scmp.ne.s32.totalorder %s146, %s160
    %p162 = scmp.eq.s32.totalorder %s24, 0
    %p163 = por %p161, %p162
    %s165 = sadd.s32 %s164, 1
    %p168 = scmp.eq.s32.totalorder %s18, 1
    %p169 = scmp.ne.s32.totalorder %s164, %s166
    %p170 = scmp.eq.s32.totalorder %s18, 0
    %p171 = por %p169, %p170
    %p172 = scmp.ne.s32.totalorder %s164, %s166
    %p173 = scmp.eq.s32.totalorder %s23, 1
    %p174 = por %p172, %p173
    %p175 = scmp.ne.s32.totalorder %s166, %s167
    %p176 = scmp.eq.s32.totalorder %s23, 0
    %p177 = por %p175, %p176
    %p178 = scmp.ne.s32.totalorder %s166, %s167
    %p179 = scmp.eq.s32.totalorder %s24, 1
    %p180 = por %p178, %p179
    %p182 = scmp.ne.s32.totalorder %s167, %s181
    %p183 = scmp.eq.s32.totalorder %s24, 0
    %p184 = por %p182, %p183
    %s186 = sadd.s32 %s185, 1
    %p189 = scmp.eq.s32.totalorder %s18, 1
    %p190 = scmp.ne.s32.totalorder %s185, %s187
    %p191 = scmp.eq.s32.totalorder %s18, 0
    %p192 = por %p190, %p191
    %p193 = scmp.ne.s32.totalorder %s185, %s187
    %p194 = scmp.eq.s32.totalorder %s23, 1
    %p195 = por %p193, %p194
    %p196 = scmp.ne.s32.totalorder %s187, %s188
    %p197 = scmp.eq.s32.totalorder %s23, 0
    %p198 = por %p196, %p197
    %p199 = scmp.ne.s32.totalorder %s187, %s188
    %p200 = scmp.eq.s32.totalorder %s24, 1
    %p201 = por %p199, %p200
    %p203 = scmp.ne.s32.totalorder %s188, %s202
    %p204 = scmp.eq.s32.totalorder %s24, 0
    %p205 = por %p203, %p204
    %s207 = sadd.s32 %s206, 1
    %p210 = scmp.eq.s32.totalorder %s18, 1
    %p211 = scmp.ne.s32.totalorder %s206, %s208
    %p212 = scmp.eq.s32.totalorder %s18, 0
    %p213 = por %p211, %p212
    %p214 = scmp.ne.s32.totalorder %s206, %s208
    %p215 = scmp.eq.s32.totalorder %s23, 1
    %p216 = por %p214, %p215
    %p217 = scmp.ne.s32.totalorder %s208, %s209
    %p218 = scmp.eq.s32.totalorder %s23, 0
    %p219 = por %p217, %p218
    %p220 = scmp.ne.s32.totalorder %s208, %s209
    %p221 = scmp.eq.s32.totalorder %s24, 1
    %p222 = por %p220, %p221
    %p224 = scmp.ne.s32.totalorder %s209, %s223
    %p225 = scmp.eq.s32.totalorder %s24, 0
    %p226 = por %p224, %p225
    %s228 = sadd.s32 %s227, 1
    %p231 = scmp.eq.s32.totalorder %s18, 1
    %p232 = scmp.ne.s32.totalorder %s227, %s229
    %p233 = scmp.eq.s32.totalorder %s18, 0
    %p234 = por %p232, %p233
    %p235 = scmp.ne.s32.totalorder %s227, %s229
    %p236 = scmp.eq.s32.totalorder %s23, 1
    %p237 = por %p235, %p236
    %p238 = scmp.ne.s32.totalorder %s229, %s230
    %p239 = scmp.eq.s32.totalorder %s23, 0
    %p240 = por %p238, %p239
    %p241 = scmp.ne.s32.totalorder %s229, %s230
    %p242 = scmp.eq.s32.totalorder %s24, 1
    %p243 = por %p241, %p242
    %p245 = scmp.ne.s32.totalorder %s230, %s244
    %p246 = scmp.eq.s32.totalorder %s24, 0
    %p247 = por %p245, %p246
    %s249 = sadd.s32 %s248, 1
    %p252 = scmp.eq.s32.totalorder %s18, 1
    %p253 = scmp.ne.s32.totalorder %s248, %s250
    %p254 = scmp.eq.s32.totalorder %s18, 0
    %p255 = por %p253, %p254
    %p256 = scmp.ne.s32.totalorder %s248, %s250
    %p257 = scmp.eq.s32.totalorder %s23, 1
    %p258 = por %p256, %p257
    %p259 = scmp.ne.s32.totalorder %s250, %s251
    %p260 = scmp.eq.s32.totalorder %s23, 0
    %p261 = por %p259, %p260
    %p262 = scmp.ne.s32.totalorder %s250, %s251
    %p263 = scmp.eq.s32.totalorder %s24, 1
    %p264 = por %p262, %p263
    %p266 = scmp.ne.s32.totalorder %s251, %s265
    %p267 = scmp.eq.s32.totalorder %s24, 0
    %p268 = por %p266, %p267
    %s270 = sadd.s32 %s269, 1
    %p273 = scmp.eq.s32.totalorder %s18, 1
    %p274 = scmp.ne.s32.totalorder %s269, %s271
    %p275 = scmp.eq.s32.totalorder %s18, 0
    %p276 = por %p274, %p275
    %p277 = scmp.ne.s32.totalorder %s269, %s271
    %p278 = scmp.eq.s32.totalorder %s23, 1
    %p279 = por %p277, %p278
    %p280 = scmp.ne.s32.totalorder %s271, %s272
    %p281 = scmp.eq.s32.totalorder %s23, 0
    %p282 = por %p280, %p281
    %p283 = scmp.ne.s32.totalorder %s271, %s272
    %p284 = scmp.eq.s32.totalorder %s24, 1
    %p285 = por %p283, %p284
    %p287 = scmp.ne.s32.totalorder %s272, %s286
    %p288 = scmp.eq.s32.totalorder %s24, 0
    %p289 = por %p287, %p288
    %s291 = sadd.s32 %s290, 1
    %p294 = scmp.eq.s32.totalorder %s18, 1
    %p295 = scmp.ne.s32.totalorder %s290, %s292
    %p296 = scmp.eq.s32.totalorder %s18, 0
    %p297 = por %p295, %p296
    %p298 = scmp.ne.s32.totalorder %s290, %s292
    %p299 = scmp.eq.s32.totalorder %s23, 1
    %p300 = por %p298, %p299
    %p301 = scmp.ne.s32.totalorder %s292, %s293
    %p302 = scmp.eq.s32.totalorder %s23, 0
    %p303 = por %p301, %p302
    %p304 = scmp.ne.s32.totalorder %s292, %s293
    %p305 = scmp.eq.s32.totalorder %s24, 1
    %p306 = por %p304, %p305
    %p308 = scmp.ne.s32.totalorder %s293, %s307
    %p309 = scmp.eq.s32.totalorder %s24, 0
    %p310 = por %p308, %p309
    %s311 = ssub.s32 %s25, %s44
    %s312 = ssub.s32 %s26, %s40
    %s313 = sor.u32 %s311, %s312
    %p314 = scmp.eq.s32.totalorder %s313, 0
    %s316 = sadd.s32 %s315, 1
    %s317 = scalar_select %p314, %s315, %s316
    %p320 = pneg %p314
    %p321 = scmp.eq.s32.totalorder %s18, 1
    %p322 = por %p320, %p321
    %p323 = scmp.ne.s32.totalorder %s315, %s318
    %p324 = scmp.eq.s32.totalorder %s18, 0
    %p325 = por %p323, %p324
    %p326 = scmp.ne.s32.totalorder %s315, %s318
    %p327 = scmp.eq.s32.totalorder %s23, 1
    %p328 = por %p326, %p327
    %p329 = scmp.ne.s32.totalorder %s318, %s319
    %p330 = scmp.eq.s32.totalorder %s23, 0
    %p331 = por %p329, %p330
    %p332 = scmp.ne.s32.totalorder %s318, %s319
    %p333 = scmp.eq.s32.totalorder %s24, 1
    %p334 = por %p332, %p333
    %p336 = scmp.ne.s32.totalorder %s319, %s335
    %p337 = scmp.eq.s32.totalorder %s24, 0
    %p338 = por %p336, %p337
    %p339 = scmp.le.s32.totalorder 1, %s18
    %p340 = scmp.lt.s32.totalorder %s18, 3
    %p341 = pnand %p339, %p340
    %p342 = pneg %p341
    // Predicated region
    $region9: #{cross_attention_forward.4} parent=5 // pred_check
      _
    $region10: #{cross_attention_forward.4} parent=5 // pred_check_branch
      %344 = sbr.rel (%p341) target = $region12
    $region11: #{cross_attention_forward.4} parent=5 // pred_region
      %s345 = ssub.s32 %s18, 1
      // Predicated region
      $region13: #{cross_attention_forward.4} parent=11 // pred_check
        %p346 = pneg %p114
      $region14: #{cross_attention_forward.4} parent=11 // pred_check_branch
        %348 = sbr.rel (%p346) target = $region16
      $region15: #{cross_attention_forward.4} parent=11 // pred_region
        _
      $region16: #{cross_attention_forward.4} parent=11 // pred_fallthru
        _
      // Predicated region
      $region17: #{cross_attention_forward.4} parent=11 // pred_check
        %p349 = pneg %p135
      $region18: #{cross_attention_forward.4} parent=11 // pred_check_branch
        %351 = sbr.rel (%p349) target = $region20
      $region19: #{cross_attention_forward.4} parent=11 // pred_region
        _
      $region20: #{cross_attention_forward.4} parent=11 // pred_fallthru
        _
      // Predicated region
      $region21: #{cross_attention_forward.4} parent=11 // pred_check
        %p352 = pneg %p156
      $region22: #{cross_attention_forward.4} parent=11 // pred_check_branch
        %354 = sbr.rel (%p352) target = $region24
      $region23: #{cross_attention_forward.4} parent=11 // pred_region
        _
      $region24: #{cross_attention_forward.4} parent=11 // pred_fallthru
        _
      // Predicated region
      $region25: #{cross_attention_forward.4} parent=11 // pred_check
        %p355 = pneg %p177
      $region26: #{cross_attention_forward.4} parent=11 // pred_check_branch
        %357 = sbr.rel (%p355) target = $region28
      $region27: #{cross_attention_forward.4} parent=11 // pred_region
        _
      $region28: #{cross_attention_forward.4} parent=11 // pred_fallthru
        _
      // Predicated region
      $region29: #{cross_attention_forward.4} parent=11 // pred_check
        %p358 = pneg %p198
      $region30: #{cross_attention_forward.4} parent=11 // pred_check_branch
        %360 = sbr.rel (%p358) target = $region32
      $region31: #{cross_attention_forward.4} parent=11 // pred_region
        _
      $region32: #{cross_attention_forward.4} parent=11 // pred_fallthru
        _
      // Predicated region
      $region33: #{cross_attention_forward.4} parent=11 // pred_check
        %p361 = pneg %p219
      $region34: #{cross_attention_forward.4} parent=11 // pred_check_branch
        %363 = sbr.rel (%p361) target = $region36
      $region35: #{cross_attention_forward.4} parent=11 // pred_region
        _
      $region36: #{cross_attention_forward.4} parent=11 // pred_fallthru
        _
      // Predicated region
      $region37: #{cross_attention_forward.4} parent=11 // pred_check
        %p364 = pneg %p240
      $region38: #{cross_attention_forward.4} parent=11 // pred_check_branch
        %366 = sbr.rel (%p364) target = $region40
      $region39: #{cross_attention_forward.4} parent=11 // pred_region
        _
      $region40: #{cross_attention_forward.4} parent=11 // pred_fallthru
        _
      // Predicated region
      $region41: #{cross_attention_forward.4} parent=11 // pred_check
        %p367 = pneg %p261
      $region42: #{cross_attention_forward.4} parent=11 // pred_check_branch
        %369 = sbr.rel (%p367) target = $region44
      $region43: #{cross_attention_forward.4} parent=11 // pred_region
        _
      $region44: #{cross_attention_forward.4} parent=11 // pred_fallthru
        _
      // Predicated region
      $region45: #{cross_attention_forward.4} parent=11 // pred_check
        %p370 = pneg %p282
      $region46: #{cross_attention_forward.4} parent=11 // pred_check_branch
        %372 = sbr.rel (%p370) target = $region48
      $region47: #{cross_attention_forward.4} parent=11 // pred_region
        _
      $region48: #{cross_attention_forward.4} parent=11 // pred_fallthru
        _
      // Predicated region
      $region49: #{cross_attention_forward.4} parent=11 // pred_check
        %p373 = pneg %p303
      $region50: #{cross_attention_forward.4} parent=11 // pred_check_branch
        %375 = sbr.rel (%p373) target = $region52
      $region51: #{cross_attention_forward.4} parent=11 // pred_region
        _
      $region52: #{cross_attention_forward.4} parent=11 // pred_fallthru
        _
    $region12: #{cross_attention_forward.4} parent=5 // pred_fallthru
      _
    %p376 = scmp.lt.s32.totalorder %s18, 2
    // Predicated region
    $region53: #{cross_attention_forward.4} parent=5 // pred_check
      %p377 = pneg %p376
    $region54: #{cross_attention_forward.4} parent=5 // pred_check_branch
      %379 = sbr.rel (%p377) target = $region56
    $region55: #{cross_attention_forward.4} parent=5 // pred_region
      // Predicated region
      $region57: #{cross_attention_forward.4} parent=55 // pred_check
        %p380 = pneg %p59
      $region58: #{cross_attention_forward.4} parent=55 // pred_check_branch
        %382 = sbr.rel (%p380) target = $region60
      $region59: #{cross_attention_forward.4} parent=55 // pred_region
        %p383 = scmp.lt.s32.totalorder %s25, 1
        %s384 = scalar_select %p383, %s25, 1
        %p385 = scmp.lt.s32.totalorder %s26, 0
        %s386 = scalar_select %p385, %s26, 0
        %s387 = sadd.s32 %s386, %s384
        %s388 = smul.addr %s387, 4
        %s389 = scalar_lea.vmem %s0, %s388
      $region60: #{cross_attention_forward.4} parent=55 // pred_fallthru
        _
      // Predicated region
      $region61: #{cross_attention_forward.4} parent=55 // pred_check
        %p390 = pneg %p87
      $region62: #{cross_attention_forward.4} parent=55 // pred_check_branch
        %392 = sbr.rel (%p390) target = $region64
      $region63: #{cross_attention_forward.4} parent=55 // pred_region
        %p393 = scmp.lt.s32.totalorder %s25, 1
        %s394 = scalar_select %p393, %s25, 1
        %p395 = scmp.lt.s32.totalorder %s27, 0
        %s396 = scalar_select %p395, %s27, 0
        %s397 = smul.addr %s394, 2
        %s398 = sadd.s32 %s396, %s397
        %s399 = smul.addr %s398, 8
        %s400 = scalar_lea.vmem %s1, %s399
      $region64: #{cross_attention_forward.4} parent=55 // pred_fallthru
        _
    $region56: #{cross_attention_forward.4} parent=5 // pred_fallthru
      _
    %p401 = scmp.le.s32.totalorder 1, %s18
    %p402 = scmp.lt.s32.totalorder %s18, 3
    %p403 = pnand %p401, %p402
    %p404 = pneg %p403
    // Predicated region
    $region65: #{cross_attention_forward.4} parent=5 // pred_check
      _
    $region66: #{cross_attention_forward.4} parent=5 // pred_check_branch
      %406 = sbr.rel (%p403) target = $region68
    $region67: #{cross_attention_forward.4} parent=5 // pred_region
      %s407 = ssub.s32 %s18, 1
      %p408 = scmp.lt.s32.totalorder %s28, 1
      %s409 = scalar_select %p408, %s28, 1
      %p410 = scmp.lt.s32.totalorder %s29, 0
      %s411 = scalar_select %p410, %s29, 0
      %s412 = sadd.s32 %s411, %s409
      %s413 = smul.addr %s412, 4
      %s414 = scalar_lea.vmem %s0, %s413
      %p415 = pneg %p65
      %p416 = pneg %p62
      %p417 = scmp.lt.s32.totalorder %s28, 1
      %s418 = scalar_select %p417, %s28, 1
      %p419 = scmp.lt.s32.totalorder %s30, 0
      %s420 = scalar_select %p419, %s30, 0
      %s421 = smul.addr %s418, 2
      %s422 = sadd.s32 %s420, %s421
      %s423 = smul.addr %s422, 8
      %s424 = scalar_lea.vmem %s1, %s423
      %p425 = pneg %p93
      %p426 = pneg %p90
      %p427 = pneg %p114
      %p428 = pneg %p111
      %p429 = pneg %p135
      %p430 = pneg %p132
      %p431 = pneg %p156
      %p432 = pneg %p153
      %p433 = pneg %p177
      %p434 = pneg %p174
      %p435 = pneg %p198
      %p436 = pneg %p195
      %p437 = pneg %p219
      %p438 = pneg %p216
      %p439 = pneg %p240
      %p440 = pneg %p237
      %p441 = pneg %p261
      %p442 = pneg %p258
      %p443 = pneg %p282
      %p444 = pneg %p279
      %p445 = pneg %p303
      %p446 = pneg %p300
      %p447 = pneg %p331
      %p448 = pneg %p328
      %p449 = scmp.lt.s32.totalorder %s28, 1
      %s450 = scalar_select %p449, %s28, 1
      %p451 = scmp.lt.s32.totalorder %s29, 0
      %s452 = scalar_select %p451, %s29, 0
      %s453 = sadd.s32 %s452, %s450
      %s454 = smul.addr %s453, 4
      %s455 = scalar_lea.vmem %s12, %s454
      %p456 = scmp.lt.s32.totalorder %s28, 1
      %s457 = scalar_select %p456, %s28, 1
      %p458 = scmp.lt.s32.totalorder %s29, 0
      %s459 = scalar_select %p458, %s29, 0
      %s460 = sadd.s32 %s459, %s457
      %s461 = smul.addr %s460, 4
      %s462 = scalar_lea.vmem %s0, %s461
      %p463 = scmp.lt.s32.totalorder %s28, 1
      %s464 = scalar_select %p463, %s28, 1
      %p465 = scmp.lt.s32.totalorder %s30, 0
      %s466 = scalar_select %p465, %s30, 0
      %s467 = smul.addr %s464, 2
      %s468 = sadd.s32 %s466, %s467
      %s469 = smul.addr %s468, 8
      %s470 = scalar_lea.vmem %s1, %s469
      %p471 = scmp.lt.s32.totalorder %s28, 1
      %s472 = scalar_select %p471, %s28, 1
      %p473 = scmp.lt.s32.totalorder %s29, 0
      %s474 = scalar_select %p473, %s29, 0
      %s475 = sadd.s32 %s474, %s472
      %s476 = smul.addr %s475, 4
      %s477 = scalar_lea.vmem %s12, %s476
      %p479 = scmp.eq.s32.totalorder %s30, 0
      // Predicated region
      $region69: #{cross_attention_forward.4} parent=67 // pred_check
        %p480 = pneg %p479
      $region70: #{cross_attention_forward.4} parent=67 // pred_check_branch
        %482 = sbr.rel (%p480) target = $region72
      $region71: #{cross_attention_forward.4} parent=67 // pred_region
        %v483 = vld [vmem:[%s462] sm:$0xf]
        %v484 = vld [vmem:[%s2] sm:$0xf]
        %v485 = vld [vmem:[%s2 + $0x4] sm:$0xf]
        %v486 = vld [vmem:[%s2 + $0x8] sm:$0xf]
        %v487 = vld [vmem:[%s2 + $0xc] sm:$0xf]
        %v488 = vld [vmem:[%s3] sm:$0x1]
        %v490 = vlaneseq
        %v491 = vshrl.u32 %v490, 7
        %v492 = vsub.s32 0, %v491
        %v493 = vrot.slane %v488, %v492
        %v499 = vunpack.c.l.b16 %v484
        %v500 = vunpack.c.l.b16 %v485
        %v501 = vunpack.c.l.b16 %v486
        %v502 = vunpack.c.l.b16 %v487
        %v503 = vpack.c.b16 %v500, %v499
        %v504 = vpack.c.b16 %v502, %v501
        %vm507 = vcmask 261120
        %v509 = vsel %vm507, %v483, 0
        %511 = vmatprep.subr.bf16.mxu0 0
        %512 = vmatpush1.bf16.msra.mxu0 0
        %513 = vmatprep.subr.bf16.mxu0 0
        %514 = vmatpush1.bf16.msra.mxu0 0
        %515 = vmatprep.subr.bf16.mxu0 0
        %516 = vmatpush1.bf16.msra.mxu0 0
        %517 = vmatprep.subr.bf16.mxu0 0
        %518 = vmatpush1.bf16.msra.mxu0 0
        %519 = vmatprep.subr.bf16.mxu0 0
        %520 = vmatpush1.bf16.msra.mxu0 0
        %521 = vmatprep.subr.bf16.mxu0 0
        %522 = vmatpush1.bf16.msra.mxu0 0
        %523 = vmatprep.subr.bf16.mxu0 0
        %524 = vmatpush1.bf16.msra.mxu0 %v504
        %525 = vmatprep.subr.bf16.mxu0 0
        %526 = vmatpush1.bf16.msra.mxu0 %v503
        %527 = vmatprep.subr.bf16.mxu0 0
        %528 = vmatpush2.bf16.msra.mxu0 0
        %529 = vmatprep.subr.bf16.mxu0 0
        %530 = vmatpush2.bf16.msra.mxu0 0
        %531 = vmatprep.subr.bf16.mxu0 0
        %532 = vmatpush2.bf16.msra.mxu0 0
        %533 = vmatprep.subr.bf16.mxu0 0
        %534 = vmatpush2.bf16.msra.mxu0 0
        %535 = vmatprep.subr.bf16.mxu0 0
        %536 = vmatpush2.bf16.msra.mxu0 0
        %537 = vmatprep.subr.bf16.mxu0 0
        %538 = vmatpush2.bf16.msra.mxu0 0
        %539 = vmatprep.subr.bf16.mxu0 0
        %540 = vmatpush2.bf16.msra.mxu0 0
        %541 = vmatprep.subr.bf16.mxu0 0
        %542 = vmatpush2.bf16.msra.mxu0 0
        %543 = vmatprep.mubr.bf16.mxu0 0
        %544 = vmatmul.mubr.bf16.gmra.mxu0 %v509
        %v545 = vpop.f32.mrf.mxu0
        %v546 = vadd.f32 %v493, %v545
        %v547 = vpop.f32.mrf.mxu0
        %v548 = vpop.f32.mrf.mxu0
        %v549 = vpop.f32.mrf.mxu0
        %550 = vdwg.mxu0
        %v551 = vmul.f32 %v546, 0.35355338
        %v552 = vpack.c.bf16 %v551, %v551
        %vm553 = vcmask 60416
        %554 = vst.msk [vmem:[#allocation2] sm:$0xf] %vm553, %v552
        %s555 = scalar_lea.vmem %s2, 16
        %v556 = vld [vmem:[%s555] sm:$0xf]
        %v557 = vld [vmem:[%s555 + $0x4] sm:$0xf]
        %v558 = vld [vmem:[%s555 + $0x8] sm:$0xf]
        %v559 = vld [vmem:[%s555 + $0xc] sm:$0xf]
        %s560 = scalar_lea.vmem %s3, 1
        %v561 = vld [vmem:[%s560] sm:$0x1]
        %v563 = vlaneseq
        %v564 = vshrl.u32 %v563, 7
        %v565 = vsub.s32 0, %v564
        %v566 = vrot.slane %v561, %v565
        %v572 = vunpack.c.l.b16 %v556
        %v573 = vunpack.c.l.b16 %v557
        %v574 = vunpack.c.l.b16 %v558
        %v575 = vunpack.c.l.b16 %v559
        %v576 = vpack.c.b16 %v573, %v572
        %v577 = vpack.c.b16 %v575, %v574
        %580 = vmatprep.subr.bf16.mxu0 0
        %581 = vmatpush1.bf16.msra.mxu0 0
        %582 = vmatprep.subr.bf16.mxu0 0
        %583 = vmatpush1.bf16.msra.mxu0 0
        %584 = vmatprep.subr.bf16.mxu0 0
        %585 = vmatpush1.bf16.msra.mxu0 0
        %586 = vmatprep.subr.bf16.mxu0 0
        %587 = vmatpush1.bf16.msra.mxu0 0
        %588 = vmatprep.subr.bf16.mxu0 0
        %589 = vmatpush1.bf16.msra.mxu0 0
        %590 = vmatprep.subr.bf16.mxu0 0
        %591 = vmatpush1.bf16.msra.mxu0 0
        %592 = vmatprep.subr.bf16.mxu0 0
        %593 = vmatpush1.bf16.msra.mxu0 %v577
        %594 = vmatprep.subr.bf16.mxu0 0
        %595 = vmatpush1.bf16.msra.mxu0 %v576
        %596 = vmatprep.subr.bf16.mxu0 0
        %597 = vmatpush2.bf16.msra.mxu0 0
        %598 = vmatprep.subr.bf16.mxu0 0
        %599 = vmatpush2.bf16.msra.mxu0 0
        %600 = vmatprep.subr.bf16.mxu0 0
        %601 = vmatpush2.bf16.msra.mxu0 0
        %602 = vmatprep.subr.bf16.mxu0 0
        %603 = vmatpush2.bf16.msra.mxu0 0
        %604 = vmatprep.subr.bf16.mxu0 0
        %605 = vmatpush2.bf16.msra.mxu0 0
        %606 = vmatprep.subr.bf16.mxu0 0
        %607 = vmatpush2.bf16.msra.mxu0 0
        %608 = vmatprep.subr.bf16.mxu0 0
        %609 = vmatpush2.bf16.msra.mxu0 0
        %610 = vmatprep.subr.bf16.mxu0 0
        %611 = vmatpush2.bf16.msra.mxu0 0
        %612 = vmatprep.mubr.bf16.mxu0 0
        %613 = vmatmul.mubr.bf16.gmra.mxu0 %v509
        %v614 = vpop.f32.mrf.mxu0
        %v615 = vadd.f32 %v566, %v614
        %v616 = vpop.f32.mrf.mxu0
        %v617 = vpop.f32.mrf.mxu0
        %v618 = vpop.f32.mrf.mxu0
        %619 = vdwg.mxu0
        %v620 = vmul.f32 %v615, 0.35355338
        %v621 = vpack.c.bf16 %v620, %v620
        %s622 = scalar_lea.vmem [#allocation2], 4
        %623 = vst.msk [vmem:[%s622] sm:$0xf] %vm553, %v621
        %s624 = scalar_lea.vmem %s2, 32
        %v625 = vld [vmem:[%s624] sm:$0xf]
        %v626 = vld [vmem:[%s624 + $0x4] sm:$0xf]
        %v627 = vld [vmem:[%s624 + $0x8] sm:$0xf]
        %v628 = vld [vmem:[%s624 + $0xc] sm:$0xf]
        %s629 = scalar_lea.vmem %s3, 2
        %v630 = vld [vmem:[%s629] sm:$0x1]
        %v632 = vlaneseq
        %v633 = vshrl.u32 %v632, 7
        %v634 = vsub.s32 0, %v633
        %v635 = vrot.slane %v630, %v634
        %v641 = vunpack.c.l.b16 %v625
        %v642 = vunpack.c.l.b16 %v626
        %v643 = vunpack.c.l.b16 %v627
        %v644 = vunpack.c.l.b16 %v628
        %v645 = vpack.c.b16 %v642, %v641
        %v646 = vpack.c.b16 %v644, %v643
        %649 = vmatprep.subr.bf16.mxu0 0
        %650 = vmatpush1.bf16.msra.mxu0 0
        %651 = vmatprep.subr.bf16.mxu0 0
        %652 = vmatpush1.bf16.msra.mxu0 0
        %653 = vmatprep.subr.bf16.mxu0 0
        %654 = vmatpush1.bf16.msra.mxu0 0
        %655 = vmatprep.subr.bf16.mxu0 0
        %656 = vmatpush1.bf16.msra.mxu0 0
        %657 = vmatprep.subr.bf16.mxu0 0
        %658 = vmatpush1.bf16.msra.mxu0 0
        %659 = vmatprep.subr.bf16.mxu0 0
        %660 = vmatpush1.bf16.msra.mxu0 0
        %661 = vmatprep.subr.bf16.mxu0 0
        %662 = vmatpush1.bf16.msra.mxu0 %v646
        %663 = vmatprep.subr.bf16.mxu0 0
        %664 = vmatpush1.bf16.msra.mxu0 %v645
        %665 = vmatprep.subr.bf16.mxu0 0
        %666 = vmatpush2.bf16.msra.mxu0 0
        %667 = vmatprep.subr.bf16.mxu0 0
        %668 = vmatpush2.bf16.msra.mxu0 0
        %669 = vmatprep.subr.bf16.mxu0 0
        %670 = vmatpush2.bf16.msra.mxu0 0
        %671 = vmatprep.subr.bf16.mxu0 0
        %672 = vmatpush2.bf16.msra.mxu0 0
        %673 = vmatprep.subr.bf16.mxu0 0
        %674 = vmatpush2.bf16.msra.mxu0 0
        %675 = vmatprep.subr.bf16.mxu0 0
        %676 = vmatpush2.bf16.msra.mxu0 0
        %677 = vmatprep.subr.bf16.mxu0 0
        %678 = vmatpush2.bf16.msra.mxu0 0
        %679 = vmatprep.subr.bf16.mxu0 0
        %680 = vmatpush2.bf16.msra.mxu0 0
        %681 = vmatprep.mubr.bf16.mxu0 0
        %682 = vmatmul.mubr.bf16.gmra.mxu0 %v509
        %v683 = vpop.f32.mrf.mxu0
        %v684 = vadd.f32 %v635, %v683
        %v685 = vpop.f32.mrf.mxu0
        %v686 = vpop.f32.mrf.mxu0
        %v687 = vpop.f32.mrf.mxu0
        %688 = vdwg.mxu0
        %v689 = vmul.f32 %v684, 0.35355338
        %v690 = vpack.c.bf16 %v689, %v689
        %s691 = scalar_lea.vmem [#allocation2], 8
        %692 = vst.msk [vmem:[%s691] sm:$0xf] %vm553, %v690
        %s693 = scalar_lea.vmem %s2, 48
        %v694 = vld [vmem:[%s693] sm:$0xf]
        %v695 = vld [vmem:[%s693 + $0x4] sm:$0xf]
        %v696 = vld [vmem:[%s693 + $0x8] sm:$0xf]
        %v697 = vld [vmem:[%s693 + $0xc] sm:$0xf]
        %s698 = scalar_lea.vmem %s3, 3
        %v699 = vld [vmem:[%s698] sm:$0x1]
        %v701 = vlaneseq
        %v702 = vshrl.u32 %v701, 7
        %v703 = vsub.s32 0, %v702
        %v704 = vrot.slane %v699, %v703
        %v710 = vunpack.c.l.b16 %v694
        %v711 = vunpack.c.l.b16 %v695
        %v712 = vunpack.c.l.b16 %v696
        %v713 = vunpack.c.l.b16 %v697
        %v714 = vpack.c.b16 %v711, %v710
        %v715 = vpack.c.b16 %v713, %v712
        %718 = vmatprep.subr.bf16.mxu0 0
        %719 = vmatpush1.bf16.msra.mxu0 0
        %720 = vmatprep.subr.bf16.mxu0 0
        %721 = vmatpush1.bf16.msra.mxu0 0
        %722 = vmatprep.subr.bf16.mxu0 0
        %723 = vmatpush1.bf16.msra.mxu0 0
        %724 = vmatprep.subr.bf16.mxu0 0
        %725 = vmatpush1.bf16.msra.mxu0 0
        %726 = vmatprep.subr.bf16.mxu0 0
        %727 = vmatpush1.bf16.msra.mxu0 0
        %728 = vmatprep.subr.bf16.mxu0 0
        %729 = vmatpush1.bf16.msra.mxu0 0
        %730 = vmatprep.subr.bf16.mxu0 0
        %731 = vmatpush1.bf16.msra.mxu0 %v715
        %732 = vmatprep.subr.bf16.mxu0 0
        %733 = vmatpush1.bf16.msra.mxu0 %v714
        %734 = vmatprep.subr.bf16.mxu0 0
        %735 = vmatpush2.bf16.msra.mxu0 0
        %736 = vmatprep.subr.bf16.mxu0 0
        %737 = vmatpush2.bf16.msra.mxu0 0
        %738 = vmatprep.subr.bf16.mxu0 0
        %739 = vmatpush2.bf16.msra.mxu0 0
        %740 = vmatprep.subr.bf16.mxu0 0
        %741 = vmatpush2.bf16.msra.mxu0 0
        %742 = vmatprep.subr.bf16.mxu0 0
        %743 = vmatpush2.bf16.msra.mxu0 0
        %744 = vmatprep.subr.bf16.mxu0 0
        %745 = vmatpush2.bf16.msra.mxu0 0
        %746 = vmatprep.subr.bf16.mxu0 0
        %747 = vmatpush2.bf16.msra.mxu0 0
        %748 = vmatprep.subr.bf16.mxu0 0
        %749 = vmatpush2.bf16.msra.mxu0 0
        %750 = vmatprep.mubr.bf16.mxu0 0
        %751 = vmatmul.mubr.bf16.gmra.mxu0 %v509
        %v752 = vpop.f32.mrf.mxu0
        %v753 = vadd.f32 %v704, %v752
        %v754 = vpop.f32.mrf.mxu0
        %v755 = vpop.f32.mrf.mxu0
        %v756 = vpop.f32.mrf.mxu0
        %757 = vdwg.mxu0
        %v758 = vmul.f32 %v753, 0.35355338
        %v759 = vpack.c.bf16 %v758, %v758
        %s760 = scalar_lea.vmem [#allocation2], 12
        %761 = vst.msk [vmem:[%s760] sm:$0xf] %vm553, %v759
        %vm762 = vcmask 7168
        %763 = vst.msk [vmem:[#allocation5] sm:$0xff] %vm762, -inf
        %764 = vst.msk [vmem:[#allocation5 + $0x8] sm:$0xff] %vm762, -inf
        %765 = vst.msk [vmem:[#allocation5 + $0x10] sm:$0xff] %vm762, -inf
        %766 = vst.msk [vmem:[#allocation5 + $0x18] sm:$0xff] %vm762, -inf
        %767 = vst.msk [vmem:[#allocation6] sm:$0xff] %vm762, 0.0
        %768 = vst.msk [vmem:[#allocation6 + $0x8] sm:$0xff] %vm762, 0.0
        %769 = vst.msk [vmem:[#allocation6 + $0x10] sm:$0xff] %vm762, 0.0
        %770 = vst.msk [vmem:[#allocation6 + $0x18] sm:$0xff] %vm762, 0.0
        %vm771 = vcmask 64512
        %772 = vst.msk [vmem:[#allocation7] sm:$0xff] %vm771, 0.0
        %773 = vst.msk [vmem:[#allocation7 + $0x8] sm:$0xff] %vm771, 0.0
        %774 = vst.msk [vmem:[#allocation7 + $0x10] sm:$0xff] %vm771, 0.0
        %775 = vst.msk [vmem:[#allocation7 + $0x18] sm:$0xff] %vm771, 0.0
      $region72: #{cross_attention_forward.4} parent=67 // pred_fallthru
        _
      %v776 = vld [vmem:[%s470] sm:$0xff]
      %v777 = vld [vmem:[%s470 + $0x8] sm:$0xff]
      %v778 = vpack.c.bf16 %v777, %v776
      %v779 = vld [vmem:[%s4] sm:$0xf]
      %v780 = vld [vmem:[%s4 + $0x4] sm:$0xf]
      %v781 = vld [vmem:[%s4 + $0x8] sm:$0xf]
      %v782 = vld [vmem:[%s4 + $0xc] sm:$0xf]
      %v783 = vld [vmem:[%s4 + $0x10] sm:$0xf]
      %v784 = vld [vmem:[%s4 + $0x14] sm:$0xf]
      %v785 = vld [vmem:[%s4 + $0x18] sm:$0xf]
      %v786 = vld [vmem:[%s4 + $0x1c] sm:$0xf]
      %v787 = vld [vmem:[%s5] sm:$0x1]
      %v789 = vlaneseq
      %v790 = vshrl.u32 %v789, 7
      %v791 = vsub.s32 0, %v790
      %v792 = vrot.slane %v787, %v791
      %v802 = vunpack.c.l.b16 %v779
      %v803 = vunpack.c.l.b16 %v780
      %v804 = vunpack.c.l.b16 %v781
      %v805 = vunpack.c.l.b16 %v782
      %v806 = vunpack.c.l.b16 %v783
      %v807 = vunpack.c.l.b16 %v784
      %v808 = vunpack.c.l.b16 %v785
      %v809 = vunpack.c.l.b16 %v786
      %v810 = vpack.c.b16 %v803, %v802
      %v811 = vpack.c.b16 %v805, %v804
      %v812 = vpack.c.b16 %v807, %v806
      %v813 = vpack.c.b16 %v809, %v808
      %vm818 = vcmask 523264
      %v820 = vsel %vm818, %v778, 0
      %822 = vmatprep.subr.bf16.mxu0 0
      %823 = vmatpush1.bf16.msra.mxu0 0
      %824 = vmatprep.subr.bf16.mxu0 0
      %825 = vmatpush1.bf16.msra.mxu0 0
      %826 = vmatprep.subr.bf16.mxu0 0
      %827 = vmatpush1.bf16.msra.mxu0 0
      %828 = vmatprep.subr.bf16.mxu0 0
      %829 = vmatpush1.bf16.msra.mxu0 0
      %830 = vmatprep.subr.bf16.mxu0 0
      %831 = vmatpush1.bf16.msra.mxu0 %v813
      %832 = vmatprep.subr.bf16.mxu0 0
      %833 = vmatpush1.bf16.msra.mxu0 %v812
      %834 = vmatprep.subr.bf16.mxu0 0
      %835 = vmatpush1.bf16.msra.mxu0 %v811
      %836 = vmatprep.subr.bf16.mxu0 0
      %837 = vmatpush1.bf16.msra.mxu0 %v810
      %838 = vmatprep.subr.bf16.mxu0 0
      %839 = vmatpush2.bf16.msra.mxu0 0
      %840 = vmatprep.subr.bf16.mxu0 0
      %841 = vmatpush2.bf16.msra.mxu0 0
      %842 = vmatprep.subr.bf16.mxu0 0
      %843 = vmatpush2.bf16.msra.mxu0 0
      %844 = vmatprep.subr.bf16.mxu0 0
      %845 = vmatpush2.bf16.msra.mxu0 0
      %846 = vmatprep.subr.bf16.mxu0 0
      %847 = vmatpush2.bf16.msra.mxu0 0
      %848 = vmatprep.subr.bf16.mxu0 0
      %849 = vmatpush2.bf16.msra.mxu0 0
      %850 = vmatprep.subr.bf16.mxu0 0
      %851 = vmatpush2.bf16.msra.mxu0 0
      %852 = vmatprep.subr.bf16.mxu0 0
      %853 = vmatpush2.bf16.msra.mxu0 0
      %854 = vmatprep.mubr.bf16.mxu0 0
      %855 = vmatmul.mubr.bf16.gmra.mxu0 %v820
      %v856 = vpop.f32.mrf.mxu0
      %v857 = vadd.f32 %v792, %v856
      %v858 = vpop.f32.mrf.mxu0
      %v859 = vpop.f32.mrf.mxu0
      %v860 = vadd.f32 %v792, %v859
      %v861 = vpop.f32.mrf.mxu0
      %862 = vdwg.mxu0
      %v863 = vpack.c.bf16 %v860, %v857
      %v865 = vunpack.c.l.b16 %v863
      %v866 = vunpack.c.h.b16 %v863
      %v867 = vpack.c.b16 %v865, %v865
      %v868 = vpack.c.b16 %v866, %v866
      %vm871 = vcmask 60416
      %872 = vst.msk [vmem:[#allocation3] sm:$0xf] %vm871, %v867
      %873 = vst.msk [vmem:[#allocation3 + $0x4] sm:$0xf] %vm871, %v868
      %v874 = vld [vmem:[%s6] sm:$0xf]
      %v875 = vld [vmem:[%s6 + $0x4] sm:$0xf]
      %v876 = vld [vmem:[%s6 + $0x8] sm:$0xf]
      %v877 = vld [vmem:[%s6 + $0xc] sm:$0xf]
      %v878 = vld [vmem:[%s6 + $0x10] sm:$0xf]
      %v879 = vld [vmem:[%s6 + $0x14] sm:$0xf]
      %v880 = vld [vmem:[%s6 + $0x18] sm:$0xf]
      %v881 = vld [vmem:[%s6 + $0x1c] sm:$0xf]
      %v882 = vld [vmem:[%s7] sm:$0x1]
      %v884 = vlaneseq
      %v885 = vshrl.u32 %v884, 7
      %v886 = vsub.s32 0, %v885
      %v887 = vrot.slane %v882, %v886
      %v897 = vunpack.c.l.b16 %v874
      %v898 = vunpack.c.l.b16 %v875
      %v899 = vunpack.c.l.b16 %v876
      %v900 = vunpack.c.l.b16 %v877
      %v901 = vunpack.c.l.b16 %v878
      %v902 = vunpack.c.l.b16 %v879
      %v903 = vunpack.c.l.b16 %v880
      %v904 = vunpack.c.l.b16 %v881
      %v905 = vpack.c.b16 %v898, %v897
      %v906 = vpack.c.b16 %v900, %v899
      %v907 = vpack.c.b16 %v902, %v901
      %v908 = vpack.c.b16 %v904, %v903
      %913 = vmatprep.subr.bf16.mxu0 0
      %914 = vmatpush1.bf16.msra.mxu0 0
      %915 = vmatprep.subr.bf16.mxu0 0
      %916 = vmatpush1.bf16.msra.mxu0 0
      %917 = vmatprep.subr.bf16.mxu0 0
      %918 = vmatpush1.bf16.msra.mxu0 0
      %919 = vmatprep.subr.bf16.mxu0 0
      %920 = vmatpush1.bf16.msra.mxu0 0
      %921 = vmatprep.subr.bf16.mxu0 0
      %922 = vmatpush1.bf16.msra.mxu0 %v908
      %923 = vmatprep.subr.bf16.mxu0 0
      %924 = vmatpush1.bf16.msra.mxu0 %v907
      %925 = vmatprep.subr.bf16.mxu0 0
      %926 = vmatpush1.bf16.msra.mxu0 %v906
      %927 = vmatprep.subr.bf16.mxu0 0
      %928 = vmatpush1.bf16.msra.mxu0 %v905
      %929 = vmatprep.subr.bf16.mxu0 0
      %930 = vmatpush2.bf16.msra.mxu0 0
      %931 = vmatprep.subr.bf16.mxu0 0
      %932 = vmatpush2.bf16.msra.mxu0 0
      %933 = vmatprep.subr.bf16.mxu0 0
      %934 = vmatpush2.bf16.msra.mxu0 0
      %935 = vmatprep.subr.bf16.mxu0 0
      %936 = vmatpush2.bf16.msra.mxu0 0
      %937 = vmatprep.subr.bf16.mxu0 0
      %938 = vmatpush2.bf16.msra.mxu0 0
      %939 = vmatprep.subr.bf16.mxu0 0
      %940 = vmatpush2.bf16.msra.mxu0 0
      %941 = vmatprep.subr.bf16.mxu0 0
      %942 = vmatpush2.bf16.msra.mxu0 0
      %943 = vmatprep.subr.bf16.mxu0 0
      %944 = vmatpush2.bf16.msra.mxu0 0
      %945 = vmatprep.mubr.bf16.mxu0 0
      %946 = vmatmul.mubr.bf16.gmra.mxu0 %v820
      %v947 = vpop.f32.mrf.mxu0
      %v948 = vadd.f32 %v887, %v947
      %v949 = vpop.f32.mrf.mxu0
      %v950 = vpop.f32.mrf.mxu0
      %v951 = vadd.f32 %v887, %v950
      %v952 = vpop.f32.mrf.mxu0
      %953 = vdwg.mxu0
      %v954 = vpack.c.bf16 %v951, %v948
      %v956 = vunpack.c.l.b16 %v954
      %v957 = vunpack.c.h.b16 %v954
      %v958 = vpack.c.b16 %v956, %v956
      %v959 = vpack.c.b16 %v957, %v957
      %962 = vst.msk [vmem:[#allocation4] sm:$0xf] %vm871, %v958
      %963 = vst.msk [vmem:[#allocation4 + $0x4] sm:$0xf] %vm871, %v959
      %s964 = scalar_lea.vmem %s4, 32
      %v965 = vld [vmem:[%s964] sm:$0xf]
      %v966 = vld [vmem:[%s964 + $0x4] sm:$0xf]
      %v967 = vld [vmem:[%s964 + $0x8] sm:$0xf]
      %v968 = vld [vmem:[%s964 + $0xc] sm:$0xf]
      %v969 = vld [vmem:[%s964 + $0x10] sm:$0xf]
      %v970 = vld [vmem:[%s964 + $0x14] sm:$0xf]
      %v971 = vld [vmem:[%s964 + $0x18] sm:$0xf]
      %v972 = vld [vmem:[%s964 + $0x1c] sm:$0xf]
      %s973 = scalar_lea.vmem %s5, 1
      %v974 = vld [vmem:[%s973] sm:$0x1]
      %v976 = vlaneseq
      %v977 = vshrl.u32 %v976, 7
      %v978 = vsub.s32 0, %v977
      %v979 = vrot.slane %v974, %v978
      %v989 = vunpack.c.l.b16 %v965
      %v990 = vunpack.c.l.b16 %v966
      %v991 = vunpack.c.l.b16 %v967
      %v992 = vunpack.c.l.b16 %v968
      %v993 = vunpack.c.l.b16 %v969
      %v994 = vunpack.c.l.b16 %v970
      %v995 = vunpack.c.l.b16 %v971
      %v996 = vunpack.c.l.b16 %v972
      %v997 = vpack.c.b16 %v990, %v989
      %v998 = vpack.c.b16 %v992, %v991
      %v999 = vpack.c.b16 %v994, %v993
      %v1000 = vpack.c.b16 %v996, %v995
      %1005 = vmatprep.subr.bf16.mxu0 0
      %1006 = vmatpush1.bf16.msra.mxu0 0
      %1007 = vmatprep.subr.bf16.mxu0 0
      %1008 = vmatpush1.bf16.msra.mxu0 0
      %1009 = vmatprep.subr.bf16.mxu0 0
      %1010 = vmatpush1.bf16.msra.mxu0 0
      %1011 = vmatprep.subr.bf16.mxu0 0
      %1012 = vmatpush1.bf16.msra.mxu0 0
      %1013 = vmatprep.subr.bf16.mxu0 0
      %1014 = vmatpush1.bf16.msra.mxu0 %v1000
      %1015 = vmatprep.subr.bf16.mxu0 0
      %1016 = vmatpush1.bf16.msra.mxu0 %v999
      %1017 = vmatprep.subr.bf16.mxu0 0
      %1018 = vmatpush1.bf16.msra.mxu0 %v998
      %1019 = vmatprep.subr.bf16.mxu0 0
      %1020 = vmatpush1.bf16.msra.mxu0 %v997
      %1021 = vmatprep.subr.bf16.mxu0 0
      %1022 = vmatpush2.bf16.msra.mxu0 0
      %1023 = vmatprep.subr.bf16.mxu0 0
      %1024 = vmatpush2.bf16.msra.mxu0 0
      %1025 = vmatprep.subr.bf16.mxu0 0
      %1026 = vmatpush2.bf16.msra.mxu0 0
      %1027 = vmatprep.subr.bf16.mxu0 0
      %1028 = vmatpush2.bf16.msra.mxu0 0
      %1029 = vmatprep.subr.bf16.mxu0 0
      %1030 = vmatpush2.bf16.msra.mxu0 0
      %1031 = vmatprep.subr.bf16.mxu0 0
      %1032 = vmatpush2.bf16.msra.mxu0 0
      %1033 = vmatprep.subr.bf16.mxu0 0
      %1034 = vmatpush2.bf16.msra.mxu0 0
      %1035 = vmatprep.subr.bf16.mxu0 0
      %1036 = vmatpush2.bf16.msra.mxu0 0
      %1037 = vmatprep.mubr.bf16.mxu0 0
      %1038 = vmatmul.mubr.bf16.gmra.mxu0 %v820
      %v1039 = vpop.f32.mrf.mxu0
      %v1040 = vadd.f32 %v979, %v1039
      %v1041 = vpop.f32.mrf.mxu0
      %v1042 = vpop.f32.mrf.mxu0
      %v1043 = vadd.f32 %v979, %v1042
      %v1044 = vpop.f32.mrf.mxu0
      %1045 = vdwg.mxu0
      %v1046 = vpack.c.bf16 %v1043, %v1040
      %v1048 = vunpack.c.l.b16 %v1046
      %v1049 = vunpack.c.h.b16 %v1046
      %v1050 = vpack.c.b16 %v1048, %v1048
      %v1051 = vpack.c.b16 %v1049, %v1049
      %s1054 = scalar_lea.vmem [#allocation3], 8
      %1055 = vst.msk [vmem:[%s1054] sm:$0xf] %vm871, %v1050
      %1056 = vst.msk [vmem:[%s1054 + $0x4] sm:$0xf] %vm871, %v1051
      %s1057 = scalar_lea.vmem %s6, 32
      %v1058 = vld [vmem:[%s1057] sm:$0xf]
      %v1059 = vld [vmem:[%s1057 + $0x4] sm:$0xf]
      %v1060 = vld [vmem:[%s1057 + $0x8] sm:$0xf]
      %v1061 = vld [vmem:[%s1057 + $0xc] sm:$0xf]
      %v1062 = vld [vmem:[%s1057 + $0x10] sm:$0xf]
      %v1063 = vld [vmem:[%s1057 + $0x14] sm:$0xf]
      %v1064 = vld [vmem:[%s1057 + $0x18] sm:$0xf]
      %v1065 = vld [vmem:[%s1057 + $0x1c] sm:$0xf]
      %s1066 = scalar_lea.vmem %s7, 1
      %v1067 = vld [vmem:[%s1066] sm:$0x1]
      %v1069 = vlaneseq
      %v1070 = vshrl.u32 %v1069, 7
      %v1071 = vsub.s32 0, %v1070
      %v1072 = vrot.slane %v1067, %v1071
      %v1082 = vunpack.c.l.b16 %v1058
      %v1083 = vunpack.c.l.b16 %v1059
      %v1084 = vunpack.c.l.b16 %v1060
      %v1085 = vunpack.c.l.b16 %v1061
      %v1086 = vunpack.c.l.b16 %v1062
      %v1087 = vunpack.c.l.b16 %v1063
      %v1088 = vunpack.c.l.b16 %v1064
      %v1089 = vunpack.c.l.b16 %v1065
      %v1090 = vpack.c.b16 %v1083, %v1082
      %v1091 = vpack.c.b16 %v1085, %v1084
      %v1092 = vpack.c.b16 %v1087, %v1086
      %v1093 = vpack.c.b16 %v1089, %v1088
      %1098 = vmatprep.subr.bf16.mxu0 0
      %1099 = vmatpush1.bf16.msra.mxu0 0
      %1100 = vmatprep.subr.bf16.mxu0 0
      %1101 = vmatpush1.bf16.msra.mxu0 0
      %1102 = vmatprep.subr.bf16.mxu0 0
      %1103 = vmatpush1.bf16.msra.mxu0 0
      %1104 = vmatprep.subr.bf16.mxu0 0
      %1105 = vmatpush1.bf16.msra.mxu0 0
      %1106 = vmatprep.subr.bf16.mxu0 0
      %1107 = vmatpush1.bf16.msra.mxu0 %v1093
      %1108 = vmatprep.subr.bf16.mxu0 0
      %1109 = vmatpush1.bf16.msra.mxu0 %v1092
      %1110 = vmatprep.subr.bf16.mxu0 0
      %1111 = vmatpush1.bf16.msra.mxu0 %v1091
      %1112 = vmatprep.subr.bf16.mxu0 0
      %1113 = vmatpush1.bf16.msra.mxu0 %v1090
      %1114 = vmatprep.subr.bf16.mxu0 0
      %1115 = vmatpush2.bf16.msra.mxu0 0
      %1116 = vmatprep.subr.bf16.mxu0 0
      %1117 = vmatpush2.bf16.msra.mxu0 0
      %1118 = vmatprep.subr.bf16.mxu0 0
      %1119 = vmatpush2.bf16.msra.mxu0 0
      %1120 = vmatprep.subr.bf16.mxu0 0
      %1121 = vmatpush2.bf16.msra.mxu0 0
      %1122 = vmatprep.subr.bf16.mxu0 0
      %1123 = vmatpush2.bf16.msra.mxu0 0
      %1124 = vmatprep.subr.bf16.mxu0 0
      %1125 = vmatpush2.bf16.msra.mxu0 0
      %1126 = vmatprep.subr.bf16.mxu0 0
      %1127 = vmatpush2.bf16.msra.mxu0 0
      %1128 = vmatprep.subr.bf16.mxu0 0
      %1129 = vmatpush2.bf16.msra.mxu0 0
      %1130 = vmatprep.mubr.bf16.mxu0 0
      %1131 = vmatmul.mubr.bf16.gmra.mxu0 %v820
      %v1132 = vpop.f32.mrf.mxu0
      %v1133 = vadd.f32 %v1072, %v1132
      %v1134 = vpop.f32.mrf.mxu0
      %v1135 = vpop.f32.mrf.mxu0
      %v1136 = vadd.f32 %v1072, %v1135
      %v1137 = vpop.f32.mrf.mxu0
      %1138 = vdwg.mxu0
      %v1139 = vpack.c.bf16 %v1136, %v1133
      %v1141 = vunpack.c.l.b16 %v1139
      %v1142 = vunpack.c.h.b16 %v1139
      %v1143 = vpack.c.b16 %v1141, %v1141
      %v1144 = vpack.c.b16 %v1142, %v1142
      %s1147 = scalar_lea.vmem [#allocation4], 8
      %1148 = vst.msk [vmem:[%s1147] sm:$0xf] %vm871, %v1143
      %1149 = vst.msk [vmem:[%s1147 + $0x4] sm:$0xf] %vm871, %v1144
      %s1150 = scalar_lea.vmem %s4, 64
      %v1151 = vld [vmem:[%s1150] sm:$0xf]
      %v1152 = vld [vmem:[%s1150 + $0x4] sm:$0xf]
      %v1153 = vld [vmem:[%s1150 + $0x8] sm:$0xf]
      %v1154 = vld [vmem:[%s1150 + $0xc] sm:$0xf]
      %v1155 = vld [vmem:[%s1150 + $0x10] sm:$0xf]
      %v1156 = vld [vmem:[%s1150 + $0x14] sm:$0xf]
      %v1157 = vld [vmem:[%s1150 + $0x18] sm:$0xf]
      %v1158 = vld [vmem:[%s1150 + $0x1c] sm:$0xf]
      %s1159 = scalar_lea.vmem %s5, 2
      %v1160 = vld [vmem:[%s1159] sm:$0x1]
      %v1162 = vlaneseq
      %v1163 = vshrl.u32 %v1162, 7
      %v1164 = vsub.s32 0, %v1163
      %v1165 = vrot.slane %v1160, %v1164
      %v1175 = vunpack.c.l.b16 %v1151
      %v1176 = vunpack.c.l.b16 %v1152
      %v1177 = vunpack.c.l.b16 %v1153
      %v1178 = vunpack.c.l.b16 %v1154
      %v1179 = vunpack.c.l.b16 %v1155
      %v1180 = vunpack.c.l.b16 %v1156
      %v1181 = vunpack.c.l.b16 %v1157
      %v1182 = vunpack.c.l.b16 %v1158
      %v1183 = vpack.c.b16 %v1176, %v1175
      %v1184 = vpack.c.b16 %v1178, %v1177
      %v1185 = vpack.c.b16 %v1180, %v1179
      %v1186 = vpack.c.b16 %v1182, %v1181
      %1191 = vmatprep.subr.bf16.mxu0 0
      %1192 = vmatpush1.bf16.msra.mxu0 0
      %1193 = vmatprep.subr.bf16.mxu0 0
      %1194 = vmatpush1.bf16.msra.mxu0 0
      %1195 = vmatprep.subr.bf16.mxu0 0
      %1196 = vmatpush1.bf16.msra.mxu0 0
      %1197 = vmatprep.subr.bf16.mxu0 0
      %1198 = vmatpush1.bf16.msra.mxu0 0
      %1199 = vmatprep.subr.bf16.mxu0 0
      %1200 = vmatpush1.bf16.msra.mxu0 %v1186
      %1201 = vmatprep.subr.bf16.mxu0 0
      %1202 = vmatpush1.bf16.msra.mxu0 %v1185
      %1203 = vmatprep.subr.bf16.mxu0 0
      %1204 = vmatpush1.bf16.msra.mxu0 %v1184
      %1205 = vmatprep.subr.bf16.mxu0 0
      %1206 = vmatpush1.bf16.msra.mxu0 %v1183
      %1207 = vmatprep.subr.bf16.mxu0 0
      %1208 = vmatpush2.bf16.msra.mxu0 0
      %1209 = vmatprep.subr.bf16.mxu0 0
      %1210 = vmatpush2.bf16.msra.mxu0 0
      %1211 = vmatprep.subr.bf16.mxu0 0
      %1212 = vmatpush2.bf16.msra.mxu0 0
      %1213 = vmatprep.subr.bf16.mxu0 0
      %1214 = vmatpush2.bf16.msra.mxu0 0
      %1215 = vmatprep.subr.bf16.mxu0 0
      %1216 = vmatpush2.bf16.msra.mxu0 0
      %1217 = vmatprep.subr.bf16.mxu0 0
      %1218 = vmatpush2.bf16.msra.mxu0 0
      %1219 = vmatprep.subr.bf16.mxu0 0
      %1220 = vmatpush2.bf16.msra.mxu0 0
      %1221 = vmatprep.subr.bf16.mxu0 0
      %1222 = vmatpush2.bf16.msra.mxu0 0
      %1223 = vmatprep.mubr.bf16.mxu0 0
      %1224 = vmatmul.mubr.bf16.gmra.mxu0 %v820
      %v1225 = vpop.f32.mrf.mxu0
      %v1226 = vadd.f32 %v1165, %v1225
      %v1227 = vpop.f32.mrf.mxu0
      %v1228 = vpop.f32.mrf.mxu0
      %v1229 = vadd.f32 %v1165, %v1228
      %v1230 = vpop.f32.mrf.mxu0
      %1231 = vdwg.mxu0
      %v1232 = vpack.c.bf16 %v1229, %v1226
      %v1234 = vunpack.c.l.b16 %v1232
      %v1235 = vunpack.c.h.b16 %v1232
      %v1236 = vpack.c.b16 %v1234, %v1234
      %v1237 = vpack.c.b16 %v1235, %v1235
      %s1240 = scalar_lea.vmem [#allocation3], 16
      %1241 = vst.msk [vmem:[%s1240] sm:$0xf] %vm871, %v1236
      %1242 = vst.msk [vmem:[%s1240 + $0x4] sm:$0xf] %vm871, %v1237
      %s1243 = scalar_lea.vmem %s6, 64
      %v1244 = vld [vmem:[%s1243] sm:$0xf]
      %v1245 = vld [vmem:[%s1243 + $0x4] sm:$0xf]
      %v1246 = vld [vmem:[%s1243 + $0x8] sm:$0xf]
      %v1247 = vld [vmem:[%s1243 + $0xc] sm:$0xf]
      %v1248 = vld [vmem:[%s1243 + $0x10] sm:$0xf]
      %v1249 = vld [vmem:[%s1243 + $0x14] sm:$0xf]
      %v1250 = vld [vmem:[%s1243 + $0x18] sm:$0xf]
      %v1251 = vld [vmem:[%s1243 + $0x1c] sm:$0xf]
      %s1252 = scalar_lea.vmem %s7, 2
      %v1253 = vld [vmem:[%s1252] sm:$0x1]
      %v1255 = vlaneseq
      %v1256 = vshrl.u32 %v1255, 7
      %v1257 = vsub.s32 0, %v1256
      %v1258 = vrot.slane %v1253, %v1257
      %v1268 = vunpack.c.l.b16 %v1244
      %v1269 = vunpack.c.l.b16 %v1245
      %v1270 = vunpack.c.l.b16 %v1246
      %v1271 = vunpack.c.l.b16 %v1247
      %v1272 = vunpack.c.l.b16 %v1248
      %v1273 = vunpack.c.l.b16 %v1249
      %v1274 = vunpack.c.l.b16 %v1250
      %v1275 = vunpack.c.l.b16 %v1251
      %v1276 = vpack.c.b16 %v1269, %v1268
      %v1277 = vpack.c.b16 %v1271, %v1270
      %v1278 = vpack.c.b16 %v1273, %v1272
      %v1279 = vpack.c.b16 %v1275, %v1274
      %1284 = vmatprep.subr.bf16.mxu0 0
      %1285 = vmatpush1.bf16.msra.mxu0 0
      %1286 = vmatprep.subr.bf16.mxu0 0
      %1287 = vmatpush1.bf16.msra.mxu0 0
      %1288 = vmatprep.subr.bf16.mxu0 0
      %1289 = vmatpush1.bf16.msra.mxu0 0
      %1290 = vmatprep.subr.bf16.mxu0 0
      %1291 = vmatpush1.bf16.msra.mxu0 0
      %1292 = vmatprep.subr.bf16.mxu0 0
      %1293 = vmatpush1.bf16.msra.mxu0 %v1279
      %1294 = vmatprep.subr.bf16.mxu0 0
      %1295 = vmatpush1.bf16.msra.mxu0 %v1278
      %1296 = vmatprep.subr.bf16.mxu0 0
      %1297 = vmatpush1.bf16.msra.mxu0 %v1277
      %1298 = vmatprep.subr.bf16.mxu0 0
      %1299 = vmatpush1.bf16.msra.mxu0 %v1276
      %1300 = vmatprep.subr.bf16.mxu0 0
      %1301 = vmatpush2.bf16.msra.mxu0 0
      %1302 = vmatprep.subr.bf16.mxu0 0
      %1303 = vmatpush2.bf16.msra.mxu0 0
      %1304 = vmatprep.subr.bf16.mxu0 0
      %1305 = vmatpush2.bf16.msra.mxu0 0
      %1306 = vmatprep.subr.bf16.mxu0 0
      %1307 = vmatpush2.bf16.msra.mxu0 0
      %1308 = vmatprep.subr.bf16.mxu0 0
      %1309 = vmatpush2.bf16.msra.mxu0 0
      %1310 = vmatprep.subr.bf16.mxu0 0
      %1311 = vmatpush2.bf16.msra.mxu0 0
      %1312 = vmatprep.subr.bf16.mxu0 0
      %1313 = vmatpush2.bf16.msra.mxu0 0
      %1314 = vmatprep.subr.bf16.mxu0 0
      %1315 = vmatpush2.bf16.msra.mxu0 0
      %1316 = vmatprep.mubr.bf16.mxu0 0
      %1317 = vmatmul.mubr.bf16.gmra.mxu0 %v820
      %v1318 = vpop.f32.mrf.mxu0
      %v1319 = vadd.f32 %v1258, %v1318
      %v1320 = vpop.f32.mrf.mxu0
      %v1321 = vpop.f32.mrf.mxu0
      %v1322 = vadd.f32 %v1258, %v1321
      %v1323 = vpop.f32.mrf.mxu0
      %1324 = vdwg.mxu0
      %v1325 = vpack.c.bf16 %v1322, %v1319
      %v1327 = vunpack.c.l.b16 %v1325
      %v1328 = vunpack.c.h.b16 %v1325
      %v1329 = vpack.c.b16 %v1327, %v1327
      %v1330 = vpack.c.b16 %v1328, %v1328
      %s1333 = scalar_lea.vmem [#allocation4], 16
      %1334 = vst.msk [vmem:[%s1333] sm:$0xf] %vm871, %v1329
      %1335 = vst.msk [vmem:[%s1333 + $0x4] sm:$0xf] %vm871, %v1330
      %s1336 = scalar_lea.vmem %s4, 96
      %v1337 = vld [vmem:[%s1336] sm:$0xf]
      %v1338 = vld [vmem:[%s1336 + $0x4] sm:$0xf]
      %v1339 = vld [vmem:[%s1336 + $0x8] sm:$0xf]
      %v1340 = vld [vmem:[%s1336 + $0xc] sm:$0xf]
      %v1341 = vld [vmem:[%s1336 + $0x10] sm:$0xf]
      %v1342 = vld [vmem:[%s1336 + $0x14] sm:$0xf]
      %v1343 = vld [vmem:[%s1336 + $0x18] sm:$0xf]
      %v1344 = vld [vmem:[%s1336 + $0x1c] sm:$0xf]
      %s1345 = scalar_lea.vmem %s5, 3
      %v1346 = vld [vmem:[%s1345] sm:$0x1]
      %v1348 = vlaneseq
      %v1349 = vshrl.u32 %v1348, 7
      %v1350 = vsub.s32 0, %v1349
      %v1351 = vrot.slane %v1346, %v1350
      %v1361 = vunpack.c.l.b16 %v1337
      %v1362 = vunpack.c.l.b16 %v1338
      %v1363 = vunpack.c.l.b16 %v1339
      %v1364 = vunpack.c.l.b16 %v1340
      %v1365 = vunpack.c.l.b16 %v1341
      %v1366 = vunpack.c.l.b16 %v1342
      %v1367 = vunpack.c.l.b16 %v1343
      %v1368 = vunpack.c.l.b16 %v1344
      %v1369 = vpack.c.b16 %v1362, %v1361
      %v1370 = vpack.c.b16 %v1364, %v1363
      %v1371 = vpack.c.b16 %v1366, %v1365
      %v1372 = vpack.c.b16 %v1368, %v1367
      %1377 = vmatprep.subr.bf16.mxu0 0
      %1378 = vmatpush1.bf16.msra.mxu0 0
      %1379 = vmatprep.subr.bf16.mxu0 0
      %1380 = vmatpush1.bf16.msra.mxu0 0
      %1381 = vmatprep.subr.bf16.mxu0 0
      %1382 = vmatpush1.bf16.msra.mxu0 0
      %1383 = vmatprep.subr.bf16.mxu0 0
      %1384 = vmatpush1.bf16.msra.mxu0 0
      %1385 = vmatprep.subr.bf16.mxu0 0
      %1386 = vmatpush1.bf16.msra.mxu0 %v1372
      %1387 = vmatprep.subr.bf16.mxu0 0
      %1388 = vmatpush1.bf16.msra.mxu0 %v1371
      %1389 = vmatprep.subr.bf16.mxu0 0
      %1390 = vmatpush1.bf16.msra.mxu0 %v1370
      %1391 = vmatprep.subr.bf16.mxu0 0
      %1392 = vmatpush1.bf16.msra.mxu0 %v1369
      %1393 = vmatprep.subr.bf16.mxu0 0
      %1394 = vmatpush2.bf16.msra.mxu0 0
      %1395 = vmatprep.subr.bf16.mxu0 0
      %1396 = vmatpush2.bf16.msra.mxu0 0
      %1397 = vmatprep.subr.bf16.mxu0 0
      %1398 = vmatpush2.bf16.msra.mxu0 0
      %1399 = vmatprep.subr.bf16.mxu0 0
      %1400 = vmatpush2.bf16.msra.mxu0 0
      %1401 = vmatprep.subr.bf16.mxu0 0
      %1402 = vmatpush2.bf16.msra.mxu0 0
      %1403 = vmatprep.subr.bf16.mxu0 0
      %1404 = vmatpush2.bf16.msra.mxu0 0
      %1405 = vmatprep.subr.bf16.mxu0 0
      %1406 = vmatpush2.bf16.msra.mxu0 0
      %1407 = vmatprep.subr.bf16.mxu0 0
      %1408 = vmatpush2.bf16.msra.mxu0 0
      %1409 = vmatprep.mubr.bf16.mxu0 0
      %1410 = vmatmul.mubr.bf16.gmra.mxu0 %v820
      %v1411 = vpop.f32.mrf.mxu0
      %v1412 = vadd.f32 %v1351, %v1411
      %v1413 = vpop.f32.mrf.mxu0
      %v1414 = vpop.f32.mrf.mxu0
      %v1415 = vadd.f32 %v1351, %v1414
      %v1416 = vpop.f32.mrf.mxu0
      %1417 = vdwg.mxu0
      %v1418 = vpack.c.bf16 %v1415, %v1412
      %v1420 = vunpack.c.l.b16 %v1418
      %v1421 = vunpack.c.h.b16 %v1418
      %v1422 = vpack.c.b16 %v1420, %v1420
      %v1423 = vpack.c.b16 %v1421, %v1421
      %s1426 = scalar_lea.vmem [#allocation3], 24
      %1427 = vst.msk [vmem:[%s1426] sm:$0xf] %vm871, %v1422
      %1428 = vst.msk [vmem:[%s1426 + $0x4] sm:$0xf] %vm871, %v1423
      %s1429 = scalar_lea.vmem %s6, 96
      %v1430 = vld [vmem:[%s1429] sm:$0xf]
      %v1431 = vld [vmem:[%s1429 + $0x4] sm:$0xf]
      %v1432 = vld [vmem:[%s1429 + $0x8] sm:$0xf]
      %v1433 = vld [vmem:[%s1429 + $0xc] sm:$0xf]
      %v1434 = vld [vmem:[%s1429 + $0x10] sm:$0xf]
      %v1435 = vld [vmem:[%s1429 + $0x14] sm:$0xf]
      %v1436 = vld [vmem:[%s1429 + $0x18] sm:$0xf]
      %v1437 = vld [vmem:[%s1429 + $0x1c] sm:$0xf]
      %s1438 = scalar_lea.vmem %s7, 3
      %v1439 = vld [vmem:[%s1438] sm:$0x1]
      %v1441 = vlaneseq
      %v1442 = vshrl.u32 %v1441, 7
      %v1443 = vsub.s32 0, %v1442
      %v1444 = vrot.slane %v1439, %v1443
      %v1454 = vunpack.c.l.b16 %v1430
      %v1455 = vunpack.c.l.b16 %v1431
      %v1456 = vunpack.c.l.b16 %v1432
      %v1457 = vunpack.c.l.b16 %v1433
      %v1458 = vunpack.c.l.b16 %v1434
      %v1459 = vunpack.c.l.b16 %v1435
      %v1460 = vunpack.c.l.b16 %v1436
      %v1461 = vunpack.c.l.b16 %v1437
      %v1462 = vpack.c.b16 %v1455, %v1454
      %v1463 = vpack.c.b16 %v1457, %v1456
      %v1464 = vpack.c.b16 %v1459, %v1458
      %v1465 = vpack.c.b16 %v1461, %v1460
      %1470 = vmatprep.subr.bf16.mxu0 0
      %1471 = vmatpush1.bf16.msra.mxu0 0
      %1472 = vmatprep.subr.bf16.mxu0 0
      %1473 = vmatpush1.bf16.msra.mxu0 0
      %1474 = vmatprep.subr.bf16.mxu0 0
      %1475 = vmatpush1.bf16.msra.mxu0 0
      %1476 = vmatprep.subr.bf16.mxu0 0
      %1477 = vmatpush1.bf16.msra.mxu0 0
      %1478 = vmatprep.subr.bf16.mxu0 0
      %1479 = vmatpush1.bf16.msra.mxu0 %v1465
      %1480 = vmatprep.subr.bf16.mxu0 0
      %1481 = vmatpush1.bf16.msra.mxu0 %v1464
      %1482 = vmatprep.subr.bf16.mxu0 0
      %1483 = vmatpush1.bf16.msra.mxu0 %v1463
      %1484 = vmatprep.subr.bf16.mxu0 0
      %1485 = vmatpush1.bf16.msra.mxu0 %v1462
      %1486 = vmatprep.subr.bf16.mxu0 0
      %1487 = vmatpush2.bf16.msra.mxu0 0
      %1488 = vmatprep.subr.bf16.mxu0 0
      %1489 = vmatpush2.bf16.msra.mxu0 0
      %1490 = vmatprep.subr.bf16.mxu0 0
      %1491 = vmatpush2.bf16.msra.mxu0 0
      %1492 = vmatprep.subr.bf16.mxu0 0
      %1493 = vmatpush2.bf16.msra.mxu0 0
      %1494 = vmatprep.subr.bf16.mxu0 0
      %1495 = vmatpush2.bf16.msra.mxu0 0
      %1496 = vmatprep.subr.bf16.mxu0 0
      %1497 = vmatpush2.bf16.msra.mxu0 0
      %1498 = vmatprep.subr.bf16.mxu0 0
      %1499 = vmatpush2.bf16.msra.mxu0 0
      %1500 = vmatprep.subr.bf16.mxu0 0
      %1501 = vmatpush2.bf16.msra.mxu0 0
      %1502 = vmatprep.mubr.bf16.mxu0 0
      %1503 = vmatmul.mubr.bf16.gmra.mxu0 %v820
      %v1504 = vpop.f32.mrf.mxu0
      %v1505 = vadd.f32 %v1444, %v1504
      %v1506 = vpop.f32.mrf.mxu0
      %v1507 = vpop.f32.mrf.mxu0
      %v1508 = vadd.f32 %v1444, %v1507
      %v1509 = vpop.f32.mrf.mxu0
      %1510 = vdwg.mxu0
      %v1511 = vpack.c.bf16 %v1508, %v1505
      %v1513 = vunpack.c.l.b16 %v1511
      %v1514 = vunpack.c.h.b16 %v1511
      %v1515 = vpack.c.b16 %v1513, %v1513
      %v1516 = vpack.c.b16 %v1514, %v1514
      %s1519 = scalar_lea.vmem [#allocation4], 24
      %1520 = vst.msk [vmem:[%s1519] sm:$0xf] %vm871, %v1515
      %1521 = vst.msk [vmem:[%s1519 + $0x4] sm:$0xf] %vm871, %v1516
      %v1522 = vld [vmem:[#allocation2] sm:$0xf]
      %v1523 = vld [vmem:[#allocation2 + $0x4] sm:$0xf]
      %v1524 = vld [vmem:[#allocation2 + $0x8] sm:$0xf]
      %v1525 = vld [vmem:[#allocation2 + $0xc] sm:$0xf]
      %v1526 = vld [vmem:[#allocation3] sm:$0xf]
      %v1527 = vld [vmem:[#allocation3 + $0x4] sm:$0xf]
      %v1528 = vld [vmem:[#allocation3 + $0x8] sm:$0xf]
      %v1529 = vld [vmem:[#allocation3 + $0xc] sm:$0xf]
      %v1530 = vld [vmem:[#allocation3 + $0x10] sm:$0xf]
      %v1531 = vld [vmem:[#allocation3 + $0x14] sm:$0xf]
      %v1532 = vld [vmem:[#allocation3 + $0x18] sm:$0xf]
      %v1533 = vld [vmem:[#allocation3 + $0x1c] sm:$0xf]
      %v1536 = vunpack.c.l.b16 %v1526
      %v1537 = vunpack.c.l.b16 %v1527
      %v1538 = vpack.c.b16 %v1537, %v1536
      %vm1539 = vcmask 64512
      %v1541 = vsel %vm1539, %v1522, 0
      %v1544 = vsel %vm1539, %v1538, 0
      %1546 = vmatprep.subr.bf16.mxu0 0
      %1547 = vmatpush1.bf16.xpose.msra.mxu0 0
      %1548 = vmatprep.subr.bf16.mxu0 0
      %1549 = vmatpush1.bf16.xpose.msra.mxu0 0
      %1550 = vmatprep.subr.bf16.mxu0 0
      %1551 = vmatpush1.bf16.xpose.msra.mxu0 0
      %1552 = vmatprep.subr.bf16.mxu0 0
      %1553 = vmatpush1.bf16.xpose.msra.mxu0 0
      %1554 = vmatprep.subr.bf16.mxu0 0
      %1555 = vmatpush1.bf16.xpose.msra.mxu0 0
      %1556 = vmatprep.subr.bf16.mxu0 0
      %1557 = vmatpush1.bf16.xpose.msra.mxu0 0
      %1558 = vmatprep.subr.bf16.mxu0 0
      %1559 = vmatpush1.bf16.xpose.msra.mxu0 0
      %1560 = vmatprep.subr.bf16.mxu0 0
      %1561 = vmatpush1.bf16.xpose.msra.mxu0 %v1544
      %1562 = vmatprep.subr.bf16.mxu0 0
      %1563 = vmatpush2.bf16.xpose.msra.mxu0 0
      %1564 = vmatprep.subr.bf16.mxu0 0
      %1565 = vmatpush2.bf16.xpose.msra.mxu0 0
      %1566 = vmatprep.subr.bf16.mxu0 0
      %1567 = vmatpush2.bf16.xpose.msra.mxu0 0
      %1568 = vmatprep.subr.bf16.mxu0 0
      %1569 = vmatpush2.bf16.xpose.msra.mxu0 0
      %1570 = vmatprep.subr.bf16.mxu0 0
      %1571 = vmatpush2.bf16.xpose.msra.mxu0 0
      %1572 = vmatprep.subr.bf16.mxu0 0
      %1573 = vmatpush2.bf16.xpose.msra.mxu0 0
      %1574 = vmatprep.subr.bf16.mxu0 0
      %1575 = vmatpush2.bf16.xpose.msra.mxu0 0
      %1576 = vmatprep.subr.bf16.mxu0 0
      %1577 = vmatpush2.bf16.xpose.msra.mxu0 0
      %1578 = vmatprep.mubr.bf16.mxu0 0
      %1579 = vmatmul.mubr.bf16.gmra.mxu0 %v1541
      %v1580 = vpop.f32.mrf.mxu0
      %v1581 = vadd.f32 0.0, %v1580
      %v1582 = vpop.f32.mrf.mxu0
      %v1583 = vpop.f32.mrf.mxu0
      %v1584 = vpop.f32.mrf.mxu0
      %1585 = vdwg.mxu0
      %v1588 = vunpack.c.l.b16 %v1528
      %v1589 = vunpack.c.l.b16 %v1529
      %v1590 = vpack.c.b16 %v1589, %v1588
      %v1592 = vsel %vm1539, %v1523, 0
      %v1595 = vsel %vm1539, %v1590, 0
      %1597 = vmatprep.subr.bf16.mxu0 0
      %1598 = vmatpush1.bf16.xpose.msra.mxu0 0
      %1599 = vmatprep.subr.bf16.mxu0 0
      %1600 = vmatpush1.bf16.xpose.msra.mxu0 0
      %1601 = vmatprep.subr.bf16.mxu0 0
      %1602 = vmatpush1.bf16.xpose.msra.mxu0 0
      %1603 = vmatprep.subr.bf16.mxu0 0
      %1604 = vmatpush1.bf16.xpose.msra.mxu0 0
      %1605 = vmatprep.subr.bf16.mxu0 0
      %1606 = vmatpush1.bf16.xpose.msra.mxu0 0
      %1607 = vmatprep.subr.bf16.mxu0 0
      %1608 = vmatpush1.bf16.xpose.msra.mxu0 0
      %1609 = vmatprep.subr.bf16.mxu0 0
      %1610 = vmatpush1.bf16.xpose.msra.mxu0 0
      %1611 = vmatprep.subr.bf16.mxu0 0
      %1612 = vmatpush1.bf16.xpose.msra.mxu0 %v1595
      %1613 = vmatprep.subr.bf16.mxu0 0
      %1614 = vmatpush2.bf16.xpose.msra.mxu0 0
      %1615 = vmatprep.subr.bf16.mxu0 0
      %1616 = vmatpush2.bf16.xpose.msra.mxu0 0
      %1617 = vmatprep.subr.bf16.mxu0 0
      %1618 = vmatpush2.bf16.xpose.msra.mxu0 0
      %1619 = vmatprep.subr.bf16.mxu0 0
      %1620 = vmatpush2.bf16.xpose.msra.mxu0 0
      %1621 = vmatprep.subr.bf16.mxu0 0
      %1622 = vmatpush2.bf16.xpose.msra.mxu0 0
      %1623 = vmatprep.subr.bf16.mxu0 0
      %1624 = vmatpush2.bf16.xpose.msra.mxu0 0
      %1625 = vmatprep.subr.bf16.mxu0 0
      %1626 = vmatpush2.bf16.xpose.msra.mxu0 0
      %1627 = vmatprep.subr.bf16.mxu0 0
      %1628 = vmatpush2.bf16.xpose.msra.mxu0 0
      %1629 = vmatprep.mubr.bf16.mxu0 0
      %1630 = vmatmul.mubr.bf16.gmra.mxu0 %v1592
      %v1631 = vpop.f32.mrf.mxu0
      %v1632 = vadd.f32 0.0, %v1631
      %v1633 = vpop.f32.mrf.mxu0
      %v1634 = vpop.f32.mrf.mxu0
      %v1635 = vpop.f32.mrf.mxu0
      %1636 = vdwg.mxu0
      %v1639 = vunpack.c.l.b16 %v1530
      %v1640 = vunpack.c.l.b16 %v1531
      %v1641 = vpack.c.b16 %v1640, %v1639
      %v1643 = vsel %vm1539, %v1524, 0
      %v1646 = vsel %vm1539, %v1641, 0
      %1648 = vmatprep.subr.bf16.mxu0 0
      %1649 = vmatpush1.bf16.xpose.msra.mxu0 0
      %1650 = vmatprep.subr.bf16.mxu0 0
      %1651 = vmatpush1.bf16.xpose.msra.mxu0 0
      %1652 = vmatprep.subr.bf16.mxu0 0
      %1653 = vmatpush1.bf16.xpose.msra.mxu0 0
      %1654 = vmatprep.subr.bf16.mxu0 0
      %1655 = vmatpush1.bf16.xpose.msra.mxu0 0
      %1656 = vmatprep.subr.bf16.mxu0 0
      %1657 = vmatpush1.bf16.xpose.msra.mxu0 0
      %1658 = vmatprep.subr.bf16.mxu0 0
      %1659 = vmatpush1.bf16.xpose.msra.mxu0 0
      %1660 = vmatprep.subr.bf16.mxu0 0
      %1661 = vmatpush1.bf16.xpose.msra.mxu0 0
      %1662 = vmatprep.subr.bf16.mxu0 0
      %1663 = vmatpush1.bf16.xpose.msra.mxu0 %v1646
      %1664 = vmatprep.subr.bf16.mxu0 0
      %1665 = vmatpush2.bf16.xpose.msra.mxu0 0
      %1666 = vmatprep.subr.bf16.mxu0 0
      %1667 = vmatpush2.bf16.xpose.msra.mxu0 0
      %1668 = vmatprep.subr.bf16.mxu0 0
      %1669 = vmatpush2.bf16.xpose.msra.mxu0 0
      %1670 = vmatprep.subr.bf16.mxu0 0
      %1671 = vmatpush2.bf16.xpose.msra.mxu0 0
      %1672 = vmatprep.subr.bf16.mxu0 0
      %1673 = vmatpush2.bf16.xpose.msra.mxu0 0
      %1674 = vmatprep.subr.bf16.mxu0 0
      %1675 = vmatpush2.bf16.xpose.msra.mxu0 0
      %1676 = vmatprep.subr.bf16.mxu0 0
      %1677 = vmatpush2.bf16.xpose.msra.mxu0 0
      %1678 = vmatprep.subr.bf16.mxu0 0
      %1679 = vmatpush2.bf16.xpose.msra.mxu0 0
      %1680 = vmatprep.mubr.bf16.mxu0 0
      %1681 = vmatmul.mubr.bf16.gmra.mxu0 %v1643
      %v1682 = vpop.f32.mrf.mxu0
      %v1683 = vadd.f32 0.0, %v1682
      %v1684 = vpop.f32.mrf.mxu0
      %v1685 = vpop.f32.mrf.mxu0
      %v1686 = vpop.f32.mrf.mxu0
      %1687 = vdwg.mxu0
      %v1690 = vunpack.c.l.b16 %v1532
      %v1691 = vunpack.c.l.b16 %v1533
      %v1692 = vpack.c.b16 %v1691, %v1690
      %v1694 = vsel %vm1539, %v1525, 0
      %v1697 = vsel %vm1539, %v1692, 0
      %1699 = vmatprep.subr.bf16.mxu0 0
      %1700 = vmatpush1.bf16.xpose.msra.mxu0 0
      %1701 = vmatprep.subr.bf16.mxu0 0
      %1702 = vmatpush1.bf16.xpose.msra.mxu0 0
      %1703 = vmatprep.subr.bf16.mxu0 0
      %1704 = vmatpush1.bf16.xpose.msra.mxu0 0
      %1705 = vmatprep.subr.bf16.mxu0 0
      %1706 = vmatpush1.bf16.xpose.msra.mxu0 0
      %1707 = vmatprep.subr.bf16.mxu0 0
      %1708 = vmatpush1.bf16.xpose.msra.mxu0 0
      %1709 = vmatprep.subr.bf16.mxu0 0
      %1710 = vmatpush1.bf16.xpose.msra.mxu0 0
      %1711 = vmatprep.subr.bf16.mxu0 0
      %1712 = vmatpush1.bf16.xpose.msra.mxu0 0
      %1713 = vmatprep.subr.bf16.mxu0 0
      %1714 = vmatpush1.bf16.xpose.msra.mxu0 %v1697
      %1715 = vmatprep.subr.bf16.mxu0 0
      %1716 = vmatpush2.bf16.xpose.msra.mxu0 0
      %1717 = vmatprep.subr.bf16.mxu0 0
      %1718 = vmatpush2.bf16.xpose.msra.mxu0 0
      %1719 = vmatprep.subr.bf16.mxu0 0
      %1720 = vmatpush2.bf16.xpose.msra.mxu0 0
      %1721 = vmatprep.subr.bf16.mxu0 0
      %1722 = vmatpush2.bf16.xpose.msra.mxu0 0
      %1723 = vmatprep.subr.bf16.mxu0 0
      %1724 = vmatpush2.bf16.xpose.msra.mxu0 0
      %1725 = vmatprep.subr.bf16.mxu0 0
      %1726 = vmatpush2.bf16.xpose.msra.mxu0 0
      %1727 = vmatprep.subr.bf16.mxu0 0
      %1728 = vmatpush2.bf16.xpose.msra.mxu0 0
      %1729 = vmatprep.subr.bf16.mxu0 0
      %1730 = vmatpush2.bf16.xpose.msra.mxu0 0
      %1731 = vmatprep.mubr.bf16.mxu0 0
      %1732 = vmatmul.mubr.bf16.gmra.mxu0 %v1694
      %v1733 = vpop.f32.mrf.mxu0
      %v1734 = vadd.f32 0.0, %v1733
      %v1735 = vpop.f32.mrf.mxu0
      %v1736 = vpop.f32.mrf.mxu0
      %v1737 = vpop.f32.mrf.mxu0
      %1738 = vdwg.mxu0
      %v1739 = vld [vmem:[#allocation5] sm:$0xff]
      %v1740 = vld [vmem:[#allocation5 + $0x8] sm:$0xff]
      %v1741 = vld [vmem:[#allocation5 + $0x10] sm:$0xff]
      %v1742 = vld [vmem:[#allocation5 + $0x18] sm:$0xff]
      %vm1743 = vcmask 130048
      %v1744 = vsel %vm1743, %v1581, -inf
      %1745 = vmax.xlane.f32.xlu0 %v1744
      %v1746 = vpop.xlane.xlu0 %1745
      %v1747 = vsel %vm1743, %v1632, -inf
      %1748 = vmax.xlane.f32.xlu0 %v1747
      %v1749 = vpop.xlane.xlu0 %1748
      %v1750 = vsel %vm1743, %v1683, -inf
      %1751 = vmax.xlane.f32.xlu0 %v1750
      %v1752 = vpop.xlane.xlu0 %1751
      %v1753 = vsel %vm1743, %v1734, -inf
      %1754 = vmax.xlane.f32.xlu0 %v1753
      %v1755 = vpop.xlane.xlu0 %1754
      %v1756 = vmax.f32 %v1739, %v1746
      %v1757 = vmax.f32 %v1740, %v1749
      %v1758 = vmax.f32 %v1741, %v1752
      %v1759 = vmax.f32 %v1742, %v1755
      %v1760 = vsub.f32 %v1739, %v1756
      %v1761 = vsub.f32 %v1740, %v1757
      %v1762 = vsub.f32 %v1741, %v1758
      %v1763 = vsub.f32 %v1742, %v1759
      %v1764 = vmul.f32 %v1760, 1.442695
      %v1765 = vpow.pop %v1764
      %v1766 = vmul.f32 %v1761, 1.442695
      %v1767 = vpow.pop %v1766
      %v1768 = vmul.f32 %v1762, 1.442695
      %v1769 = vpow.pop %v1768
      %v1770 = vmul.f32 %v1763, 1.442695
      %v1771 = vpow.pop %v1770
      %1773 = vset.pattern.permute.xlu0 0
      %1774 = vperm.xlu0 %1773, %v1756
      %v1775 = vpop.permute.xlu0 %1774
      %1778 = vset.pattern.permute.xlu0 0
      %1779 = vperm.xlu0 %1778, %v1757
      %v1780 = vpop.permute.xlu0 %1779
      %1783 = vset.pattern.permute.xlu0 0
      %1784 = vperm.xlu0 %1783, %v1758
      %v1785 = vpop.permute.xlu0 %1784
      %1788 = vset.pattern.permute.xlu0 0
      %1789 = vperm.xlu0 %1788, %v1759
      %v1790 = vpop.permute.xlu0 %1789
      %v1792 = vsub.f32 %v1581, %v1775
      %v1793 = vsub.f32 %v1632, %v1780
      %v1794 = vsub.f32 %v1683, %v1785
      %v1795 = vsub.f32 %v1734, %v1790
      %v1796 = vmul.f32 %v1792, 1.442695
      %v1797 = vpow.pop %v1796
      %v1798 = vmul.f32 %v1793, 1.442695
      %v1799 = vpow.pop %v1798
      %v1800 = vmul.f32 %v1794, 1.442695
      %v1801 = vpow.pop %v1800
      %v1802 = vmul.f32 %v1795, 1.442695
      %v1803 = vpow.pop %v1802
      %v1804 = vld [vmem:[#allocation6] sm:$0xff]
      %v1805 = vld [vmem:[#allocation6 + $0x8] sm:$0xff]
      %v1806 = vld [vmem:[#allocation6 + $0x10] sm:$0xff]
      %v1807 = vld [vmem:[#allocation6 + $0x18] sm:$0xff]
      %v1808 = vmul.f32 %v1765, %v1804
      %v1809 = vmul.f32 %v1767, %v1805
      %v1810 = vmul.f32 %v1769, %v1806
      %v1811 = vmul.f32 %v1771, %v1807
      %v1812 = vsel %vm1743, %v1797, 0.0
      %1813 = vadd.xlane.f32.xlu0 %v1812
      %v1814 = vpop.xlane.xlu0 %1813
      %v1815 = vsel %vm1743, %v1799, 0.0
      %1816 = vadd.xlane.f32.xlu0 %v1815
      %v1817 = vpop.xlane.xlu0 %1816
      %v1818 = vsel %vm1743, %v1801, 0.0
      %1819 = vadd.xlane.f32.xlu0 %v1818
      %v1820 = vpop.xlane.xlu0 %1819
      %v1821 = vsel %vm1743, %v1803, 0.0
      %1822 = vadd.xlane.f32.xlu0 %v1821
      %v1823 = vpop.xlane.xlu0 %1822
      %v1824 = vadd.f32 %v1808, %v1814
      %v1825 = vadd.f32 %v1809, %v1817
      %v1826 = vadd.f32 %v1810, %v1820
      %v1827 = vadd.f32 %v1811, %v1823
      %vm1828 = vcmask 7168
      %1829 = vst.msk [vmem:[#allocation6] sm:$0xff] %vm1828, %v1824
      %1830 = vst.msk [vmem:[#allocation6 + $0x8] sm:$0xff] %vm1828, %v1825
      %1831 = vst.msk [vmem:[#allocation6 + $0x10] sm:$0xff] %vm1828, %v1826
      %1832 = vst.msk [vmem:[#allocation6 + $0x18] sm:$0xff] %vm1828, %v1827
      %v1833 = vpack.c.bf16 %v1797, %v1797
      %v1834 = vpack.c.bf16 %v1799, %v1799
      %v1835 = vpack.c.bf16 %v1801, %v1801
      %v1836 = vpack.c.bf16 %v1803, %v1803
      %v1837 = vld [vmem:[#allocation4] sm:$0xf]
      %v1838 = vld [vmem:[#allocation4 + $0x4] sm:$0xf]
      %v1839 = vld [vmem:[#allocation4 + $0x8] sm:$0xf]
      %v1840 = vld [vmem:[#allocation4 + $0xc] sm:$0xf]
      %v1841 = vld [vmem:[#allocation4 + $0x10] sm:$0xf]
      %v1842 = vld [vmem:[#allocation4 + $0x14] sm:$0xf]
      %v1843 = vld [vmem:[#allocation4 + $0x18] sm:$0xf]
      %v1844 = vld [vmem:[#allocation4 + $0x1c] sm:$0xf]
      %v1847 = vunpack.c.l.b16 %v1837
      %v1848 = vunpack.c.l.b16 %v1838
      %v1849 = vpack.c.b16 %v1848, %v1847
      %v1852 = vsel %vm1743, %v1833, 0
      %1854 = vmatprep.subr.bf16.mxu0 0
      %1855 = vmatpush1.bf16.msra.mxu0 0
      %1856 = vmatprep.subr.bf16.mxu0 0
      %1857 = vmatpush1.bf16.msra.mxu0 0
      %1858 = vmatprep.subr.bf16.mxu0 0
      %1859 = vmatpush1.bf16.msra.mxu0 0
      %1860 = vmatprep.subr.bf16.mxu0 0
      %1861 = vmatpush1.bf16.msra.mxu0 0
      %1862 = vmatprep.subr.bf16.mxu0 0
      %1863 = vmatpush1.bf16.msra.mxu0 0
      %1864 = vmatprep.subr.bf16.mxu0 0
      %1865 = vmatpush1.bf16.msra.mxu0 0
      %1866 = vmatprep.subr.bf16.mxu0 0
      %1867 = vmatpush1.bf16.msra.mxu0 0
      %1868 = vmatprep.subr.bf16.mxu0 0
      %1869 = vmatpush1.bf16.msra.mxu0 %v1849
      %1870 = vmatprep.subr.bf16.mxu0 0
      %1871 = vmatpush2.bf16.msra.mxu0 0
      %1872 = vmatprep.subr.bf16.mxu0 0
      %1873 = vmatpush2.bf16.msra.mxu0 0
      %1874 = vmatprep.subr.bf16.mxu0 0
      %1875 = vmatpush2.bf16.msra.mxu0 0
      %1876 = vmatprep.subr.bf16.mxu0 0
      %1877 = vmatpush2.bf16.msra.mxu0 0
      %1878 = vmatprep.subr.bf16.mxu0 0
      %1879 = vmatpush2.bf16.msra.mxu0 0
      %1880 = vmatprep.subr.bf16.mxu0 0
      %1881 = vmatpush2.bf16.msra.mxu0 0
      %1882 = vmatprep.subr.bf16.mxu0 0
      %1883 = vmatpush2.bf16.msra.mxu0 0
      %1884 = vmatprep.subr.bf16.mxu0 0
      %1885 = vmatpush2.bf16.msra.mxu0 0
      %1886 = vmatprep.mubr.bf16.mxu0 0
      %1887 = vmatmul.mubr.bf16.gmra.mxu0 %v1852
      %v1888 = vpop.f32.mrf.mxu0
      %v1889 = vadd.f32 0.0, %v1888
      %v1890 = vpop.f32.mrf.mxu0
      %v1891 = vpop.f32.mrf.mxu0
      %v1892 = vpop.f32.mrf.mxu0
      %1893 = vdwg.mxu0
      %v1896 = vunpack.c.l.b16 %v1839
      %v1897 = vunpack.c.l.b16 %v1840
      %v1898 = vpack.c.b16 %v1897, %v1896
      %v1901 = vsel %vm1743, %v1834, 0
      %1903 = vmatprep.subr.bf16.mxu0 0
      %1904 = vmatpush1.bf16.msra.mxu0 0
      %1905 = vmatprep.subr.bf16.mxu0 0
      %1906 = vmatpush1.bf16.msra.mxu0 0
      %1907 = vmatprep.subr.bf16.mxu0 0
      %1908 = vmatpush1.bf16.msra.mxu0 0
      %1909 = vmatprep.subr.bf16.mxu0 0
      %1910 = vmatpush1.bf16.msra.mxu0 0
      %1911 = vmatprep.subr.bf16.mxu0 0
      %1912 = vmatpush1.bf16.msra.mxu0 0
      %1913 = vmatprep.subr.bf16.mxu0 0
      %1914 = vmatpush1.bf16.msra.mxu0 0
      %1915 = vmatprep.subr.bf16.mxu0 0
      %1916 = vmatpush1.bf16.msra.mxu0 0
      %1917 = vmatprep.subr.bf16.mxu0 0
      %1918 = vmatpush1.bf16.msra.mxu0 %v1898
      %1919 = vmatprep.subr.bf16.mxu0 0
      %1920 = vmatpush2.bf16.msra.mxu0 0
      %1921 = vmatprep.subr.bf16.mxu0 0
      %1922 = vmatpush2.bf16.msra.mxu0 0
      %1923 = vmatprep.subr.bf16.mxu0 0
      %1924 = vmatpush2.bf16.msra.mxu0 0
      %1925 = vmatprep.subr.bf16.mxu0 0
      %1926 = vmatpush2.bf16.msra.mxu0 0
      %1927 = vmatprep.subr.bf16.mxu0 0
      %1928 = vmatpush2.bf16.msra.mxu0 0
      %1929 = vmatprep.subr.bf16.mxu0 0
      %1930 = vmatpush2.bf16.msra.mxu0 0
      %1931 = vmatprep.subr.bf16.mxu0 0
      %1932 = vmatpush2.bf16.msra.mxu0 0
      %1933 = vmatprep.subr.bf16.mxu0 0
      %1934 = vmatpush2.bf16.msra.mxu0 0
      %1935 = vmatprep.mubr.bf16.mxu0 0
      %1936 = vmatmul.mubr.bf16.gmra.mxu0 %v1901
      %v1937 = vpop.f32.mrf.mxu0
      %v1938 = vadd.f32 0.0, %v1937
      %v1939 = vpop.f32.mrf.mxu0
      %v1940 = vpop.f32.mrf.mxu0
      %v1941 = vpop.f32.mrf.mxu0
      %1942 = vdwg.mxu0
      %v1945 = vunpack.c.l.b16 %v1841
      %v1946 = vunpack.c.l.b16 %v1842
      %v1947 = vpack.c.b16 %v1946, %v1945
      %v1950 = vsel %vm1743, %v1835, 0
      %1952 = vmatprep.subr.bf16.mxu0 0
      %1953 = vmatpush1.bf16.msra.mxu0 0
      %1954 = vmatprep.subr.bf16.mxu0 0
      %1955 = vmatpush1.bf16.msra.mxu0 0
      %1956 = vmatprep.subr.bf16.mxu0 0
      %1957 = vmatpush1.bf16.msra.mxu0 0
      %1958 = vmatprep.subr.bf16.mxu0 0
      %1959 = vmatpush1.bf16.msra.mxu0 0
      %1960 = vmatprep.subr.bf16.mxu0 0
      %1961 = vmatpush1.bf16.msra.mxu0 0
      %1962 = vmatprep.subr.bf16.mxu0 0
      %1963 = vmatpush1.bf16.msra.mxu0 0
      %1964 = vmatprep.subr.bf16.mxu0 0
      %1965 = vmatpush1.bf16.msra.mxu0 0
      %1966 = vmatprep.subr.bf16.mxu0 0
      %1967 = vmatpush1.bf16.msra.mxu0 %v1947
      %1968 = vmatprep.subr.bf16.mxu0 0
      %1969 = vmatpush2.bf16.msra.mxu0 0
      %1970 = vmatprep.subr.bf16.mxu0 0
      %1971 = vmatpush2.bf16.msra.mxu0 0
      %1972 = vmatprep.subr.bf16.mxu0 0
      %1973 = vmatpush2.bf16.msra.mxu0 0
      %1974 = vmatprep.subr.bf16.mxu0 0
      %1975 = vmatpush2.bf16.msra.mxu0 0
      %1976 = vmatprep.subr.bf16.mxu0 0
      %1977 = vmatpush2.bf16.msra.mxu0 0
      %1978 = vmatprep.subr.bf16.mxu0 0
      %1979 = vmatpush2.bf16.msra.mxu0 0
      %1980 = vmatprep.subr.bf16.mxu0 0
      %1981 = vmatpush2.bf16.msra.mxu0 0
      %1982 = vmatprep.subr.bf16.mxu0 0
      %1983 = vmatpush2.bf16.msra.mxu0 0
      %1984 = vmatprep.mubr.bf16.mxu0 0
      %1985 = vmatmul.mubr.bf16.gmra.mxu0 %v1950
      %v1986 = vpop.f32.mrf.mxu0
      %v1987 = vadd.f32 0.0, %v1986
      %v1988 = vpop.f32.mrf.mxu0
      %v1989 = vpop.f32.mrf.mxu0
      %v1990 = vpop.f32.mrf.mxu0
      %1991 = vdwg.mxu0
      %v1994 = vunpack.c.l.b16 %v1843
      %v1995 = vunpack.c.l.b16 %v1844
      %v1996 = vpack.c.b16 %v1995, %v1994
      %v1999 = vsel %vm1743, %v1836, 0
      %2001 = vmatprep.subr.bf16.mxu0 0
      %2002 = vmatpush1.bf16.msra.mxu0 0
      %2003 = vmatprep.subr.bf16.mxu0 0
      %2004 = vmatpush1.bf16.msra.mxu0 0
      %2005 = vmatprep.subr.bf16.mxu0 0
      %2006 = vmatpush1.bf16.msra.mxu0 0
      %2007 = vmatprep.subr.bf16.mxu0 0
      %2008 = vmatpush1.bf16.msra.mxu0 0
      %2009 = vmatprep.subr.bf16.mxu0 0
      %2010 = vmatpush1.bf16.msra.mxu0 0
      %2011 = vmatprep.subr.bf16.mxu0 0
      %2012 = vmatpush1.bf16.msra.mxu0 0
      %2013 = vmatprep.subr.bf16.mxu0 0
      %2014 = vmatpush1.bf16.msra.mxu0 0
      %2015 = vmatprep.subr.bf16.mxu0 0
      %2016 = vmatpush1.bf16.msra.mxu0 %v1996
      %2017 = vmatprep.subr.bf16.mxu0 0
      %2018 = vmatpush2.bf16.msra.mxu0 0
      %2019 = vmatprep.subr.bf16.mxu0 0
      %2020 = vmatpush2.bf16.msra.mxu0 0
      %2021 = vmatprep.subr.bf16.mxu0 0
      %2022 = vmatpush2.bf16.msra.mxu0 0
      %2023 = vmatprep.subr.bf16.mxu0 0
      %2024 = vmatpush2.bf16.msra.mxu0 0
      %2025 = vmatprep.subr.bf16.mxu0 0
      %2026 = vmatpush2.bf16.msra.mxu0 0
      %2027 = vmatprep.subr.bf16.mxu0 0
      %2028 = vmatpush2.bf16.msra.mxu0 0
      %2029 = vmatprep.subr.bf16.mxu0 0
      %2030 = vmatpush2.bf16.msra.mxu0 0
      %2031 = vmatprep.subr.bf16.mxu0 0
      %2032 = vmatpush2.bf16.msra.mxu0 0
      %2033 = vmatprep.mubr.bf16.mxu0 0
      %2034 = vmatmul.mubr.bf16.gmra.mxu0 %v1999
      %v2035 = vpop.f32.mrf.mxu0
      %v2036 = vadd.f32 0.0, %v2035
      %v2037 = vpop.f32.mrf.mxu0
      %v2038 = vpop.f32.mrf.mxu0
      %v2039 = vpop.f32.mrf.mxu0
      %2040 = vdwg.mxu0
      %v2041 = vld [vmem:[#allocation7] sm:$0xff]
      %v2042 = vld [vmem:[#allocation7 + $0x8] sm:$0xff]
      %v2043 = vld [vmem:[#allocation7 + $0x10] sm:$0xff]
      %v2044 = vld [vmem:[#allocation7 + $0x18] sm:$0xff]
      %2046 = vset.pattern.permute.xlu0 0
      %2047 = vperm.xlu0 %2046, %v1765
      %v2048 = vpop.permute.xlu0 %2047
      %2051 = vset.pattern.permute.xlu0 0
      %2052 = vperm.xlu0 %2051, %v1767
      %v2053 = vpop.permute.xlu0 %2052
      %2056 = vset.pattern.permute.xlu0 0
      %2057 = vperm.xlu0 %2056, %v1769
      %v2058 = vpop.permute.xlu0 %2057
      %2061 = vset.pattern.permute.xlu0 0
      %2062 = vperm.xlu0 %2061, %v1771
      %v2063 = vpop.permute.xlu0 %2062
      %v2065 = vmul.f32 %v2048, %v2041
      %v2066 = vmul.f32 %v2053, %v2042
      %v2067 = vmul.f32 %v2058, %v2043
      %v2068 = vmul.f32 %v2063, %v2044
      %v2069 = vadd.f32 %v2065, %v1889
      %v2070 = vadd.f32 %v2066, %v1938
      %v2071 = vadd.f32 %v2067, %v1987
      %v2072 = vadd.f32 %v2068, %v2036
      %2073 = vst.msk [vmem:[#allocation7] sm:$0xff] %vm1539, %v2069
      %2074 = vst.msk [vmem:[#allocation7 + $0x8] sm:$0xff] %vm1539, %v2070
      %2075 = vst.msk [vmem:[#allocation7 + $0x10] sm:$0xff] %vm1539, %v2071
      %2076 = vst.msk [vmem:[#allocation7 + $0x18] sm:$0xff] %vm1539, %v2072
      %2077 = vst.msk [vmem:[#allocation5] sm:$0xff] %vm1828, %v1756
      %2078 = vst.msk [vmem:[#allocation5 + $0x8] sm:$0xff] %vm1828, %v1757
      %2079 = vst.msk [vmem:[#allocation5 + $0x10] sm:$0xff] %vm1828, %v1758
      %2080 = vst.msk [vmem:[#allocation5 + $0x18] sm:$0xff] %vm1828, %v1759
      // Predicated region
      $region73: #{cross_attention_forward.4} parent=67 // pred_check
        %p2081 = pneg %p479
      $region74: #{cross_attention_forward.4} parent=67 // pred_check_branch
        %2083 = sbr.rel (%p2081) target = $region76
      $region75: #{cross_attention_forward.4} parent=67 // pred_region
        %v2084 = vld [vmem:[#allocation6] sm:$0xff]
        %v2085 = vld [vmem:[#allocation6 + $0x8] sm:$0xff]
        %v2086 = vld [vmem:[#allocation6 + $0x10] sm:$0xff]
        %v2087 = vld [vmem:[#allocation6 + $0x18] sm:$0xff]
        %v2088 = vrcp.pop %v2084
        %v2089 = vrcp.pop %v2085
        %v2090 = vrcp.pop %v2086
        %v2091 = vrcp.pop %v2087
        %v2092 = vld [vmem:[#allocation7] sm:$0xff]
        %2094 = vset.pattern.permute.xlu0 0
        %2095 = vperm.xlu0 %2094, %v2088
        %v2096 = vpop.permute.xlu0 %2095
        %v2098 = vmul.f32 %v2092, %v2096
        %v2099 = vpack.c.bf16 %v2098, %v2098
        %2100 = vst.msk [vmem:[#allocation8] sm:$0xf] %vm871, %v2099
        %s2101 = scalar_lea.vmem [#allocation7], 8
        %v2102 = vld [vmem:[%s2101] sm:$0xff]
        %2104 = vset.pattern.permute.xlu0 0
        %2105 = vperm.xlu0 %2104, %v2089
        %v2106 = vpop.permute.xlu0 %2105
        %v2108 = vmul.f32 %v2102, %v2106
        %v2109 = vpack.c.bf16 %v2108, %v2108
        %v2111 = vunpack.c.l.b16 %v2109
        %v2112 = vpack.c.b16 %v2111, %v2111
        %2113 = vrot.lane.b32.xlu0 %v2112, 8
        %v2114 = vpop.permute.xlu0 %2113
        %vm2116 = vcmask 126016
        %2117 = vst.msk [vmem:[#allocation8] sm:$0xf] %vm2116, %v2114
        %s2118 = scalar_lea.vmem [#allocation7], 16
        %v2119 = vld [vmem:[%s2118] sm:$0xff]
        %2121 = vset.pattern.permute.xlu0 0
        %2122 = vperm.xlu0 %2121, %v2090
        %v2123 = vpop.permute.xlu0 %2122
        %v2125 = vmul.f32 %v2119, %v2123
        %v2126 = vpack.c.bf16 %v2125, %v2125
        %v2128 = vunpack.c.l.b16 %v2126
        %v2129 = vpack.c.b16 %v2128, %v2128
        %2130 = vrot.lane.b32.xlu0 %v2129, 16
        %v2131 = vpop.permute.xlu0 %2130
        %vm2133 = vcmask 191616
        %2134 = vst.msk [vmem:[#allocation8] sm:$0xf] %vm2133, %v2131
        %s2135 = scalar_lea.vmem [#allocation7], 24
        %v2136 = vld [vmem:[%s2135] sm:$0xff]
        %2138 = vset.pattern.permute.xlu0 0
        %2139 = vperm.xlu0 %2138, %v2091
        %v2140 = vpop.permute.xlu0 %2139
        %v2142 = vmul.f32 %v2136, %v2140
        %v2143 = vpack.c.bf16 %v2142, %v2142
        %v2145 = vunpack.c.l.b16 %v2143
        %v2146 = vpack.c.b16 %v2145, %v2145
        %2147 = vrot.lane.b32.xlu0 %v2146, 24
        %v2148 = vpop.permute.xlu0 %2147
        %vm2150 = vcmask 257216
        %2151 = vst.msk [vmem:[#allocation8] sm:$0xf] %vm2150, %v2148
        %v2152 = vld [vmem:[#allocation8] sm:$0xf]
        %v2153 = vld [vmem:[%s8] sm:$0xf]
        %v2154 = vld [vmem:[%s8 + $0x4] sm:$0xf]
        %v2155 = vld [vmem:[%s8 + $0x8] sm:$0xf]
        %v2156 = vld [vmem:[%s8 + $0xc] sm:$0xf]
        %v2157 = vld [vmem:[%s9] sm:$0x1]
        %v2159 = vlaneseq
        %v2160 = vshrl.u32 %v2159, 7
        %v2161 = vsub.s32 0, %v2160
        %v2162 = vrot.slane %v2157, %v2161
        %v2168 = vunpack.c.l.b16 %v2153
        %v2169 = vunpack.c.l.b16 %v2154
        %v2170 = vunpack.c.l.b16 %v2155
        %v2171 = vunpack.c.l.b16 %v2156
        %v2172 = vpack.c.b16 %v2169, %v2168
        %v2173 = vpack.c.b16 %v2171, %v2170
        %vm2176 = vcmask 261120
        %v2178 = vsel %vm2176, %v2152, 0
        %2180 = vmatprep.subr.bf16.mxu0 0
        %2181 = vmatpush1.bf16.msra.mxu0 0
        %2182 = vmatprep.subr.bf16.mxu0 0
        %2183 = vmatpush1.bf16.msra.mxu0 0
        %2184 = vmatprep.subr.bf16.mxu0 0
        %2185 = vmatpush1.bf16.msra.mxu0 0
        %2186 = vmatprep.subr.bf16.mxu0 0
        %2187 = vmatpush1.bf16.msra.mxu0 0
        %2188 = vmatprep.subr.bf16.mxu0 0
        %2189 = vmatpush1.bf16.msra.mxu0 0
        %2190 = vmatprep.subr.bf16.mxu0 0
        %2191 = vmatpush1.bf16.msra.mxu0 0
        %2192 = vmatprep.subr.bf16.mxu0 0
        %2193 = vmatpush1.bf16.msra.mxu0 %v2173
        %2194 = vmatprep.subr.bf16.mxu0 0
        %2195 = vmatpush1.bf16.msra.mxu0 %v2172
        %2196 = vmatprep.subr.bf16.mxu0 0
        %2197 = vmatpush2.bf16.msra.mxu0 0
        %2198 = vmatprep.subr.bf16.mxu0 0
        %2199 = vmatpush2.bf16.msra.mxu0 0
        %2200 = vmatprep.subr.bf16.mxu0 0
        %2201 = vmatpush2.bf16.msra.mxu0 0
        %2202 = vmatprep.subr.bf16.mxu0 0
        %2203 = vmatpush2.bf16.msra.mxu0 0
        %2204 = vmatprep.subr.bf16.mxu0 0
        %2205 = vmatpush2.bf16.msra.mxu0 0
        %2206 = vmatprep.subr.bf16.mxu0 0
        %2207 = vmatpush2.bf16.msra.mxu0 0
        %2208 = vmatprep.subr.bf16.mxu0 0
        %2209 = vmatpush2.bf16.msra.mxu0 0
        %2210 = vmatprep.subr.bf16.mxu0 0
        %2211 = vmatpush2.bf16.msra.mxu0 0
        %2212 = vmatprep.mubr.bf16.mxu0 0
        %2213 = vmatmul.mubr.bf16.gmra.mxu0 %v2178
        %v2214 = vpop.f32.mrf.mxu0
        %v2215 = vadd.f32 %v2162, %v2214
        %v2216 = vpop.f32.mrf.mxu0
        %v2217 = vpop.f32.mrf.mxu0
        %v2218 = vpop.f32.mrf.mxu0
        %2219 = vdwg.mxu0
        %v2220 = vld [vmem:[%s462] sm:$0xf]
        %v2221 = vunpack.c.l.bf16 %v2220
        %v2222 = vadd.f32 %v2221, %v2215
        %v2223 = vld [vmem:[%s10] sm:$0x1]
        %v2224 = vld [vmem:[%s11] sm:$0x1]
        %v2225 = vsel %vm2176, %v2222, 0.0
        %2226 = vadd.xlane.f32.xlu0 %v2225
        %v2227 = vpop.xlane.xlu0 %2226
        %v2228 = vrcp.pop 32.0
        %v2229 = vmul.f32 %v2227, %v2228
        %v2230 = vsub.f32 %v2222, %v2229
        %v2231 = vmul.f32 %v2230, %v2230
        %v2232 = vsel %vm2176, %v2231, 0.0
        %2233 = vadd.xlane.f32.xlu0 %v2232
        %v2234 = vpop.xlane.xlu0 %2233
        %v2235 = vmul.f32 %v2234, %v2228
        %v2236 = vadd.f32 %v2235, 1e-05
        %v2237 = vrsqrt.pop %v2236
        %v2238 = vmul.f32 %v2230, %v2237
        %v2240 = vlaneseq
        %v2241 = vshrl.u32 %v2240, 7
        %v2242 = vsub.s32 0, %v2241
        %v2243 = vrot.slane %v2223, %v2242
        %v2245 = vmul.f32 %v2238, %v2243
        %v2247 = vlaneseq
        %v2248 = vshrl.u32 %v2247, 7
        %v2249 = vsub.s32 0, %v2248
        %v2250 = vrot.slane %v2224, %v2249
        %v2252 = vadd.f32 %v2245, %v2250
        %v2253 = vpack.c.bf16 %v2252, %v2252
        %vm2254 = vcmask 257024
        %2255 = vst.msk [vmem:[%s477] sm:$0xf] %vm2254, %v2253
      $region76: #{cross_attention_forward.4} parent=67 // pred_fallthru
        _
      %p2256 = scmp.lt.s32.totalorder %s28, 1
      %s2257 = scalar_select %p2256, %s28, 1
      %p2258 = scmp.lt.s32.totalorder %s29, 0
      %s2259 = scalar_select %p2258, %s29, 0
      %s2260 = sadd.s32 %s2259, %s2257
      %s2261 = smul.addr %s2260, 4
      %s2262 = scalar_lea.vmem %s12, %s2261
      // Predicated region
      $region77: #{cross_attention_forward.4} parent=67 // pred_check
        %p2263 = pneg %p328
      $region78: #{cross_attention_forward.4} parent=67 // pred_check_branch
        %2265 = sbr.rel (%p2263) target = $region80
      $region79: #{cross_attention_forward.4} parent=67 // pred_region
        _
      $region80: #{cross_attention_forward.4} parent=67 // pred_fallthru
        _
    $region68: #{cross_attention_forward.4} parent=5 // pred_fallthru
      _
    %p2266 = scmp.le.s32.totalorder 2, %s18
    // Predicated region
    $region81: #{cross_attention_forward.4} parent=5 // pred_check
      %p2267 = pneg %p2266
    $region82: #{cross_attention_forward.4} parent=5 // pred_check_branch
      %2269 = sbr.rel (%p2267) target = $region84
    $region83: #{cross_attention_forward.4} parent=5 // pred_region
      %s2270 = ssub.s32 %s18, 2
      // Predicated region
      $region85: #{cross_attention_forward.4} parent=83 // pred_check
        %p2271 = pneg %p334
      $region86: #{cross_attention_forward.4} parent=83 // pred_check_branch
        %2273 = sbr.rel (%p2271) target = $region88
      $region87: #{cross_attention_forward.4} parent=83 // pred_region
        %p2274 = scmp.lt.s32.totalorder %s31, 1
        %s2275 = scalar_select %p2274, %s31, 1
        %p2276 = scmp.lt.s32.totalorder %s32, 0
        %s2277 = scalar_select %p2276, %s32, 0
        %s2278 = sadd.s32 %s2277, %s2275
        %s2279 = smul.addr %s2278, 4
        %s2280 = scalar_lea.vmem %s12, %s2279
      $region88: #{cross_attention_forward.4} parent=83 // pred_fallthru
        _
    $region84: #{cross_attention_forward.4} parent=5 // pred_fallthru
      _
  $region6: #{cross_attention_forward.4} parent=0 // loop_footer
    %s22 = sadd.s32 1, %s18
  $region7: #{cross_attention_forward.4} parent=0 // loop_footer_branch
    %17 = sbr.rel target = $region3
  $region8: #{cross_attention_forward.4} parent=0 // loop_exit
    _

// kernel: cross_attention_forward.3
$region0: #{cross_attention_forward.3}
  #allocation0 [shape = 'u32[]', space=smem, size = 0x4, offset = 0x4, fixed_abs, tag = 'smem constant byte address 0x4 - core index']
  #allocation1 [shape = 'u32[144,128]{1,0:T(1,128)}', space=vmem, size = 0x12000, scoped, tag = 'internal scratch']
  #allocation2 [shape = 'bf16[4,8,8]{2,1,0:T(8,128)(2,1)}', space=vmem, size = 0x2000, scoped, tag = 'scratch operand']
  #allocation3 [shape = 'bf16[4,8,8]{2,1,0:T(8,128)(2,1)}', space=vmem, size = 0x2000, scoped, tag = 'scratch operand']
  #allocation4 [shape = 'bf16[4,8,8]{2,1,0:T(8,128)(2,1)}', space=vmem, size = 0x2000, scoped, tag = 'scratch operand']
  #allocation5 [shape = 'f32[4,8,1]{2,1,0:T(8,128)}', space=vmem, size = 0x4000, scoped, tag = 'scratch operand']
  #allocation6 [shape = 'f32[4,8,1]{2,1,0:T(8,128)}', space=vmem, size = 0x4000, scoped, tag = 'scratch operand']
  #allocation7 [shape = 'f32[4,8,8]{2,1,0:T(8,128)}', space=vmem, size = 0x4000, scoped, tag = 'scratch operand']
  #allocation8 [shape = 'bf16[8,32]{1,0:T(8,128)(2,1)}', space=vmem, size = 0x800, scoped, tag = 'scratch operand']
  %s0 = inlined_call_operand.vmem [shape: f32[2,8,32], index: 0, kind: input, shape index: {}, may-alias: {0,1}]
  %s1 = inlined_call_operand.vmem [shape: f32[2,8,32], index: 1, kind: input, shape index: {}, may-alias: {0,1}]
  %s2 = inlined_call_operand.vmem [shape: bf16[4,32,8], index: 2, kind: input, shape index: {}]
  %s3 = inlined_call_operand.vmem [shape: f32[4,1,8], index: 3, kind: input, shape index: {}]
  %s4 = inlined_call_operand.vmem [shape: bf16[4,32,8], index: 4, kind: input, shape index: {}]
  %s5 = inlined_call_operand.vmem [shape: f32[4,1,8], index: 5, kind: input, shape index: {}]
  %s6 = inlined_call_operand.vmem [shape: bf16[4,32,8], index: 6, kind: input, shape index: {}]
  %s7 = inlined_call_operand.vmem [shape: f32[4,1,8], index: 7, kind: input, shape index: {}]
  %s8 = inlined_call_operand.vmem [shape: bf16[32,32], index: 8, kind: input, shape index: {}]
  %s9 = inlined_call_operand.vmem [shape: f32[1,32], index: 9, kind: input, shape index: {}]
  %s10 = inlined_call_operand.vmem [shape: f32[1,32], index: 10, kind: input, shape index: {}]
  %s11 = inlined_call_operand.vmem [shape: f32[1,32], index: 11, kind: input, shape index: {}]
  %s12 = inlined_call_operand.vmem [shape: bf16[2,8,32], index: 12, kind: output, shape index: {}]
  %s13 = sld [smem:[#allocation0]]
  $region89: #{cross_attention_forward.3} parent=0
    _
  %s15 = ssub.s32 1, %s13
  %s16 = scalar_select 0, %s15, %s13
  loop: start=0, step=1, limit=4
  $region2: #{cross_attention_forward.3} parent=0 // loop_pre_header
    _
  $region3: #{cross_attention_forward.3} parent=0 // loop_header
    %s18 = sphi 0, %s22
    %p19 = scmp.ge.s32.totalorder %s18, 4
    %s25 = sphi 0, %s44
    %s26 = sphi 0, %s40
    %s27 = sphi 0, %s36
    %s28 = sphi 0, %s25
    %s29 = sphi 0, %s26
    %s30 = sphi 0, %s27
    %s31 = sphi 0, %s28
    %s32 = sphi 0, %s29
    %s33 = sphi 0, %s30
    %s49 = sphi 0, %s51
    %s52 = sphi 0, %s49
    %s53 = sphi 0, %s52
    %s69 = sphi 0, %s53
    %s77 = sphi 0, %s79
    %s80 = sphi 0, %s77
    %s81 = sphi 0, %s80
    %s97 = sphi 0, %s81
    %s101 = sphi 0, %s101
    %s103 = sphi 0, %s101
    %s104 = sphi 0, %s103
    %s118 = sphi 0, %s104
    %s122 = sphi 0, %s122
    %s124 = sphi 0, %s122
    %s125 = sphi 0, %s124
    %s139 = sphi 0, %s125
    %s143 = sphi 0, %s143
    %s145 = sphi 0, %s143
    %s146 = sphi 0, %s145
    %s160 = sphi 0, %s146
    %s164 = sphi 0, %s164
    %s166 = sphi 0, %s164
    %s167 = sphi 0, %s166
    %s181 = sphi 0, %s167
    %s185 = sphi 0, %s185
    %s187 = sphi 0, %s185
    %s188 = sphi 0, %s187
    %s202 = sphi 0, %s188
    %s206 = sphi 0, %s206
    %s208 = sphi 0, %s206
    %s209 = sphi 0, %s208
    %s223 = sphi 0, %s209
    %s227 = sphi 0, %s227
    %s229 = sphi 0, %s227
    %s230 = sphi 0, %s229
    %s244 = sphi 0, %s230
    %s248 = sphi 0, %s248
    %s250 = sphi 0, %s248
    %s251 = sphi 0, %s250
    %s265 = sphi 0, %s251
    %s269 = sphi 0, %s269
    %s271 = sphi 0, %s269
    %s272 = sphi 0, %s271
    %s286 = sphi 0, %s272
    %s290 = sphi 0, %s290
    %s292 = sphi 0, %s290
    %s293 = sphi 0, %s292
    %s307 = sphi 0, %s293
    %s315 = sphi 0, %s317
    %s318 = sphi 0, %s315
    %s319 = sphi 0, %s318
    %s335 = sphi 0, %s319
  $region4: #{cross_attention_forward.3} parent=0 // loop_header_branch
    %21 = sbr.rel (%p19) target = $region8
  $region5: #{cross_attention_forward.3} parent=0 // loop_body
    %s23 = ssub.s32 %s18, 1
    %s24 = ssub.s32 %s18, 2
    %s34 = sadd.s32 1, %s27
    %p35 = scmp.ge.s32.totalorder %s34, 1
    %s36 = scalar_select %p35, 0, %s34
    %s37 = sadd.s32 1, %s26
    %s38 = scalar_select %p35, %s37, %s26
    %p39 = scmp.ge.s32.totalorder %s38, 1
    %s40 = scalar_select %p39, 0, %s38
    %s41 = sadd.s32 1, %s25
    %s42 = scalar_select %p39, %s41, %s25
    %p43 = scmp.ge.s32.totalorder %s42, 2
    %s44 = scalar_select %p43, 0, %s42
    %s45 = ssub.s32 %s25, %s44
    %s46 = ssub.s32 %s26, %s40
    %s47 = sor.u32 %s45, %s46
    %p48 = scmp.eq.s32.totalorder %s47, 0
    %s50 = sadd.s32 %s49, 1
    %s51 = scalar_select %p48, %s49, %s50
    %p54 = pneg %p48
    %p55 = scmp.eq.s32.totalorder %s18, 1
    %p56 = por %p54, %p55
    %p57 = scmp.ne.s32.totalorder %s49, %s52
    %p58 = scmp.eq.s32.totalorder %s18, 0
    %p59 = por %p57, %p58
    %p60 = scmp.ne.s32.totalorder %s49, %s52
    %p61 = scmp.eq.s32.totalorder %s23, 1
    %p62 = por %p60, %p61
    %p63 = scmp.ne.s32.totalorder %s52, %s53
    %p64 = scmp.eq.s32.totalorder %s23, 0
    %p65 = por %p63, %p64
    %p66 = scmp.ne.s32.totalorder %s52, %s53
    %p67 = scmp.eq.s32.totalorder %s24, 1
    %p68 = por %p66, %p67
    %p70 = scmp.ne.s32.totalorder %s53, %s69
    %p71 = scmp.eq.s32.totalorder %s24, 0
    %p72 = por %p70, %p71
    %s73 = ssub.s32 %s25, %s44
    %s74 = ssub.s32 %s27, %s36
    %s75 = sor.u32 %s73, %s74
    %p76 = scmp.eq.s32.totalorder %s75, 0
    %s78 = sadd.s32 %s77, 1
    %s79 = scalar_select %p76, %s77, %s78
    %p82 = pneg %p76
    %p83 = scmp.eq.s32.totalorder %s18, 1
    %p84 = por %p82, %p83
    %p85 = scmp.ne.s32.totalorder %s77, %s80
    %p86 = scmp.eq.s32.totalorder %s18, 0
    %p87 = por %p85, %p86
    %p88 = scmp.ne.s32.totalorder %s77, %s80
    %p89 = scmp.eq.s32.totalorder %s23, 1
    %p90 = por %p88, %p89
    %p91 = scmp.ne.s32.totalorder %s80, %s81
    %p92 = scmp.eq.s32.totalorder %s23, 0
    %p93 = por %p91, %p92
    %p94 = scmp.ne.s32.totalorder %s80, %s81
    %p95 = scmp.eq.s32.totalorder %s24, 1
    %p96 = por %p94, %p95
    %p98 = scmp.ne.s32.totalorder %s81, %s97
    %p99 = scmp.eq.s32.totalorder %s24, 0
    %p100 = por %p98, %p99
    %s102 = sadd.s32 %s101, 1
    %p105 = scmp.eq.s32.totalorder %s18, 1
    %p106 = scmp.ne.s32.totalorder %s101, %s103
    %p107 = scmp.eq.s32.totalorder %s18, 0
    %p108 = por %p106, %p107
    %p109 = scmp.ne.s32.totalorder %s101, %s103
    %p110 = scmp.eq.s32.totalorder %s23, 1
    %p111 = por %p109, %p110
    %p112 = scmp.ne.s32.totalorder %s103, %s104
    %p113 = scmp.eq.s32.totalorder %s23, 0
    %p114 = por %p112, %p113
    %p115 = scmp.ne.s32.totalorder %s103, %s104
    %p116 = scmp.eq.s32.totalorder %s24, 1
    %p117 = por %p115, %p116
    %p119 = scmp.ne.s32.totalorder %s104, %s118
    %p120 = scmp.eq.s32.totalorder %s24, 0
    %p121 = por %p119, %p120
    %s123 = sadd.s32 %s122, 1
    %p126 = scmp.eq.s32.totalorder %s18, 1
    %p127 = scmp.ne.s32.totalorder %s122, %s124
    %p128 = scmp.eq.s32.totalorder %s18, 0
    %p129 = por %p127, %p128
    %p130 = scmp.ne.s32.totalorder %s122, %s124
    %p131 = scmp.eq.s32.totalorder %s23, 1
    %p132 = por %p130, %p131
    %p133 = scmp.ne.s32.totalorder %s124, %s125
    %p134 = scmp.eq.s32.totalorder %s23, 0
    %p135 = por %p133, %p134
    %p136 = scmp.ne.s32.totalorder %s124, %s125
    %p137 = scmp.eq.s32.totalorder %s24, 1
    %p138 = por %p136, %p137
    %p140 = scmp.ne.s32.totalorder %s125, %s139
    %p141 = scmp.eq.s32.totalorder %s24, 0
    %p142 = por %p140, %p141
    %s144 = sadd.s32 %s143, 1
    %p147 = scmp.eq.s32.totalorder %s18, 1
    %p148 = scmp.ne.s32.totalorder %s143, %s145
    %p149 = scmp.eq.s32.totalorder %s18, 0
    %p150 = por %p148, %p149
    %p151 = scmp.ne.s32.totalorder %s143, %s145
    %p152 = scmp.eq.s32.totalorder %s23, 1
    %p153 = por %p151, %p152
    %p154 = scmp.ne.s32.totalorder %s145, %s146
    %p155 = scmp.eq.s32.totalorder %s23, 0
    %p156 = por %p154, %p155
    %p157 = scmp.ne.s32.totalorder %s145, %s146
    %p158 = scmp.eq.s32.totalorder %s24, 1
    %p159 = por %p157, %p158
    %p161 = scmp.ne.s32.totalorder %s146, %s160
    %p162 = scmp.eq.s32.totalorder %s24, 0
    %p163 = por %p161, %p162
    %s165 = sadd.s32 %s164, 1
    %p168 = scmp.eq.s32.totalorder %s18, 1
    %p169 = scmp.ne.s32.totalorder %s164, %s166
    %p170 = scmp.eq.s32.totalorder %s18, 0
    %p171 = por %p169, %p170
    %p172 = scmp.ne.s32.totalorder %s164, %s166
    %p173 = scmp.eq.s32.totalorder %s23, 1
    %p174 = por %p172, %p173
    %p175 = scmp.ne.s32.totalorder %s166, %s167
    %p176 = scmp.eq.s32.totalorder %s23, 0
    %p177 = por %p175, %p176
    %p178 = scmp.ne.s32.totalorder %s166, %s167
    %p179 = scmp.eq.s32.totalorder %s24, 1
    %p180 = por %p178, %p179
    %p182 = scmp.ne.s32.totalorder %s167, %s181
    %p183 = scmp.eq.s32.totalorder %s24, 0
    %p184 = por %p182, %p183
    %s186 = sadd.s32 %s185, 1
    %p189 = scmp.eq.s32.totalorder %s18, 1
    %p190 = scmp.ne.s32.totalorder %s185, %s187
    %p191 = scmp.eq.s32.totalorder %s18, 0
    %p192 = por %p190, %p191
    %p193 = scmp.ne.s32.totalorder %s185, %s187
    %p194 = scmp.eq.s32.totalorder %s23, 1
    %p195 = por %p193, %p194
    %p196 = scmp.ne.s32.totalorder %s187, %s188
    %p197 = scmp.eq.s32.totalorder %s23, 0
    %p198 = por %p196, %p197
    %p199 = scmp.ne.s32.totalorder %s187, %s188
    %p200 = scmp.eq.s32.totalorder %s24, 1
    %p201 = por %p199, %p200
    %p203 = scmp.ne.s32.totalorder %s188, %s202
    %p204 = scmp.eq.s32.totalorder %s24, 0
    %p205 = por %p203, %p204
    %s207 = sadd.s32 %s206, 1
    %p210 = scmp.eq.s32.totalorder %s18, 1
    %p211 = scmp.ne.s32.totalorder %s206, %s208
    %p212 = scmp.eq.s32.totalorder %s18, 0
    %p213 = por %p211, %p212
    %p214 = scmp.ne.s32.totalorder %s206, %s208
    %p215 = scmp.eq.s32.totalorder %s23, 1
    %p216 = por %p214, %p215
    %p217 = scmp.ne.s32.totalorder %s208, %s209
    %p218 = scmp.eq.s32.totalorder %s23, 0
    %p219 = por %p217, %p218
    %p220 = scmp.ne.s32.totalorder %s208, %s209
    %p221 = scmp.eq.s32.totalorder %s24, 1
    %p222 = por %p220, %p221
    %p224 = scmp.ne.s32.totalorder %s209, %s223
    %p225 = scmp.eq.s32.totalorder %s24, 0
    %p226 = por %p224, %p225
    %s228 = sadd.s32 %s227, 1
    %p231 = scmp.eq.s32.totalorder %s18, 1
    %p232 = scmp.ne.s32.totalorder %s227, %s229
    %p233 = scmp.eq.s32.totalorder %s18, 0
    %p234 = por %p232, %p233
    %p235 = scmp.ne.s32.totalorder %s227, %s229
    %p236 = scmp.eq.s32.totalorder %s23, 1
    %p237 = por %p235, %p236
    %p238 = scmp.ne.s32.totalorder %s229, %s230
    %p239 = scmp.eq.s32.totalorder %s23, 0
    %p240 = por %p238, %p239
    %p241 = scmp.ne.s32.totalorder %s229, %s230
    %p242 = scmp.eq.s32.totalorder %s24, 1
    %p243 = por %p241, %p242
    %p245 = scmp.ne.s32.totalorder %s230, %s244
    %p246 = scmp.eq.s32.totalorder %s24, 0
    %p247 = por %p245, %p246
    %s249 = sadd.s32 %s248, 1
    %p252 = scmp.eq.s32.totalorder %s18, 1
    %p253 = scmp.ne.s32.totalorder %s248, %s250
    %p254 = scmp.eq.s32.totalorder %s18, 0
    %p255 = por %p253, %p254
    %p256 = scmp.ne.s32.totalorder %s248, %s250
    %p257 = scmp.eq.s32.totalorder %s23, 1
    %p258 = por %p256, %p257
    %p259 = scmp.ne.s32.totalorder %s250, %s251
    %p260 = scmp.eq.s32.totalorder %s23, 0
    %p261 = por %p259, %p260
    %p262 = scmp.ne.s32.totalorder %s250, %s251
    %p263 = scmp.eq.s32.totalorder %s24, 1
    %p264 = por %p262, %p263
    %p266 = scmp.ne.s32.totalorder %s251, %s265
    %p267 = scmp.eq.s32.totalorder %s24, 0
    %p268 = por %p266, %p267
    %s270 = sadd.s32 %s269, 1
    %p273 = scmp.eq.s32.totalorder %s18, 1
    %p274 = scmp.ne.s32.totalorder %s269, %s271
    %p275 = scmp.eq.s32.totalorder %s18, 0
    %p276 = por %p274, %p275
    %p277 = scmp.ne.s32.totalorder %s269, %s271
    %p278 = scmp.eq.s32.totalorder %s23, 1
    %p279 = por %p277, %p278
    %p280 = scmp.ne.s32.totalorder %s271, %s272
    %p281 = scmp.eq.s32.totalorder %s23, 0
    %p282 = por %p280, %p281
    %p283 = scmp.ne.s32.totalorder %s271, %s272
    %p284 = scmp.eq.s32.totalorder %s24, 1
    %p285 = por %p283, %p284
    %p287 = scmp.ne.s32.totalorder %s272, %s286
    %p288 = scmp.eq.s32.totalorder %s24, 0
    %p289 = por %p287, %p288
    %s291 = sadd.s32 %s290, 1
    %p294 = scmp.eq.s32.totalorder %s18, 1
    %p295 = scmp.ne.s32.totalorder %s290, %s292
    %p296 = scmp.eq.s32.totalorder %s18, 0
    %p297 = por %p295, %p296
    %p298 = scmp.ne.s32.totalorder %s290, %s292
    %p299 = scmp.eq.s32.totalorder %s23, 1
    %p300 = por %p298, %p299
    %p301 = scmp.ne.s32.totalorder %s292, %s293
    %p302 = scmp.eq.s32.totalorder %s23, 0
    %p303 = por %p301, %p302
    %p304 = scmp.ne.s32.totalorder %s292, %s293
    %p305 = scmp.eq.s32.totalorder %s24, 1
    %p306 = por %p304, %p305
    %p308 = scmp.ne.s32.totalorder %s293, %s307
    %p309 = scmp.eq.s32.totalorder %s24, 0
    %p310 = por %p308, %p309
    %s311 = ssub.s32 %s25, %s44
    %s312 = ssub.s32 %s26, %s40
    %s313 = sor.u32 %s311, %s312
    %p314 = scmp.eq.s32.totalorder %s313, 0
    %s316 = sadd.s32 %s315, 1
    %s317 = scalar_select %p314, %s315, %s316
    %p320 = pneg %p314
    %p321 = scmp.eq.s32.totalorder %s18, 1
    %p322 = por %p320, %p321
    %p323 = scmp.ne.s32.totalorder %s315, %s318
    %p324 = scmp.eq.s32.totalorder %s18, 0
    %p325 = por %p323, %p324
    %p326 = scmp.ne.s32.totalorder %s315, %s318
    %p327 = scmp.eq.s32.totalorder %s23, 1
    %p328 = por %p326, %p327
    %p329 = scmp.ne.s32.totalorder %s318, %s319
    %p330 = scmp.eq.s32.totalorder %s23, 0
    %p331 = por %p329, %p330
    %p332 = scmp.ne.s32.totalorder %s318, %s319
    %p333 = scmp.eq.s32.totalorder %s24, 1
    %p334 = por %p332, %p333
    %p336 = scmp.ne.s32.totalorder %s319, %s335
    %p337 = scmp.eq.s32.totalorder %s24, 0
    %p338 = por %p336, %p337
    %p339 = scmp.le.s32.totalorder 1, %s18
    %p340 = scmp.lt.s32.totalorder %s18, 3
    %p341 = pnand %p339, %p340
    %p342 = pneg %p341
    // Predicated region
    $region9: #{cross_attention_forward.3} parent=5 // pred_check
      _
    $region10: #{cross_attention_forward.3} parent=5 // pred_check_branch
      %344 = sbr.rel (%p341) target = $region12
    $region11: #{cross_attention_forward.3} parent=5 // pred_region
      %s345 = ssub.s32 %s18, 1
      // Predicated region
      $region13: #{cross_attention_forward.3} parent=11 // pred_check
        %p346 = pneg %p114
      $region14: #{cross_attention_forward.3} parent=11 // pred_check_branch
        %348 = sbr.rel (%p346) target = $region16
      $region15: #{cross_attention_forward.3} parent=11 // pred_region
        _
      $region16: #{cross_attention_forward.3} parent=11 // pred_fallthru
        _
      // Predicated region
      $region17: #{cross_attention_forward.3} parent=11 // pred_check
        %p349 = pneg %p135
      $region18: #{cross_attention_forward.3} parent=11 // pred_check_branch
        %351 = sbr.rel (%p349) target = $region20
      $region19: #{cross_attention_forward.3} parent=11 // pred_region
        _
      $region20: #{cross_attention_forward.3} parent=11 // pred_fallthru
        _
      // Predicated region
      $region21: #{cross_attention_forward.3} parent=11 // pred_check
        %p352 = pneg %p156
      $region22: #{cross_attention_forward.3} parent=11 // pred_check_branch
        %354 = sbr.rel (%p352) target = $region24
      $region23: #{cross_attention_forward.3} parent=11 // pred_region
        _
      $region24: #{cross_attention_forward.3} parent=11 // pred_fallthru
        _
      // Predicated region
      $region25: #{cross_attention_forward.3} parent=11 // pred_check
        %p355 = pneg %p177
      $region26: #{cross_attention_forward.3} parent=11 // pred_check_branch
        %357 = sbr.rel (%p355) target = $region28
      $region27: #{cross_attention_forward.3} parent=11 // pred_region
        _
      $region28: #{cross_attention_forward.3} parent=11 // pred_fallthru
        _
      // Predicated region
      $region29: #{cross_attention_forward.3} parent=11 // pred_check
        %p358 = pneg %p198
      $region30: #{cross_attention_forward.3} parent=11 // pred_check_branch
        %360 = sbr.rel (%p358) target = $region32
      $region31: #{cross_attention_forward.3} parent=11 // pred_region
        _
      $region32: #{cross_attention_forward.3} parent=11 // pred_fallthru
        _
      // Predicated region
      $region33: #{cross_attention_forward.3} parent=11 // pred_check
        %p361 = pneg %p219
      $region34: #{cross_attention_forward.3} parent=11 // pred_check_branch
        %363 = sbr.rel (%p361) target = $region36
      $region35: #{cross_attention_forward.3} parent=11 // pred_region
        _
      $region36: #{cross_attention_forward.3} parent=11 // pred_fallthru
        _
      // Predicated region
      $region37: #{cross_attention_forward.3} parent=11 // pred_check
        %p364 = pneg %p240
      $region38: #{cross_attention_forward.3} parent=11 // pred_check_branch
        %366 = sbr.rel (%p364) target = $region40
      $region39: #{cross_attention_forward.3} parent=11 // pred_region
        _
      $region40: #{cross_attention_forward.3} parent=11 // pred_fallthru
        _
      // Predicated region
      $region41: #{cross_attention_forward.3} parent=11 // pred_check
        %p367 = pneg %p261
      $region42: #{cross_attention_forward.3} parent=11 // pred_check_branch
        %369 = sbr.rel (%p367) target = $region44
      $region43: #{cross_attention_forward.3} parent=11 // pred_region
        _
      $region44: #{cross_attention_forward.3} parent=11 // pred_fallthru
        _
      // Predicated region
      $region45: #{cross_attention_forward.3} parent=11 // pred_check
        %p370 = pneg %p282
      $region46: #{cross_attention_forward.3} parent=11 // pred_check_branch
        %372 = sbr.rel (%p370) target = $region48
      $region47: #{cross_attention_forward.3} parent=11 // pred_region
        _
      $region48: #{cross_attention_forward.3} parent=11 // pred_fallthru
        _
      // Predicated region
      $region49: #{cross_attention_forward.3} parent=11 // pred_check
        %p373 = pneg %p303
      $region50: #{cross_attention_forward.3} parent=11 // pred_check_branch
        %375 = sbr.rel (%p373) target = $region52
      $region51: #{cross_attention_forward.3} parent=11 // pred_region
        _
      $region52: #{cross_attention_forward.3} parent=11 // pred_fallthru
        _
    $region12: #{cross_attention_forward.3} parent=5 // pred_fallthru
      _
    %p376 = scmp.lt.s32.totalorder %s18, 2
    // Predicated region
    $region53: #{cross_attention_forward.3} parent=5 // pred_check
      %p377 = pneg %p376
    $region54: #{cross_attention_forward.3} parent=5 // pred_check_branch
      %379 = sbr.rel (%p377) target = $region56
    $region55: #{cross_attention_forward.3} parent=5 // pred_region
      // Predicated region
      $region57: #{cross_attention_forward.3} parent=55 // pred_check
        %p380 = pneg %p59
      $region58: #{cross_attention_forward.3} parent=55 // pred_check_branch
        %382 = sbr.rel (%p380) target = $region60
      $region59: #{cross_attention_forward.3} parent=55 // pred_region
        %p383 = scmp.lt.s32.totalorder %s25, 1
        %s384 = scalar_select %p383, %s25, 1
        %p385 = scmp.lt.s32.totalorder %s26, 0
        %s386 = scalar_select %p385, %s26, 0
        %s387 = sadd.s32 %s386, %s384
        %s388 = smul.addr %s387, 8
        %s389 = scalar_lea.vmem %s0, %s388
      $region60: #{cross_attention_forward.3} parent=55 // pred_fallthru
        _
      // Predicated region
      $region61: #{cross_attention_forward.3} parent=55 // pred_check
        %p390 = pneg %p87
      $region62: #{cross_attention_forward.3} parent=55 // pred_check_branch
        %392 = sbr.rel (%p390) target = $region64
      $region63: #{cross_attention_forward.3} parent=55 // pred_region
        %p393 = scmp.lt.s32.totalorder %s25, 1
        %s394 = scalar_select %p393, %s25, 1
        %p395 = scmp.lt.s32.totalorder %s27, 0
        %s396 = scalar_select %p395, %s27, 0
        %s397 = sadd.s32 %s396, %s394
        %s398 = smul.addr %s397, 8
        %s399 = scalar_lea.vmem %s1, %s398
      $region64: #{cross_attention_forward.3} parent=55 // pred_fallthru
        _
    $region56: #{cross_attention_forward.3} parent=5 // pred_fallthru
      _
    %p400 = scmp.le.s32.totalorder 1, %s18
    %p401 = scmp.lt.s32.totalorder %s18, 3
    %p402 = pnand %p400, %p401
    %p403 = pneg %p402
    // Predicated region
    $region65: #{cross_attention_forward.3} parent=5 // pred_check
      _
    $region66: #{cross_attention_forward.3} parent=5 // pred_check_branch
      %405 = sbr.rel (%p402) target = $region68
    $region67: #{cross_attention_forward.3} parent=5 // pred_region
      %s406 = ssub.s32 %s18, 1
      %p407 = scmp.lt.s32.totalorder %s28, 1
      %s408 = scalar_select %p407, %s28, 1
      %p409 = scmp.lt.s32.totalorder %s29, 0
      %s410 = scalar_select %p409, %s29, 0
      %s411 = sadd.s32 %s410, %s408
      %s412 = smul.addr %s411, 8
      %s413 = scalar_lea.vmem %s0, %s412
      %p414 = pneg %p65
      %p415 = pneg %p62
      %p416 = scmp.lt.s32.totalorder %s28, 1
      %s417 = scalar_select %p416, %s28, 1
      %p418 = scmp.lt.s32.totalorder %s30, 0
      %s419 = scalar_select %p418, %s30, 0
      %s420 = sadd.s32 %s419, %s417
      %s421 = smul.addr %s420, 8
      %s422 = scalar_lea.vmem %s1, %s421
      %p423 = pneg %p93
      %p424 = pneg %p90
      %p425 = pneg %p114
      %p426 = pneg %p111
      %p427 = pneg %p135
      %p428 = pneg %p132
      %p429 = pneg %p156
      %p430 = pneg %p153
      %p431 = pneg %p177
      %p432 = pneg %p174
      %p433 = pneg %p198
      %p434 = pneg %p195
      %p435 = pneg %p219
      %p436 = pneg %p216
      %p437 = pneg %p240
      %p438 = pneg %p237
      %p439 = pneg %p261
      %p440 = pneg %p258
      %p441 = pneg %p282
      %p442 = pneg %p279
      %p443 = pneg %p303
      %p444 = pneg %p300
      %p445 = pneg %p331
      %p446 = pneg %p328
      %p447 = scmp.lt.s32.totalorder %s28, 1
      %s448 = scalar_select %p447, %s28, 1
      %p449 = scmp.lt.s32.totalorder %s29, 0
      %s450 = scalar_select %p449, %s29, 0
      %s451 = sadd.s32 %s450, %s448
      %s452 = smul.addr %s451, 4
      %s453 = scalar_lea.vmem %s12, %s452
      %p454 = scmp.lt.s32.totalorder %s28, 1
      %s455 = scalar_select %p454, %s28, 1
      %p456 = scmp.lt.s32.totalorder %s29, 0
      %s457 = scalar_select %p456, %s29, 0
      %s458 = sadd.s32 %s457, %s455
      %s459 = smul.addr %s458, 8
      %s460 = scalar_lea.vmem %s0, %s459
      %p461 = scmp.lt.s32.totalorder %s28, 1
      %s462 = scalar_select %p461, %s28, 1
      %p463 = scmp.lt.s32.totalorder %s30, 0
      %s464 = scalar_select %p463, %s30, 0
      %s465 = sadd.s32 %s464, %s462
      %s466 = smul.addr %s465, 8
      %s467 = scalar_lea.vmem %s1, %s466
      %p468 = scmp.lt.s32.totalorder %s28, 1
      %s469 = scalar_select %p468, %s28, 1
      %p470 = scmp.lt.s32.totalorder %s29, 0
      %s471 = scalar_select %p470, %s29, 0
      %s472 = sadd.s32 %s471, %s469
      %s473 = smul.addr %s472, 4
      %s474 = scalar_lea.vmem %s12, %s473
      %p476 = scmp.eq.s32.totalorder %s30, 0
      // Predicated region
      $region69: #{cross_attention_forward.3} parent=67 // pred_check
        %p477 = pneg %p476
      $region70: #{cross_attention_forward.3} parent=67 // pred_check_branch
        %479 = sbr.rel (%p477) target = $region72
      $region71: #{cross_attention_forward.3} parent=67 // pred_region
        %v480 = vld [vmem:[%s460] sm:$0xff]
        %v481 = vpack.c.bf16 %v480, %v480
        %v482 = vld [vmem:[%s2] sm:$0xf]
        %v483 = vld [vmem:[%s2 + $0x4] sm:$0xf]
        %v484 = vld [vmem:[%s2 + $0x8] sm:$0xf]
        %v485 = vld [vmem:[%s2 + $0xc] sm:$0xf]
        %v486 = vld [vmem:[%s3] sm:$0x1]
        %v488 = vlaneseq
        %v489 = vshrl.u32 %v488, 7
        %v490 = vsub.s32 0, %v489
        %v491 = vrot.slane %v486, %v490
        %v497 = vunpack.c.l.b16 %v482
        %v498 = vunpack.c.l.b16 %v483
        %v499 = vunpack.c.l.b16 %v484
        %v500 = vunpack.c.l.b16 %v485
        %v501 = vpack.c.b16 %v498, %v497
        %v502 = vpack.c.b16 %v500, %v499
        %vm505 = vcmask 261120
        %v507 = vsel %vm505, %v481, 0
        %509 = vmatprep.subr.bf16.mxu0 0
        %510 = vmatpush1.bf16.msra.mxu0 0
        %511 = vmatprep.subr.bf16.mxu0 0
        %512 = vmatpush1.bf16.msra.mxu0 0
        %513 = vmatprep.subr.bf16.mxu0 0
        %514 = vmatpush1.bf16.msra.mxu0 0
        %515 = vmatprep.subr.bf16.mxu0 0
        %516 = vmatpush1.bf16.msra.mxu0 0
        %517 = vmatprep.subr.bf16.mxu0 0
        %518 = vmatpush1.bf16.msra.mxu0 0
        %519 = vmatprep.subr.bf16.mxu0 0
        %520 = vmatpush1.bf16.msra.mxu0 0
        %521 = vmatprep.subr.bf16.mxu0 0
        %522 = vmatpush1.bf16.msra.mxu0 %v502
        %523 = vmatprep.subr.bf16.mxu0 0
        %524 = vmatpush1.bf16.msra.mxu0 %v501
        %525 = vmatprep.subr.bf16.mxu0 0
        %526 = vmatpush2.bf16.msra.mxu0 0
        %527 = vmatprep.subr.bf16.mxu0 0
        %528 = vmatpush2.bf16.msra.mxu0 0
        %529 = vmatprep.subr.bf16.mxu0 0
        %530 = vmatpush2.bf16.msra.mxu0 0
        %531 = vmatprep.subr.bf16.mxu0 0
        %532 = vmatpush2.bf16.msra.mxu0 0
        %533 = vmatprep.subr.bf16.mxu0 0
        %534 = vmatpush2.bf16.msra.mxu0 0
        %535 = vmatprep.subr.bf16.mxu0 0
        %536 = vmatpush2.bf16.msra.mxu0 0
        %537 = vmatprep.subr.bf16.mxu0 0
        %538 = vmatpush2.bf16.msra.mxu0 0
        %539 = vmatprep.subr.bf16.mxu0 0
        %540 = vmatpush2.bf16.msra.mxu0 0
        %541 = vmatprep.mubr.bf16.mxu0 0
        %542 = vmatmul.mubr.bf16.gmra.mxu0 %v507
        %v543 = vpop.f32.mrf.mxu0
        %v544 = vadd.f32 %v491, %v543
        %v545 = vpop.f32.mrf.mxu0
        %v546 = vpop.f32.mrf.mxu0
        %v547 = vpop.f32.mrf.mxu0
        %548 = vdwg.mxu0
        %v549 = vmul.f32 %v544, 0.35355338
        %v550 = vpack.c.bf16 %v549, %v549
        %vm551 = vcmask 60416
        %552 = vst.msk [vmem:[#allocation2] sm:$0xf] %vm551, %v550
        %s553 = scalar_lea.vmem %s2, 16
        %v554 = vld [vmem:[%s553] sm:$0xf]
        %v555 = vld [vmem:[%s553 + $0x4] sm:$0xf]
        %v556 = vld [vmem:[%s553 + $0x8] sm:$0xf]
        %v557 = vld [vmem:[%s553 + $0xc] sm:$0xf]
        %s558 = scalar_lea.vmem %s3, 1
        %v559 = vld [vmem:[%s558] sm:$0x1]
        %v561 = vlaneseq
        %v562 = vshrl.u32 %v561, 7
        %v563 = vsub.s32 0, %v562
        %v564 = vrot.slane %v559, %v563
        %v570 = vunpack.c.l.b16 %v554
        %v571 = vunpack.c.l.b16 %v555
        %v572 = vunpack.c.l.b16 %v556
        %v573 = vunpack.c.l.b16 %v557
        %v574 = vpack.c.b16 %v571, %v570
        %v575 = vpack.c.b16 %v573, %v572
        %578 = vmatprep.subr.bf16.mxu0 0
        %579 = vmatpush1.bf16.msra.mxu0 0
        %580 = vmatprep.subr.bf16.mxu0 0
        %581 = vmatpush1.bf16.msra.mxu0 0
        %582 = vmatprep.subr.bf16.mxu0 0
        %583 = vmatpush1.bf16.msra.mxu0 0
        %584 = vmatprep.subr.bf16.mxu0 0
        %585 = vmatpush1.bf16.msra.mxu0 0
        %586 = vmatprep.subr.bf16.mxu0 0
        %587 = vmatpush1.bf16.msra.mxu0 0
        %588 = vmatprep.subr.bf16.mxu0 0
        %589 = vmatpush1.bf16.msra.mxu0 0
        %590 = vmatprep.subr.bf16.mxu0 0
        %591 = vmatpush1.bf16.msra.mxu0 %v575
        %592 = vmatprep.subr.bf16.mxu0 0
        %593 = vmatpush1.bf16.msra.mxu0 %v574
        %594 = vmatprep.subr.bf16.mxu0 0
        %595 = vmatpush2.bf16.msra.mxu0 0
        %596 = vmatprep.subr.bf16.mxu0 0
        %597 = vmatpush2.bf16.msra.mxu0 0
        %598 = vmatprep.subr.bf16.mxu0 0
        %599 = vmatpush2.bf16.msra.mxu0 0
        %600 = vmatprep.subr.bf16.mxu0 0
        %601 = vmatpush2.bf16.msra.mxu0 0
        %602 = vmatprep.subr.bf16.mxu0 0
        %603 = vmatpush2.bf16.msra.mxu0 0
        %604 = vmatprep.subr.bf16.mxu0 0
        %605 = vmatpush2.bf16.msra.mxu0 0
        %606 = vmatprep.subr.bf16.mxu0 0
        %607 = vmatpush2.bf16.msra.mxu0 0
        %608 = vmatprep.subr.bf16.mxu0 0
        %609 = vmatpush2.bf16.msra.mxu0 0
        %610 = vmatprep.mubr.bf16.mxu0 0
        %611 = vmatmul.mubr.bf16.gmra.mxu0 %v507
        %v612 = vpop.f32.mrf.mxu0
        %v613 = vadd.f32 %v564, %v612
        %v614 = vpop.f32.mrf.mxu0
        %v615 = vpop.f32.mrf.mxu0
        %v616 = vpop.f32.mrf.mxu0
        %617 = vdwg.mxu0
        %v618 = vmul.f32 %v613, 0.35355338
        %v619 = vpack.c.bf16 %v618, %v618
        %s620 = scalar_lea.vmem [#allocation2], 4
        %621 = vst.msk [vmem:[%s620] sm:$0xf] %vm551, %v619
        %s622 = scalar_lea.vmem %s2, 32
        %v623 = vld [vmem:[%s622] sm:$0xf]
        %v624 = vld [vmem:[%s622 + $0x4] sm:$0xf]
        %v625 = vld [vmem:[%s622 + $0x8] sm:$0xf]
        %v626 = vld [vmem:[%s622 + $0xc] sm:$0xf]
        %s627 = scalar_lea.vmem %s3, 2
        %v628 = vld [vmem:[%s627] sm:$0x1]
        %v630 = vlaneseq
        %v631 = vshrl.u32 %v630, 7
        %v632 = vsub.s32 0, %v631
        %v633 = vrot.slane %v628, %v632
        %v639 = vunpack.c.l.b16 %v623
        %v640 = vunpack.c.l.b16 %v624
        %v641 = vunpack.c.l.b16 %v625
        %v642 = vunpack.c.l.b16 %v626
        %v643 = vpack.c.b16 %v640, %v639
        %v644 = vpack.c.b16 %v642, %v641
        %647 = vmatprep.subr.bf16.mxu0 0
        %648 = vmatpush1.bf16.msra.mxu0 0
        %649 = vmatprep.subr.bf16.mxu0 0
        %650 = vmatpush1.bf16.msra.mxu0 0
        %651 = vmatprep.subr.bf16.mxu0 0
        %652 = vmatpush1.bf16.msra.mxu0 0
        %653 = vmatprep.subr.bf16.mxu0 0
        %654 = vmatpush1.bf16.msra.mxu0 0
        %655 = vmatprep.subr.bf16.mxu0 0
        %656 = vmatpush1.bf16.msra.mxu0 0
        %657 = vmatprep.subr.bf16.mxu0 0
        %658 = vmatpush1.bf16.msra.mxu0 0
        %659 = vmatprep.subr.bf16.mxu0 0
        %660 = vmatpush1.bf16.msra.mxu0 %v644
        %661 = vmatprep.subr.bf16.mxu0 0
        %662 = vmatpush1.bf16.msra.mxu0 %v643
        %663 = vmatprep.subr.bf16.mxu0 0
        %664 = vmatpush2.bf16.msra.mxu0 0
        %665 = vmatprep.subr.bf16.mxu0 0
        %666 = vmatpush2.bf16.msra.mxu0 0
        %667 = vmatprep.subr.bf16.mxu0 0
        %668 = vmatpush2.bf16.msra.mxu0 0
        %669 = vmatprep.subr.bf16.mxu0 0
        %670 = vmatpush2.bf16.msra.mxu0 0
        %671 = vmatprep.subr.bf16.mxu0 0
        %672 = vmatpush2.bf16.msra.mxu0 0
        %673 = vmatprep.subr.bf16.mxu0 0
        %674 = vmatpush2.bf16.msra.mxu0 0
        %675 = vmatprep.subr.bf16.mxu0 0
        %676 = vmatpush2.bf16.msra.mxu0 0
        %677 = vmatprep.subr.bf16.mxu0 0
        %678 = vmatpush2.bf16.msra.mxu0 0
        %679 = vmatprep.mubr.bf16.mxu0 0
        %680 = vmatmul.mubr.bf16.gmra.mxu0 %v507
        %v681 = vpop.f32.mrf.mxu0
        %v682 = vadd.f32 %v633, %v681
        %v683 = vpop.f32.mrf.mxu0
        %v684 = vpop.f32.mrf.mxu0
        %v685 = vpop.f32.mrf.mxu0
        %686 = vdwg.mxu0
        %v687 = vmul.f32 %v682, 0.35355338
        %v688 = vpack.c.bf16 %v687, %v687
        %s689 = scalar_lea.vmem [#allocation2], 8
        %690 = vst.msk [vmem:[%s689] sm:$0xf] %vm551, %v688
        %s691 = scalar_lea.vmem %s2, 48
        %v692 = vld [vmem:[%s691] sm:$0xf]
        %v693 = vld [vmem:[%s691 + $0x4] sm:$0xf]
        %v694 = vld [vmem:[%s691 + $0x8] sm:$0xf]
        %v695 = vld [vmem:[%s691 + $0xc] sm:$0xf]
        %s696 = scalar_lea.vmem %s3, 3
        %v697 = vld [vmem:[%s696] sm:$0x1]
        %v699 = vlaneseq
        %v700 = vshrl.u32 %v699, 7
        %v701 = vsub.s32 0, %v700
        %v702 = vrot.slane %v697, %v701
        %v708 = vunpack.c.l.b16 %v692
        %v709 = vunpack.c.l.b16 %v693
        %v710 = vunpack.c.l.b16 %v694
        %v711 = vunpack.c.l.b16 %v695
        %v712 = vpack.c.b16 %v709, %v708
        %v713 = vpack.c.b16 %v711, %v710
        %716 = vmatprep.subr.bf16.mxu0 0
        %717 = vmatpush1.bf16.msra.mxu0 0
        %718 = vmatprep.subr.bf16.mxu0 0
        %719 = vmatpush1.bf16.msra.mxu0 0
        %720 = vmatprep.subr.bf16.mxu0 0
        %721 = vmatpush1.bf16.msra.mxu0 0
        %722 = vmatprep.subr.bf16.mxu0 0
        %723 = vmatpush1.bf16.msra.mxu0 0
        %724 = vmatprep.subr.bf16.mxu0 0
        %725 = vmatpush1.bf16.msra.mxu0 0
        %726 = vmatprep.subr.bf16.mxu0 0
        %727 = vmatpush1.bf16.msra.mxu0 0
        %728 = vmatprep.subr.bf16.mxu0 0
        %729 = vmatpush1.bf16.msra.mxu0 %v713
        %730 = vmatprep.subr.bf16.mxu0 0
        %731 = vmatpush1.bf16.msra.mxu0 %v712
        %732 = vmatprep.subr.bf16.mxu0 0
        %733 = vmatpush2.bf16.msra.mxu0 0
        %734 = vmatprep.subr.bf16.mxu0 0
        %735 = vmatpush2.bf16.msra.mxu0 0
        %736 = vmatprep.subr.bf16.mxu0 0
        %737 = vmatpush2.bf16.msra.mxu0 0
        %738 = vmatprep.subr.bf16.mxu0 0
        %739 = vmatpush2.bf16.msra.mxu0 0
        %740 = vmatprep.subr.bf16.mxu0 0
        %741 = vmatpush2.bf16.msra.mxu0 0
        %742 = vmatprep.subr.bf16.mxu0 0
        %743 = vmatpush2.bf16.msra.mxu0 0
        %744 = vmatprep.subr.bf16.mxu0 0
        %745 = vmatpush2.bf16.msra.mxu0 0
        %746 = vmatprep.subr.bf16.mxu0 0
        %747 = vmatpush2.bf16.msra.mxu0 0
        %748 = vmatprep.mubr.bf16.mxu0 0
        %749 = vmatmul.mubr.bf16.gmra.mxu0 %v507
        %v750 = vpop.f32.mrf.mxu0
        %v751 = vadd.f32 %v702, %v750
        %v752 = vpop.f32.mrf.mxu0
        %v753 = vpop.f32.mrf.mxu0
        %v754 = vpop.f32.mrf.mxu0
        %755 = vdwg.mxu0
        %v756 = vmul.f32 %v751, 0.35355338
        %v757 = vpack.c.bf16 %v756, %v756
        %s758 = scalar_lea.vmem [#allocation2], 12
        %759 = vst.msk [vmem:[%s758] sm:$0xf] %vm551, %v757
        %vm760 = vcmask 7168
        %761 = vst.msk [vmem:[#allocation5] sm:$0xff] %vm760, -inf
        %762 = vst.msk [vmem:[#allocation5 + $0x8] sm:$0xff] %vm760, -inf
        %763 = vst.msk [vmem:[#allocation5 + $0x10] sm:$0xff] %vm760, -inf
        %764 = vst.msk [vmem:[#allocation5 + $0x18] sm:$0xff] %vm760, -inf
        %765 = vst.msk [vmem:[#allocation6] sm:$0xff] %vm760, 0.0
        %766 = vst.msk [vmem:[#allocation6 + $0x8] sm:$0xff] %vm760, 0.0
        %767 = vst.msk [vmem:[#allocation6 + $0x10] sm:$0xff] %vm760, 0.0
        %768 = vst.msk [vmem:[#allocation6 + $0x18] sm:$0xff] %vm760, 0.0
        %vm769 = vcmask 64512
        %770 = vst.msk [vmem:[#allocation7] sm:$0xff] %vm769, 0.0
        %771 = vst.msk [vmem:[#allocation7 + $0x8] sm:$0xff] %vm769, 0.0
        %772 = vst.msk [vmem:[#allocation7 + $0x10] sm:$0xff] %vm769, 0.0
        %773 = vst.msk [vmem:[#allocation7 + $0x18] sm:$0xff] %vm769, 0.0
      $region72: #{cross_attention_forward.3} parent=67 // pred_fallthru
        _
      %v774 = vld [vmem:[%s467] sm:$0xff]
      %v775 = vpack.c.bf16 %v774, %v774
      %v776 = vld [vmem:[%s4] sm:$0xf]
      %v777 = vld [vmem:[%s4 + $0x4] sm:$0xf]
      %v778 = vld [vmem:[%s4 + $0x8] sm:$0xf]
      %v779 = vld [vmem:[%s4 + $0xc] sm:$0xf]
      %v780 = vld [vmem:[%s5] sm:$0x1]
      %v782 = vlaneseq
      %v783 = vshrl.u32 %v782, 7
      %v784 = vsub.s32 0, %v783
      %v785 = vrot.slane %v780, %v784
      %v791 = vunpack.c.l.b16 %v776
      %v792 = vunpack.c.l.b16 %v777
      %v793 = vunpack.c.l.b16 %v778
      %v794 = vunpack.c.l.b16 %v779
      %v795 = vpack.c.b16 %v792, %v791
      %v796 = vpack.c.b16 %v794, %v793
      %vm799 = vcmask 261120
      %v801 = vsel %vm799, %v775, 0
      %803 = vmatprep.subr.bf16.mxu0 0
      %804 = vmatpush1.bf16.msra.mxu0 0
      %805 = vmatprep.subr.bf16.mxu0 0
      %806 = vmatpush1.bf16.msra.mxu0 0
      %807 = vmatprep.subr.bf16.mxu0 0
      %808 = vmatpush1.bf16.msra.mxu0 0
      %809 = vmatprep.subr.bf16.mxu0 0
      %810 = vmatpush1.bf16.msra.mxu0 0
      %811 = vmatprep.subr.bf16.mxu0 0
      %812 = vmatpush1.bf16.msra.mxu0 0
      %813 = vmatprep.subr.bf16.mxu0 0
      %814 = vmatpush1.bf16.msra.mxu0 0
      %815 = vmatprep.subr.bf16.mxu0 0
      %816 = vmatpush1.bf16.msra.mxu0 %v796
      %817 = vmatprep.subr.bf16.mxu0 0
      %818 = vmatpush1.bf16.msra.mxu0 %v795
      %819 = vmatprep.subr.bf16.mxu0 0
      %820 = vmatpush2.bf16.msra.mxu0 0
      %821 = vmatprep.subr.bf16.mxu0 0
      %822 = vmatpush2.bf16.msra.mxu0 0
      %823 = vmatprep.subr.bf16.mxu0 0
      %824 = vmatpush2.bf16.msra.mxu0 0
      %825 = vmatprep.subr.bf16.mxu0 0
      %826 = vmatpush2.bf16.msra.mxu0 0
      %827 = vmatprep.subr.bf16.mxu0 0
      %828 = vmatpush2.bf16.msra.mxu0 0
      %829 = vmatprep.subr.bf16.mxu0 0
      %830 = vmatpush2.bf16.msra.mxu0 0
      %831 = vmatprep.subr.bf16.mxu0 0
      %832 = vmatpush2.bf16.msra.mxu0 0
      %833 = vmatprep.subr.bf16.mxu0 0
      %834 = vmatpush2.bf16.msra.mxu0 0
      %835 = vmatprep.mubr.bf16.mxu0 0
      %836 = vmatmul.mubr.bf16.gmra.mxu0 %v801
      %v837 = vpop.f32.mrf.mxu0
      %v838 = vadd.f32 %v785, %v837
      %v839 = vpop.f32.mrf.mxu0
      %v840 = vpop.f32.mrf.mxu0
      %v841 = vpop.f32.mrf.mxu0
      %842 = vdwg.mxu0
      %v843 = vpack.c.bf16 %v838, %v838
      %vm844 = vcmask 60416
      %845 = vst.msk [vmem:[#allocation3] sm:$0xf] %vm844, %v843
      %v846 = vld [vmem:[%s6] sm:$0xf]
      %v847 = vld [vmem:[%s6 + $0x4] sm:$0xf]
      %v848 = vld [vmem:[%s6 + $0x8] sm:$0xf]
      %v849 = vld [vmem:[%s6 + $0xc] sm:$0xf]
      %v850 = vld [vmem:[%s7] sm:$0x1]
      %v852 = vlaneseq
      %v853 = vshrl.u32 %v852, 7
      %v854 = vsub.s32 0, %v853
      %v855 = vrot.slane %v850, %v854
      %v861 = vunpack.c.l.b16 %v846
      %v862 = vunpack.c.l.b16 %v847
      %v863 = vunpack.c.l.b16 %v848
      %v864 = vunpack.c.l.b16 %v849
      %v865 = vpack.c.b16 %v862, %v861
      %v866 = vpack.c.b16 %v864, %v863
      %869 = vmatprep.subr.bf16.mxu0 0
      %870 = vmatpush1.bf16.msra.mxu0 0
      %871 = vmatprep.subr.bf16.mxu0 0
      %872 = vmatpush1.bf16.msra.mxu0 0
      %873 = vmatprep.subr.bf16.mxu0 0
      %874 = vmatpush1.bf16.msra.mxu0 0
      %875 = vmatprep.subr.bf16.mxu0 0
      %876 = vmatpush1.bf16.msra.mxu0 0
      %877 = vmatprep.subr.bf16.mxu0 0
      %878 = vmatpush1.bf16.msra.mxu0 0
      %879 = vmatprep.subr.bf16.mxu0 0
      %880 = vmatpush1.bf16.msra.mxu0 0
      %881 = vmatprep.subr.bf16.mxu0 0
      %882 = vmatpush1.bf16.msra.mxu0 %v866
      %883 = vmatprep.subr.bf16.mxu0 0
      %884 = vmatpush1.bf16.msra.mxu0 %v865
      %885 = vmatprep.subr.bf16.mxu0 0
      %886 = vmatpush2.bf16.msra.mxu0 0
      %887 = vmatprep.subr.bf16.mxu0 0
      %888 = vmatpush2.bf16.msra.mxu0 0
      %889 = vmatprep.subr.bf16.mxu0 0
      %890 = vmatpush2.bf16.msra.mxu0 0
      %891 = vmatprep.subr.bf16.mxu0 0
      %892 = vmatpush2.bf16.msra.mxu0 0
      %893 = vmatprep.subr.bf16.mxu0 0
      %894 = vmatpush2.bf16.msra.mxu0 0
      %895 = vmatprep.subr.bf16.mxu0 0
      %896 = vmatpush2.bf16.msra.mxu0 0
      %897 = vmatprep.subr.bf16.mxu0 0
      %898 = vmatpush2.bf16.msra.mxu0 0
      %899 = vmatprep.subr.bf16.mxu0 0
      %900 = vmatpush2.bf16.msra.mxu0 0
      %901 = vmatprep.mubr.bf16.mxu0 0
      %902 = vmatmul.mubr.bf16.gmra.mxu0 %v801
      %v903 = vpop.f32.mrf.mxu0
      %v904 = vadd.f32 %v855, %v903
      %v905 = vpop.f32.mrf.mxu0
      %v906 = vpop.f32.mrf.mxu0
      %v907 = vpop.f32.mrf.mxu0
      %908 = vdwg.mxu0
      %v909 = vpack.c.bf16 %v904, %v904
      %910 = vst.msk [vmem:[#allocation4] sm:$0xf] %vm844, %v909
      %s911 = scalar_lea.vmem %s4, 16
      %v912 = vld [vmem:[%s911] sm:$0xf]
      %v913 = vld [vmem:[%s911 + $0x4] sm:$0xf]
      %v914 = vld [vmem:[%s911 + $0x8] sm:$0xf]
      %v915 = vld [vmem:[%s911 + $0xc] sm:$0xf]
      %s916 = scalar_lea.vmem %s5, 1
      %v917 = vld [vmem:[%s916] sm:$0x1]
      %v919 = vlaneseq
      %v920 = vshrl.u32 %v919, 7
      %v921 = vsub.s32 0, %v920
      %v922 = vrot.slane %v917, %v921
      %v928 = vunpack.c.l.b16 %v912
      %v929 = vunpack.c.l.b16 %v913
      %v930 = vunpack.c.l.b16 %v914
      %v931 = vunpack.c.l.b16 %v915
      %v932 = vpack.c.b16 %v929, %v928
      %v933 = vpack.c.b16 %v931, %v930
      %936 = vmatprep.subr.bf16.mxu0 0
      %937 = vmatpush1.bf16.msra.mxu0 0
      %938 = vmatprep.subr.bf16.mxu0 0
      %939 = vmatpush1.bf16.msra.mxu0 0
      %940 = vmatprep.subr.bf16.mxu0 0
      %941 = vmatpush1.bf16.msra.mxu0 0
      %942 = vmatprep.subr.bf16.mxu0 0
      %943 = vmatpush1.bf16.msra.mxu0 0
      %944 = vmatprep.subr.bf16.mxu0 0
      %945 = vmatpush1.bf16.msra.mxu0 0
      %946 = vmatprep.subr.bf16.mxu0 0
      %947 = vmatpush1.bf16.msra.mxu0 0
      %948 = vmatprep.subr.bf16.mxu0 0
      %949 = vmatpush1.bf16.msra.mxu0 %v933
      %950 = vmatprep.subr.bf16.mxu0 0
      %951 = vmatpush1.bf16.msra.mxu0 %v932
      %952 = vmatprep.subr.bf16.mxu0 0
      %953 = vmatpush2.bf16.msra.mxu0 0
      %954 = vmatprep.subr.bf16.mxu0 0
      %955 = vmatpush2.bf16.msra.mxu0 0
      %956 = vmatprep.subr.bf16.mxu0 0
      %957 = vmatpush2.bf16.msra.mxu0 0
      %958 = vmatprep.subr.bf16.mxu0 0
      %959 = vmatpush2.bf16.msra.mxu0 0
      %960 = vmatprep.subr.bf16.mxu0 0
      %961 = vmatpush2.bf16.msra.mxu0 0
      %962 = vmatprep.subr.bf16.mxu0 0
      %963 = vmatpush2.bf16.msra.mxu0 0
      %964 = vmatprep.subr.bf16.mxu0 0
      %965 = vmatpush2.bf16.msra.mxu0 0
      %966 = vmatprep.subr.bf16.mxu0 0
      %967 = vmatpush2.bf16.msra.mxu0 0
      %968 = vmatprep.mubr.bf16.mxu0 0
      %969 = vmatmul.mubr.bf16.gmra.mxu0 %v801
      %v970 = vpop.f32.mrf.mxu0
      %v971 = vadd.f32 %v922, %v970
      %v972 = vpop.f32.mrf.mxu0
      %v973 = vpop.f32.mrf.mxu0
      %v974 = vpop.f32.mrf.mxu0
      %975 = vdwg.mxu0
      %v976 = vpack.c.bf16 %v971, %v971
      %s977 = scalar_lea.vmem [#allocation3], 4
      %978 = vst.msk [vmem:[%s977] sm:$0xf] %vm844, %v976
      %s979 = scalar_lea.vmem %s6, 16
      %v980 = vld [vmem:[%s979] sm:$0xf]
      %v981 = vld [vmem:[%s979 + $0x4] sm:$0xf]
      %v982 = vld [vmem:[%s979 + $0x8] sm:$0xf]
      %v983 = vld [vmem:[%s979 + $0xc] sm:$0xf]
      %s984 = scalar_lea.vmem %s7, 1
      %v985 = vld [vmem:[%s984] sm:$0x1]
      %v987 = vlaneseq
      %v988 = vshrl.u32 %v987, 7
      %v989 = vsub.s32 0, %v988
      %v990 = vrot.slane %v985, %v989
      %v996 = vunpack.c.l.b16 %v980
      %v997 = vunpack.c.l.b16 %v981
      %v998 = vunpack.c.l.b16 %v982
      %v999 = vunpack.c.l.b16 %v983
      %v1000 = vpack.c.b16 %v997, %v996
      %v1001 = vpack.c.b16 %v999, %v998
      %1004 = vmatprep.subr.bf16.mxu0 0
      %1005 = vmatpush1.bf16.msra.mxu0 0
      %1006 = vmatprep.subr.bf16.mxu0 0
      %1007 = vmatpush1.bf16.msra.mxu0 0
      %1008 = vmatprep.subr.bf16.mxu0 0
      %1009 = vmatpush1.bf16.msra.mxu0 0
      %1010 = vmatprep.subr.bf16.mxu0 0
      %1011 = vmatpush1.bf16.msra.mxu0 0
      %1012 = vmatprep.subr.bf16.mxu0 0
      %1013 = vmatpush1.bf16.msra.mxu0 0
      %1014 = vmatprep.subr.bf16.mxu0 0
      %1015 = vmatpush1.bf16.msra.mxu0 0
      %1016 = vmatprep.subr.bf16.mxu0 0
      %1017 = vmatpush1.bf16.msra.mxu0 %v1001
      %1018 = vmatprep.subr.bf16.mxu0 0
      %1019 = vmatpush1.bf16.msra.mxu0 %v1000
      %1020 = vmatprep.subr.bf16.mxu0 0
      %1021 = vmatpush2.bf16.msra.mxu0 0
      %1022 = vmatprep.subr.bf16.mxu0 0
      %1023 = vmatpush2.bf16.msra.mxu0 0
      %1024 = vmatprep.subr.bf16.mxu0 0
      %1025 = vmatpush2.bf16.msra.mxu0 0
      %1026 = vmatprep.subr.bf16.mxu0 0
      %1027 = vmatpush2.bf16.msra.mxu0 0
      %1028 = vmatprep.subr.bf16.mxu0 0
      %1029 = vmatpush2.bf16.msra.mxu0 0
      %1030 = vmatprep.subr.bf16.mxu0 0
      %1031 = vmatpush2.bf16.msra.mxu0 0
      %1032 = vmatprep.subr.bf16.mxu0 0
      %1033 = vmatpush2.bf16.msra.mxu0 0
      %1034 = vmatprep.subr.bf16.mxu0 0
      %1035 = vmatpush2.bf16.msra.mxu0 0
      %1036 = vmatprep.mubr.bf16.mxu0 0
      %1037 = vmatmul.mubr.bf16.gmra.mxu0 %v801
      %v1038 = vpop.f32.mrf.mxu0
      %v1039 = vadd.f32 %v990, %v1038
      %v1040 = vpop.f32.mrf.mxu0
      %v1041 = vpop.f32.mrf.mxu0
      %v1042 = vpop.f32.mrf.mxu0
      %1043 = vdwg.mxu0
      %v1044 = vpack.c.bf16 %v1039, %v1039
      %s1045 = scalar_lea.vmem [#allocation4], 4
      %1046 = vst.msk [vmem:[%s1045] sm:$0xf] %vm844, %v1044
      %s1047 = scalar_lea.vmem %s4, 32
      %v1048 = vld [vmem:[%s1047] sm:$0xf]
      %v1049 = vld [vmem:[%s1047 + $0x4] sm:$0xf]
      %v1050 = vld [vmem:[%s1047 + $0x8] sm:$0xf]
      %v1051 = vld [vmem:[%s1047 + $0xc] sm:$0xf]
      %s1052 = scalar_lea.vmem %s5, 2
      %v1053 = vld [vmem:[%s1052] sm:$0x1]
      %v1055 = vlaneseq
      %v1056 = vshrl.u32 %v1055, 7
      %v1057 = vsub.s32 0, %v1056
      %v1058 = vrot.slane %v1053, %v1057
      %v1064 = vunpack.c.l.b16 %v1048
      %v1065 = vunpack.c.l.b16 %v1049
      %v1066 = vunpack.c.l.b16 %v1050
      %v1067 = vunpack.c.l.b16 %v1051
      %v1068 = vpack.c.b16 %v1065, %v1064
      %v1069 = vpack.c.b16 %v1067, %v1066
      %1072 = vmatprep.subr.bf16.mxu0 0
      %1073 = vmatpush1.bf16.msra.mxu0 0
      %1074 = vmatprep.subr.bf16.mxu0 0
      %1075 = vmatpush1.bf16.msra.mxu0 0
      %1076 = vmatprep.subr.bf16.mxu0 0
      %1077 = vmatpush1.bf16.msra.mxu0 0
      %1078 = vmatprep.subr.bf16.mxu0 0
      %1079 = vmatpush1.bf16.msra.mxu0 0
      %1080 = vmatprep.subr.bf16.mxu0 0
      %1081 = vmatpush1.bf16.msra.mxu0 0
      %1082 = vmatprep.subr.bf16.mxu0 0
      %1083 = vmatpush1.bf16.msra.mxu0 0
      %1084 = vmatprep.subr.bf16.mxu0 0
      %1085 = vmatpush1.bf16.msra.mxu0 %v1069
      %1086 = vmatprep.subr.bf16.mxu0 0
      %1087 = vmatpush1.bf16.msra.mxu0 %v1068
      %1088 = vmatprep.subr.bf16.mxu0 0
      %1089 = vmatpush2.bf16.msra.mxu0 0
      %1090 = vmatprep.subr.bf16.mxu0 0
      %1091 = vmatpush2.bf16.msra.mxu0 0
      %1092 = vmatprep.subr.bf16.mxu0 0
      %1093 = vmatpush2.bf16.msra.mxu0 0
      %1094 = vmatprep.subr.bf16.mxu0 0
      %1095 = vmatpush2.bf16.msra.mxu0 0
      %1096 = vmatprep.subr.bf16.mxu0 0
      %1097 = vmatpush2.bf16.msra.mxu0 0
      %1098 = vmatprep.subr.bf16.mxu0 0
      %1099 = vmatpush2.bf16.msra.mxu0 0
      %1100 = vmatprep.subr.bf16.mxu0 0
      %1101 = vmatpush2.bf16.msra.mxu0 0
      %1102 = vmatprep.subr.bf16.mxu0 0
      %1103 = vmatpush2.bf16.msra.mxu0 0
      %1104 = vmatprep.mubr.bf16.mxu0 0
      %1105 = vmatmul.mubr.bf16.gmra.mxu0 %v801
      %v1106 = vpop.f32.mrf.mxu0
      %v1107 = vadd.f32 %v1058, %v1106
      %v1108 = vpop.f32.mrf.mxu0
      %v1109 = vpop.f32.mrf.mxu0
      %v1110 = vpop.f32.mrf.mxu0
      %1111 = vdwg.mxu0
      %v1112 = vpack.c.bf16 %v1107, %v1107
      %s1113 = scalar_lea.vmem [#allocation3], 8
      %1114 = vst.msk [vmem:[%s1113] sm:$0xf] %vm844, %v1112
      %s1115 = scalar_lea.vmem %s6, 32
      %v1116 = vld [vmem:[%s1115] sm:$0xf]
      %v1117 = vld [vmem:[%s1115 + $0x4] sm:$0xf]
      %v1118 = vld [vmem:[%s1115 + $0x8] sm:$0xf]
      %v1119 = vld [vmem:[%s1115 + $0xc] sm:$0xf]
      %s1120 = scalar_lea.vmem %s7, 2
      %v1121 = vld [vmem:[%s1120] sm:$0x1]
      %v1123 = vlaneseq
      %v1124 = vshrl.u32 %v1123, 7
      %v1125 = vsub.s32 0, %v1124
      %v1126 = vrot.slane %v1121, %v1125
      %v1132 = vunpack.c.l.b16 %v1116
      %v1133 = vunpack.c.l.b16 %v1117
      %v1134 = vunpack.c.l.b16 %v1118
      %v1135 = vunpack.c.l.b16 %v1119
      %v1136 = vpack.c.b16 %v1133, %v1132
      %v1137 = vpack.c.b16 %v1135, %v1134
      %1140 = vmatprep.subr.bf16.mxu0 0
      %1141 = vmatpush1.bf16.msra.mxu0 0
      %1142 = vmatprep.subr.bf16.mxu0 0
      %1143 = vmatpush1.bf16.msra.mxu0 0
      %1144 = vmatprep.subr.bf16.mxu0 0
      %1145 = vmatpush1.bf16.msra.mxu0 0
      %1146 = vmatprep.subr.bf16.mxu0 0
      %1147 = vmatpush1.bf16.msra.mxu0 0
      %1148 = vmatprep.subr.bf16.mxu0 0
      %1149 = vmatpush1.bf16.msra.mxu0 0
      %1150 = vmatprep.subr.bf16.mxu0 0
      %1151 = vmatpush1.bf16.msra.mxu0 0
      %1152 = vmatprep.subr.bf16.mxu0 0
      %1153 = vmatpush1.bf16.msra.mxu0 %v1137
      %1154 = vmatprep.subr.bf16.mxu0 0
      %1155 = vmatpush1.bf16.msra.mxu0 %v1136
      %1156 = vmatprep.subr.bf16.mxu0 0
      %1157 = vmatpush2.bf16.msra.mxu0 0
      %1158 = vmatprep.subr.bf16.mxu0 0
      %1159 = vmatpush2.bf16.msra.mxu0 0
      %1160 = vmatprep.subr.bf16.mxu0 0
      %1161 = vmatpush2.bf16.msra.mxu0 0
      %1162 = vmatprep.subr.bf16.mxu0 0
      %1163 = vmatpush2.bf16.msra.mxu0 0
      %1164 = vmatprep.subr.bf16.mxu0 0
      %1165 = vmatpush2.bf16.msra.mxu0 0
      %1166 = vmatprep.subr.bf16.mxu0 0
      %1167 = vmatpush2.bf16.msra.mxu0 0
      %1168 = vmatprep.subr.bf16.mxu0 0
      %1169 = vmatpush2.bf16.msra.mxu0 0
      %1170 = vmatprep.subr.bf16.mxu0 0
      %1171 = vmatpush2.bf16.msra.mxu0 0
      %1172 = vmatprep.mubr.bf16.mxu0 0
      %1173 = vmatmul.mubr.bf16.gmra.mxu0 %v801
      %v1174 = vpop.f32.mrf.mxu0
      %v1175 = vadd.f32 %v1126, %v1174
      %v1176 = vpop.f32.mrf.mxu0
      %v1177 = vpop.f32.mrf.mxu0
      %v1178 = vpop.f32.mrf.mxu0
      %1179 = vdwg.mxu0
      %v1180 = vpack.c.bf16 %v1175, %v1175
      %s1181 = scalar_lea.vmem [#allocation4], 8
      %1182 = vst.msk [vmem:[%s1181] sm:$0xf] %vm844, %v1180
      %s1183 = scalar_lea.vmem %s4, 48
      %v1184 = vld [vmem:[%s1183] sm:$0xf]
      %v1185 = vld [vmem:[%s1183 + $0x4] sm:$0xf]
      %v1186 = vld [vmem:[%s1183 + $0x8] sm:$0xf]
      %v1187 = vld [vmem:[%s1183 + $0xc] sm:$0xf]
      %s1188 = scalar_lea.vmem %s5, 3
      %v1189 = vld [vmem:[%s1188] sm:$0x1]
      %v1191 = vlaneseq
      %v1192 = vshrl.u32 %v1191, 7
      %v1193 = vsub.s32 0, %v1192
      %v1194 = vrot.slane %v1189, %v1193
      %v1200 = vunpack.c.l.b16 %v1184
      %v1201 = vunpack.c.l.b16 %v1185
      %v1202 = vunpack.c.l.b16 %v1186
      %v1203 = vunpack.c.l.b16 %v1187
      %v1204 = vpack.c.b16 %v1201, %v1200
      %v1205 = vpack.c.b16 %v1203, %v1202
      %1208 = vmatprep.subr.bf16.mxu0 0
      %1209 = vmatpush1.bf16.msra.mxu0 0
      %1210 = vmatprep.subr.bf16.mxu0 0
      %1211 = vmatpush1.bf16.msra.mxu0 0
      %1212 = vmatprep.subr.bf16.mxu0 0
      %1213 = vmatpush1.bf16.msra.mxu0 0
      %1214 = vmatprep.subr.bf16.mxu0 0
      %1215 = vmatpush1.bf16.msra.mxu0 0
      %1216 = vmatprep.subr.bf16.mxu0 0
      %1217 = vmatpush1.bf16.msra.mxu0 0
      %1218 = vmatprep.subr.bf16.mxu0 0
      %1219 = vmatpush1.bf16.msra.mxu0 0
      %1220 = vmatprep.subr.bf16.mxu0 0
      %1221 = vmatpush1.bf16.msra.mxu0 %v1205
      %1222 = vmatprep.subr.bf16.mxu0 0
      %1223 = vmatpush1.bf16.msra.mxu0 %v1204
      %1224 = vmatprep.subr.bf16.mxu0 0
      %1225 = vmatpush2.bf16.msra.mxu0 0
      %1226 = vmatprep.subr.bf16.mxu0 0
      %1227 = vmatpush2.bf16.msra.mxu0 0
      %1228 = vmatprep.subr.bf16.mxu0 0
      %1229 = vmatpush2.bf16.msra.mxu0 0
      %1230 = vmatprep.subr.bf16.mxu0 0
      %1231 = vmatpush2.bf16.msra.mxu0 0
      %1232 = vmatprep.subr.bf16.mxu0 0
      %1233 = vmatpush2.bf16.msra.mxu0 0
      %1234 = vmatprep.subr.bf16.mxu0 0
      %1235 = vmatpush2.bf16.msra.mxu0 0
      %1236 = vmatprep.subr.bf16.mxu0 0
      %1237 = vmatpush2.bf16.msra.mxu0 0
      %1238 = vmatprep.subr.bf16.mxu0 0
      %1239 = vmatpush2.bf16.msra.mxu0 0
      %1240 = vmatprep.mubr.bf16.mxu0 0
      %1241 = vmatmul.mubr.bf16.gmra.mxu0 %v801
      %v1242 = vpop.f32.mrf.mxu0
      %v1243 = vadd.f32 %v1194, %v1242
      %v1244 = vpop.f32.mrf.mxu0
      %v1245 = vpop.f32.mrf.mxu0
      %v1246 = vpop.f32.mrf.mxu0
      %1247 = vdwg.mxu0
      %v1248 = vpack.c.bf16 %v1243, %v1243
      %s1249 = scalar_lea.vmem [#allocation3], 12
      %1250 = vst.msk [vmem:[%s1249] sm:$0xf] %vm844, %v1248
      %s1251 = scalar_lea.vmem %s6, 48
      %v1252 = vld [vmem:[%s1251] sm:$0xf]
      %v1253 = vld [vmem:[%s1251 + $0x4] sm:$0xf]
      %v1254 = vld [vmem:[%s1251 + $0x8] sm:$0xf]
      %v1255 = vld [vmem:[%s1251 + $0xc] sm:$0xf]
      %s1256 = scalar_lea.vmem %s7, 3
      %v1257 = vld [vmem:[%s1256] sm:$0x1]
      %v1259 = vlaneseq
      %v1260 = vshrl.u32 %v1259, 7
      %v1261 = vsub.s32 0, %v1260
      %v1262 = vrot.slane %v1257, %v1261
      %v1268 = vunpack.c.l.b16 %v1252
      %v1269 = vunpack.c.l.b16 %v1253
      %v1270 = vunpack.c.l.b16 %v1254
      %v1271 = vunpack.c.l.b16 %v1255
      %v1272 = vpack.c.b16 %v1269, %v1268
      %v1273 = vpack.c.b16 %v1271, %v1270
      %1276 = vmatprep.subr.bf16.mxu0 0
      %1277 = vmatpush1.bf16.msra.mxu0 0
      %1278 = vmatprep.subr.bf16.mxu0 0
      %1279 = vmatpush1.bf16.msra.mxu0 0
      %1280 = vmatprep.subr.bf16.mxu0 0
      %1281 = vmatpush1.bf16.msra.mxu0 0
      %1282 = vmatprep.subr.bf16.mxu0 0
      %1283 = vmatpush1.bf16.msra.mxu0 0
      %1284 = vmatprep.subr.bf16.mxu0 0
      %1285 = vmatpush1.bf16.msra.mxu0 0
      %1286 = vmatprep.subr.bf16.mxu0 0
      %1287 = vmatpush1.bf16.msra.mxu0 0
      %1288 = vmatprep.subr.bf16.mxu0 0
      %1289 = vmatpush1.bf16.msra.mxu0 %v1273
      %1290 = vmatprep.subr.bf16.mxu0 0
      %1291 = vmatpush1.bf16.msra.mxu0 %v1272
      %1292 = vmatprep.subr.bf16.mxu0 0
      %1293 = vmatpush2.bf16.msra.mxu0 0
      %1294 = vmatprep.subr.bf16.mxu0 0
      %1295 = vmatpush2.bf16.msra.mxu0 0
      %1296 = vmatprep.subr.bf16.mxu0 0
      %1297 = vmatpush2.bf16.msra.mxu0 0
      %1298 = vmatprep.subr.bf16.mxu0 0
      %1299 = vmatpush2.bf16.msra.mxu0 0
      %1300 = vmatprep.subr.bf16.mxu0 0
      %1301 = vmatpush2.bf16.msra.mxu0 0
      %1302 = vmatprep.subr.bf16.mxu0 0
      %1303 = vmatpush2.bf16.msra.mxu0 0
      %1304 = vmatprep.subr.bf16.mxu0 0
      %1305 = vmatpush2.bf16.msra.mxu0 0
      %1306 = vmatprep.subr.bf16.mxu0 0
      %1307 = vmatpush2.bf16.msra.mxu0 0
      %1308 = vmatprep.mubr.bf16.mxu0 0
      %1309 = vmatmul.mubr.bf16.gmra.mxu0 %v801
      %v1310 = vpop.f32.mrf.mxu0
      %v1311 = vadd.f32 %v1262, %v1310
      %v1312 = vpop.f32.mrf.mxu0
      %v1313 = vpop.f32.mrf.mxu0
      %v1314 = vpop.f32.mrf.mxu0
      %1315 = vdwg.mxu0
      %v1316 = vpack.c.bf16 %v1311, %v1311
      %s1317 = scalar_lea.vmem [#allocation4], 12
      %1318 = vst.msk [vmem:[%s1317] sm:$0xf] %vm844, %v1316
      %v1319 = vld [vmem:[#allocation2] sm:$0xf]
      %v1320 = vld [vmem:[#allocation2 + $0x4] sm:$0xf]
      %v1321 = vld [vmem:[#allocation2 + $0x8] sm:$0xf]
      %v1322 = vld [vmem:[#allocation2 + $0xc] sm:$0xf]
      %v1323 = vld [vmem:[#allocation3] sm:$0xf]
      %v1324 = vld [vmem:[#allocation3 + $0x4] sm:$0xf]
      %v1325 = vld [vmem:[#allocation3 + $0x8] sm:$0xf]
      %v1326 = vld [vmem:[#allocation3 + $0xc] sm:$0xf]
      %vm1327 = vcmask 64512
      %v1329 = vsel %vm1327, %v1319, 0
      %v1332 = vsel %vm1327, %v1323, 0
      %1334 = vmatprep.subr.bf16.mxu0 0
      %1335 = vmatpush1.bf16.xpose.msra.mxu0 0
      %1336 = vmatprep.subr.bf16.mxu0 0
      %1337 = vmatpush1.bf16.xpose.msra.mxu0 0
      %1338 = vmatprep.subr.bf16.mxu0 0
      %1339 = vmatpush1.bf16.xpose.msra.mxu0 0
      %1340 = vmatprep.subr.bf16.mxu0 0
      %1341 = vmatpush1.bf16.xpose.msra.mxu0 0
      %1342 = vmatprep.subr.bf16.mxu0 0
      %1343 = vmatpush1.bf16.xpose.msra.mxu0 0
      %1344 = vmatprep.subr.bf16.mxu0 0
      %1345 = vmatpush1.bf16.xpose.msra.mxu0 0
      %1346 = vmatprep.subr.bf16.mxu0 0
      %1347 = vmatpush1.bf16.xpose.msra.mxu0 0
      %1348 = vmatprep.subr.bf16.mxu0 0
      %1349 = vmatpush1.bf16.xpose.msra.mxu0 %v1332
      %1350 = vmatprep.subr.bf16.mxu0 0
      %1351 = vmatpush2.bf16.xpose.msra.mxu0 0
      %1352 = vmatprep.subr.bf16.mxu0 0
      %1353 = vmatpush2.bf16.xpose.msra.mxu0 0
      %1354 = vmatprep.subr.bf16.mxu0 0
      %1355 = vmatpush2.bf16.xpose.msra.mxu0 0
      %1356 = vmatprep.subr.bf16.mxu0 0
      %1357 = vmatpush2.bf16.xpose.msra.mxu0 0
      %1358 = vmatprep.subr.bf16.mxu0 0
      %1359 = vmatpush2.bf16.xpose.msra.mxu0 0
      %1360 = vmatprep.subr.bf16.mxu0 0
      %1361 = vmatpush2.bf16.xpose.msra.mxu0 0
      %1362 = vmatprep.subr.bf16.mxu0 0
      %1363 = vmatpush2.bf16.xpose.msra.mxu0 0
      %1364 = vmatprep.subr.bf16.mxu0 0
      %1365 = vmatpush2.bf16.xpose.msra.mxu0 0
      %1366 = vmatprep.mubr.bf16.mxu0 0
      %1367 = vmatmul.mubr.bf16.gmra.mxu0 %v1329
      %v1368 = vpop.f32.mrf.mxu0
      %v1369 = vadd.f32 0.0, %v1368
      %v1370 = vpop.f32.mrf.mxu0
      %v1371 = vpop.f32.mrf.mxu0
      %v1372 = vpop.f32.mrf.mxu0
      %1373 = vdwg.mxu0
      %v1375 = vsel %vm1327, %v1320, 0
      %v1378 = vsel %vm1327, %v1324, 0
      %1380 = vmatprep.subr.bf16.mxu0 0
      %1381 = vmatpush1.bf16.xpose.msra.mxu0 0
      %1382 = vmatprep.subr.bf16.mxu0 0
      %1383 = vmatpush1.bf16.xpose.msra.mxu0 0
      %1384 = vmatprep.subr.bf16.mxu0 0
      %1385 = vmatpush1.bf16.xpose.msra.mxu0 0
      %1386 = vmatprep.subr.bf16.mxu0 0
      %1387 = vmatpush1.bf16.xpose.msra.mxu0 0
      %1388 = vmatprep.subr.bf16.mxu0 0
      %1389 = vmatpush1.bf16.xpose.msra.mxu0 0
      %1390 = vmatprep.subr.bf16.mxu0 0
      %1391 = vmatpush1.bf16.xpose.msra.mxu0 0
      %1392 = vmatprep.subr.bf16.mxu0 0
      %1393 = vmatpush1.bf16.xpose.msra.mxu0 0
      %1394 = vmatprep.subr.bf16.mxu0 0
      %1395 = vmatpush1.bf16.xpose.msra.mxu0 %v1378
      %1396 = vmatprep.subr.bf16.mxu0 0
      %1397 = vmatpush2.bf16.xpose.msra.mxu0 0
      %1398 = vmatprep.subr.bf16.mxu0 0
      %1399 = vmatpush2.bf16.xpose.msra.mxu0 0
      %1400 = vmatprep.subr.bf16.mxu0 0
      %1401 = vmatpush2.bf16.xpose.msra.mxu0 0
      %1402 = vmatprep.subr.bf16.mxu0 0
      %1403 = vmatpush2.bf16.xpose.msra.mxu0 0
      %1404 = vmatprep.subr.bf16.mxu0 0
      %1405 = vmatpush2.bf16.xpose.msra.mxu0 0
      %1406 = vmatprep.subr.bf16.mxu0 0
      %1407 = vmatpush2.bf16.xpose.msra.mxu0 0
      %1408 = vmatprep.subr.bf16.mxu0 0
      %1409 = vmatpush2.bf16.xpose.msra.mxu0 0
      %1410 = vmatprep.subr.bf16.mxu0 0
      %1411 = vmatpush2.bf16.xpose.msra.mxu0 0
      %1412 = vmatprep.mubr.bf16.mxu0 0
      %1413 = vmatmul.mubr.bf16.gmra.mxu0 %v1375
      %v1414 = vpop.f32.mrf.mxu0
      %v1415 = vadd.f32 0.0, %v1414
      %v1416 = vpop.f32.mrf.mxu0
      %v1417 = vpop.f32.mrf.mxu0
      %v1418 = vpop.f32.mrf.mxu0
      %1419 = vdwg.mxu0
      %v1421 = vsel %vm1327, %v1321, 0
      %v1424 = vsel %vm1327, %v1325, 0
      %1426 = vmatprep.subr.bf16.mxu0 0
      %1427 = vmatpush1.bf16.xpose.msra.mxu0 0
      %1428 = vmatprep.subr.bf16.mxu0 0
      %1429 = vmatpush1.bf16.xpose.msra.mxu0 0
      %1430 = vmatprep.subr.bf16.mxu0 0
      %1431 = vmatpush1.bf16.xpose.msra.mxu0 0
      %1432 = vmatprep.subr.bf16.mxu0 0
      %1433 = vmatpush1.bf16.xpose.msra.mxu0 0
      %1434 = vmatprep.subr.bf16.mxu0 0
      %1435 = vmatpush1.bf16.xpose.msra.mxu0 0
      %1436 = vmatprep.subr.bf16.mxu0 0
      %1437 = vmatpush1.bf16.xpose.msra.mxu0 0
      %1438 = vmatprep.subr.bf16.mxu0 0
      %1439 = vmatpush1.bf16.xpose.msra.mxu0 0
      %1440 = vmatprep.subr.bf16.mxu0 0
      %1441 = vmatpush1.bf16.xpose.msra.mxu0 %v1424
      %1442 = vmatprep.subr.bf16.mxu0 0
      %1443 = vmatpush2.bf16.xpose.msra.mxu0 0
      %1444 = vmatprep.subr.bf16.mxu0 0
      %1445 = vmatpush2.bf16.xpose.msra.mxu0 0
      %1446 = vmatprep.subr.bf16.mxu0 0
      %1447 = vmatpush2.bf16.xpose.msra.mxu0 0
      %1448 = vmatprep.subr.bf16.mxu0 0
      %1449 = vmatpush2.bf16.xpose.msra.mxu0 0
      %1450 = vmatprep.subr.bf16.mxu0 0
      %1451 = vmatpush2.bf16.xpose.msra.mxu0 0
      %1452 = vmatprep.subr.bf16.mxu0 0
      %1453 = vmatpush2.bf16.xpose.msra.mxu0 0
      %1454 = vmatprep.subr.bf16.mxu0 0
      %1455 = vmatpush2.bf16.xpose.msra.mxu0 0
      %1456 = vmatprep.subr.bf16.mxu0 0
      %1457 = vmatpush2.bf16.xpose.msra.mxu0 0
      %1458 = vmatprep.mubr.bf16.mxu0 0
      %1459 = vmatmul.mubr.bf16.gmra.mxu0 %v1421
      %v1460 = vpop.f32.mrf.mxu0
      %v1461 = vadd.f32 0.0, %v1460
      %v1462 = vpop.f32.mrf.mxu0
      %v1463 = vpop.f32.mrf.mxu0
      %v1464 = vpop.f32.mrf.mxu0
      %1465 = vdwg.mxu0
      %v1467 = vsel %vm1327, %v1322, 0
      %v1470 = vsel %vm1327, %v1326, 0
      %1472 = vmatprep.subr.bf16.mxu0 0
      %1473 = vmatpush1.bf16.xpose.msra.mxu0 0
      %1474 = vmatprep.subr.bf16.mxu0 0
      %1475 = vmatpush1.bf16.xpose.msra.mxu0 0
      %1476 = vmatprep.subr.bf16.mxu0 0
      %1477 = vmatpush1.bf16.xpose.msra.mxu0 0
      %1478 = vmatprep.subr.bf16.mxu0 0
      %1479 = vmatpush1.bf16.xpose.msra.mxu0 0
      %1480 = vmatprep.subr.bf16.mxu0 0
      %1481 = vmatpush1.bf16.xpose.msra.mxu0 0
      %1482 = vmatprep.subr.bf16.mxu0 0
      %1483 = vmatpush1.bf16.xpose.msra.mxu0 0
      %1484 = vmatprep.subr.bf16.mxu0 0
      %1485 = vmatpush1.bf16.xpose.msra.mxu0 0
      %1486 = vmatprep.subr.bf16.mxu0 0
      %1487 = vmatpush1.bf16.xpose.msra.mxu0 %v1470
      %1488 = vmatprep.subr.bf16.mxu0 0
      %1489 = vmatpush2.bf16.xpose.msra.mxu0 0
      %1490 = vmatprep.subr.bf16.mxu0 0
      %1491 = vmatpush2.bf16.xpose.msra.mxu0 0
      %1492 = vmatprep.subr.bf16.mxu0 0
      %1493 = vmatpush2.bf16.xpose.msra.mxu0 0
      %1494 = vmatprep.subr.bf16.mxu0 0
      %1495 = vmatpush2.bf16.xpose.msra.mxu0 0
      %1496 = vmatprep.subr.bf16.mxu0 0
      %1497 = vmatpush2.bf16.xpose.msra.mxu0 0
      %1498 = vmatprep.subr.bf16.mxu0 0
      %1499 = vmatpush2.bf16.xpose.msra.mxu0 0
      %1500 = vmatprep.subr.bf16.mxu0 0
      %1501 = vmatpush2.bf16.xpose.msra.mxu0 0
      %1502 = vmatprep.subr.bf16.mxu0 0
      %1503 = vmatpush2.bf16.xpose.msra.mxu0 0
      %1504 = vmatprep.mubr.bf16.mxu0 0
      %1505 = vmatmul.mubr.bf16.gmra.mxu0 %v1467
      %v1506 = vpop.f32.mrf.mxu0
      %v1507 = vadd.f32 0.0, %v1506
      %v1508 = vpop.f32.mrf.mxu0
      %v1509 = vpop.f32.mrf.mxu0
      %v1510 = vpop.f32.mrf.mxu0
      %1511 = vdwg.mxu0
      %v1512 = vld [vmem:[#allocation5] sm:$0xff]
      %v1513 = vld [vmem:[#allocation5 + $0x8] sm:$0xff]
      %v1514 = vld [vmem:[#allocation5 + $0x10] sm:$0xff]
      %v1515 = vld [vmem:[#allocation5 + $0x18] sm:$0xff]
      %v1516 = vsel %vm1327, %v1369, -inf
      %1517 = vmax.xlane.f32.xlu0 %v1516
      %v1518 = vpop.xlane.xlu0 %1517
      %v1519 = vsel %vm1327, %v1415, -inf
      %1520 = vmax.xlane.f32.xlu0 %v1519
      %v1521 = vpop.xlane.xlu0 %1520
      %v1522 = vsel %vm1327, %v1461, -inf
      %1523 = vmax.xlane.f32.xlu0 %v1522
      %v1524 = vpop.xlane.xlu0 %1523
      %v1525 = vsel %vm1327, %v1507, -inf
      %1526 = vmax.xlane.f32.xlu0 %v1525
      %v1527 = vpop.xlane.xlu0 %1526
      %v1528 = vmax.f32 %v1512, %v1518
      %v1529 = vmax.f32 %v1513, %v1521
      %v1530 = vmax.f32 %v1514, %v1524
      %v1531 = vmax.f32 %v1515, %v1527
      %v1532 = vsub.f32 %v1512, %v1528
      %v1533 = vsub.f32 %v1513, %v1529
      %v1534 = vsub.f32 %v1514, %v1530
      %v1535 = vsub.f32 %v1515, %v1531
      %v1536 = vmul.f32 %v1532, 1.442695
      %v1537 = vpow.pop %v1536
      %v1538 = vmul.f32 %v1533, 1.442695
      %v1539 = vpow.pop %v1538
      %v1540 = vmul.f32 %v1534, 1.442695
      %v1541 = vpow.pop %v1540
      %v1542 = vmul.f32 %v1535, 1.442695
      %v1543 = vpow.pop %v1542
      %1545 = vset.pattern.permute.xlu0 0
      %1546 = vperm.xlu0 %1545, %v1528
      %v1547 = vpop.permute.xlu0 %1546
      %1550 = vset.pattern.permute.xlu0 0
      %1551 = vperm.xlu0 %1550, %v1529
      %v1552 = vpop.permute.xlu0 %1551
      %1555 = vset.pattern.permute.xlu0 0
      %1556 = vperm.xlu0 %1555, %v1530
      %v1557 = vpop.permute.xlu0 %1556
      %1560 = vset.pattern.permute.xlu0 0
      %1561 = vperm.xlu0 %1560, %v1531
      %v1562 = vpop.permute.xlu0 %1561
      %v1564 = vsub.f32 %v1369, %v1547
      %v1565 = vsub.f32 %v1415, %v1552
      %v1566 = vsub.f32 %v1461, %v1557
      %v1567 = vsub.f32 %v1507, %v1562
      %v1568 = vmul.f32 %v1564, 1.442695
      %v1569 = vpow.pop %v1568
      %v1570 = vmul.f32 %v1565, 1.442695
      %v1571 = vpow.pop %v1570
      %v1572 = vmul.f32 %v1566, 1.442695
      %v1573 = vpow.pop %v1572
      %v1574 = vmul.f32 %v1567, 1.442695
      %v1575 = vpow.pop %v1574
      %v1576 = vld [vmem:[#allocation6] sm:$0xff]
      %v1577 = vld [vmem:[#allocation6 + $0x8] sm:$0xff]
      %v1578 = vld [vmem:[#allocation6 + $0x10] sm:$0xff]
      %v1579 = vld [vmem:[#allocation6 + $0x18] sm:$0xff]
      %v1580 = vmul.f32 %v1537, %v1576
      %v1581 = vmul.f32 %v1539, %v1577
      %v1582 = vmul.f32 %v1541, %v1578
      %v1583 = vmul.f32 %v1543, %v1579
      %v1584 = vsel %vm1327, %v1569, 0.0
      %1585 = vadd.xlane.f32.xlu0 %v1584
      %v1586 = vpop.xlane.xlu0 %1585
      %v1587 = vsel %vm1327, %v1571, 0.0
      %1588 = vadd.xlane.f32.xlu0 %v1587
      %v1589 = vpop.xlane.xlu0 %1588
      %v1590 = vsel %vm1327, %v1573, 0.0
      %1591 = vadd.xlane.f32.xlu0 %v1590
      %v1592 = vpop.xlane.xlu0 %1591
      %v1593 = vsel %vm1327, %v1575, 0.0
      %1594 = vadd.xlane.f32.xlu0 %v1593
      %v1595 = vpop.xlane.xlu0 %1594
      %v1596 = vadd.f32 %v1580, %v1586
      %v1597 = vadd.f32 %v1581, %v1589
      %v1598 = vadd.f32 %v1582, %v1592
      %v1599 = vadd.f32 %v1583, %v1595
      %vm1600 = vcmask 7168
      %1601 = vst.msk [vmem:[#allocation6] sm:$0xff] %vm1600, %v1596
      %1602 = vst.msk [vmem:[#allocation6 + $0x8] sm:$0xff] %vm1600, %v1597
      %1603 = vst.msk [vmem:[#allocation6 + $0x10] sm:$0xff] %vm1600, %v1598
      %1604 = vst.msk [vmem:[#allocation6 + $0x18] sm:$0xff] %vm1600, %v1599
      %v1605 = vpack.c.bf16 %v1569, %v1569
      %v1606 = vpack.c.bf16 %v1571, %v1571
      %v1607 = vpack.c.bf16 %v1573, %v1573
      %v1608 = vpack.c.bf16 %v1575, %v1575
      %v1609 = vld [vmem:[#allocation4] sm:$0xf]
      %v1610 = vld [vmem:[#allocation4 + $0x4] sm:$0xf]
      %v1611 = vld [vmem:[#allocation4 + $0x8] sm:$0xf]
      %v1612 = vld [vmem:[#allocation4 + $0xc] sm:$0xf]
      %v1614 = vsel %vm1327, %v1605, 0
      %vm1616 = vcmask 1043456
      %v1618 = vsel %vm1616, %v1609, 0
      %1620 = vmatprep.subr.bf16.mxu0 0
      %1621 = vmatpush1.bf16.msra.mxu0 0
      %1622 = vmatprep.subr.bf16.mxu0 0
      %1623 = vmatpush1.bf16.msra.mxu0 0
      %1624 = vmatprep.subr.bf16.mxu0 0
      %1625 = vmatpush1.bf16.msra.mxu0 0
      %1626 = vmatprep.subr.bf16.mxu0 0
      %1627 = vmatpush1.bf16.msra.mxu0 0
      %1628 = vmatprep.subr.bf16.mxu0 0
      %1629 = vmatpush1.bf16.msra.mxu0 0
      %1630 = vmatprep.subr.bf16.mxu0 0
      %1631 = vmatpush1.bf16.msra.mxu0 0
      %1632 = vmatprep.subr.bf16.mxu0 0
      %1633 = vmatpush1.bf16.msra.mxu0 0
      %1634 = vmatprep.subr.bf16.mxu0 0
      %1635 = vmatpush1.bf16.msra.mxu0 %v1618
      %1636 = vmatprep.subr.bf16.mxu0 0
      %1637 = vmatpush2.bf16.msra.mxu0 0
      %1638 = vmatprep.subr.bf16.mxu0 0
      %1639 = vmatpush2.bf16.msra.mxu0 0
      %1640 = vmatprep.subr.bf16.mxu0 0
      %1641 = vmatpush2.bf16.msra.mxu0 0
      %1642 = vmatprep.subr.bf16.mxu0 0
      %1643 = vmatpush2.bf16.msra.mxu0 0
      %1644 = vmatprep.subr.bf16.mxu0 0
      %1645 = vmatpush2.bf16.msra.mxu0 0
      %1646 = vmatprep.subr.bf16.mxu0 0
      %1647 = vmatpush2.bf16.msra.mxu0 0
      %1648 = vmatprep.subr.bf16.mxu0 0
      %1649 = vmatpush2.bf16.msra.mxu0 0
      %1650 = vmatprep.subr.bf16.mxu0 0
      %1651 = vmatpush2.bf16.msra.mxu0 0
      %1652 = vmatprep.mubr.bf16.mxu0 0
      %1653 = vmatmul.mubr.bf16.gmra.mxu0 %v1614
      %v1654 = vpop.f32.mrf.mxu0
      %v1655 = vadd.f32 0.0, %v1654
      %v1656 = vpop.f32.mrf.mxu0
      %v1657 = vpop.f32.mrf.mxu0
      %v1658 = vpop.f32.mrf.mxu0
      %1659 = vdwg.mxu0
      %v1661 = vsel %vm1327, %v1606, 0
      %v1664 = vsel %vm1616, %v1610, 0
      %1666 = vmatprep.subr.bf16.mxu0 0
      %1667 = vmatpush1.bf16.msra.mxu0 0
      %1668 = vmatprep.subr.bf16.mxu0 0
      %1669 = vmatpush1.bf16.msra.mxu0 0
      %1670 = vmatprep.subr.bf16.mxu0 0
      %1671 = vmatpush1.bf16.msra.mxu0 0
      %1672 = vmatprep.subr.bf16.mxu0 0
      %1673 = vmatpush1.bf16.msra.mxu0 0
      %1674 = vmatprep.subr.bf16.mxu0 0
      %1675 = vmatpush1.bf16.msra.mxu0 0
      %1676 = vmatprep.subr.bf16.mxu0 0
      %1677 = vmatpush1.bf16.msra.mxu0 0
      %1678 = vmatprep.subr.bf16.mxu0 0
      %1679 = vmatpush1.bf16.msra.mxu0 0
      %1680 = vmatprep.subr.bf16.mxu0 0
      %1681 = vmatpush1.bf16.msra.mxu0 %v1664
      %1682 = vmatprep.subr.bf16.mxu0 0
      %1683 = vmatpush2.bf16.msra.mxu0 0
      %1684 = vmatprep.subr.bf16.mxu0 0
      %1685 = vmatpush2.bf16.msra.mxu0 0
      %1686 = vmatprep.subr.bf16.mxu0 0
      %1687 = vmatpush2.bf16.msra.mxu0 0
      %1688 = vmatprep.subr.bf16.mxu0 0
      %1689 = vmatpush2.bf16.msra.mxu0 0
      %1690 = vmatprep.subr.bf16.mxu0 0
      %1691 = vmatpush2.bf16.msra.mxu0 0
      %1692 = vmatprep.subr.bf16.mxu0 0
      %1693 = vmatpush2.bf16.msra.mxu0 0
      %1694 = vmatprep.subr.bf16.mxu0 0
      %1695 = vmatpush2.bf16.msra.mxu0 0
      %1696 = vmatprep.subr.bf16.mxu0 0
      %1697 = vmatpush2.bf16.msra.mxu0 0
      %1698 = vmatprep.mubr.bf16.mxu0 0
      %1699 = vmatmul.mubr.bf16.gmra.mxu0 %v1661
      %v1700 = vpop.f32.mrf.mxu0
      %v1701 = vadd.f32 0.0, %v1700
      %v1702 = vpop.f32.mrf.mxu0
      %v1703 = vpop.f32.mrf.mxu0
      %v1704 = vpop.f32.mrf.mxu0
      %1705 = vdwg.mxu0
      %v1707 = vsel %vm1327, %v1607, 0
      %v1710 = vsel %vm1616, %v1611, 0
      %1712 = vmatprep.subr.bf16.mxu0 0
      %1713 = vmatpush1.bf16.msra.mxu0 0
      %1714 = vmatprep.subr.bf16.mxu0 0
      %1715 = vmatpush1.bf16.msra.mxu0 0
      %1716 = vmatprep.subr.bf16.mxu0 0
      %1717 = vmatpush1.bf16.msra.mxu0 0
      %1718 = vmatprep.subr.bf16.mxu0 0
      %1719 = vmatpush1.bf16.msra.mxu0 0
      %1720 = vmatprep.subr.bf16.mxu0 0
      %1721 = vmatpush1.bf16.msra.mxu0 0
      %1722 = vmatprep.subr.bf16.mxu0 0
      %1723 = vmatpush1.bf16.msra.mxu0 0
      %1724 = vmatprep.subr.bf16.mxu0 0
      %1725 = vmatpush1.bf16.msra.mxu0 0
      %1726 = vmatprep.subr.bf16.mxu0 0
      %1727 = vmatpush1.bf16.msra.mxu0 %v1710
      %1728 = vmatprep.subr.bf16.mxu0 0
      %1729 = vmatpush2.bf16.msra.mxu0 0
      %1730 = vmatprep.subr.bf16.mxu0 0
      %1731 = vmatpush2.bf16.msra.mxu0 0
      %1732 = vmatprep.subr.bf16.mxu0 0
      %1733 = vmatpush2.bf16.msra.mxu0 0
      %1734 = vmatprep.subr.bf16.mxu0 0
      %1735 = vmatpush2.bf16.msra.mxu0 0
      %1736 = vmatprep.subr.bf16.mxu0 0
      %1737 = vmatpush2.bf16.msra.mxu0 0
      %1738 = vmatprep.subr.bf16.mxu0 0
      %1739 = vmatpush2.bf16.msra.mxu0 0
      %1740 = vmatprep.subr.bf16.mxu0 0
      %1741 = vmatpush2.bf16.msra.mxu0 0
      %1742 = vmatprep.subr.bf16.mxu0 0
      %1743 = vmatpush2.bf16.msra.mxu0 0
      %1744 = vmatprep.mubr.bf16.mxu0 0
      %1745 = vmatmul.mubr.bf16.gmra.mxu0 %v1707
      %v1746 = vpop.f32.mrf.mxu0
      %v1747 = vadd.f32 0.0, %v1746
      %v1748 = vpop.f32.mrf.mxu0
      %v1749 = vpop.f32.mrf.mxu0
      %v1750 = vpop.f32.mrf.mxu0
      %1751 = vdwg.mxu0
      %v1753 = vsel %vm1327, %v1608, 0
      %v1756 = vsel %vm1616, %v1612, 0
      %1758 = vmatprep.subr.bf16.mxu0 0
      %1759 = vmatpush1.bf16.msra.mxu0 0
      %1760 = vmatprep.subr.bf16.mxu0 0
      %1761 = vmatpush1.bf16.msra.mxu0 0
      %1762 = vmatprep.subr.bf16.mxu0 0
      %1763 = vmatpush1.bf16.msra.mxu0 0
      %1764 = vmatprep.subr.bf16.mxu0 0
      %1765 = vmatpush1.bf16.msra.mxu0 0
      %1766 = vmatprep.subr.bf16.mxu0 0
      %1767 = vmatpush1.bf16.msra.mxu0 0
      %1768 = vmatprep.subr.bf16.mxu0 0
      %1769 = vmatpush1.bf16.msra.mxu0 0
      %1770 = vmatprep.subr.bf16.mxu0 0
      %1771 = vmatpush1.bf16.msra.mxu0 0
      %1772 = vmatprep.subr.bf16.mxu0 0
      %1773 = vmatpush1.bf16.msra.mxu0 %v1756
      %1774 = vmatprep.subr.bf16.mxu0 0
      %1775 = vmatpush2.bf16.msra.mxu0 0
      %1776 = vmatprep.subr.bf16.mxu0 0
      %1777 = vmatpush2.bf16.msra.mxu0 0
      %1778 = vmatprep.subr.bf16.mxu0 0
      %1779 = vmatpush2.bf16.msra.mxu0 0
      %1780 = vmatprep.subr.bf16.mxu0 0
      %1781 = vmatpush2.bf16.msra.mxu0 0
      %1782 = vmatprep.subr.bf16.mxu0 0
      %1783 = vmatpush2.bf16.msra.mxu0 0
      %1784 = vmatprep.subr.bf16.mxu0 0
      %1785 = vmatpush2.bf16.msra.mxu0 0
      %1786 = vmatprep.subr.bf16.mxu0 0
      %1787 = vmatpush2.bf16.msra.mxu0 0
      %1788 = vmatprep.subr.bf16.mxu0 0
      %1789 = vmatpush2.bf16.msra.mxu0 0
      %1790 = vmatprep.mubr.bf16.mxu0 0
      %1791 = vmatmul.mubr.bf16.gmra.mxu0 %v1753
      %v1792 = vpop.f32.mrf.mxu0
      %v1793 = vadd.f32 0.0, %v1792
      %v1794 = vpop.f32.mrf.mxu0
      %v1795 = vpop.f32.mrf.mxu0
      %v1796 = vpop.f32.mrf.mxu0
      %1797 = vdwg.mxu0
      %v1798 = vld [vmem:[#allocation7] sm:$0xff]
      %v1799 = vld [vmem:[#allocation7 + $0x8] sm:$0xff]
      %v1800 = vld [vmem:[#allocation7 + $0x10] sm:$0xff]
      %v1801 = vld [vmem:[#allocation7 + $0x18] sm:$0xff]
      %1803 = vset.pattern.permute.xlu0 0
      %1804 = vperm.xlu0 %1803, %v1537
      %v1805 = vpop.permute.xlu0 %1804
      %1808 = vset.pattern.permute.xlu0 0
      %1809 = vperm.xlu0 %1808, %v1539
      %v1810 = vpop.permute.xlu0 %1809
      %1813 = vset.pattern.permute.xlu0 0
      %1814 = vperm.xlu0 %1813, %v1541
      %v1815 = vpop.permute.xlu0 %1814
      %1818 = vset.pattern.permute.xlu0 0
      %1819 = vperm.xlu0 %1818, %v1543
      %v1820 = vpop.permute.xlu0 %1819
      %v1822 = vmul.f32 %v1805, %v1798
      %v1823 = vmul.f32 %v1810, %v1799
      %v1824 = vmul.f32 %v1815, %v1800
      %v1825 = vmul.f32 %v1820, %v1801
      %v1826 = vadd.f32 %v1822, %v1655
      %v1827 = vadd.f32 %v1823, %v1701
      %v1828 = vadd.f32 %v1824, %v1747
      %v1829 = vadd.f32 %v1825, %v1793
      %1830 = vst.msk [vmem:[#allocation7] sm:$0xff] %vm1327, %v1826
      %1831 = vst.msk [vmem:[#allocation7 + $0x8] sm:$0xff] %vm1327, %v1827
      %1832 = vst.msk [vmem:[#allocation7 + $0x10] sm:$0xff] %vm1327, %v1828
      %1833 = vst.msk [vmem:[#allocation7 + $0x18] sm:$0xff] %vm1327, %v1829
      %1834 = vst.msk [vmem:[#allocation5] sm:$0xff] %vm1600, %v1528
      %1835 = vst.msk [vmem:[#allocation5 + $0x8] sm:$0xff] %vm1600, %v1529
      %1836 = vst.msk [vmem:[#allocation5 + $0x10] sm:$0xff] %vm1600, %v1530
      %1837 = vst.msk [vmem:[#allocation5 + $0x18] sm:$0xff] %vm1600, %v1531
      // Predicated region
      $region73: #{cross_attention_forward.3} parent=67 // pred_check
        %p1838 = pneg %p476
      $region74: #{cross_attention_forward.3} parent=67 // pred_check_branch
        %1840 = sbr.rel (%p1838) target = $region76
      $region75: #{cross_attention_forward.3} parent=67 // pred_region
        %v1841 = vld [vmem:[#allocation6] sm:$0xff]
        %v1842 = vld [vmem:[#allocation6 + $0x8] sm:$0xff]
        %v1843 = vld [vmem:[#allocation6 + $0x10] sm:$0xff]
        %v1844 = vld [vmem:[#allocation6 + $0x18] sm:$0xff]
        %v1845 = vrcp.pop %v1841
        %v1846 = vrcp.pop %v1842
        %v1847 = vrcp.pop %v1843
        %v1848 = vrcp.pop %v1844
        %v1849 = vld [vmem:[#allocation7] sm:$0xff]
        %1851 = vset.pattern.permute.xlu0 0
        %1852 = vperm.xlu0 %1851, %v1845
        %v1853 = vpop.permute.xlu0 %1852
        %v1855 = vmul.f32 %v1849, %v1853
        %v1856 = vpack.c.bf16 %v1855, %v1855
        %1857 = vst.msk [vmem:[#allocation8] sm:$0xf] %vm844, %v1856
        %s1858 = scalar_lea.vmem [#allocation7], 8
        %v1859 = vld [vmem:[%s1858] sm:$0xff]
        %1861 = vset.pattern.permute.xlu0 0
        %1862 = vperm.xlu0 %1861, %v1846
        %v1863 = vpop.permute.xlu0 %1862
        %v1865 = vmul.f32 %v1859, %v1863
        %v1866 = vpack.c.bf16 %v1865, %v1865
        %v1868 = vunpack.c.l.b16 %v1866
        %v1869 = vpack.c.b16 %v1868, %v1868
        %1870 = vrot.lane.b32.xlu0 %v1869, 8
        %v1871 = vpop.permute.xlu0 %1870
        %vm1873 = vcmask 126016
        %1874 = vst.msk [vmem:[#allocation8] sm:$0xf] %vm1873, %v1871
        %s1875 = scalar_lea.vmem [#allocation7], 16
        %v1876 = vld [vmem:[%s1875] sm:$0xff]
        %1878 = vset.pattern.permute.xlu0 0
        %1879 = vperm.xlu0 %1878, %v1847
        %v1880 = vpop.permute.xlu0 %1879
        %v1882 = vmul.f32 %v1876, %v1880
        %v1883 = vpack.c.bf16 %v1882, %v1882
        %v1885 = vunpack.c.l.b16 %v1883
        %v1886 = vpack.c.b16 %v1885, %v1885
        %1887 = vrot.lane.b32.xlu0 %v1886, 16
        %v1888 = vpop.permute.xlu0 %1887
        %vm1890 = vcmask 191616
        %1891 = vst.msk [vmem:[#allocation8] sm:$0xf] %vm1890, %v1888
        %s1892 = scalar_lea.vmem [#allocation7], 24
        %v1893 = vld [vmem:[%s1892] sm:$0xff]
        %1895 = vset.pattern.permute.xlu0 0
        %1896 = vperm.xlu0 %1895, %v1848
        %v1897 = vpop.permute.xlu0 %1896
        %v1899 = vmul.f32 %v1893, %v1897
        %v1900 = vpack.c.bf16 %v1899, %v1899
        %v1902 = vunpack.c.l.b16 %v1900
        %v1903 = vpack.c.b16 %v1902, %v1902
        %1904 = vrot.lane.b32.xlu0 %v1903, 24
        %v1905 = vpop.permute.xlu0 %1904
        %vm1907 = vcmask 257216
        %1908 = vst.msk [vmem:[#allocation8] sm:$0xf] %vm1907, %v1905
        %v1909 = vld [vmem:[#allocation8] sm:$0xf]
        %v1910 = vld [vmem:[%s8] sm:$0xf]
        %v1911 = vld [vmem:[%s8 + $0x4] sm:$0xf]
        %v1912 = vld [vmem:[%s8 + $0x8] sm:$0xf]
        %v1913 = vld [vmem:[%s8 + $0xc] sm:$0xf]
        %v1914 = vld [vmem:[%s9] sm:$0x1]
        %v1916 = vlaneseq
        %v1917 = vshrl.u32 %v1916, 7
        %v1918 = vsub.s32 0, %v1917
        %v1919 = vrot.slane %v1914, %v1918
        %v1925 = vunpack.c.l.b16 %v1910
        %v1926 = vunpack.c.l.b16 %v1911
        %v1927 = vunpack.c.l.b16 %v1912
        %v1928 = vunpack.c.l.b16 %v1913
        %v1929 = vpack.c.b16 %v1926, %v1925
        %v1930 = vpack.c.b16 %v1928, %v1927
        %v1934 = vsel %vm799, %v1909, 0
        %1936 = vmatprep.subr.bf16.mxu0 0
        %1937 = vmatpush1.bf16.msra.mxu0 0
        %1938 = vmatprep.subr.bf16.mxu0 0
        %1939 = vmatpush1.bf16.msra.mxu0 0
        %1940 = vmatprep.subr.bf16.mxu0 0
        %1941 = vmatpush1.bf16.msra.mxu0 0
        %1942 = vmatprep.subr.bf16.mxu0 0
        %1943 = vmatpush1.bf16.msra.mxu0 0
        %1944 = vmatprep.subr.bf16.mxu0 0
        %1945 = vmatpush1.bf16.msra.mxu0 0
        %1946 = vmatprep.subr.bf16.mxu0 0
        %1947 = vmatpush1.bf16.msra.mxu0 0
        %1948 = vmatprep.subr.bf16.mxu0 0
        %1949 = vmatpush1.bf16.msra.mxu0 %v1930
        %1950 = vmatprep.subr.bf16.mxu0 0
        %1951 = vmatpush1.bf16.msra.mxu0 %v1929
        %1952 = vmatprep.subr.bf16.mxu0 0
        %1953 = vmatpush2.bf16.msra.mxu0 0
        %1954 = vmatprep.subr.bf16.mxu0 0
        %1955 = vmatpush2.bf16.msra.mxu0 0
        %1956 = vmatprep.subr.bf16.mxu0 0
        %1957 = vmatpush2.bf16.msra.mxu0 0
        %1958 = vmatprep.subr.bf16.mxu0 0
        %1959 = vmatpush2.bf16.msra.mxu0 0
        %1960 = vmatprep.subr.bf16.mxu0 0
        %1961 = vmatpush2.bf16.msra.mxu0 0
        %1962 = vmatprep.subr.bf16.mxu0 0
        %1963 = vmatpush2.bf16.msra.mxu0 0
        %1964 = vmatprep.subr.bf16.mxu0 0
        %1965 = vmatpush2.bf16.msra.mxu0 0
        %1966 = vmatprep.subr.bf16.mxu0 0
        %1967 = vmatpush2.bf16.msra.mxu0 0
        %1968 = vmatprep.mubr.bf16.mxu0 0
        %1969 = vmatmul.mubr.bf16.gmra.mxu0 %v1934
        %v1970 = vpop.f32.mrf.mxu0
        %v1971 = vadd.f32 %v1919, %v1970
        %v1972 = vpop.f32.mrf.mxu0
        %v1973 = vpop.f32.mrf.mxu0
        %v1974 = vpop.f32.mrf.mxu0
        %1975 = vdwg.mxu0
        %v1976 = vld [vmem:[%s460] sm:$0xff]
        %v1977 = vadd.f32 %v1976, %v1971
        %v1978 = vld [vmem:[%s10] sm:$0x1]
        %v1979 = vld [vmem:[%s11] sm:$0x1]
        %v1980 = vsel %vm799, %v1977, 0.0
        %1981 = vadd.xlane.f32.xlu0 %v1980
        %v1982 = vpop.xlane.xlu0 %1981
        %v1983 = vrcp.pop 32.0
        %v1984 = vmul.f32 %v1982, %v1983
        %v1985 = vsub.f32 %v1977, %v1984
        %v1986 = vmul.f32 %v1985, %v1985
        %v1987 = vsel %vm799, %v1986, 0.0
        %1988 = vadd.xlane.f32.xlu0 %v1987
        %v1989 = vpop.xlane.xlu0 %1988
        %v1990 = vmul.f32 %v1989, %v1983
        %v1991 = vadd.f32 %v1990, 1e-05
        %v1992 = vrsqrt.pop %v1991
        %v1993 = vmul.f32 %v1985, %v1992
        %v1995 = vlaneseq
        %v1996 = vshrl.u32 %v1995, 7
        %v1997 = vsub.s32 0, %v1996
        %v1998 = vrot.slane %v1978, %v1997
        %v2000 = vmul.f32 %v1993, %v1998
        %v2002 = vlaneseq
        %v2003 = vshrl.u32 %v2002, 7
        %v2004 = vsub.s32 0, %v2003
        %v2005 = vrot.slane %v1979, %v2004
        %v2007 = vadd.f32 %v2000, %v2005
        %v2008 = vpack.c.bf16 %v2007, %v2007
        %vm2009 = vcmask 257024
        %2010 = vst.msk [vmem:[%s474] sm:$0xf] %vm2009, %v2008
      $region76: #{cross_attention_forward.3} parent=67 // pred_fallthru
        _
      %p2011 = scmp.lt.s32.totalorder %s28, 1
      %s2012 = scalar_select %p2011, %s28, 1
      %p2013 = scmp.lt.s32.totalorder %s29, 0
      %s2014 = scalar_select %p2013, %s29, 0
      %s2015 = sadd.s32 %s2014, %s2012
      %s2016 = smul.addr %s2015, 4
      %s2017 = scalar_lea.vmem %s12, %s2016
      // Predicated region
      $region77: #{cross_attention_forward.3} parent=67 // pred_check
        %p2018 = pneg %p328
      $region78: #{cross_attention_forward.3} parent=67 // pred_check_branch
        %2020 = sbr.rel (%p2018) target = $region80
      $region79: #{cross_attention_forward.3} parent=67 // pred_region
        _
      $region80: #{cross_attention_forward.3} parent=67 // pred_fallthru
        _
    $region68: #{cross_attention_forward.3} parent=5 // pred_fallthru
      _
    %p2021 = scmp.le.s32.totalorder 2, %s18
    // Predicated region
    $region81: #{cross_attention_forward.3} parent=5 // pred_check
      %p2022 = pneg %p2021
    $region82: #{cross_attention_forward.3} parent=5 // pred_check_branch
      %2024 = sbr.rel (%p2022) target = $region84
    $region83: #{cross_attention_forward.3} parent=5 // pred_region
      %s2025 = ssub.s32 %s18, 2
      // Predicated region
      $region85: #{cross_attention_forward.3} parent=83 // pred_check
        %p2026 = pneg %p334
      $region86: #{cross_attention_forward.3} parent=83 // pred_check_branch
        %2028 = sbr.rel (%p2026) target = $region88
      $region87: #{cross_attention_forward.3} parent=83 // pred_region
        %p2029 = scmp.lt.s32.totalorder %s31, 1
        %s2030 = scalar_select %p2029, %s31, 1
        %p2031 = scmp.lt.s32.totalorder %s32, 0
        %s2032 = scalar_select %p2031, %s32, 0
        %s2033 = sadd.s32 %s2032, %s2030
        %s2034 = smul.addr %s2033, 4
        %s2035 = scalar_lea.vmem %s12, %s2034
      $region88: #{cross_attention_forward.3} parent=83 // pred_fallthru
        _
    $region84: #{cross_attention_forward.3} parent=5 // pred_fallthru
      _
  $region6: #{cross_attention_forward.3} parent=0 // loop_footer
    %s22 = sadd.s32 1, %s18
  $region7: #{cross_attention_forward.3} parent=0 // loop_footer_branch
    %17 = sbr.rel target = $region3
  $region8: #{cross_attention_forward.3} parent=0 // loop_exit
    _

</llo_original>
